<compile_context>
chip_gen: v7x
topology: tpu7x:2x2x1
jax: 0.10.0
libtpu: 0.0.40
codegen_flags: <defaults>
</compile_context>

<pallas_src>
import functools
import math

import jax
import jax.numpy as jnp
from jax.experimental import pallas as pl
from jax.experimental.pallas import tpu as pltpu

LANE = 128


def _round_up(x, m):
    return (x + m - 1) // m * m


# --------------- fused conv3x3 + bias + ReLU (+ 2x2 maxpool) -----------------

def _conv_relu_pool(x_ref, w_ref, b_ref, xp_ref, *, pool):
    """Shared body. Returns f32 (Bn, Ho, Wo, Cout)."""
    Bn, H, W, Cin = x_ref.shape
    Cout = w_ref.shape[-1]

    # Build the spatially padded tile in VMEM (no jnp.pad HBM round trip).
    # The border is never touched by the interior store, so zero it only once.
    @pl.when(pl.program_id(0) == 0)
    def _():
        xp_ref[...] = jnp.zeros_like(xp_ref)
    xp_ref[:, 1:H + 1, 1:W + 1, :] = x_ref[...]
    xp = xp_ref[...]                                    # (Bn, H+2, W+2, Cin) bf16

    # Partial im2col along dx: 3 matmuls with K = 3*Cin (lane-aligned concat)
    # instead of 9 with K = Cin.  Column order (dx, cin) matches
    # w.reshape(3, 3*Cin, Cout).
    acc = None
    for dy in range(3):
        slab = xp[:, dy:dy + H, :, :]                   # (Bn, H, W+2, Cin)
        patch = jnp.concatenate(
            [slab[:, :, dx:dx + W, :] for dx in range(3)], axis=-1)
        d = jnp.dot(patch.reshape(Bn * H * W, 3 * Cin), w_ref[dy],
                    preferred_element_type=jnp.float32)
        acc = d if acc is None else acc + d             # unrolled accumulate chain

    acc = jnp.maximum(acc + b_ref[...], 0.0)            # f32 bias + ReLU epilogue
    if pool:                                            # fused 2x2 / stride-2 max pool
        y = acc.reshape(Bn, H // 2, 2, W // 2, 2, Cout)
        return jnp.maximum(jnp.maximum(y[:, :, 0, :, 0, :], y[:, :, 0, :, 1, :]),
                           jnp.maximum(y[:, :, 1, :, 0, :], y[:, :, 1, :, 1, :]))
    return acc.reshape(Bn, H, W, Cout)


def _conv_kernel(x_ref, w_ref, b_ref, o_ref, xp_ref, *, pool):
    y = _conv_relu_pool(x_ref, w_ref, b_ref, xp_ref, pool=pool)
    o_ref[...] = y.astype(o_ref.dtype)


def _conv_linear_kernel(x_ref, w_ref, b_ref, wc_ref, bc_ref, o_ref, xp_ref, *, pool):
    # Last block: conv (+pool) leaves a 1x1 spatial map, so the pooled channels
    # are exactly the flattened feature -> fuse the classifier matmul here.
    y = _conv_relu_pool(x_ref, w_ref, b_ref, xp_ref, pool=pool)   # (Bn, 1, 1, Cout) f32
    feat = y.reshape(y.shape[0], y.shape[-1]).astype(jnp.bfloat16)
    o_ref[...] = (jnp.dot(feat, wc_ref[...], preferred_element_type=jnp.float32)
                  + bc_ref[...])


def conv_block(x, w, b, *, pool, classifier=None):
    """Fused VGG feature block (+ optional fused classifier).

    x: (N, H, W, Cin) bf16, Cin multiple of 128.
    w: (3, 3, Cin, Cout) bf16, Cout multiple of 128.   b: (Cout,) f32.
    classifier=(wc, bc): wc (Cout, Ncp) bf16, bc (Ncp,) f32; requires the
    pooled spatial map to be 1x1.  Returns logits (N, Ncp) f32 in that case,
    otherwise the activation (N, Ho, Wo, Cout) bf16.
    """
    N, H, W, Cin = x.shape
    Cout = w.shape[-1]
    assert Cin % LANE == 0 and Cout % LANE == 0
    if pool:
        assert H % 2 == 0 and W % 2 == 0
        Ho, Wo = H // 2, W // 2
    else:
        Ho, Wo = H, W

    # Batch images into the matmul M dimension.
    Bn = min(N, 8)
    Npad = _round_up(N, Bn)
    if Npad != N:
        x = jnp.pad(x, ((0, Npad - N), (0, 0), (0, 0), (0, 0)))
    grid = (Npad // Bn,)

    wt = w.reshape(3, 3 * Cin, Cout)                    # rows ordered (dx, cin)
    b2 = b.reshape(1, Cout).astype(jnp.float32)

    x_spec = pl.BlockSpec((Bn, H, W, Cin), lambda n: (n, 0, 0, 0))
    w_spec = pl.BlockSpec((3, 3 * Cin, Cout), lambda n: (0, 0, 0))
    b_spec = pl.BlockSpec((1, Cout), lambda n: (0, 0))
    scratch = [pltpu.VMEM((Bn, H + 2, W + 2, Cin), jnp.bfloat16)]

    conv_flops = 2 * Npad * H * W * 9 * Cin * Cout
    base_bytes = x.size * 2 + wt.size * 2 + b2.size * 4

    if classifier is None:
        out = pl.pallas_call(
            functools.partial(_conv_kernel, pool=pool),
            grid=grid,
            in_specs=[x_spec, w_spec, b_spec],
            out_specs=pl.BlockSpec((Bn, Ho, Wo, Cout), lambda n: (n, 0, 0, 0)),
            out_shape=jax.ShapeDtypeStruct((Npad, Ho, Wo, Cout), jnp.bfloat16),
            scratch_shapes=scratch,
            compiler_params=pltpu.CompilerParams(dimension_semantics=("parallel",)),
            cost_estimate=pl.CostEstimate(
                flops=conv_flops, transcendentals=0,
                bytes_accessed=base_bytes + Npad * Ho * Wo * Cout * 2),
        )(x, wt, b2)
        return out[:N]

    wc, bc = classifier
    K, Ncp = wc.shape
    assert Ho == 1 and Wo == 1 and K == Cout
    bc2 = bc.reshape(1, Ncp).astype(jnp.float32)
    out = pl.pallas_call(
        functools.partial(_conv_linear_kernel, pool=pool),
        grid=grid,
        in_specs=[x_spec, w_spec, b_spec,
                  pl.BlockSpec((K, Ncp), lambda n: (0, 0)),
                  pl.BlockSpec((1, Ncp), lambda n: (0, 0))],
        out_specs=pl.BlockSpec((Bn, Ncp), lambda n: (n, 0)),
        out_shape=jax.ShapeDtypeStruct((Npad, Ncp), jnp.float32),
        scratch_shapes=scratch,
        compiler_params=pltpu.CompilerParams(dimension_semantics=("parallel",)),
        cost_estimate=pl.CostEstimate(
            flops=conv_flops + 2 * Npad * K * Ncp, transcendentals=0,
            bytes_accessed=base_bytes + wc.size * 2 + bc2.size * 4 + Npad * Ncp * 4),
    )(x, wt, b2, wc, bc2)
    return out[:N]


# ------------------------------- VGG parameters --------------------------------

def init_params(key, cfg, in_channels=3, num_classes=10):
    """Deterministic init mirroring VGG._initialize_weights.

    All channel dims are zero-padded to multiples of 128 (lane-dense); the zero
    channels/weights propagate exactly through conv/bias/ReLU/pool/linear, so
    results match the unpadded network.  Each conv is paired with a following
    'M' into one fused block descriptor.
    """
    blocks = []
    c_true = in_channels
    c_pad = _round_up(in_channels, LANE)
    in_pad = c_pad
    i = 0
    while i < len(cfg):
        v = cfg[i]
        assert v != 'M', "each 'M' in cfg must directly follow a conv layer"
        vp = _round_up(v, LANE)
        key, k1 = jax.random.split(key)
        n = 3 * 3 * v                                   # kh * kw * out_channels
        w = jax.random.normal(k1, (3, 3, c_true, v), jnp.float32) * math.sqrt(2.0 / n)
        wpad = jnp.zeros((3, 3, c_pad, vp), jnp.float32).at[:, :, :c_true, :v].set(w)
        bpad = jnp.zeros((vp,), jnp.float32)
        pool = (i + 1 < len(cfg) and cfg[i + 1] == 'M')
        blocks.append({"w": wpad.astype(jnp.bfloat16), "b": bpad, "pool": pool})
        c_true, c_pad = v, vp
        i += 2 if pool else 1

    # Classifier: Linear(512, num_classes), weights N(0, 0.01), zero bias.
    key, k1 = jax.random.split(key)
    ncp = _round_up(num_classes, LANE)
    wc = jax.random.normal(k1, (c_true, num_classes), jnp.float32) * 0.01
    wcp = jnp.zeros((c_pad, ncp), jnp.float32).at[:c_true, :num_classes].set(wc)
    bcp = jnp.zeros((ncp,), jnp.float32)
    return {"in_channels_pad": in_pad,
            "blocks": blocks,
            "classifier": (wcp.astype(jnp.bfloat16), bcp, num_classes)}


def vgg_forward(params, x_nchw):
    x = jnp.transpose(x_nchw, (0, 2, 3, 1)).astype(jnp.bfloat16)   # NCHW -> NHWC, bf16
    x = jnp.pad(x, ((0, 0), (0, 0), (0, 0),
                    (0, params["in_channels_pad"] - x.shape[-1])))  # one-time tiny pad
    wc, bc, num_classes = params["classifier"]
    blocks = params["blocks"]
    logits = None
    for li, blk in enumerate(blocks):
        H, W = x.shape[1], x.shape[2]
        pool = blk["pool"]
        Ho, Wo = (H // 2, W // 2) if pool else (H, W)
        if li == len(blocks) - 1:
            # Linear(512, num_classes) spec => flattened feature == 512 => 1x1 map.
            assert Ho == 1 and Wo == 1, "final feature map must be 1x1"
            # TODO(synk): support non-1x1 final spatial (NCHW flatten + separate linear kernel).
            logits = conv_block(x, blk["w"], blk["b"], pool=pool, classifier=(wc, bc))
        else:
            x = conv_block(x, blk["w"], blk["b"], pool=pool)
    return logits[:, :num_classes]


# ------------------------------------ main -------------------------------------

if __name__ == "__main__":
    # Small VGG-style feature config ending at 512 channels and 1x1 spatial,
    # so the classifier is Linear(512, num_classes) exactly as in the module.
    cfg = [32, 'M', 64, 'M', 512, 'M']
    num_classes = 10

    key = jax.random.PRNGKey(0)
    kx, kp = jax.random.split(key)
    x = jax.random.normal(kx, (2, 3, 8, 8), jnp.float32)   # NCHW, like the PyTorch input
    params = init_params(kp, cfg, in_channels=3, num_classes=num_classes)

    fwd = jax.jit(functools.partial(vgg_forward, params))
    out = fwd(x)
    jax.block_until_ready(out)
    assert out.shape == (2, num_classes) and out.dtype == jnp.float32
    print("KERNEL_OK")
</pallas_src>

<mosaic_0001>
module attributes {stable_mosaic.version = 11 : i64} {
  func.func @_conv_kernel(%arg0: i32, %arg1: memref<2x4x4x128xbf16, #tpu.memory_space<vmem>>, %arg2: memref<3x384x128xbf16, #tpu.memory_space<vmem>>, %arg3: memref<1x128xf32, #tpu.memory_space<vmem>>, %arg4: memref<2x2x2x128xbf16, #tpu.memory_space<vmem>>, %arg5: memref<2x6x6x128xbf16, #tpu.memory_space<vmem>>) attributes {dimension_semantics = [#tpu.dimension_semantics<parallel>], iteration_bounds = array<i64: 1>, scalar_prefetch = 0 : i64, scratch_operands = 1 : i64, tpu.core_type = #tpu.core_type<tc>, window_params = [{transform_indices = @transform_0, window_bounds = array<i64: 2, 4, 4, 128>}, {pipeline_mode = #tpu.pipeline_mode<synchronous>, transform_indices = @transform_1, window_bounds = array<i64: 3, 384, 128>}, {pipeline_mode = #tpu.pipeline_mode<synchronous>, transform_indices = @transform_2, window_bounds = array<i64: 1, 128>}, {transform_indices = @transform_3, window_bounds = array<i64: 2, 2, 2, 128>}]} {
    %c0_i32 = arith.constant 0 : i32
    %0 = arith.cmpi eq, %arg0, %c0_i32 : i32
    %1 = arith.extui %0 : i1 to i32
    %c0_i32_0 = arith.constant 0 : i32
    %2 = arith.cmpi ne, %1, %c0_i32_0 : i32
    scf.if %2 {
      %cst_28 = arith.constant 0.000000e+00 : bf16
      %54 = vector.broadcast %cst_28 : bf16 to vector<2x6x6x128xbf16>
      %c0_29 = arith.constant 0 : index
      %c0_30 = arith.constant 0 : index
      %c0_31 = arith.constant 0 : index
      %c0_32 = arith.constant 0 : index
      %55 = vector.load %arg5[%c0_29, %c0_30, %c0_31, %c0_32] : memref<2x6x6x128xbf16, #tpu.memory_space<vmem>>, vector<2x6x6x128xbf16>
      tpu.vector_store %arg5[%c0_29, %c0_30, %c0_31, %c0_32], %54 {strides = array<i32>} : memref<2x6x6x128xbf16, #tpu.memory_space<vmem>>, vector<2x6x6x128xbf16>,
    } else {
    }
    %c0 = arith.constant 0 : index
    %c0_1 = arith.constant 0 : index
    %c0_2 = arith.constant 0 : index
    %c0_3 = arith.constant 0 : index
    %3 = vector.load %arg1[%c0, %c0_1, %c0_2, %c0_3] : memref<2x4x4x128xbf16, #tpu.memory_space<vmem>>, vector<2x4x4x128xbf16>
    %c0_4 = arith.constant 0 : index
    %c1 = arith.constant 1 : index
    %c1_5 = arith.constant 1 : index
    %c0_6 = arith.constant 0 : index
    %4 = vector.load %arg5[%c0_4, %c1, %c1_5, %c0_6] : memref<2x6x6x128xbf16, #tpu.memory_space<vmem>>, vector<2x4x4x128xbf16>
    tpu.vector_store %arg5[%c0_4, %c1, %c1_5, %c0_6], %3 {strides = array<i32>} : memref<2x6x6x128xbf16, #tpu.memory_space<vmem>>, vector<2x4x4x128xbf16>,
    %c0_7 = arith.constant 0 : index
    %c0_8 = arith.constant 0 : index
    %c0_9 = arith.constant 0 : index
    %c0_10 = arith.constant 0 : index
    %5 = vector.load %arg5[%c0_7, %c0_8, %c0_9, %c0_10] : memref<2x6x6x128xbf16, #tpu.memory_space<vmem>>, vector<2x6x6x128xbf16>
    %6 = vector.extract_strided_slice %5 {offsets = [0, 0, 0, 0], sizes = [2, 4, 6, 128], strides = [1, 1, 1, 1]} : vector<2x6x6x128xbf16> to vector<2x4x6x128xbf16>
    %7 = vector.extract_strided_slice %6 {offsets = [0, 0, 0, 0], sizes = [2, 4, 4, 128], strides = [1, 1, 1, 1]} : vector<2x4x6x128xbf16> to vector<2x4x4x128xbf16>
    %8 = vector.extract_strided_slice %6 {offsets = [0, 0, 1, 0], sizes = [2, 4, 4, 128], strides = [1, 1, 1, 1]} : vector<2x4x6x128xbf16> to vector<2x4x4x128xbf16>
    %9 = vector.extract_strided_slice %6 {offsets = [0, 0, 2, 0], sizes = [2, 4, 4, 128], strides = [1, 1, 1, 1]} : vector<2x4x6x128xbf16> to vector<2x4x4x128xbf16>
    %10 = tpu.concatenate %7, %8, %9 in 3 : vector<2x4x4x128xbf16>, vector<2x4x4x128xbf16>, vector<2x4x4x128xbf16> -> vector<2x4x4x384xbf16>
    %11 = vector.shape_cast %10 : vector<2x4x4x384xbf16> to vector<32x384xbf16>
    %c0_11 = arith.constant 0 : index
    %c0_12 = arith.constant 0 : index
    %c0_13 = arith.constant 0 : index
    %12 = vector.load %arg2[%c0_11, %c0_12, %c0_13] : memref<3x384x128xbf16, #tpu.memory_space<vmem>>, vector<1x384x128xbf16>
    %13 = vector.shape_cast %12 : vector<1x384x128xbf16> to vector<384x128xbf16>
    %cst = arith.constant dense<0.000000e+00> : vector<32x128xf32>
    %14 = tpu.matmul %11, %13, %cst {dimension_numbers = #tpu.dot_dimension_numbers<[1], [0], [0], [1], [0, 0, 1, 1], [], []>} : vector<32x384xbf16>, vector<384x128xbf16>, vector<32x128xf32> -> vector<32x128xf32>
    %15 = vector.extract_strided_slice %5 {offsets = [0, 1, 0, 0], sizes = [2, 4, 6, 128], strides = [1, 1, 1, 1]} : vector<2x6x6x128xbf16> to vector<2x4x6x128xbf16>
    %16 = vector.extract_strided_slice %15 {offsets = [0, 0, 0, 0], sizes = [2, 4, 4, 128], strides = [1, 1, 1, 1]} : vector<2x4x6x128xbf16> to vector<2x4x4x128xbf16>
    %17 = vector.extract_strided_slice %15 {offsets = [0, 0, 1, 0], sizes = [2, 4, 4, 128], strides = [1, 1, 1, 1]} : vector<2x4x6x128xbf16> to vector<2x4x4x128xbf16>
    %18 = vector.extract_strided_slice %15 {offsets = [0, 0, 2, 0], sizes = [2, 4, 4, 128], strides = [1, 1, 1, 1]} : vector<2x4x6x128xbf16> to vector<2x4x4x128xbf16>
    %19 = tpu.concatenate %16, %17, %18 in 3 : vector<2x4x4x128xbf16>, vector<2x4x4x128xbf16>, vector<2x4x4x128xbf16> -> vector<2x4x4x384xbf16>
    %20 = vector.shape_cast %19 : vector<2x4x4x384xbf16> to vector<32x384xbf16>
    %c1_14 = arith.constant 1 : index
    %c0_15 = arith.constant 0 : index
    %c0_16 = arith.constant 0 : index
    %21 = vector.load %arg2[%c1_14, %c0_15, %c0_16] : memref<3x384x128xbf16, #tpu.memory_space<vmem>>, vector<1x384x128xbf16>
    %22 = vector.shape_cast %21 : vector<1x384x128xbf16> to vector<384x128xbf16>
    %cst_17 = arith.constant dense<0.000000e+00> : vector<32x128xf32>
    %23 = tpu.matmul %20, %22, %cst_17 {dimension_numbers = #tpu.dot_dimension_numbers<[1], [0], [0], [1], [0, 0, 1, 1], [], []>} : vector<32x384xbf16>, vector<384x128xbf16>, vector<32x128xf32> -> vector<32x128xf32>
    %24 = arith.addf %14, %23 : vector<32x128xf32>
    %25 = vector.extract_strided_slice %5 {offsets = [0, 2, 0, 0], sizes = [2, 4, 6, 128], strides = [1, 1, 1, 1]} : vector<2x6x6x128xbf16> to vector<2x4x6x128xbf16>
    %26 = vector.extract_strided_slice %25 {offsets = [0, 0, 0, 0], sizes = [2, 4, 4, 128], strides = [1, 1, 1, 1]} : vector<2x4x6x128xbf16> to vector<2x4x4x128xbf16>
    %27 = vector.extract_strided_slice %25 {offsets = [0, 0, 1, 0], sizes = [2, 4, 4, 128], strides = [1, 1, 1, 1]} : vector<2x4x6x128xbf16> to vector<2x4x4x128xbf16>
    %28 = vector.extract_strided_slice %25 {offsets = [0, 0, 2, 0], sizes = [2, 4, 4, 128], strides = [1, 1, 1, 1]} : vector<2x4x6x128xbf16> to vector<2x4x4x128xbf16>
    %29 = tpu.concatenate %26, %27, %28 in 3 : vector<2x4x4x128xbf16>, vector<2x4x4x128xbf16>, vector<2x4x4x128xbf16> -> vector<2x4x4x384xbf16>
    %30 = vector.shape_cast %29 : vector<2x4x4x384xbf16> to vector<32x384xbf16>
    %c2 = arith.constant 2 : index
    %c0_18 = arith.constant 0 : index
    %c0_19 = arith.constant 0 : index
    %31 = vector.load %arg2[%c2, %c0_18, %c0_19] : memref<3x384x128xbf16, #tpu.memory_space<vmem>>, vector<1x384x128xbf16>
    %32 = vector.shape_cast %31 : vector<1x384x128xbf16> to vector<384x128xbf16>
    %cst_20 = arith.constant dense<0.000000e+00> : vector<32x128xf32>
    %33 = tpu.matmul %30, %32, %cst_20 {dimension_numbers = #tpu.dot_dimension_numbers<[1], [0], [0], [1], [0, 0, 1, 1], [], []>} : vector<32x384xbf16>, vector<384x128xbf16>, vector<32x128xf32> -> vector<32x128xf32>
    %34 = arith.addf %24, %33 : vector<32x128xf32>
    %c0_21 = arith.constant 0 : index
    %c0_22 = arith.constant 0 : index
    %35 = vector.load %arg3[%c0_21, %c0_22] : memref<1x128xf32, #tpu.memory_space<vmem>>, vector<1x128xf32>
    %36 = vector.broadcast %35 : vector<1x128xf32> to vector<32x128xf32>
    %37 = arith.addf %34, %36 : vector<32x128xf32>
    %cst_23 = arith.constant 0.000000e+00 : f32
    %38 = vector.broadcast %cst_23 : f32 to vector<32x128xf32>
    %39 = arith.maximumf %37, %38 : vector<32x128xf32>
    %40 = vector.shape_cast %39 : vector<32x128xf32> to vector<2x2x2x2x2x128xf32>
    %41 = vector.extract_strided_slice %40 {offsets = [0, 0, 0, 0, 0, 0], sizes = [2, 2, 1, 2, 1, 128], strides = [1, 1, 1, 1, 1, 1]} : vector<2x2x2x2x2x128xf32> to vector<2x2x1x2x1x128xf32>
    %42 = vector.shape_cast %41 : vector<2x2x1x2x1x128xf32> to vector<2x2x2x128xf32>
    %43 = vector.extract_strided_slice %40 {offsets = [0, 0, 0, 0, 1, 0], sizes = [2, 2, 1, 2, 1, 128], strides = [1, 1, 1, 1, 1, 1]} : vector<2x2x2x2x2x128xf32> to vector<2x2x1x2x1x128xf32>
    %44 = vector.shape_cast %43 : vector<2x2x1x2x1x128xf32> to vector<2x2x2x128xf32>
    %45 = arith.maximumf %42, %44 : vector<2x2x2x128xf32>
    %46 = vector.extract_strided_slice %40 {offsets = [0, 0, 1, 0, 0, 0], sizes = [2, 2, 1, 2, 1, 128], strides = [1, 1, 1, 1, 1, 1]} : vector<2x2x2x2x2x128xf32> to vector<2x2x1x2x1x128xf32>
    %47 = vector.shape_cast %46 : vector<2x2x1x2x1x128xf32> to vector<2x2x2x128xf32>
    %48 = vector.extract_strided_slice %40 {offsets = [0, 0, 1, 0, 1, 0], sizes = [2, 2, 1, 2, 1, 128], strides = [1, 1, 1, 1, 1, 1]} : vector<2x2x2x2x2x128xf32> to vector<2x2x1x2x1x128xf32>
    %49 = vector.shape_cast %48 : vector<2x2x1x2x1x128xf32> to vector<2x2x2x128xf32>
    %50 = arith.maximumf %47, %49 : vector<2x2x2x128xf32>
    %51 = arith.maximumf %45, %50 : vector<2x2x2x128xf32>
    %52 = arith.truncf %51 : vector<2x2x2x128xf32> to vector<2x2x2x128xbf16>
    %c0_24 = arith.constant 0 : index
    %c0_25 = arith.constant 0 : index
    %c0_26 = arith.constant 0 : index
    %c0_27 = arith.constant 0 : index
    %53 = vector.load %arg4[%c0_24, %c0_25, %c0_26, %c0_27] : memref<2x2x2x128xbf16, #tpu.memory_space<vmem>>, vector<2x2x2x128xbf16>
    tpu.vector_store %arg4[%c0_24, %c0_25, %c0_26, %c0_27], %52 {strides = array<i32>} : memref<2x2x2x128xbf16, #tpu.memory_space<vmem>>, vector<2x2x2x128xbf16>,
    return
  }
  func.func @transform_0(%arg0: i32) -> (i32, i32, i32, i32) {
    %c0_i32 = arith.constant 0 : i32
    %c0_i32_0 = arith.constant 0 : i32
    %c0_i32_1 = arith.constant 0 : i32
    %c0_i32_2 = arith.constant 0 : i32
    return %arg0, %c0_i32, %c0_i32_0, %c0_i32_1 : i32, i32, i32, i32
  }
  func.func @transform_1(%arg0: i32) -> (i32, i32, i32) {
    %c0_i32 = arith.constant 0 : i32
    %c0_i32_0 = arith.constant 0 : i32
    %c0_i32_1 = arith.constant 0 : i32
    %c0_i32_2 = arith.constant 0 : i32
    return %c0_i32, %c0_i32_0, %c0_i32_1 : i32, i32, i32
  }
  func.func @transform_2(%arg0: i32) -> (i32, i32) {
    %c0_i32 = arith.constant 0 : i32
    %c0_i32_0 = arith.constant 0 : i32
    %c0_i32_1 = arith.constant 0 : i32
    return %c0_i32, %c0_i32_0 : i32, i32
  }
  func.func @transform_3(%arg0: i32) -> (i32, i32, i32, i32) {
    %c0_i32 = arith.constant 0 : i32
    %c0_i32_0 = arith.constant 0 : i32
    %c0_i32_1 = arith.constant 0 : i32
    %c0_i32_2 = arith.constant 0 : i32
    return %arg0, %c0_i32, %c0_i32_0, %c0_i32_1 : i32, i32, i32, i32
  }
}

module attributes {stable_mosaic.version = 11 : i64} {
  func.func @_conv_kernel(%arg0: i32, %arg1: memref<2x8x8x128xbf16, #tpu.memory_space<vmem>>, %arg2: memref<3x384x128xbf16, #tpu.memory_space<vmem>>, %arg3: memref<1x128xf32, #tpu.memory_space<vmem>>, %arg4: memref<2x4x4x128xbf16, #tpu.memory_space<vmem>>, %arg5: memref<2x10x10x128xbf16, #tpu.memory_space<vmem>>) attributes {dimension_semantics = [#tpu.dimension_semantics<parallel>], iteration_bounds = array<i64: 1>, scalar_prefetch = 0 : i64, scratch_operands = 1 : i64, tpu.core_type = #tpu.core_type<tc>, window_params = [{transform_indices = @transform_0, window_bounds = array<i64: 2, 8, 8, 128>}, {pipeline_mode = #tpu.pipeline_mode<synchronous>, transform_indices = @transform_1, window_bounds = array<i64: 3, 384, 128>}, {pipeline_mode = #tpu.pipeline_mode<synchronous>, transform_indices = @transform_2, window_bounds = array<i64: 1, 128>}, {transform_indices = @transform_3, window_bounds = array<i64: 2, 4, 4, 128>}]} {
    %c0_i32 = arith.constant 0 : i32
    %0 = arith.cmpi eq, %arg0, %c0_i32 : i32
    %1 = arith.extui %0 : i1 to i32
    %c0_i32_0 = arith.constant 0 : i32
    %2 = arith.cmpi ne, %1, %c0_i32_0 : i32
    scf.if %2 {
      %cst_28 = arith.constant 0.000000e+00 : bf16
      %54 = vector.broadcast %cst_28 : bf16 to vector<2x10x10x128xbf16>
      %c0_29 = arith.constant 0 : index
      %c0_30 = arith.constant 0 : index
      %c0_31 = arith.constant 0 : index
      %c0_32 = arith.constant 0 : index
      %55 = vector.load %arg5[%c0_29, %c0_30, %c0_31, %c0_32] : memref<2x10x10x128xbf16, #tpu.memory_space<vmem>>, vector<2x10x10x128xbf16>
      tpu.vector_store %arg5[%c0_29, %c0_30, %c0_31, %c0_32], %54 {strides = array<i32>} : memref<2x10x10x128xbf16, #tpu.memory_space<vmem>>, vector<2x10x10x128xbf16>,
    } else {
    }
    %c0 = arith.constant 0 : index
    %c0_1 = arith.constant 0 : index
    %c0_2 = arith.constant 0 : index
    %c0_3 = arith.constant 0 : index
    %3 = vector.load %arg1[%c0, %c0_1, %c0_2, %c0_3] : memref<2x8x8x128xbf16, #tpu.memory_space<vmem>>, vector<2x8x8x128xbf16>
    %c0_4 = arith.constant 0 : index
    %c1 = arith.constant 1 : index
    %c1_5 = arith.constant 1 : index
    %c0_6 = arith.constant 0 : index
    %4 = vector.load %arg5[%c0_4, %c1, %c1_5, %c0_6] : memref<2x10x10x128xbf16, #tpu.memory_space<vmem>>, vector<2x8x8x128xbf16>
    tpu.vector_store %arg5[%c0_4, %c1, %c1_5, %c0_6], %3 {strides = array<i32>} : memref<2x10x10x128xbf16, #tpu.memory_space<vmem>>, vector<2x8x8x128xbf16>,
    %c0_7 = arith.constant 0 : index
    %c0_8 = arith.constant 0 : index
    %c0_9 = arith.constant 0 : index
    %c0_10 = arith.constant 0 : index
    %5 = vector.load %arg5[%c0_7, %c0_8, %c0_9, %c0_10] : memref<2x10x10x128xbf16, #tpu.memory_space<vmem>>, vector<2x10x10x128xbf16>
    %6 = vector.extract_strided_slice %5 {offsets = [0, 0, 0, 0], sizes = [2, 8, 10, 128], strides = [1, 1, 1, 1]} : vector<2x10x10x128xbf16> to vector<2x8x10x128xbf16>
    %7 = vector.extract_strided_slice %6 {offsets = [0, 0, 0, 0], sizes = [2, 8, 8, 128], strides = [1, 1, 1, 1]} : vector<2x8x10x128xbf16> to vector<2x8x8x128xbf16>
    %8 = vector.extract_strided_slice %6 {offsets = [0, 0, 1, 0], sizes = [2, 8, 8, 128], strides = [1, 1, 1, 1]} : vector<2x8x10x128xbf16> to vector<2x8x8x128xbf16>
    %9 = vector.extract_strided_slice %6 {offsets = [0, 0, 2, 0], sizes = [2, 8, 8, 128], strides = [1, 1, 1, 1]} : vector<2x8x10x128xbf16> to vector<2x8x8x128xbf16>
    %10 = tpu.concatenate %7, %8, %9 in 3 : vector<2x8x8x128xbf16>, vector<2x8x8x128xbf16>, vector<2x8x8x128xbf16> -> vector<2x8x8x384xbf16>
    %11 = vector.shape_cast %10 : vector<2x8x8x384xbf16> to vector<128x384xbf16>
    %c0_11 = arith.constant 0 : index
    %c0_12 = arith.constant 0 : index
    %c0_13 = arith.constant 0 : index
    %12 = vector.load %arg2[%c0_11, %c0_12, %c0_13] : memref<3x384x128xbf16, #tpu.memory_space<vmem>>, vector<1x384x128xbf16>
    %13 = vector.shape_cast %12 : vector<1x384x128xbf16> to vector<384x128xbf16>
    %cst = arith.constant dense<0.000000e+00> : vector<128x128xf32>
    %14 = tpu.matmul %11, %13, %cst {dimension_numbers = #tpu.dot_dimension_numbers<[1], [0], [0], [1], [0, 0, 1, 1], [], []>} : vector<128x384xbf16>, vector<384x128xbf16>, vector<128x128xf32> -> vector<128x128xf32>
    %15 = vector.extract_strided_slice %5 {offsets = [0, 1, 0, 0], sizes = [2, 8, 10, 128], strides = [1, 1, 1, 1]} : vector<2x10x10x128xbf16> to vector<2x8x10x128xbf16>
    %16 = vector.extract_strided_slice %15 {offsets = [0, 0, 0, 0], sizes = [2, 8, 8, 128], strides = [1, 1, 1, 1]} : vector<2x8x10x128xbf16> to vector<2x8x8x128xbf16>
    %17 = vector.extract_strided_slice %15 {offsets = [0, 0, 1, 0], sizes = [2, 8, 8, 128], strides = [1, 1, 1, 1]} : vector<2x8x10x128xbf16> to vector<2x8x8x128xbf16>
    %18 = vector.extract_strided_slice %15 {offsets = [0, 0, 2, 0], sizes = [2, 8, 8, 128], strides = [1, 1, 1, 1]} : vector<2x8x10x128xbf16> to vector<2x8x8x128xbf16>
    %19 = tpu.concatenate %16, %17, %18 in 3 : vector<2x8x8x128xbf16>, vector<2x8x8x128xbf16>, vector<2x8x8x128xbf16> -> vector<2x8x8x384xbf16>
    %20 = vector.shape_cast %19 : vector<2x8x8x384xbf16> to vector<128x384xbf16>
    %c1_14 = arith.constant 1 : index
    %c0_15 = arith.constant 0 : index
    %c0_16 = arith.constant 0 : index
    %21 = vector.load %arg2[%c1_14, %c0_15, %c0_16] : memref<3x384x128xbf16, #tpu.memory_space<vmem>>, vector<1x384x128xbf16>
    %22 = vector.shape_cast %21 : vector<1x384x128xbf16> to vector<384x128xbf16>
    %cst_17 = arith.constant dense<0.000000e+00> : vector<128x128xf32>
    %23 = tpu.matmul %20, %22, %cst_17 {dimension_numbers = #tpu.dot_dimension_numbers<[1], [0], [0], [1], [0, 0, 1, 1], [], []>} : vector<128x384xbf16>, vector<384x128xbf16>, vector<128x128xf32> -> vector<128x128xf32>
    %24 = arith.addf %14, %23 : vector<128x128xf32>
    %25 = vector.extract_strided_slice %5 {offsets = [0, 2, 0, 0], sizes = [2, 8, 10, 128], strides = [1, 1, 1, 1]} : vector<2x10x10x128xbf16> to vector<2x8x10x128xbf16>
    %26 = vector.extract_strided_slice %25 {offsets = [0, 0, 0, 0], sizes = [2, 8, 8, 128], strides = [1, 1, 1, 1]} : vector<2x8x10x128xbf16> to vector<2x8x8x128xbf16>
    %27 = vector.extract_strided_slice %25 {offsets = [0, 0, 1, 0], sizes = [2, 8, 8, 128], strides = [1, 1, 1, 1]} : vector<2x8x10x128xbf16> to vector<2x8x8x128xbf16>
    %28 = vector.extract_strided_slice %25 {offsets = [0, 0, 2, 0], sizes = [2, 8, 8, 128], strides = [1, 1, 1, 1]} : vector<2x8x10x128xbf16> to vector<2x8x8x128xbf16>
    %29 = tpu.concatenate %26, %27, %28 in 3 : vector<2x8x8x128xbf16>, vector<2x8x8x128xbf16>, vector<2x8x8x128xbf16> -> vector<2x8x8x384xbf16>
    %30 = vector.shape_cast %29 : vector<2x8x8x384xbf16> to vector<128x384xbf16>
    %c2 = arith.constant 2 : index
    %c0_18 = arith.constant 0 : index
    %c0_19 = arith.constant 0 : index
    %31 = vector.load %arg2[%c2, %c0_18, %c0_19] : memref<3x384x128xbf16, #tpu.memory_space<vmem>>, vector<1x384x128xbf16>
    %32 = vector.shape_cast %31 : vector<1x384x128xbf16> to vector<384x128xbf16>
    %cst_20 = arith.constant dense<0.000000e+00> : vector<128x128xf32>
    %33 = tpu.matmul %30, %32, %cst_20 {dimension_numbers = #tpu.dot_dimension_numbers<[1], [0], [0], [1], [0, 0, 1, 1], [], []>} : vector<128x384xbf16>, vector<384x128xbf16>, vector<128x128xf32> -> vector<128x128xf32>
    %34 = arith.addf %24, %33 : vector<128x128xf32>
    %c0_21 = arith.constant 0 : index
    %c0_22 = arith.constant 0 : index
    %35 = vector.load %arg3[%c0_21, %c0_22] : memref<1x128xf32, #tpu.memory_space<vmem>>, vector<1x128xf32>
    %36 = vector.broadcast %35 : vector<1x128xf32> to vector<128x128xf32>
    %37 = arith.addf %34, %36 : vector<128x128xf32>
    %cst_23 = arith.constant 0.000000e+00 : f32
    %38 = vector.broadcast %cst_23 : f32 to vector<128x128xf32>
    %39 = arith.maximumf %37, %38 : vector<128x128xf32>
    %40 = vector.shape_cast %39 : vector<128x128xf32> to vector<2x4x2x4x2x128xf32>
    %41 = vector.extract_strided_slice %40 {offsets = [0, 0, 0, 0, 0, 0], sizes = [2, 4, 1, 4, 1, 128], strides = [1, 1, 1, 1, 1, 1]} : vector<2x4x2x4x2x128xf32> to vector<2x4x1x4x1x128xf32>
    %42 = vector.shape_cast %41 : vector<2x4x1x4x1x128xf32> to vector<2x4x4x128xf32>
    %43 = vector.extract_strided_slice %40 {offsets = [0, 0, 0, 0, 1, 0], sizes = [2, 4, 1, 4, 1, 128], strides = [1, 1, 1, 1, 1, 1]} : vector<2x4x2x4x2x128xf32> to vector<2x4x1x4x1x128xf32>
    %44 = vector.shape_cast %43 : vector<2x4x1x4x1x128xf32> to vector<2x4x4x128xf32>
    %45 = arith.maximumf %42, %44 : vector<2x4x4x128xf32>
    %46 = vector.extract_strided_slice %40 {offsets = [0, 0, 1, 0, 0, 0], sizes = [2, 4, 1, 4, 1, 128], strides = [1, 1, 1, 1, 1, 1]} : vector<2x4x2x4x2x128xf32> to vector<2x4x1x4x1x128xf32>
    %47 = vector.shape_cast %46 : vector<2x4x1x4x1x128xf32> to vector<2x4x4x128xf32>
    %48 = vector.extract_strided_slice %40 {offsets = [0, 0, 1, 0, 1, 0], sizes = [2, 4, 1, 4, 1, 128], strides = [1, 1, 1, 1, 1, 1]} : vector<2x4x2x4x2x128xf32> to vector<2x4x1x4x1x128xf32>
    %49 = vector.shape_cast %48 : vector<2x4x1x4x1x128xf32> to vector<2x4x4x128xf32>
    %50 = arith.maximumf %47, %49 : vector<2x4x4x128xf32>
    %51 = arith.maximumf %45, %50 : vector<2x4x4x128xf32>
    %52 = arith.truncf %51 : vector<2x4x4x128xf32> to vector<2x4x4x128xbf16>
    %c0_24 = arith.constant 0 : index
    %c0_25 = arith.constant 0 : index
    %c0_26 = arith.constant 0 : index
    %c0_27 = arith.constant 0 : index
    %53 = vector.load %arg4[%c0_24, %c0_25, %c0_26, %c0_27] : memref<2x4x4x128xbf16, #tpu.memory_space<vmem>>, vector<2x4x4x128xbf16>
    tpu.vector_store %arg4[%c0_24, %c0_25, %c0_26, %c0_27], %52 {strides = array<i32>} : memref<2x4x4x128xbf16, #tpu.memory_space<vmem>>, vector<2x4x4x128xbf16>,
    return
  }
  func.func @transform_0(%arg0: i32) -> (i32, i32, i32, i32) {
    %c0_i32 = arith.constant 0 : i32
    %c0_i32_0 = arith.constant 0 : i32
    %c0_i32_1 = arith.constant 0 : i32
    %c0_i32_2 = arith.constant 0 : i32
    return %arg0, %c0_i32, %c0_i32_0, %c0_i32_1 : i32, i32, i32, i32
  }
  func.func @transform_1(%arg0: i32) -> (i32, i32, i32) {
    %c0_i32 = arith.constant 0 : i32
    %c0_i32_0 = arith.constant 0 : i32
    %c0_i32_1 = arith.constant 0 : i32
    %c0_i32_2 = arith.constant 0 : i32
    return %c0_i32, %c0_i32_0, %c0_i32_1 : i32, i32, i32
  }
  func.func @transform_2(%arg0: i32) -> (i32, i32) {
    %c0_i32 = arith.constant 0 : i32
    %c0_i32_0 = arith.constant 0 : i32
    %c0_i32_1 = arith.constant 0 : i32
    return %c0_i32, %c0_i32_0 : i32, i32
  }
  func.func @transform_3(%arg0: i32) -> (i32, i32, i32, i32) {
    %c0_i32 = arith.constant 0 : i32
    %c0_i32_0 = arith.constant 0 : i32
    %c0_i32_1 = arith.constant 0 : i32
    %c0_i32_2 = arith.constant 0 : i32
    return %arg0, %c0_i32, %c0_i32_0, %c0_i32_1 : i32, i32, i32, i32
  }
}

module attributes {stable_mosaic.version = 11 : i64} {
  func.func @_conv_linear_kernel(%arg0: i32, %arg1: memref<2x2x2x128xbf16, #tpu.memory_space<vmem>>, %arg2: memref<3x384x512xbf16, #tpu.memory_space<vmem>>, %arg3: memref<1x512xf32, #tpu.memory_space<vmem>>, %arg4: memref<512x128xbf16, #tpu.memory_space<vmem>>, %arg5: memref<1x128xf32, #tpu.memory_space<vmem>>, %arg6: memref<2x128xf32, #tpu.memory_space<vmem>>, %arg7: memref<2x4x4x128xbf16, #tpu.memory_space<vmem>>) attributes {dimension_semantics = [#tpu.dimension_semantics<parallel>], iteration_bounds = array<i64: 1>, scalar_prefetch = 0 : i64, scratch_operands = 1 : i64, tpu.core_type = #tpu.core_type<tc>, window_params = [{transform_indices = @transform_0, window_bounds = array<i64: 2, 2, 2, 128>}, {pipeline_mode = #tpu.pipeline_mode<synchronous>, transform_indices = @transform_1, window_bounds = array<i64: 3, 384, 512>}, {pipeline_mode = #tpu.pipeline_mode<synchronous>, transform_indices = @transform_2, window_bounds = array<i64: 1, 512>}, {pipeline_mode = #tpu.pipeline_mode<synchronous>, transform_indices = @transform_3, window_bounds = array<i64: 512, 128>}, {pipeline_mode = #tpu.pipeline_mode<synchronous>, transform_indices = @transform_4, window_bounds = array<i64: 1, 128>}, {transform_indices = @transform_5, window_bounds = array<i64: 2, 128>}]} {
    %c0_i32 = arith.constant 0 : i32
    %0 = arith.cmpi eq, %arg0, %c0_i32 : i32
    %1 = arith.extui %0 : i1 to i32
    %c0_i32_0 = arith.constant 0 : i32
    %2 = arith.cmpi ne, %1, %c0_i32_0 : i32
    scf.if %2 {
      %cst_31 = arith.constant 0.000000e+00 : bf16
      %60 = vector.broadcast %cst_31 : bf16 to vector<2x4x4x128xbf16>
      %c0_32 = arith.constant 0 : index
      %c0_33 = arith.constant 0 : index
      %c0_34 = arith.constant 0 : index
      %c0_35 = arith.constant 0 : index
      %61 = vector.load %arg7[%c0_32, %c0_33, %c0_34, %c0_35] : memref<2x4x4x128xbf16, #tpu.memory_space<vmem>>, vector<2x4x4x128xbf16>
      tpu.vector_store %arg7[%c0_32, %c0_33, %c0_34, %c0_35], %60 {strides = array<i32>} : memref<2x4x4x128xbf16, #tpu.memory_space<vmem>>, vector<2x4x4x128xbf16>,
    } else {
    }
    %c0 = arith.constant 0 : index
    %c0_1 = arith.constant 0 : index
    %c0_2 = arith.constant 0 : index
    %c0_3 = arith.constant 0 : index
    %3 = vector.load %arg1[%c0, %c0_1, %c0_2, %c0_3] : memref<2x2x2x128xbf16, #tpu.memory_space<vmem>>, vector<2x2x2x128xbf16>
    %c0_4 = arith.constant 0 : index
    %c1 = arith.constant 1 : index
    %c1_5 = arith.constant 1 : index
    %c0_6 = arith.constant 0 : index
    %4 = vector.load %arg7[%c0_4, %c1, %c1_5, %c0_6] : memref<2x4x4x128xbf16, #tpu.memory_space<vmem>>, vector<2x2x2x128xbf16>
    tpu.vector_store %arg7[%c0_4, %c1, %c1_5, %c0_6], %3 {strides = array<i32>} : memref<2x4x4x128xbf16, #tpu.memory_space<vmem>>, vector<2x2x2x128xbf16>,
    %c0_7 = arith.constant 0 : index
    %c0_8 = arith.constant 0 : index
    %c0_9 = arith.constant 0 : index
    %c0_10 = arith.constant 0 : index
    %5 = vector.load %arg7[%c0_7, %c0_8, %c0_9, %c0_10] : memref<2x4x4x128xbf16, #tpu.memory_space<vmem>>, vector<2x4x4x128xbf16>
    %6 = vector.extract_strided_slice %5 {offsets = [0, 0, 0, 0], sizes = [2, 2, 4, 128], strides = [1, 1, 1, 1]} : vector<2x4x4x128xbf16> to vector<2x2x4x128xbf16>
    %7 = vector.extract_strided_slice %6 {offsets = [0, 0, 0, 0], sizes = [2, 2, 2, 128], strides = [1, 1, 1, 1]} : vector<2x2x4x128xbf16> to vector<2x2x2x128xbf16>
    %8 = vector.extract_strided_slice %6 {offsets = [0, 0, 1, 0], sizes = [2, 2, 2, 128], strides = [1, 1, 1, 1]} : vector<2x2x4x128xbf16> to vector<2x2x2x128xbf16>
    %9 = vector.extract_strided_slice %6 {offsets = [0, 0, 2, 0], sizes = [2, 2, 2, 128], strides = [1, 1, 1, 1]} : vector<2x2x4x128xbf16> to vector<2x2x2x128xbf16>
    %10 = tpu.concatenate %7, %8, %9 in 3 : vector<2x2x2x128xbf16>, vector<2x2x2x128xbf16>, vector<2x2x2x128xbf16> -> vector<2x2x2x384xbf16>
    %11 = vector.shape_cast %10 : vector<2x2x2x384xbf16> to vector<8x384xbf16>
    %c0_11 = arith.constant 0 : index
    %c0_12 = arith.constant 0 : index
    %c0_13 = arith.constant 0 : index
    %12 = vector.load %arg2[%c0_11, %c0_12, %c0_13] : memref<3x384x512xbf16, #tpu.memory_space<vmem>>, vector<1x384x512xbf16>
    %13 = vector.shape_cast %12 : vector<1x384x512xbf16> to vector<384x512xbf16>
    %cst = arith.constant dense<0.000000e+00> : vector<8x512xf32>
    %14 = tpu.matmul %11, %13, %cst {dimension_numbers = #tpu.dot_dimension_numbers<[1], [0], [0], [1], [0, 0, 1, 1], [], []>} : vector<8x384xbf16>, vector<384x512xbf16>, vector<8x512xf32> -> vector<8x512xf32>
    %15 = vector.extract_strided_slice %5 {offsets = [0, 1, 0, 0], sizes = [2, 2, 4, 128], strides = [1, 1, 1, 1]} : vector<2x4x4x128xbf16> to vector<2x2x4x128xbf16>
    %16 = vector.extract_strided_slice %15 {offsets = [0, 0, 0, 0], sizes = [2, 2, 2, 128], strides = [1, 1, 1, 1]} : vector<2x2x4x128xbf16> to vector<2x2x2x128xbf16>
    %17 = vector.extract_strided_slice %15 {offsets = [0, 0, 1, 0], sizes = [2, 2, 2, 128], strides = [1, 1, 1, 1]} : vector<2x2x4x128xbf16> to vector<2x2x2x128xbf16>
    %18 = vector.extract_strided_slice %15 {offsets = [0, 0, 2, 0], sizes = [2, 2, 2, 128], strides = [1, 1, 1, 1]} : vector<2x2x4x128xbf16> to vector<2x2x2x128xbf16>
    %19 = tpu.concatenate %16, %17, %18 in 3 : vector<2x2x2x128xbf16>, vector<2x2x2x128xbf16>, vector<2x2x2x128xbf16> -> vector<2x2x2x384xbf16>
    %20 = vector.shape_cast %19 : vector<2x2x2x384xbf16> to vector<8x384xbf16>
    %c1_14 = arith.constant 1 : index
    %c0_15 = arith.constant 0 : index
    %c0_16 = arith.constant 0 : index
    %21 = vector.load %arg2[%c1_14, %c0_15, %c0_16] : memref<3x384x512xbf16, #tpu.memory_space<vmem>>, vector<1x384x512xbf16>
    %22 = vector.shape_cast %21 : vector<1x384x512xbf16> to vector<384x512xbf16>
    %cst_17 = arith.constant dense<0.000000e+00> : vector<8x512xf32>
    %23 = tpu.matmul %20, %22, %cst_17 {dimension_numbers = #tpu.dot_dimension_numbers<[1], [0], [0], [1], [0, 0, 1, 1], [], []>} : vector<8x384xbf16>, vector<384x512xbf16>, vector<8x512xf32> -> vector<8x512xf32>
    %24 = arith.addf %14, %23 : vector<8x512xf32>
    %25 = vector.extract_strided_slice %5 {offsets = [0, 2, 0, 0], sizes = [2, 2, 4, 128], strides = [1, 1, 1, 1]} : vector<2x4x4x128xbf16> to vector<2x2x4x128xbf16>
    %26 = vector.extract_strided_slice %25 {offsets = [0, 0, 0, 0], sizes = [2, 2, 2, 128], strides = [1, 1, 1, 1]} : vector<2x2x4x128xbf16> to vector<2x2x2x128xbf16>
    %27 = vector.extract_strided_slice %25 {offsets = [0, 0, 1, 0], sizes = [2, 2, 2, 128], strides = [1, 1, 1, 1]} : vector<2x2x4x128xbf16> to vector<2x2x2x128xbf16>
    %28 = vector.extract_strided_slice %25 {offsets = [0, 0, 2, 0], sizes = [2, 2, 2, 128], strides = [1, 1, 1, 1]} : vector<2x2x4x128xbf16> to vector<2x2x2x128xbf16>
    %29 = tpu.concatenate %26, %27, %28 in 3 : vector<2x2x2x128xbf16>, vector<2x2x2x128xbf16>, vector<2x2x2x128xbf16> -> vector<2x2x2x384xbf16>
    %30 = vector.shape_cast %29 : vector<2x2x2x384xbf16> to vector<8x384xbf16>
    %c2 = arith.constant 2 : index
    %c0_18 = arith.constant 0 : index
    %c0_19 = arith.constant 0 : index
    %31 = vector.load %arg2[%c2, %c0_18, %c0_19] : memref<3x384x512xbf16, #tpu.memory_space<vmem>>, vector<1x384x512xbf16>
    %32 = vector.shape_cast %31 : vector<1x384x512xbf16> to vector<384x512xbf16>
    %cst_20 = arith.constant dense<0.000000e+00> : vector<8x512xf32>
    %33 = tpu.matmul %30, %32, %cst_20 {dimension_numbers = #tpu.dot_dimension_numbers<[1], [0], [0], [1], [0, 0, 1, 1], [], []>} : vector<8x384xbf16>, vector<384x512xbf16>, vector<8x512xf32> -> vector<8x512xf32>
    %34 = arith.addf %24, %33 : vector<8x512xf32>
    %c0_21 = arith.constant 0 : index
    %c0_22 = arith.constant 0 : index
    %35 = vector.load %arg3[%c0_21, %c0_22] : memref<1x512xf32, #tpu.memory_space<vmem>>, vector<1x512xf32>
    %36 = vector.broadcast %35 : vector<1x512xf32> to vector<8x512xf32>
    %37 = arith.addf %34, %36 : vector<8x512xf32>
    %cst_23 = arith.constant 0.000000e+00 : f32
    %38 = vector.broadcast %cst_23 : f32 to vector<8x512xf32>
    %39 = arith.maximumf %37, %38 : vector<8x512xf32>
    %40 = vector.shape_cast %39 : vector<8x512xf32> to vector<2x1x2x1x2x512xf32>
    %41 = vector.extract_strided_slice %40 {offsets = [0, 0, 0, 0, 0, 0], sizes = [2, 1, 1, 1, 1, 512], strides = [1, 1, 1, 1, 1, 1]} : vector<2x1x2x1x2x512xf32> to vector<2x1x1x1x1x512xf32>
    %42 = vector.shape_cast %41 : vector<2x1x1x1x1x512xf32> to vector<2x1x1x512xf32>
    %43 = vector.extract_strided_slice %40 {offsets = [0, 0, 0, 0, 1, 0], sizes = [2, 1, 1, 1, 1, 512], strides = [1, 1, 1, 1, 1, 1]} : vector<2x1x2x1x2x512xf32> to vector<2x1x1x1x1x512xf32>
    %44 = vector.shape_cast %43 : vector<2x1x1x1x1x512xf32> to vector<2x1x1x512xf32>
    %45 = arith.maximumf %42, %44 : vector<2x1x1x512xf32>
    %46 = vector.extract_strided_slice %40 {offsets = [0, 0, 1, 0, 0, 0], sizes = [2, 1, 1, 1, 1, 512], strides = [1, 1, 1, 1, 1, 1]} : vector<2x1x2x1x2x512xf32> to vector<2x1x1x1x1x512xf32>
    %47 = vector.shape_cast %46 : vector<2x1x1x1x1x512xf32> to vector<2x1x1x512xf32>
    %48 = vector.extract_strided_slice %40 {offsets = [0, 0, 1, 0, 1, 0], sizes = [2, 1, 1, 1, 1, 512], strides = [1, 1, 1, 1, 1, 1]} : vector<2x1x2x1x2x512xf32> to vector<2x1x1x1x1x512xf32>
    %49 = vector.shape_cast %48 : vector<2x1x1x1x1x512xf32> to vector<2x1x1x512xf32>
    %50 = arith.maximumf %47, %49 : vector<2x1x1x512xf32>
    %51 = arith.maximumf %45, %50 : vector<2x1x1x512xf32>
    %52 = vector.shape_cast %51 : vector<2x1x1x512xf32> to vector<2x512xf32>
    %53 = arith.truncf %52 : vector<2x512xf32> to vector<2x512xbf16>
    %c0_24 = arith.constant 0 : index
    %c0_25 = arith.constant 0 : index
    %54 = vector.load %arg4[%c0_24, %c0_25] : memref<512x128xbf16, #tpu.memory_space<vmem>>, vector<512x128xbf16>
    %cst_26 = arith.constant dense<0.000000e+00> : vector<2x128xf32>
    %55 = tpu.matmul %53, %54, %cst_26 {dimension_numbers = #tpu.dot_dimension_numbers<[1], [0], [0], [1], [0, 0, 1, 1], [], []>} : vector<2x512xbf16>, vector<512x128xbf16>, vector<2x128xf32> -> vector<2x128xf32>
    %c0_27 = arith.constant 0 : index
    %c0_28 = arith.constant 0 : index
    %56 = vector.load %arg5[%c0_27, %c0_28] : memref<1x128xf32, #tpu.memory_space<vmem>>, vector<1x128xf32>
    %57 = vector.broadcast %56 : vector<1x128xf32> to vector<2x128xf32>
    %58 = arith.addf %55, %57 : vector<2x128xf32>
    %c0_29 = arith.constant 0 : index
    %c0_30 = arith.constant 0 : index
    %59 = vector.load %arg6[%c0_29, %c0_30] : memref<2x128xf32, #tpu.memory_space<vmem>>, vector<2x128xf32>
    tpu.vector_store %arg6[%c0_29, %c0_30], %58 {strides = array<i32>} : memref<2x128xf32, #tpu.memory_space<vmem>>, vector<2x128xf32>,
    return
  }
  func.func @transform_0(%arg0: i32) -> (i32, i32, i32, i32) {
    %c0_i32 = arith.constant 0 : i32
    %c0_i32_0 = arith.constant 0 : i32
    %c0_i32_1 = arith.constant 0 : i32
    %c0_i32_2 = arith.constant 0 : i32
    return %arg0, %c0_i32, %c0_i32_0, %c0_i32_1 : i32, i32, i32, i32
  }
  func.func @transform_1(%arg0: i32) -> (i32, i32, i32) {
    %c0_i32 = arith.constant 0 : i32
    %c0_i32_0 = arith.constant 0 : i32
    %c0_i32_1 = arith.constant 0 : i32
    %c0_i32_2 = arith.constant 0 : i32
    return %c0_i32, %c0_i32_0, %c0_i32_1 : i32, i32, i32
  }
  func.func @transform_2(%arg0: i32) -> (i32, i32) {
    %c0_i32 = arith.constant 0 : i32
    %c0_i32_0 = arith.constant 0 : i32
    %c0_i32_1 = arith.constant 0 : i32
    return %c0_i32, %c0_i32_0 : i32, i32
  }
  func.func @transform_3(%arg0: i32) -> (i32, i32) {
    %c0_i32 = arith.constant 0 : i32
    %c0_i32_0 = arith.constant 0 : i32
    %c0_i32_1 = arith.constant 0 : i32
    return %c0_i32, %c0_i32_0 : i32, i32
  }
  func.func @transform_4(%arg0: i32) -> (i32, i32) {
    %c0_i32 = arith.constant 0 : i32
    %c0_i32_0 = arith.constant 0 : i32
    %c0_i32_1 = arith.constant 0 : i32
    return %c0_i32, %c0_i32_0 : i32, i32
  }
  func.func @transform_5(%arg0: i32) -> (i32, i32) {
    %c0_i32 = arith.constant 0 : i32
    %c0_i32_0 = arith.constant 0 : i32
    return %arg0, %c0_i32 : i32, i32
  }
}

</mosaic_0001>

<llo_original>
// kernel: vgg_forward.4
$region0: #{vgg_forward.4}
  #allocation0 [shape = 'u32[]', space=smem, size = 0x4, offset = 0x4, fixed_abs, tag = 'smem constant byte address 0x4 - core index']
  #allocation1 [shape = 'u32[144,128]{1,0:T(1,128)}', space=vmem, size = 0x12000, scoped, tag = 'internal scratch']
  #allocation2 [shape = 'bf16[2,6,6,128]{3,2,1,0:T(8,128)(2,1)}', space=vmem, size = 0x6000, scoped, tag = 'scratch operand']
  %s0 = inlined_call_operand.vmem [shape: bf16[2,4,4,128], index: 0, kind: input, shape index: {}]
  %s1 = inlined_call_operand.hbm [shape: bf16[3,384,128], index: 1, kind: input, shape index: {}]
  %s2 = inlined_call_operand.vmem [shape: f32[1,128], index: 2, kind: input, shape index: {}]
  %s3 = inlined_call_operand.vmem [shape: bf16[2,2,2,128], index: 3, kind: output, shape index: {}]
  %s4 = sld [smem:[#allocation0]]
  $region30: #{vgg_forward.4} parent=0
    _
  %s6 = ssub.s32 1, %s4
  %s7 = scalar_select 0, %s6, %s4
  $region1: #{vgg_forward.4} parent=0
    #allocation3 [shape = 'u8[294912]{0}', space=vmem, size = 0x48000, scoped, tag = 'input window, operand 1, single buffered']
    #allocation4 [shape = 's32[1]{0}', space=sflag, size = 0x4, scoped, tag = 'scoped memory for vgg_forward.4']
    %8 = vsyncpa [#allocation4], 0
    // Predicated region
    $region2: #{vgg_forward.4} parent=1 // pred_check
      _
    $region3: #{vgg_forward.4} parent=1 // pred_check_branch
      %10 = sbr.rel (0) target = $region5
    $region4: #{vgg_forward.4} parent=1 // pred_region
      _
    $region5: #{vgg_forward.4} parent=1 // pred_fallthru
      _
    // Predicated region
    $region6: #{vgg_forward.4} parent=1 // pred_check
      _
    $region7: #{vgg_forward.4} parent=1 // pred_check_branch
      %12 = sbr.rel (0) target = $region9
    $region8: #{vgg_forward.4} parent=1 // pred_region
      %s14 = ssub.s32 9216, 9216
      %15 = vsyncadd [#allocation4], %s14
      %s16 = sshll.u32 [#allocation3], 4
      %s17 = int_to_ptr.vmem [resolvable:$true] %s16
      %22 = dma.hbm_to_vmem [thread:$0]  %s1, 9216, %s17, [#allocation4], 64, 64, 4
    $region9: #{vgg_forward.4} parent=1 // pred_fallthru
      _
    // Predicated region
    $region10: #{vgg_forward.4} parent=1 // pred_check
      _
    $region11: #{vgg_forward.4} parent=1 // pred_check_branch
      %24 = sbr.rel (0) target = $region13
    $region12: #{vgg_forward.4} parent=1 // pred_region
      _
    $region13: #{vgg_forward.4} parent=1 // pred_fallthru
      _
    // Predicated region
    $region14: #{vgg_forward.4} parent=1 // pred_check
      _
    $region15: #{vgg_forward.4} parent=1 // pred_check_branch
      %26 = sbr.rel (0) target = $region17
    $region16: #{vgg_forward.4} parent=1 // pred_region
      %27 = dma.done [#allocation4], 9216
    $region17: #{vgg_forward.4} parent=1 // pred_fallthru
      _
    %p29 = scmp.eq.s32.totalorder 0, 0
    // Predicated region
    $region18: #{vgg_forward.4} parent=1 // pred_check
      %p30 = pneg %p29
    $region19: #{vgg_forward.4} parent=1 // pred_check_branch
      %32 = sbr.rel (%p30) target = $region21
    $region20: #{vgg_forward.4} parent=1 // pred_region
      %33 = vst [vmem:[#allocation2] sm:$0x7] 0
      %34 = vst [vmem:[#allocation2 + $0x4] sm:$0x7] 0
      %35 = vst [vmem:[#allocation2 + $0x8] sm:$0x7] 0
      %36 = vst [vmem:[#allocation2 + $0xc] sm:$0x7] 0
      %37 = vst [vmem:[#allocation2 + $0x10] sm:$0x7] 0
      %38 = vst [vmem:[#allocation2 + $0x14] sm:$0x7] 0
      %39 = vst [vmem:[#allocation2 + $0x18] sm:$0x7] 0
      %40 = vst [vmem:[#allocation2 + $0x1c] sm:$0x7] 0
      %41 = vst [vmem:[#allocation2 + $0x20] sm:$0x7] 0
      %42 = vst [vmem:[#allocation2 + $0x24] sm:$0x7] 0
      %43 = vst [vmem:[#allocation2 + $0x28] sm:$0x7] 0
      %44 = vst [vmem:[#allocation2 + $0x2c] sm:$0x7] 0
    $region21: #{vgg_forward.4} parent=1 // pred_fallthru
      _
    %v45 = vld [vmem:[%s0] sm:$0x3]
    %v46 = vld [vmem:[%s0 + $0x2] sm:$0x3]
    %v47 = vld [vmem:[%s0 + $0x4] sm:$0x3]
    %v48 = vld [vmem:[%s0 + $0x6] sm:$0x3]
    %v49 = vld [vmem:[%s0 + $0x8] sm:$0x3]
    %v50 = vld [vmem:[%s0 + $0xa] sm:$0x3]
    %v51 = vld [vmem:[%s0 + $0xc] sm:$0x3]
    %v52 = vld [vmem:[%s0 + $0xe] sm:$0x3]
    %v62 = vunpack.c.l.s4 1983009808
    %v63 = vunpack.c.0.s8 %v62
    %v64 = vlaneseq
    %v65 = vshrl.u32 %v64, 7
    %v66 = vsub.s32 %v63, %v65
    %v67 = vrot.slane %v45, %v66
    %v69 = vunpack.c.l.s4 1983009808
    %v70 = vunpack.c.0.s8 %v69
    %v71 = vlaneseq
    %v72 = vshrl.u32 %v71, 7
    %v73 = vsub.s32 %v70, %v72
    %v74 = vrot.slane %v46, %v73
    %v76 = vunpack.c.l.s4 1983009808
    %v77 = vunpack.c.0.s8 %v76
    %v78 = vlaneseq
    %v79 = vshrl.u32 %v78, 7
    %v80 = vsub.s32 %v77, %v79
    %v81 = vrot.slane %v47, %v80
    %v83 = vunpack.c.l.s4 1983009808
    %v84 = vunpack.c.0.s8 %v83
    %v85 = vlaneseq
    %v86 = vshrl.u32 %v85, 7
    %v87 = vsub.s32 %v84, %v86
    %v88 = vrot.slane %v48, %v87
    %v90 = vunpack.c.l.s4 1983009808
    %v91 = vunpack.c.0.s8 %v90
    %v92 = vlaneseq
    %v93 = vshrl.u32 %v92, 7
    %v94 = vsub.s32 %v91, %v93
    %v95 = vrot.slane %v49, %v94
    %v97 = vunpack.c.l.s4 1983009808
    %v98 = vunpack.c.0.s8 %v97
    %v99 = vlaneseq
    %v100 = vshrl.u32 %v99, 7
    %v101 = vsub.s32 %v98, %v100
    %v102 = vrot.slane %v50, %v101
    %v104 = vunpack.c.l.s4 1983009808
    %v105 = vunpack.c.0.s8 %v104
    %v106 = vlaneseq
    %v107 = vshrl.u32 %v106, 7
    %v108 = vsub.s32 %v105, %v107
    %v109 = vrot.slane %v51, %v108
    %v111 = vunpack.c.l.s4 1983009808
    %v112 = vunpack.c.0.s8 %v111
    %v113 = vlaneseq
    %v114 = vshrl.u32 %v113, 7
    %v115 = vsub.s32 %v112, %v114
    %v116 = vrot.slane %v52, %v115
    %v118 = vshrl.u32 %v67, 16
    %v120 = vrot.slane %v118, 7
    %v121 = vshll.u32 %v67, 16
    %v123 = vor.u32 %v120, %v121
    %v125 = vshrl.u32 %v74, 16
    %v127 = vrot.slane %v125, 7
    %v128 = vshll.u32 %v74, 16
    %v130 = vor.u32 %v127, %v128
    %v132 = vshrl.u32 %v81, 16
    %v134 = vrot.slane %v132, 7
    %v135 = vshll.u32 %v81, 16
    %v137 = vor.u32 %v134, %v135
    %v139 = vshrl.u32 %v88, 16
    %v141 = vrot.slane %v139, 7
    %v142 = vshll.u32 %v88, 16
    %v144 = vor.u32 %v141, %v142
    %v146 = vshrl.u32 %v95, 16
    %v148 = vrot.slane %v146, 7
    %v149 = vshll.u32 %v95, 16
    %v151 = vor.u32 %v148, %v149
    %v153 = vshrl.u32 %v102, 16
    %v155 = vrot.slane %v153, 7
    %v156 = vshll.u32 %v102, 16
    %v158 = vor.u32 %v155, %v156
    %v160 = vshrl.u32 %v109, 16
    %v162 = vrot.slane %v160, 7
    %v163 = vshll.u32 %v109, 16
    %v165 = vor.u32 %v162, %v163
    %v167 = vshrl.u32 %v116, 16
    %v169 = vrot.slane %v167, 7
    %v170 = vshll.u32 %v116, 16
    %v172 = vor.u32 %v169, %v170
    %s181 = scalar_lea.vmem [#allocation2], 4
    %vm182 = vcmask 1042432
    %vm183 = vsmask.f32 2306
    %vm184 = vmand %vm182, %vm183
    %v185 = vld [vmem:[%s181] sm:$0x7]
    %v186 = vsel %vm184, %v123, %v185
    %187 = vst [vmem:[%s181] sm:$0x7] %v186
    %v188 = vld [vmem:[%s181 + $0x4] sm:$0x7]
    %v189 = vsel %vm184, %v130, %v188
    %190 = vst [vmem:[%s181 + $0x4] sm:$0x7] %v189
    %v191 = vld [vmem:[%s181 + $0x8] sm:$0x7]
    %v192 = vsel %vm184, %v137, %v191
    %193 = vst [vmem:[%s181 + $0x8] sm:$0x7] %v192
    %v194 = vld [vmem:[%s181 + $0xc] sm:$0x7]
    %v195 = vsel %vm184, %v144, %v194
    %196 = vst [vmem:[%s181 + $0xc] sm:$0x7] %v195
    %v197 = vld [vmem:[%s181 + $0x18] sm:$0x7]
    %v198 = vsel %vm184, %v151, %v197
    %199 = vst [vmem:[%s181 + $0x18] sm:$0x7] %v198
    %v200 = vld [vmem:[%s181 + $0x1c] sm:$0x7]
    %v201 = vsel %vm184, %v158, %v200
    %202 = vst [vmem:[%s181 + $0x1c] sm:$0x7] %v201
    %v203 = vld [vmem:[%s181 + $0x20] sm:$0x7]
    %v204 = vsel %vm184, %v165, %v203
    %205 = vst [vmem:[%s181 + $0x20] sm:$0x7] %v204
    %v206 = vld [vmem:[%s181 + $0x24] sm:$0x7]
    %v207 = vsel %vm184, %v172, %v206
    %208 = vst [vmem:[%s181 + $0x24] sm:$0x7] %v207
    %v209 = vld [vmem:[#allocation2] sm:$0x7]
    %v210 = vld [vmem:[#allocation2 + $0x4] sm:$0x7]
    %v211 = vld [vmem:[#allocation2 + $0x8] sm:$0x7]
    %v212 = vld [vmem:[#allocation2 + $0xc] sm:$0x7]
    %v213 = vld [vmem:[#allocation2 + $0x10] sm:$0x7]
    %v214 = vld [vmem:[#allocation2 + $0x14] sm:$0x7]
    %v215 = vld [vmem:[#allocation2 + $0x18] sm:$0x7]
    %v216 = vld [vmem:[#allocation2 + $0x1c] sm:$0x7]
    %v217 = vld [vmem:[#allocation2 + $0x20] sm:$0x7]
    %v218 = vld [vmem:[#allocation2 + $0x24] sm:$0x7]
    %v219 = vld [vmem:[#allocation2 + $0x28] sm:$0x7]
    %v220 = vld [vmem:[#allocation2 + $0x2c] sm:$0x7]
    %v229 = vunpack.c.l.b16 %v209
    %v230 = vunpack.c.l.b16 %v210
    %v231 = vunpack.c.l.b16 %v211
    %v232 = vunpack.c.l.b16 %v212
    %v233 = vunpack.c.l.b16 %v215
    %v234 = vunpack.c.l.b16 %v216
    %v235 = vunpack.c.l.b16 %v217
    %v236 = vunpack.c.l.b16 %v218
    %v237 = vpack.c.b16 %v229, %v229
    %v238 = vpack.c.b16 %v230, %v230
    %v239 = vpack.c.b16 %v231, %v231
    %v240 = vpack.c.b16 %v232, %v232
    %v241 = vpack.c.b16 %v233, %v233
    %v242 = vpack.c.b16 %v234, %v234
    %v243 = vpack.c.b16 %v235, %v235
    %v244 = vpack.c.b16 %v236, %v236
    %v246 = vshrl.u32 %v237, 16
    %v248 = vshll.u32 %v237, 16
    %v250 = vrot.slane %v248, 1
    %v251 = vor.u32 %v246, %v250
    %v253 = vshrl.u32 %v238, 16
    %v255 = vshll.u32 %v238, 16
    %v257 = vrot.slane %v255, 1
    %v258 = vor.u32 %v253, %v257
    %v260 = vshrl.u32 %v239, 16
    %v262 = vshll.u32 %v239, 16
    %v264 = vrot.slane %v262, 1
    %v265 = vor.u32 %v260, %v264
    %v267 = vshrl.u32 %v240, 16
    %v269 = vshll.u32 %v240, 16
    %v271 = vrot.slane %v269, 1
    %v272 = vor.u32 %v267, %v271
    %v274 = vshrl.u32 %v241, 16
    %v276 = vshll.u32 %v241, 16
    %v278 = vrot.slane %v276, 1
    %v279 = vor.u32 %v274, %v278
    %v281 = vshrl.u32 %v242, 16
    %v283 = vshll.u32 %v242, 16
    %v285 = vrot.slane %v283, 1
    %v286 = vor.u32 %v281, %v285
    %v288 = vshrl.u32 %v243, 16
    %v290 = vshll.u32 %v243, 16
    %v292 = vrot.slane %v290, 1
    %v293 = vor.u32 %v288, %v292
    %v295 = vshrl.u32 %v244, 16
    %v297 = vshll.u32 %v244, 16
    %v299 = vrot.slane %v297, 1
    %v300 = vor.u32 %v295, %v299
    %v301 = vrot.slane %v237, 1
    %v302 = vrot.slane %v238, 1
    %v303 = vrot.slane %v239, 1
    %v304 = vrot.slane %v240, 1
    %v305 = vrot.slane %v241, 1
    %v306 = vrot.slane %v242, 1
    %v307 = vrot.slane %v243, 1
    %v308 = vrot.slane %v244, 1
    %v309 = vcombine.low %v209, %v251
    %v311 = vunpack.c.l.s4 1983009808
    %v312 = vunpack.c.0.s8 %v311
    %v313 = vlaneseq
    %v314 = vshrl.u32 %v313, 7
    %v315 = vsub.s32 %v312, %v314
    %v316 = vrot.slane %v309, %v315
    %v318 = vunpack.c.l.s4 1983009808
    %v319 = vunpack.c.0.s8 %v318
    %v320 = vlaneseq
    %v321 = vshrl.u32 %v320, 7
    %v322 = vsub.s32 %v319, %v321
    %v323 = vrot.slane %v301, %v322
    %v324 = vcombine.low %v316, %v323
    %v325 = vcombine.low %v210, %v258
    %v327 = vunpack.c.l.s4 1983009808
    %v328 = vunpack.c.0.s8 %v327
    %v329 = vlaneseq
    %v330 = vshrl.u32 %v329, 7
    %v331 = vsub.s32 %v328, %v330
    %v332 = vrot.slane %v325, %v331
    %v334 = vunpack.c.l.s4 1983009808
    %v335 = vunpack.c.0.s8 %v334
    %v336 = vlaneseq
    %v337 = vshrl.u32 %v336, 7
    %v338 = vsub.s32 %v335, %v337
    %v339 = vrot.slane %v302, %v338
    %v340 = vcombine.low %v332, %v339
    %v341 = vcombine.low %v211, %v265
    %v343 = vunpack.c.l.s4 1983009808
    %v344 = vunpack.c.0.s8 %v343
    %v345 = vlaneseq
    %v346 = vshrl.u32 %v345, 7
    %v347 = vsub.s32 %v344, %v346
    %v348 = vrot.slane %v341, %v347
    %v350 = vunpack.c.l.s4 1983009808
    %v351 = vunpack.c.0.s8 %v350
    %v352 = vlaneseq
    %v353 = vshrl.u32 %v352, 7
    %v354 = vsub.s32 %v351, %v353
    %v355 = vrot.slane %v303, %v354
    %v356 = vcombine.low %v348, %v355
    %v357 = vcombine.low %v212, %v272
    %v359 = vunpack.c.l.s4 1983009808
    %v360 = vunpack.c.0.s8 %v359
    %v361 = vlaneseq
    %v362 = vshrl.u32 %v361, 7
    %v363 = vsub.s32 %v360, %v362
    %v364 = vrot.slane %v357, %v363
    %v366 = vunpack.c.l.s4 1983009808
    %v367 = vunpack.c.0.s8 %v366
    %v368 = vlaneseq
    %v369 = vshrl.u32 %v368, 7
    %v370 = vsub.s32 %v367, %v369
    %v371 = vrot.slane %v304, %v370
    %v372 = vcombine.low %v364, %v371
    %v373 = vcombine.low %v215, %v279
    %v375 = vunpack.c.l.s4 1983009808
    %v376 = vunpack.c.0.s8 %v375
    %v377 = vlaneseq
    %v378 = vshrl.u32 %v377, 7
    %v379 = vsub.s32 %v376, %v378
    %v380 = vrot.slane %v373, %v379
    %v382 = vunpack.c.l.s4 1983009808
    %v383 = vunpack.c.0.s8 %v382
    %v384 = vlaneseq
    %v385 = vshrl.u32 %v384, 7
    %v386 = vsub.s32 %v383, %v385
    %v387 = vrot.slane %v305, %v386
    %v388 = vcombine.low %v380, %v387
    %v389 = vcombine.low %v216, %v286
    %v391 = vunpack.c.l.s4 1983009808
    %v392 = vunpack.c.0.s8 %v391
    %v393 = vlaneseq
    %v394 = vshrl.u32 %v393, 7
    %v395 = vsub.s32 %v392, %v394
    %v396 = vrot.slane %v389, %v395
    %v398 = vunpack.c.l.s4 1983009808
    %v399 = vunpack.c.0.s8 %v398
    %v400 = vlaneseq
    %v401 = vshrl.u32 %v400, 7
    %v402 = vsub.s32 %v399, %v401
    %v403 = vrot.slane %v306, %v402
    %v404 = vcombine.low %v396, %v403
    %v405 = vcombine.low %v217, %v293
    %v407 = vunpack.c.l.s4 1983009808
    %v408 = vunpack.c.0.s8 %v407
    %v409 = vlaneseq
    %v410 = vshrl.u32 %v409, 7
    %v411 = vsub.s32 %v408, %v410
    %v412 = vrot.slane %v405, %v411
    %v414 = vunpack.c.l.s4 1983009808
    %v415 = vunpack.c.0.s8 %v414
    %v416 = vlaneseq
    %v417 = vshrl.u32 %v416, 7
    %v418 = vsub.s32 %v415, %v417
    %v419 = vrot.slane %v307, %v418
    %v420 = vcombine.low %v412, %v419
    %v421 = vcombine.low %v218, %v300
    %v423 = vunpack.c.l.s4 1983009808
    %v424 = vunpack.c.0.s8 %v423
    %v425 = vlaneseq
    %v426 = vshrl.u32 %v425, 7
    %v427 = vsub.s32 %v424, %v426
    %v428 = vrot.slane %v421, %v427
    %v430 = vunpack.c.l.s4 1983009808
    %v431 = vunpack.c.0.s8 %v430
    %v432 = vlaneseq
    %v433 = vshrl.u32 %v432, 7
    %v434 = vsub.s32 %v431, %v433
    %v435 = vrot.slane %v308, %v434
    %v436 = vcombine.low %v428, %v435
    %v437 = vld [vmem:[#allocation3] sm:$0xf]
    %v438 = vld [vmem:[#allocation3 + $0x4] sm:$0xf]
    %v439 = vld [vmem:[#allocation3 + $0x8] sm:$0xf]
    %v440 = vld [vmem:[#allocation3 + $0xc] sm:$0xf]
    %v441 = vld [vmem:[#allocation3 + $0x10] sm:$0xf]
    %v442 = vld [vmem:[#allocation3 + $0x14] sm:$0xf]
    %v443 = vld [vmem:[#allocation3 + $0x18] sm:$0xf]
    %v444 = vld [vmem:[#allocation3 + $0x1c] sm:$0xf]
    %v445 = vld [vmem:[#allocation3 + $0x20] sm:$0xf]
    %v446 = vld [vmem:[#allocation3 + $0x24] sm:$0xf]
    %v447 = vld [vmem:[#allocation3 + $0x28] sm:$0xf]
    %v448 = vld [vmem:[#allocation3 + $0x2c] sm:$0xf]
    %v449 = vld [vmem:[#allocation3 + $0x30] sm:$0xf]
    %v450 = vld [vmem:[#allocation3 + $0x34] sm:$0xf]
    %v451 = vld [vmem:[#allocation3 + $0x38] sm:$0xf]
    %v452 = vld [vmem:[#allocation3 + $0x3c] sm:$0xf]
    %v453 = vld [vmem:[#allocation3 + $0x40] sm:$0xf]
    %v454 = vld [vmem:[#allocation3 + $0x44] sm:$0xf]
    %v455 = vld [vmem:[#allocation3 + $0x48] sm:$0xf]
    %v456 = vld [vmem:[#allocation3 + $0x4c] sm:$0xf]
    %v457 = vld [vmem:[#allocation3 + $0x50] sm:$0xf]
    %v458 = vld [vmem:[#allocation3 + $0x54] sm:$0xf]
    %v459 = vld [vmem:[#allocation3 + $0x58] sm:$0xf]
    %v460 = vld [vmem:[#allocation3 + $0x5c] sm:$0xf]
    %v461 = vld [vmem:[#allocation3 + $0x60] sm:$0xf]
    %v462 = vld [vmem:[#allocation3 + $0x64] sm:$0xf]
    %v463 = vld [vmem:[#allocation3 + $0x68] sm:$0xf]
    %v464 = vld [vmem:[#allocation3 + $0x6c] sm:$0xf]
    %v465 = vld [vmem:[#allocation3 + $0x70] sm:$0xf]
    %v466 = vld [vmem:[#allocation3 + $0x74] sm:$0xf]
    %v467 = vld [vmem:[#allocation3 + $0x78] sm:$0xf]
    %v468 = vld [vmem:[#allocation3 + $0x7c] sm:$0xf]
    %v469 = vld [vmem:[#allocation3 + $0x80] sm:$0xf]
    %v470 = vld [vmem:[#allocation3 + $0x84] sm:$0xf]
    %v471 = vld [vmem:[#allocation3 + $0x88] sm:$0xf]
    %v472 = vld [vmem:[#allocation3 + $0x8c] sm:$0xf]
    %v473 = vld [vmem:[#allocation3 + $0x90] sm:$0xf]
    %v474 = vld [vmem:[#allocation3 + $0x94] sm:$0xf]
    %v475 = vld [vmem:[#allocation3 + $0x98] sm:$0xf]
    %v476 = vld [vmem:[#allocation3 + $0x9c] sm:$0xf]
    %v477 = vld [vmem:[#allocation3 + $0xa0] sm:$0xf]
    %v478 = vld [vmem:[#allocation3 + $0xa4] sm:$0xf]
    %v479 = vld [vmem:[#allocation3 + $0xa8] sm:$0xf]
    %v480 = vld [vmem:[#allocation3 + $0xac] sm:$0xf]
    %v481 = vld [vmem:[#allocation3 + $0xb0] sm:$0xf]
    %v482 = vld [vmem:[#allocation3 + $0xb4] sm:$0xf]
    %v483 = vld [vmem:[#allocation3 + $0xb8] sm:$0xf]
    %v484 = vld [vmem:[#allocation3 + $0xbc] sm:$0xf]
    %v487 = vunpack.c.l.b16 %v213
    %v488 = vunpack.c.l.b16 %v219
    %v489 = vpack.c.b16 %v487, %v487
    %v490 = vpack.c.b16 %v488, %v488
    %v492 = vshrl.u32 %v489, 16
    %v494 = vshll.u32 %v489, 16
    %v496 = vrot.slane %v494, 1
    %v497 = vor.u32 %v492, %v496
    %v499 = vshrl.u32 %v490, 16
    %v501 = vshll.u32 %v490, 16
    %v503 = vrot.slane %v501, 1
    %v504 = vor.u32 %v499, %v503
    %v505 = vrot.slane %v489, 1
    %v506 = vrot.slane %v490, 1
    %v507 = vcombine.low %v213, %v497
    %v509 = vunpack.c.l.s4 1983009808
    %v510 = vunpack.c.0.s8 %v509
    %v511 = vlaneseq
    %v512 = vshrl.u32 %v511, 7
    %v513 = vsub.s32 %v510, %v512
    %v514 = vrot.slane %v507, %v513
    %v516 = vunpack.c.l.s4 1983009808
    %v517 = vunpack.c.0.s8 %v516
    %v518 = vlaneseq
    %v519 = vshrl.u32 %v518, 7
    %v520 = vsub.s32 %v517, %v519
    %v521 = vrot.slane %v505, %v520
    %v522 = vcombine.low %v514, %v521
    %v523 = vcombine.low %v219, %v504
    %v525 = vunpack.c.l.s4 1983009808
    %v526 = vunpack.c.0.s8 %v525
    %v527 = vlaneseq
    %v528 = vshrl.u32 %v527, 7
    %v529 = vsub.s32 %v526, %v528
    %v530 = vrot.slane %v523, %v529
    %v532 = vunpack.c.l.s4 1983009808
    %v533 = vunpack.c.0.s8 %v532
    %v534 = vlaneseq
    %v535 = vshrl.u32 %v534, 7
    %v536 = vsub.s32 %v533, %v535
    %v537 = vrot.slane %v506, %v536
    %v538 = vcombine.low %v530, %v537
    %s539 = scalar_lea.vmem [#allocation3], 192
    %v540 = vld [vmem:[%s539] sm:$0xf]
    %v541 = vld [vmem:[%s539 + $0x4] sm:$0xf]
    %v542 = vld [vmem:[%s539 + $0x8] sm:$0xf]
    %v543 = vld [vmem:[%s539 + $0xc] sm:$0xf]
    %v544 = vld [vmem:[%s539 + $0x10] sm:$0xf]
    %v545 = vld [vmem:[%s539 + $0x14] sm:$0xf]
    %v546 = vld [vmem:[%s539 + $0x18] sm:$0xf]
    %v547 = vld [vmem:[%s539 + $0x1c] sm:$0xf]
    %v548 = vld [vmem:[%s539 + $0x20] sm:$0xf]
    %v549 = vld [vmem:[%s539 + $0x24] sm:$0xf]
    %v550 = vld [vmem:[%s539 + $0x28] sm:$0xf]
    %v551 = vld [vmem:[%s539 + $0x2c] sm:$0xf]
    %v552 = vld [vmem:[%s539 + $0x30] sm:$0xf]
    %v553 = vld [vmem:[%s539 + $0x34] sm:$0xf]
    %v554 = vld [vmem:[%s539 + $0x38] sm:$0xf]
    %v555 = vld [vmem:[%s539 + $0x3c] sm:$0xf]
    %v556 = vld [vmem:[%s539 + $0x40] sm:$0xf]
    %v557 = vld [vmem:[%s539 + $0x44] sm:$0xf]
    %v558 = vld [vmem:[%s539 + $0x48] sm:$0xf]
    %v559 = vld [vmem:[%s539 + $0x4c] sm:$0xf]
    %v560 = vld [vmem:[%s539 + $0x50] sm:$0xf]
    %v561 = vld [vmem:[%s539 + $0x54] sm:$0xf]
    %v562 = vld [vmem:[%s539 + $0x58] sm:$0xf]
    %v563 = vld [vmem:[%s539 + $0x5c] sm:$0xf]
    %v564 = vld [vmem:[%s539 + $0x60] sm:$0xf]
    %v565 = vld [vmem:[%s539 + $0x64] sm:$0xf]
    %v566 = vld [vmem:[%s539 + $0x68] sm:$0xf]
    %v567 = vld [vmem:[%s539 + $0x6c] sm:$0xf]
    %v568 = vld [vmem:[%s539 + $0x70] sm:$0xf]
    %v569 = vld [vmem:[%s539 + $0x74] sm:$0xf]
    %v570 = vld [vmem:[%s539 + $0x78] sm:$0xf]
    %v571 = vld [vmem:[%s539 + $0x7c] sm:$0xf]
    %v572 = vld [vmem:[%s539 + $0x80] sm:$0xf]
    %v573 = vld [vmem:[%s539 + $0x84] sm:$0xf]
    %v574 = vld [vmem:[%s539 + $0x88] sm:$0xf]
    %v575 = vld [vmem:[%s539 + $0x8c] sm:$0xf]
    %v576 = vld [vmem:[%s539 + $0x90] sm:$0xf]
    %v577 = vld [vmem:[%s539 + $0x94] sm:$0xf]
    %v578 = vld [vmem:[%s539 + $0x98] sm:$0xf]
    %v579 = vld [vmem:[%s539 + $0x9c] sm:$0xf]
    %v580 = vld [vmem:[%s539 + $0xa0] sm:$0xf]
    %v581 = vld [vmem:[%s539 + $0xa4] sm:$0xf]
    %v582 = vld [vmem:[%s539 + $0xa8] sm:$0xf]
    %v583 = vld [vmem:[%s539 + $0xac] sm:$0xf]
    %v584 = vld [vmem:[%s539 + $0xb0] sm:$0xf]
    %v585 = vld [vmem:[%s539 + $0xb4] sm:$0xf]
    %v586 = vld [vmem:[%s539 + $0xb8] sm:$0xf]
    %v587 = vld [vmem:[%s539 + $0xbc] sm:$0xf]
    %v588 = vcombine.low %v340, %v356
    %v589 = vcombine.high %v340, %v356
    %v590 = vcombine.low %v372, %v522
    %v591 = vcombine.high %v372, %v522
    %v593 = vunpack.c.l.s4 1983009808
    %v594 = vunpack.c.0.s8 %v593
    %v595 = vlaneseq
    %v596 = vshrl.u32 %v595, 7
    %v597 = vsub.s32 %v594, %v596
    %v598 = vrot.slane %v588, %v597
    %v600 = vunpack.c.l.s4 1983009808
    %v601 = vunpack.c.0.s8 %v600
    %v602 = vlaneseq
    %v603 = vshrl.u32 %v602, 7
    %v604 = vsub.s32 %v601, %v603
    %v605 = vrot.slane %v589, %v604
    %v607 = vunpack.c.l.s4 1983009808
    %v608 = vunpack.c.0.s8 %v607
    %v609 = vlaneseq
    %v610 = vshrl.u32 %v609, 7
    %v611 = vsub.s32 %v608, %v610
    %v612 = vrot.slane %v590, %v611
    %v614 = vunpack.c.l.s4 1983009808
    %v615 = vunpack.c.0.s8 %v614
    %v616 = vlaneseq
    %v617 = vshrl.u32 %v616, 7
    %v618 = vsub.s32 %v615, %v617
    %v619 = vrot.slane %v591, %v618
    %v620 = vcombine.low %v598, %v612
    %v621 = vcombine.high %v598, %v612
    %v622 = vcombine.low %v605, %v619
    %v623 = vcombine.low %v404, %v420
    %v624 = vcombine.high %v404, %v420
    %v625 = vcombine.low %v436, %v538
    %v626 = vcombine.high %v436, %v538
    %v628 = vunpack.c.l.s4 1983009808
    %v629 = vunpack.c.0.s8 %v628
    %v630 = vlaneseq
    %v631 = vshrl.u32 %v630, 7
    %v632 = vsub.s32 %v629, %v631
    %v633 = vrot.slane %v623, %v632
    %v635 = vunpack.c.l.s4 1983009808
    %v636 = vunpack.c.0.s8 %v635
    %v637 = vlaneseq
    %v638 = vshrl.u32 %v637, 7
    %v639 = vsub.s32 %v636, %v638
    %v640 = vrot.slane %v624, %v639
    %v642 = vunpack.c.l.s4 1983009808
    %v643 = vunpack.c.0.s8 %v642
    %v644 = vlaneseq
    %v645 = vshrl.u32 %v644, 7
    %v646 = vsub.s32 %v643, %v645
    %v647 = vrot.slane %v625, %v646
    %v649 = vunpack.c.l.s4 1983009808
    %v650 = vunpack.c.0.s8 %v649
    %v651 = vlaneseq
    %v652 = vshrl.u32 %v651, 7
    %v653 = vsub.s32 %v650, %v652
    %v654 = vrot.slane %v626, %v653
    %v655 = vcombine.low %v633, %v647
    %v656 = vcombine.high %v633, %v647
    %v657 = vcombine.low %v640, %v654
    %v712 = vunpack.c.l.b16 %v540
    %v713 = vunpack.c.l.b16 %v541
    %v714 = vunpack.c.l.b16 %v542
    %v715 = vunpack.c.l.b16 %v543
    %v716 = vunpack.c.l.b16 %v544
    %v717 = vunpack.c.l.b16 %v545
    %v718 = vunpack.c.l.b16 %v546
    %v719 = vunpack.c.l.b16 %v547
    %v720 = vunpack.c.l.b16 %v548
    %v721 = vunpack.c.l.b16 %v549
    %v722 = vunpack.c.l.b16 %v550
    %v723 = vunpack.c.l.b16 %v551
    %v724 = vunpack.c.l.b16 %v552
    %v725 = vunpack.c.l.b16 %v553
    %v726 = vunpack.c.l.b16 %v554
    %v727 = vunpack.c.l.b16 %v555
    %v728 = vunpack.c.l.b16 %v556
    %v729 = vunpack.c.l.b16 %v557
    %v730 = vunpack.c.l.b16 %v558
    %v731 = vunpack.c.l.b16 %v559
    %v732 = vunpack.c.l.b16 %v560
    %v733 = vunpack.c.l.b16 %v561
    %v734 = vunpack.c.l.b16 %v562
    %v735 = vunpack.c.l.b16 %v563
    %v736 = vunpack.c.l.b16 %v564
    %v737 = vunpack.c.l.b16 %v565
    %v738 = vunpack.c.l.b16 %v566
    %v739 = vunpack.c.l.b16 %v567
    %v740 = vunpack.c.l.b16 %v568
    %v741 = vunpack.c.l.b16 %v569
    %v742 = vunpack.c.l.b16 %v570
    %v743 = vunpack.c.l.b16 %v571
    %v744 = vunpack.c.l.b16 %v572
    %v745 = vunpack.c.l.b16 %v573
    %v746 = vunpack.c.l.b16 %v574
    %v747 = vunpack.c.l.b16 %v575
    %v748 = vunpack.c.l.b16 %v576
    %v749 = vunpack.c.l.b16 %v577
    %v750 = vunpack.c.l.b16 %v578
    %v751 = vunpack.c.l.b16 %v579
    %v752 = vunpack.c.l.b16 %v580
    %v753 = vunpack.c.l.b16 %v581
    %v754 = vunpack.c.l.b16 %v582
    %v755 = vunpack.c.l.b16 %v583
    %v756 = vunpack.c.l.b16 %v584
    %v757 = vunpack.c.l.b16 %v585
    %v758 = vunpack.c.l.b16 %v586
    %v759 = vunpack.c.l.b16 %v587
    %v760 = vpack.c.b16 %v713, %v712
    %v761 = vpack.c.b16 %v715, %v714
    %v762 = vpack.c.b16 %v717, %v716
    %v763 = vpack.c.b16 %v719, %v718
    %v764 = vpack.c.b16 %v721, %v720
    %v765 = vpack.c.b16 %v723, %v722
    %v766 = vpack.c.b16 %v725, %v724
    %v767 = vpack.c.b16 %v727, %v726
    %v768 = vpack.c.b16 %v729, %v728
    %v769 = vpack.c.b16 %v731, %v730
    %v770 = vpack.c.b16 %v733, %v732
    %v771 = vpack.c.b16 %v735, %v734
    %v772 = vpack.c.b16 %v737, %v736
    %v773 = vpack.c.b16 %v739, %v738
    %v774 = vpack.c.b16 %v741, %v740
    %v775 = vpack.c.b16 %v743, %v742
    %v776 = vpack.c.b16 %v745, %v744
    %v777 = vpack.c.b16 %v747, %v746
    %v778 = vpack.c.b16 %v749, %v748
    %v779 = vpack.c.b16 %v751, %v750
    %v780 = vpack.c.b16 %v753, %v752
    %v781 = vpack.c.b16 %v755, %v754
    %v782 = vpack.c.b16 %v757, %v756
    %v783 = vpack.c.b16 %v759, %v758
    %808 = vmatprep.subr.bf16.mxu0 0
    %809 = vmatpush1.bf16.msra.mxu0 %v760
    %810 = vmatprep.subr.bf16.mxu0 0
    %811 = vmatpush1.bf16.msra.mxu0 %v761
    %812 = vmatprep.subr.bf16.mxu0 0
    %813 = vmatpush1.bf16.msra.mxu0 %v762
    %814 = vmatprep.subr.bf16.mxu0 0
    %815 = vmatpush1.bf16.msra.mxu0 %v763
    %816 = vmatprep.subr.bf16.mxu0 0
    %817 = vmatpush1.bf16.msra.mxu0 %v764
    %818 = vmatprep.subr.bf16.mxu0 0
    %819 = vmatpush1.bf16.msra.mxu0 %v765
    %820 = vmatprep.subr.bf16.mxu0 0
    %821 = vmatpush1.bf16.msra.mxu0 %v766
    %822 = vmatprep.subr.bf16.mxu0 0
    %823 = vmatpush1.bf16.msra.mxu0 %v767
    %824 = vmatprep.subr.bf16.mxu0 0
    %825 = vmatpush1.bf16.msra.mxu0 %v768
    %826 = vmatprep.subr.bf16.mxu0 0
    %827 = vmatpush1.bf16.msra.mxu0 %v769
    %828 = vmatprep.subr.bf16.mxu0 0
    %829 = vmatpush1.bf16.msra.mxu0 %v770
    %830 = vmatprep.subr.bf16.mxu0 0
    %831 = vmatpush1.bf16.msra.mxu0 %v771
    %832 = vmatprep.subr.bf16.mxu0 0
    %833 = vmatpush1.bf16.msra.mxu0 %v772
    %834 = vmatprep.subr.bf16.mxu0 0
    %835 = vmatpush1.bf16.msra.mxu0 %v773
    %836 = vmatprep.subr.bf16.mxu0 0
    %837 = vmatpush1.bf16.msra.mxu0 %v774
    %838 = vmatprep.subr.bf16.mxu0 0
    %839 = vmatpush1.bf16.msra.mxu0 %v775
    %840 = vmatprep.mubr.bf16.mxu0 %v621
    %841 = vmatmul.mubr.bf16.gmra.mrb[0].mxu0 %v620
    %v842 = vpop.f32.mrb[0].mxu0
    %v843 = vadd.f32 0.0, %v842
    %v844 = vpop.f32.mrb[0].mxu0
    %v845 = vpop.f32.mrb[0].mxu0
    %v846 = vadd.f32 0.0, %v845
    %v847 = vpop.f32.mrb[0].mxu0
    %848 = vmatprep.mubr.bf16.mxu0 %v656
    %849 = vmatmul.mubr.bf16.gmra.mrb[0].mxu0 %v655
    %v850 = vpop.f32.mrb[0].mxu0
    %v851 = vadd.f32 0.0, %v850
    %v852 = vpop.f32.mrb[0].mxu0
    %v853 = vpop.f32.mrb[0].mxu0
    %v854 = vadd.f32 0.0, %v853
    %v855 = vpop.f32.mrb[0].mxu0
    %856 = vdwg.mxu0
    %857 = vmatprep.subr.bf16.mxu0 0
    %858 = vmatpush1.bf16.msra.mxu0 %v776
    %859 = vmatprep.subr.bf16.mxu0 0
    %860 = vmatpush1.bf16.msra.mxu0 %v777
    %861 = vmatprep.subr.bf16.mxu0 0
    %862 = vmatpush1.bf16.msra.mxu0 %v778
    %863 = vmatprep.subr.bf16.mxu0 0
    %864 = vmatpush1.bf16.msra.mxu0 %v779
    %865 = vmatprep.subr.bf16.mxu0 0
    %866 = vmatpush1.bf16.msra.mxu0 %v780
    %867 = vmatprep.subr.bf16.mxu0 0
    %868 = vmatpush1.bf16.msra.mxu0 %v781
    %869 = vmatprep.subr.bf16.mxu0 0
    %870 = vmatpush1.bf16.msra.mxu0 %v782
    %871 = vmatprep.subr.bf16.mxu0 0
    %872 = vmatpush1.bf16.msra.mxu0 %v783
    %873 = vmatprep.subr.bf16.mxu0 0
    %874 = vmatpush1.bf16.msra.mxu0 0
    %875 = vmatprep.subr.bf16.mxu0 0
    %876 = vmatpush1.bf16.msra.mxu0 0
    %877 = vmatprep.subr.bf16.mxu0 0
    %878 = vmatpush1.bf16.msra.mxu0 0
    %879 = vmatprep.subr.bf16.mxu0 0
    %880 = vmatpush1.bf16.msra.mxu0 0
    %881 = vmatprep.subr.bf16.mxu0 0
    %882 = vmatpush1.bf16.msra.mxu0 0
    %883 = vmatprep.subr.bf16.mxu0 0
    %884 = vmatpush1.bf16.msra.mxu0 0
    %885 = vmatprep.subr.bf16.mxu0 0
    %886 = vmatpush1.bf16.msra.mxu0 0
    %887 = vmatprep.subr.bf16.mxu0 0
    %888 = vmatpush1.bf16.msra.mxu0 0
    %889 = vmatprep.mubr.bf16.mxu0 0
    %890 = vmatmul.mubr.bf16.gmra.mrb[0].mxu0 %v622
    %v891 = vpop.f32.mrb[0].mxu0
    %v892 = vadd.f32 %v843, %v891
    %v893 = vpop.f32.mrb[0].mxu0
    %v894 = vpop.f32.mrb[0].mxu0
    %v895 = vadd.f32 %v846, %v894
    %v896 = vpop.f32.mrb[0].mxu0
    %897 = vmatprep.mubr.bf16.mxu0 0
    %898 = vmatmul.mubr.bf16.gmra.mrb[0].mxu0 %v657
    %v899 = vpop.f32.mrb[0].mxu0
    %v900 = vadd.f32 %v851, %v899
    %v901 = vpop.f32.mrb[0].mxu0
    %v902 = vpop.f32.mrb[0].mxu0
    %v903 = vadd.f32 %v854, %v902
    %v904 = vpop.f32.mrb[0].mxu0
    %905 = vdwg.mxu0
    %v906 = vcombine.low %v324, %v340
    %v907 = vcombine.high %v324, %v340
    %v908 = vcombine.low %v356, %v372
    %v909 = vcombine.high %v356, %v372
    %v911 = vunpack.c.l.s4 1983009808
    %v912 = vunpack.c.0.s8 %v911
    %v913 = vlaneseq
    %v914 = vshrl.u32 %v913, 7
    %v915 = vsub.s32 %v912, %v914
    %v916 = vrot.slane %v906, %v915
    %v918 = vunpack.c.l.s4 1983009808
    %v919 = vunpack.c.0.s8 %v918
    %v920 = vlaneseq
    %v921 = vshrl.u32 %v920, 7
    %v922 = vsub.s32 %v919, %v921
    %v923 = vrot.slane %v907, %v922
    %v925 = vunpack.c.l.s4 1983009808
    %v926 = vunpack.c.0.s8 %v925
    %v927 = vlaneseq
    %v928 = vshrl.u32 %v927, 7
    %v929 = vsub.s32 %v926, %v928
    %v930 = vrot.slane %v908, %v929
    %v932 = vunpack.c.l.s4 1983009808
    %v933 = vunpack.c.0.s8 %v932
    %v934 = vlaneseq
    %v935 = vshrl.u32 %v934, 7
    %v936 = vsub.s32 %v933, %v935
    %v937 = vrot.slane %v909, %v936
    %v938 = vcombine.low %v916, %v930
    %v939 = vcombine.high %v916, %v930
    %v940 = vcombine.low %v923, %v937
    %v941 = vcombine.low %v388, %v404
    %v942 = vcombine.high %v388, %v404
    %v943 = vcombine.low %v420, %v436
    %v944 = vcombine.high %v420, %v436
    %v946 = vunpack.c.l.s4 1983009808
    %v947 = vunpack.c.0.s8 %v946
    %v948 = vlaneseq
    %v949 = vshrl.u32 %v948, 7
    %v950 = vsub.s32 %v947, %v949
    %v951 = vrot.slane %v941, %v950
    %v953 = vunpack.c.l.s4 1983009808
    %v954 = vunpack.c.0.s8 %v953
    %v955 = vlaneseq
    %v956 = vshrl.u32 %v955, 7
    %v957 = vsub.s32 %v954, %v956
    %v958 = vrot.slane %v942, %v957
    %v960 = vunpack.c.l.s4 1983009808
    %v961 = vunpack.c.0.s8 %v960
    %v962 = vlaneseq
    %v963 = vshrl.u32 %v962, 7
    %v964 = vsub.s32 %v961, %v963
    %v965 = vrot.slane %v943, %v964
    %v967 = vunpack.c.l.s4 1983009808
    %v968 = vunpack.c.0.s8 %v967
    %v969 = vlaneseq
    %v970 = vshrl.u32 %v969, 7
    %v971 = vsub.s32 %v968, %v970
    %v972 = vrot.slane %v944, %v971
    %v973 = vcombine.low %v951, %v965
    %v974 = vcombine.high %v951, %v965
    %v975 = vcombine.low %v958, %v972
    %v1030 = vunpack.c.l.b16 %v437
    %v1031 = vunpack.c.l.b16 %v438
    %v1032 = vunpack.c.l.b16 %v439
    %v1033 = vunpack.c.l.b16 %v440
    %v1034 = vunpack.c.l.b16 %v441
    %v1035 = vunpack.c.l.b16 %v442
    %v1036 = vunpack.c.l.b16 %v443
    %v1037 = vunpack.c.l.b16 %v444
    %v1038 = vunpack.c.l.b16 %v445
    %v1039 = vunpack.c.l.b16 %v446
    %v1040 = vunpack.c.l.b16 %v447
    %v1041 = vunpack.c.l.b16 %v448
    %v1042 = vunpack.c.l.b16 %v449
    %v1043 = vunpack.c.l.b16 %v450
    %v1044 = vunpack.c.l.b16 %v451
    %v1045 = vunpack.c.l.b16 %v452
    %v1046 = vunpack.c.l.b16 %v453
    %v1047 = vunpack.c.l.b16 %v454
    %v1048 = vunpack.c.l.b16 %v455
    %v1049 = vunpack.c.l.b16 %v456
    %v1050 = vunpack.c.l.b16 %v457
    %v1051 = vunpack.c.l.b16 %v458
    %v1052 = vunpack.c.l.b16 %v459
    %v1053 = vunpack.c.l.b16 %v460
    %v1054 = vunpack.c.l.b16 %v461
    %v1055 = vunpack.c.l.b16 %v462
    %v1056 = vunpack.c.l.b16 %v463
    %v1057 = vunpack.c.l.b16 %v464
    %v1058 = vunpack.c.l.b16 %v465
    %v1059 = vunpack.c.l.b16 %v466
    %v1060 = vunpack.c.l.b16 %v467
    %v1061 = vunpack.c.l.b16 %v468
    %v1062 = vunpack.c.l.b16 %v469
    %v1063 = vunpack.c.l.b16 %v470
    %v1064 = vunpack.c.l.b16 %v471
    %v1065 = vunpack.c.l.b16 %v472
    %v1066 = vunpack.c.l.b16 %v473
    %v1067 = vunpack.c.l.b16 %v474
    %v1068 = vunpack.c.l.b16 %v475
    %v1069 = vunpack.c.l.b16 %v476
    %v1070 = vunpack.c.l.b16 %v477
    %v1071 = vunpack.c.l.b16 %v478
    %v1072 = vunpack.c.l.b16 %v479
    %v1073 = vunpack.c.l.b16 %v480
    %v1074 = vunpack.c.l.b16 %v481
    %v1075 = vunpack.c.l.b16 %v482
    %v1076 = vunpack.c.l.b16 %v483
    %v1077 = vunpack.c.l.b16 %v484
    %v1078 = vpack.c.b16 %v1031, %v1030
    %v1079 = vpack.c.b16 %v1033, %v1032
    %v1080 = vpack.c.b16 %v1035, %v1034
    %v1081 = vpack.c.b16 %v1037, %v1036
    %v1082 = vpack.c.b16 %v1039, %v1038
    %v1083 = vpack.c.b16 %v1041, %v1040
    %v1084 = vpack.c.b16 %v1043, %v1042
    %v1085 = vpack.c.b16 %v1045, %v1044
    %v1086 = vpack.c.b16 %v1047, %v1046
    %v1087 = vpack.c.b16 %v1049, %v1048
    %v1088 = vpack.c.b16 %v1051, %v1050
    %v1089 = vpack.c.b16 %v1053, %v1052
    %v1090 = vpack.c.b16 %v1055, %v1054
    %v1091 = vpack.c.b16 %v1057, %v1056
    %v1092 = vpack.c.b16 %v1059, %v1058
    %v1093 = vpack.c.b16 %v1061, %v1060
    %v1094 = vpack.c.b16 %v1063, %v1062
    %v1095 = vpack.c.b16 %v1065, %v1064
    %v1096 = vpack.c.b16 %v1067, %v1066
    %v1097 = vpack.c.b16 %v1069, %v1068
    %v1098 = vpack.c.b16 %v1071, %v1070
    %v1099 = vpack.c.b16 %v1073, %v1072
    %v1100 = vpack.c.b16 %v1075, %v1074
    %v1101 = vpack.c.b16 %v1077, %v1076
    %1126 = vmatprep.subr.bf16.mxu0 0
    %1127 = vmatpush1.bf16.msra.mxu0 %v1078
    %1128 = vmatprep.subr.bf16.mxu0 0
    %1129 = vmatpush1.bf16.msra.mxu0 %v1079
    %1130 = vmatprep.subr.bf16.mxu0 0
    %1131 = vmatpush1.bf16.msra.mxu0 %v1080
    %1132 = vmatprep.subr.bf16.mxu0 0
    %1133 = vmatpush1.bf16.msra.mxu0 %v1081
    %1134 = vmatprep.subr.bf16.mxu0 0
    %1135 = vmatpush1.bf16.msra.mxu0 %v1082
    %1136 = vmatprep.subr.bf16.mxu0 0
    %1137 = vmatpush1.bf16.msra.mxu0 %v1083
    %1138 = vmatprep.subr.bf16.mxu0 0
    %1139 = vmatpush1.bf16.msra.mxu0 %v1084
    %1140 = vmatprep.subr.bf16.mxu0 0
    %1141 = vmatpush1.bf16.msra.mxu0 %v1085
    %1142 = vmatprep.subr.bf16.mxu0 0
    %1143 = vmatpush1.bf16.msra.mxu0 %v1086
    %1144 = vmatprep.subr.bf16.mxu0 0
    %1145 = vmatpush1.bf16.msra.mxu0 %v1087
    %1146 = vmatprep.subr.bf16.mxu0 0
    %1147 = vmatpush1.bf16.msra.mxu0 %v1088
    %1148 = vmatprep.subr.bf16.mxu0 0
    %1149 = vmatpush1.bf16.msra.mxu0 %v1089
    %1150 = vmatprep.subr.bf16.mxu0 0
    %1151 = vmatpush1.bf16.msra.mxu0 %v1090
    %1152 = vmatprep.subr.bf16.mxu0 0
    %1153 = vmatpush1.bf16.msra.mxu0 %v1091
    %1154 = vmatprep.subr.bf16.mxu0 0
    %1155 = vmatpush1.bf16.msra.mxu0 %v1092
    %1156 = vmatprep.subr.bf16.mxu0 0
    %1157 = vmatpush1.bf16.msra.mxu0 %v1093
    %1158 = vmatprep.mubr.bf16.mxu0 %v939
    %1159 = vmatmul.mubr.bf16.gmra.mrb[0].mxu0 %v938
    %v1160 = vpop.f32.mrb[0].mxu0
    %v1161 = vadd.f32 %v892, %v1160
    %v1162 = vpop.f32.mrb[0].mxu0
    %v1163 = vpop.f32.mrb[0].mxu0
    %v1164 = vadd.f32 %v895, %v1163
    %v1165 = vpop.f32.mrb[0].mxu0
    %1166 = vmatprep.mubr.bf16.mxu0 %v974
    %1167 = vmatmul.mubr.bf16.gmra.mrb[0].mxu0 %v973
    %v1168 = vpop.f32.mrb[0].mxu0
    %v1169 = vadd.f32 %v900, %v1168
    %v1170 = vpop.f32.mrb[0].mxu0
    %v1171 = vpop.f32.mrb[0].mxu0
    %v1172 = vadd.f32 %v903, %v1171
    %v1173 = vpop.f32.mrb[0].mxu0
    %1174 = vdwg.mxu0
    %1175 = vmatprep.subr.bf16.mxu0 0
    %1176 = vmatpush1.bf16.msra.mxu0 %v1094
    %1177 = vmatprep.subr.bf16.mxu0 0
    %1178 = vmatpush1.bf16.msra.mxu0 %v1095
    %1179 = vmatprep.subr.bf16.mxu0 0
    %1180 = vmatpush1.bf16.msra.mxu0 %v1096
    %1181 = vmatprep.subr.bf16.mxu0 0
    %1182 = vmatpush1.bf16.msra.mxu0 %v1097
    %1183 = vmatprep.subr.bf16.mxu0 0
    %1184 = vmatpush1.bf16.msra.mxu0 %v1098
    %1185 = vmatprep.subr.bf16.mxu0 0
    %1186 = vmatpush1.bf16.msra.mxu0 %v1099
    %1187 = vmatprep.subr.bf16.mxu0 0
    %1188 = vmatpush1.bf16.msra.mxu0 %v1100
    %1189 = vmatprep.subr.bf16.mxu0 0
    %1190 = vmatpush1.bf16.msra.mxu0 %v1101
    %1191 = vmatprep.subr.bf16.mxu0 0
    %1192 = vmatpush1.bf16.msra.mxu0 0
    %1193 = vmatprep.subr.bf16.mxu0 0
    %1194 = vmatpush1.bf16.msra.mxu0 0
    %1195 = vmatprep.subr.bf16.mxu0 0
    %1196 = vmatpush1.bf16.msra.mxu0 0
    %1197 = vmatprep.subr.bf16.mxu0 0
    %1198 = vmatpush1.bf16.msra.mxu0 0
    %1199 = vmatprep.subr.bf16.mxu0 0
    %1200 = vmatpush1.bf16.msra.mxu0 0
    %1201 = vmatprep.subr.bf16.mxu0 0
    %1202 = vmatpush1.bf16.msra.mxu0 0
    %1203 = vmatprep.subr.bf16.mxu0 0
    %1204 = vmatpush1.bf16.msra.mxu0 0
    %1205 = vmatprep.subr.bf16.mxu0 0
    %1206 = vmatpush1.bf16.msra.mxu0 0
    %1207 = vmatprep.mubr.bf16.mxu0 0
    %1208 = vmatmul.mubr.bf16.gmra.mrb[0].mxu0 %v940
    %v1209 = vpop.f32.mrb[0].mxu0
    %v1210 = vadd.f32 %v1161, %v1209
    %v1211 = vpop.f32.mrb[0].mxu0
    %v1212 = vpop.f32.mrb[0].mxu0
    %v1213 = vadd.f32 %v1164, %v1212
    %v1214 = vpop.f32.mrb[0].mxu0
    %1215 = vmatprep.mubr.bf16.mxu0 0
    %1216 = vmatmul.mubr.bf16.gmra.mrb[0].mxu0 %v975
    %v1217 = vpop.f32.mrb[0].mxu0
    %v1218 = vadd.f32 %v1169, %v1217
    %v1219 = vpop.f32.mrb[0].mxu0
    %v1220 = vpop.f32.mrb[0].mxu0
    %v1221 = vadd.f32 %v1172, %v1220
    %v1222 = vpop.f32.mrb[0].mxu0
    %1223 = vdwg.mxu0
    %v1226 = vunpack.c.l.b16 %v214
    %v1227 = vunpack.c.l.b16 %v220
    %v1228 = vpack.c.b16 %v1226, %v1226
    %v1229 = vpack.c.b16 %v1227, %v1227
    %v1231 = vshrl.u32 %v1228, 16
    %v1233 = vshll.u32 %v1228, 16
    %v1235 = vrot.slane %v1233, 1
    %v1236 = vor.u32 %v1231, %v1235
    %v1238 = vshrl.u32 %v1229, 16
    %v1240 = vshll.u32 %v1229, 16
    %v1242 = vrot.slane %v1240, 1
    %v1243 = vor.u32 %v1238, %v1242
    %v1244 = vrot.slane %v1228, 1
    %v1245 = vrot.slane %v1229, 1
    %v1246 = vcombine.low %v214, %v1236
    %v1248 = vunpack.c.l.s4 1983009808
    %v1249 = vunpack.c.0.s8 %v1248
    %v1250 = vlaneseq
    %v1251 = vshrl.u32 %v1250, 7
    %v1252 = vsub.s32 %v1249, %v1251
    %v1253 = vrot.slane %v1246, %v1252
    %v1255 = vunpack.c.l.s4 1983009808
    %v1256 = vunpack.c.0.s8 %v1255
    %v1257 = vlaneseq
    %v1258 = vshrl.u32 %v1257, 7
    %v1259 = vsub.s32 %v1256, %v1258
    %v1260 = vrot.slane %v1244, %v1259
    %v1261 = vcombine.low %v1253, %v1260
    %v1262 = vcombine.low %v220, %v1243
    %v1264 = vunpack.c.l.s4 1983009808
    %v1265 = vunpack.c.0.s8 %v1264
    %v1266 = vlaneseq
    %v1267 = vshrl.u32 %v1266, 7
    %v1268 = vsub.s32 %v1265, %v1267
    %v1269 = vrot.slane %v1262, %v1268
    %v1271 = vunpack.c.l.s4 1983009808
    %v1272 = vunpack.c.0.s8 %v1271
    %v1273 = vlaneseq
    %v1274 = vshrl.u32 %v1273, 7
    %v1275 = vsub.s32 %v1272, %v1274
    %v1276 = vrot.slane %v1245, %v1275
    %v1277 = vcombine.low %v1269, %v1276
    %s1278 = scalar_lea.vmem [#allocation3], 384
    %v1279 = vld [vmem:[%s1278] sm:$0xf]
    %v1280 = vld [vmem:[%s1278 + $0x4] sm:$0xf]
    %v1281 = vld [vmem:[%s1278 + $0x8] sm:$0xf]
    %v1282 = vld [vmem:[%s1278 + $0xc] sm:$0xf]
    %v1283 = vld [vmem:[%s1278 + $0x10] sm:$0xf]
    %v1284 = vld [vmem:[%s1278 + $0x14] sm:$0xf]
    %v1285 = vld [vmem:[%s1278 + $0x18] sm:$0xf]
    %v1286 = vld [vmem:[%s1278 + $0x1c] sm:$0xf]
    %v1287 = vld [vmem:[%s1278 + $0x20] sm:$0xf]
    %v1288 = vld [vmem:[%s1278 + $0x24] sm:$0xf]
    %v1289 = vld [vmem:[%s1278 + $0x28] sm:$0xf]
    %v1290 = vld [vmem:[%s1278 + $0x2c] sm:$0xf]
    %v1291 = vld [vmem:[%s1278 + $0x30] sm:$0xf]
    %v1292 = vld [vmem:[%s1278 + $0x34] sm:$0xf]
    %v1293 = vld [vmem:[%s1278 + $0x38] sm:$0xf]
    %v1294 = vld [vmem:[%s1278 + $0x3c] sm:$0xf]
    %v1295 = vld [vmem:[%s1278 + $0x40] sm:$0xf]
    %v1296 = vld [vmem:[%s1278 + $0x44] sm:$0xf]
    %v1297 = vld [vmem:[%s1278 + $0x48] sm:$0xf]
    %v1298 = vld [vmem:[%s1278 + $0x4c] sm:$0xf]
    %v1299 = vld [vmem:[%s1278 + $0x50] sm:$0xf]
    %v1300 = vld [vmem:[%s1278 + $0x54] sm:$0xf]
    %v1301 = vld [vmem:[%s1278 + $0x58] sm:$0xf]
    %v1302 = vld [vmem:[%s1278 + $0x5c] sm:$0xf]
    %v1303 = vld [vmem:[%s1278 + $0x60] sm:$0xf]
    %v1304 = vld [vmem:[%s1278 + $0x64] sm:$0xf]
    %v1305 = vld [vmem:[%s1278 + $0x68] sm:$0xf]
    %v1306 = vld [vmem:[%s1278 + $0x6c] sm:$0xf]
    %v1307 = vld [vmem:[%s1278 + $0x70] sm:$0xf]
    %v1308 = vld [vmem:[%s1278 + $0x74] sm:$0xf]
    %v1309 = vld [vmem:[%s1278 + $0x78] sm:$0xf]
    %v1310 = vld [vmem:[%s1278 + $0x7c] sm:$0xf]
    %v1311 = vld [vmem:[%s1278 + $0x80] sm:$0xf]
    %v1312 = vld [vmem:[%s1278 + $0x84] sm:$0xf]
    %v1313 = vld [vmem:[%s1278 + $0x88] sm:$0xf]
    %v1314 = vld [vmem:[%s1278 + $0x8c] sm:$0xf]
    %v1315 = vld [vmem:[%s1278 + $0x90] sm:$0xf]
    %v1316 = vld [vmem:[%s1278 + $0x94] sm:$0xf]
    %v1317 = vld [vmem:[%s1278 + $0x98] sm:$0xf]
    %v1318 = vld [vmem:[%s1278 + $0x9c] sm:$0xf]
    %v1319 = vld [vmem:[%s1278 + $0xa0] sm:$0xf]
    %v1320 = vld [vmem:[%s1278 + $0xa4] sm:$0xf]
    %v1321 = vld [vmem:[%s1278 + $0xa8] sm:$0xf]
    %v1322 = vld [vmem:[%s1278 + $0xac] sm:$0xf]
    %v1323 = vld [vmem:[%s1278 + $0xb0] sm:$0xf]
    %v1324 = vld [vmem:[%s1278 + $0xb4] sm:$0xf]
    %v1325 = vld [vmem:[%s1278 + $0xb8] sm:$0xf]
    %v1326 = vld [vmem:[%s1278 + $0xbc] sm:$0xf]
    %v1327 = vcombine.low %v522, %v1261
    %v1328 = vcombine.high %v522, %v1261
    %v1330 = vunpack.c.l.s4 1983009808
    %v1331 = vunpack.c.0.s8 %v1330
    %v1332 = vlaneseq
    %v1333 = vshrl.u32 %v1332, 7
    %v1334 = vsub.s32 %v1331, %v1333
    %v1335 = vrot.slane %v1327, %v1334
    %v1337 = vunpack.c.l.s4 1983009808
    %v1338 = vunpack.c.0.s8 %v1337
    %v1339 = vlaneseq
    %v1340 = vshrl.u32 %v1339, 7
    %v1341 = vsub.s32 %v1338, %v1340
    %v1342 = vrot.slane %v1328, %v1341
    %v1343 = vcombine.low %v930, %v1335
    %v1344 = vcombine.high %v930, %v1335
    %v1345 = vcombine.low %v937, %v1342
    %v1346 = vcombine.low %v538, %v1277
    %v1347 = vcombine.high %v538, %v1277
    %v1349 = vunpack.c.l.s4 1983009808
    %v1350 = vunpack.c.0.s8 %v1349
    %v1351 = vlaneseq
    %v1352 = vshrl.u32 %v1351, 7
    %v1353 = vsub.s32 %v1350, %v1352
    %v1354 = vrot.slane %v1346, %v1353
    %v1356 = vunpack.c.l.s4 1983009808
    %v1357 = vunpack.c.0.s8 %v1356
    %v1358 = vlaneseq
    %v1359 = vshrl.u32 %v1358, 7
    %v1360 = vsub.s32 %v1357, %v1359
    %v1361 = vrot.slane %v1347, %v1360
    %v1362 = vcombine.low %v965, %v1354
    %v1363 = vcombine.high %v965, %v1354
    %v1364 = vcombine.low %v972, %v1361
    %v1419 = vunpack.c.l.b16 %v1279
    %v1420 = vunpack.c.l.b16 %v1280
    %v1421 = vunpack.c.l.b16 %v1281
    %v1422 = vunpack.c.l.b16 %v1282
    %v1423 = vunpack.c.l.b16 %v1283
    %v1424 = vunpack.c.l.b16 %v1284
    %v1425 = vunpack.c.l.b16 %v1285
    %v1426 = vunpack.c.l.b16 %v1286
    %v1427 = vunpack.c.l.b16 %v1287
    %v1428 = vunpack.c.l.b16 %v1288
    %v1429 = vunpack.c.l.b16 %v1289
    %v1430 = vunpack.c.l.b16 %v1290
    %v1431 = vunpack.c.l.b16 %v1291
    %v1432 = vunpack.c.l.b16 %v1292
    %v1433 = vunpack.c.l.b16 %v1293
    %v1434 = vunpack.c.l.b16 %v1294
    %v1435 = vunpack.c.l.b16 %v1295
    %v1436 = vunpack.c.l.b16 %v1296
    %v1437 = vunpack.c.l.b16 %v1297
    %v1438 = vunpack.c.l.b16 %v1298
    %v1439 = vunpack.c.l.b16 %v1299
    %v1440 = vunpack.c.l.b16 %v1300
    %v1441 = vunpack.c.l.b16 %v1301
    %v1442 = vunpack.c.l.b16 %v1302
    %v1443 = vunpack.c.l.b16 %v1303
    %v1444 = vunpack.c.l.b16 %v1304
    %v1445 = vunpack.c.l.b16 %v1305
    %v1446 = vunpack.c.l.b16 %v1306
    %v1447 = vunpack.c.l.b16 %v1307
    %v1448 = vunpack.c.l.b16 %v1308
    %v1449 = vunpack.c.l.b16 %v1309
    %v1450 = vunpack.c.l.b16 %v1310
    %v1451 = vunpack.c.l.b16 %v1311
    %v1452 = vunpack.c.l.b16 %v1312
    %v1453 = vunpack.c.l.b16 %v1313
    %v1454 = vunpack.c.l.b16 %v1314
    %v1455 = vunpack.c.l.b16 %v1315
    %v1456 = vunpack.c.l.b16 %v1316
    %v1457 = vunpack.c.l.b16 %v1317
    %v1458 = vunpack.c.l.b16 %v1318
    %v1459 = vunpack.c.l.b16 %v1319
    %v1460 = vunpack.c.l.b16 %v1320
    %v1461 = vunpack.c.l.b16 %v1321
    %v1462 = vunpack.c.l.b16 %v1322
    %v1463 = vunpack.c.l.b16 %v1323
    %v1464 = vunpack.c.l.b16 %v1324
    %v1465 = vunpack.c.l.b16 %v1325
    %v1466 = vunpack.c.l.b16 %v1326
    %v1467 = vpack.c.b16 %v1420, %v1419
    %v1468 = vpack.c.b16 %v1422, %v1421
    %v1469 = vpack.c.b16 %v1424, %v1423
    %v1470 = vpack.c.b16 %v1426, %v1425
    %v1471 = vpack.c.b16 %v1428, %v1427
    %v1472 = vpack.c.b16 %v1430, %v1429
    %v1473 = vpack.c.b16 %v1432, %v1431
    %v1474 = vpack.c.b16 %v1434, %v1433
    %v1475 = vpack.c.b16 %v1436, %v1435
    %v1476 = vpack.c.b16 %v1438, %v1437
    %v1477 = vpack.c.b16 %v1440, %v1439
    %v1478 = vpack.c.b16 %v1442, %v1441
    %v1479 = vpack.c.b16 %v1444, %v1443
    %v1480 = vpack.c.b16 %v1446, %v1445
    %v1481 = vpack.c.b16 %v1448, %v1447
    %v1482 = vpack.c.b16 %v1450, %v1449
    %v1483 = vpack.c.b16 %v1452, %v1451
    %v1484 = vpack.c.b16 %v1454, %v1453
    %v1485 = vpack.c.b16 %v1456, %v1455
    %v1486 = vpack.c.b16 %v1458, %v1457
    %v1487 = vpack.c.b16 %v1460, %v1459
    %v1488 = vpack.c.b16 %v1462, %v1461
    %v1489 = vpack.c.b16 %v1464, %v1463
    %v1490 = vpack.c.b16 %v1466, %v1465
    %1515 = vmatprep.subr.bf16.mxu0 0
    %1516 = vmatpush1.bf16.msra.mxu0 %v1467
    %1517 = vmatprep.subr.bf16.mxu0 0
    %1518 = vmatpush1.bf16.msra.mxu0 %v1468
    %1519 = vmatprep.subr.bf16.mxu0 0
    %1520 = vmatpush1.bf16.msra.mxu0 %v1469
    %1521 = vmatprep.subr.bf16.mxu0 0
    %1522 = vmatpush1.bf16.msra.mxu0 %v1470
    %1523 = vmatprep.subr.bf16.mxu0 0
    %1524 = vmatpush1.bf16.msra.mxu0 %v1471
    %1525 = vmatprep.subr.bf16.mxu0 0
    %1526 = vmatpush1.bf16.msra.mxu0 %v1472
    %1527 = vmatprep.subr.bf16.mxu0 0
    %1528 = vmatpush1.bf16.msra.mxu0 %v1473
    %1529 = vmatprep.subr.bf16.mxu0 0
    %1530 = vmatpush1.bf16.msra.mxu0 %v1474
    %1531 = vmatprep.subr.bf16.mxu0 0
    %1532 = vmatpush1.bf16.msra.mxu0 %v1475
    %1533 = vmatprep.subr.bf16.mxu0 0
    %1534 = vmatpush1.bf16.msra.mxu0 %v1476
    %1535 = vmatprep.subr.bf16.mxu0 0
    %1536 = vmatpush1.bf16.msra.mxu0 %v1477
    %1537 = vmatprep.subr.bf16.mxu0 0
    %1538 = vmatpush1.bf16.msra.mxu0 %v1478
    %1539 = vmatprep.subr.bf16.mxu0 0
    %1540 = vmatpush1.bf16.msra.mxu0 %v1479
    %1541 = vmatprep.subr.bf16.mxu0 0
    %1542 = vmatpush1.bf16.msra.mxu0 %v1480
    %1543 = vmatprep.subr.bf16.mxu0 0
    %1544 = vmatpush1.bf16.msra.mxu0 %v1481
    %1545 = vmatprep.subr.bf16.mxu0 0
    %1546 = vmatpush1.bf16.msra.mxu0 %v1482
    %1547 = vmatprep.mubr.bf16.mxu0 %v1344
    %1548 = vmatmul.mubr.bf16.gmra.mrb[0].mxu0 %v1343
    %v1549 = vpop.f32.mrb[0].mxu0
    %v1550 = vadd.f32 0.0, %v1549
    %v1551 = vpop.f32.mrb[0].mxu0
    %v1552 = vpop.f32.mrb[0].mxu0
    %v1553 = vadd.f32 0.0, %v1552
    %v1554 = vpop.f32.mrb[0].mxu0
    %1555 = vmatprep.mubr.bf16.mxu0 %v1363
    %1556 = vmatmul.mubr.bf16.gmra.mrb[0].mxu0 %v1362
    %v1557 = vpop.f32.mrb[0].mxu0
    %v1558 = vadd.f32 0.0, %v1557
    %v1559 = vpop.f32.mrb[0].mxu0
    %v1560 = vpop.f32.mrb[0].mxu0
    %v1561 = vadd.f32 0.0, %v1560
    %v1562 = vpop.f32.mrb[0].mxu0
    %1563 = vdwg.mxu0
    %1564 = vmatprep.subr.bf16.mxu0 0
    %1565 = vmatpush1.bf16.msra.mxu0 %v1483
    %1566 = vmatprep.subr.bf16.mxu0 0
    %1567 = vmatpush1.bf16.msra.mxu0 %v1484
    %1568 = vmatprep.subr.bf16.mxu0 0
    %1569 = vmatpush1.bf16.msra.mxu0 %v1485
    %1570 = vmatprep.subr.bf16.mxu0 0
    %1571 = vmatpush1.bf16.msra.mxu0 %v1486
    %1572 = vmatprep.subr.bf16.mxu0 0
    %1573 = vmatpush1.bf16.msra.mxu0 %v1487
    %1574 = vmatprep.subr.bf16.mxu0 0
    %1575 = vmatpush1.bf16.msra.mxu0 %v1488
    %1576 = vmatprep.subr.bf16.mxu0 0
    %1577 = vmatpush1.bf16.msra.mxu0 %v1489
    %1578 = vmatprep.subr.bf16.mxu0 0
    %1579 = vmatpush1.bf16.msra.mxu0 %v1490
    %1580 = vmatprep.subr.bf16.mxu0 0
    %1581 = vmatpush1.bf16.msra.mxu0 0
    %1582 = vmatprep.subr.bf16.mxu0 0
    %1583 = vmatpush1.bf16.msra.mxu0 0
    %1584 = vmatprep.subr.bf16.mxu0 0
    %1585 = vmatpush1.bf16.msra.mxu0 0
    %1586 = vmatprep.subr.bf16.mxu0 0
    %1587 = vmatpush1.bf16.msra.mxu0 0
    %1588 = vmatprep.subr.bf16.mxu0 0
    %1589 = vmatpush1.bf16.msra.mxu0 0
    %1590 = vmatprep.subr.bf16.mxu0 0
    %1591 = vmatpush1.bf16.msra.mxu0 0
    %1592 = vmatprep.subr.bf16.mxu0 0
    %1593 = vmatpush1.bf16.msra.mxu0 0
    %1594 = vmatprep.subr.bf16.mxu0 0
    %1595 = vmatpush1.bf16.msra.mxu0 0
    %1596 = vmatprep.mubr.bf16.mxu0 0
    %1597 = vmatmul.mubr.bf16.gmra.mrb[0].mxu0 %v1345
    %v1598 = vpop.f32.mrb[0].mxu0
    %v1599 = vadd.f32 %v1550, %v1598
    %v1600 = vpop.f32.mrb[0].mxu0
    %v1601 = vpop.f32.mrb[0].mxu0
    %v1602 = vadd.f32 %v1553, %v1601
    %v1603 = vpop.f32.mrb[0].mxu0
    %1604 = vmatprep.mubr.bf16.mxu0 0
    %1605 = vmatmul.mubr.bf16.gmra.mrb[0].mxu0 %v1364
    %v1606 = vpop.f32.mrb[0].mxu0
    %v1607 = vadd.f32 %v1558, %v1606
    %v1608 = vpop.f32.mrb[0].mxu0
    %v1609 = vpop.f32.mrb[0].mxu0
    %v1610 = vadd.f32 %v1561, %v1609
    %v1611 = vpop.f32.mrb[0].mxu0
    %1612 = vdwg.mxu0
    %v1613 = vadd.f32 %v1210, %v1599
    %v1614 = vadd.f32 %v1213, %v1602
    %v1615 = vadd.f32 %v1218, %v1607
    %v1616 = vadd.f32 %v1221, %v1610
    %v1617 = vld [vmem:[%s2] sm:$0x1]
    %v1619 = vlaneseq
    %v1620 = vshrl.u32 %v1619, 7
    %v1621 = vsub.s32 0, %v1620
    %v1622 = vrot.slane %v1617, %v1621
    %v1624 = vadd.f32 %v1613, %v1622
    %v1625 = vadd.f32 %v1614, %v1622
    %v1626 = vadd.f32 %v1615, %v1622
    %v1627 = vadd.f32 %v1616, %v1622
    %v1628 = vmax.f32 %v1624, 0.0
    %v1629 = vmax.f32 %v1625, 0.0
    %v1630 = vmax.f32 %v1626, 0.0
    %v1631 = vmax.f32 %v1627, 0.0
    %v1636 = vcombine.high %v1628, %v1628
    %v1638 = vunpack.c.l.s4 1983009808
    %v1639 = vunpack.c.0.s8 %v1638
    %v1640 = vlaneseq
    %v1641 = vshrl.u32 %v1640, 7
    %v1642 = vsub.s32 %v1639, %v1641
    %v1643 = vrot.slane %v1628, %v1642
    %v1645 = vunpack.c.l.s4 1983009808
    %v1646 = vunpack.c.0.s8 %v1645
    %v1647 = vlaneseq
    %v1648 = vshrl.u32 %v1647, 7
    %v1649 = vsub.s32 %v1646, %v1648
    %v1650 = vrot.slane %v1636, %v1649
    %v1651 = vcombine.high %v1643, %v1643
    %v1652 = vcombine.high %v1650, %v1650
    %v1653 = vcombine.high %v1629, %v1629
    %v1655 = vunpack.c.l.s4 1983009808
    %v1656 = vunpack.c.0.s8 %v1655
    %v1657 = vlaneseq
    %v1658 = vshrl.u32 %v1657, 7
    %v1659 = vsub.s32 %v1656, %v1658
    %v1660 = vrot.slane %v1629, %v1659
    %v1662 = vunpack.c.l.s4 1983009808
    %v1663 = vunpack.c.0.s8 %v1662
    %v1664 = vlaneseq
    %v1665 = vshrl.u32 %v1664, 7
    %v1666 = vsub.s32 %v1663, %v1665
    %v1667 = vrot.slane %v1653, %v1666
    %v1668 = vcombine.high %v1660, %v1660
    %v1669 = vcombine.high %v1667, %v1667
    %v1670 = vcombine.high %v1630, %v1630
    %v1672 = vunpack.c.l.s4 1983009808
    %v1673 = vunpack.c.0.s8 %v1672
    %v1674 = vlaneseq
    %v1675 = vshrl.u32 %v1674, 7
    %v1676 = vsub.s32 %v1673, %v1675
    %v1677 = vrot.slane %v1630, %v1676
    %v1679 = vunpack.c.l.s4 1983009808
    %v1680 = vunpack.c.0.s8 %v1679
    %v1681 = vlaneseq
    %v1682 = vshrl.u32 %v1681, 7
    %v1683 = vsub.s32 %v1680, %v1682
    %v1684 = vrot.slane %v1670, %v1683
    %v1685 = vcombine.high %v1677, %v1677
    %v1686 = vcombine.high %v1684, %v1684
    %v1687 = vcombine.high %v1631, %v1631
    %v1689 = vunpack.c.l.s4 1983009808
    %v1690 = vunpack.c.0.s8 %v1689
    %v1691 = vlaneseq
    %v1692 = vshrl.u32 %v1691, 7
    %v1693 = vsub.s32 %v1690, %v1692
    %v1694 = vrot.slane %v1631, %v1693
    %v1696 = vunpack.c.l.s4 1983009808
    %v1697 = vunpack.c.0.s8 %v1696
    %v1698 = vlaneseq
    %v1699 = vshrl.u32 %v1698, 7
    %v1700 = vsub.s32 %v1697, %v1699
    %v1701 = vrot.slane %v1687, %v1700
    %v1702 = vcombine.high %v1694, %v1694
    %v1703 = vcombine.high %v1701, %v1701
    %v1720 = vrot.slane %v1643, 7
    %v1721 = vrot.slane %v1720, 2
    %v1722 = vrot.slane %v1651, 7
    %v1723 = vrot.slane %v1722, 2
    %v1724 = vrot.slane %v1660, 7
    %v1725 = vrot.slane %v1724, 2
    %v1726 = vrot.slane %v1668, 7
    %v1727 = vrot.slane %v1726, 2
    %v1728 = vrot.slane %v1677, 7
    %v1729 = vrot.slane %v1728, 2
    %v1730 = vrot.slane %v1685, 7
    %v1731 = vrot.slane %v1730, 2
    %v1732 = vrot.slane %v1694, 7
    %v1733 = vrot.slane %v1732, 2
    %v1734 = vrot.slane %v1702, 7
    %v1735 = vrot.slane %v1734, 2
    %v1744 = vmax.f32 %v1643, %v1721
    %v1745 = vmax.f32 %v1651, %v1723
    %v1746 = vmax.f32 %v1660, %v1725
    %v1747 = vmax.f32 %v1668, %v1727
    %v1748 = vmax.f32 %v1677, %v1729
    %v1749 = vmax.f32 %v1685, %v1731
    %v1750 = vmax.f32 %v1694, %v1733
    %v1751 = vmax.f32 %v1702, %v1735
    %v1752 = vrot.slane %v1650, 7
    %v1753 = vrot.slane %v1752, 2
    %v1754 = vrot.slane %v1652, 7
    %v1755 = vrot.slane %v1754, 2
    %v1756 = vrot.slane %v1667, 7
    %v1757 = vrot.slane %v1756, 2
    %v1758 = vrot.slane %v1669, 7
    %v1759 = vrot.slane %v1758, 2
    %v1760 = vrot.slane %v1684, 7
    %v1761 = vrot.slane %v1760, 2
    %v1762 = vrot.slane %v1686, 7
    %v1763 = vrot.slane %v1762, 2
    %v1764 = vrot.slane %v1701, 7
    %v1765 = vrot.slane %v1764, 2
    %v1766 = vrot.slane %v1703, 7
    %v1767 = vrot.slane %v1766, 2
    %v1776 = vmax.f32 %v1650, %v1753
    %v1777 = vmax.f32 %v1652, %v1755
    %v1778 = vmax.f32 %v1667, %v1757
    %v1779 = vmax.f32 %v1669, %v1759
    %v1780 = vmax.f32 %v1684, %v1761
    %v1781 = vmax.f32 %v1686, %v1763
    %v1782 = vmax.f32 %v1701, %v1765
    %v1783 = vmax.f32 %v1703, %v1767
    %v1784 = vmax.f32 %v1744, %v1776
    %v1785 = vmax.f32 %v1745, %v1777
    %v1786 = vmax.f32 %v1746, %v1778
    %v1787 = vmax.f32 %v1747, %v1779
    %v1788 = vmax.f32 %v1748, %v1780
    %v1789 = vmax.f32 %v1749, %v1781
    %v1790 = vmax.f32 %v1750, %v1782
    %v1791 = vmax.f32 %v1751, %v1783
    %v1792 = vpack.c.bf16 %v1784, %v1784
    %v1793 = vpack.c.bf16 %v1785, %v1785
    %v1794 = vpack.c.bf16 %v1786, %v1786
    %v1795 = vpack.c.bf16 %v1787, %v1787
    %v1796 = vpack.c.bf16 %v1788, %v1788
    %v1797 = vpack.c.bf16 %v1789, %v1789
    %v1798 = vpack.c.bf16 %v1790, %v1790
    %v1799 = vpack.c.bf16 %v1791, %v1791
    %v1809 = vunpack.c.l.s4 1966171168
    %v1810 = vunpack.c.0.s8 %v1809
    %v1811 = vlaneseq
    %v1812 = vshrl.u32 %v1811, 7
    %v1813 = vsub.s32 %v1810, %v1812
    %v1814 = vrot.slane %v1792, %v1813
    %v1816 = vunpack.c.l.s4 1966171168
    %v1817 = vunpack.c.0.s8 %v1816
    %v1818 = vlaneseq
    %v1819 = vshrl.u32 %v1818, 7
    %v1820 = vsub.s32 %v1817, %v1819
    %v1821 = vrot.slane %v1814, %v1820
    %v1823 = vunpack.c.l.s4 1966171168
    %v1824 = vunpack.c.0.s8 %v1823
    %v1825 = vlaneseq
    %v1826 = vshrl.u32 %v1825, 7
    %v1827 = vsub.s32 %v1824, %v1826
    %v1828 = vrot.slane %v1793, %v1827
    %v1830 = vunpack.c.l.s4 1966171168
    %v1831 = vunpack.c.0.s8 %v1830
    %v1832 = vlaneseq
    %v1833 = vshrl.u32 %v1832, 7
    %v1834 = vsub.s32 %v1831, %v1833
    %v1835 = vrot.slane %v1828, %v1834
    %v1837 = vunpack.c.l.s4 1966171168
    %v1838 = vunpack.c.0.s8 %v1837
    %v1839 = vlaneseq
    %v1840 = vshrl.u32 %v1839, 7
    %v1841 = vsub.s32 %v1838, %v1840
    %v1842 = vrot.slane %v1794, %v1841
    %v1844 = vunpack.c.l.s4 1966171168
    %v1845 = vunpack.c.0.s8 %v1844
    %v1846 = vlaneseq
    %v1847 = vshrl.u32 %v1846, 7
    %v1848 = vsub.s32 %v1845, %v1847
    %v1849 = vrot.slane %v1842, %v1848
    %v1851 = vunpack.c.l.s4 1966171168
    %v1852 = vunpack.c.0.s8 %v1851
    %v1853 = vlaneseq
    %v1854 = vshrl.u32 %v1853, 7
    %v1855 = vsub.s32 %v1852, %v1854
    %v1856 = vrot.slane %v1795, %v1855
    %v1858 = vunpack.c.l.s4 1966171168
    %v1859 = vunpack.c.0.s8 %v1858
    %v1860 = vlaneseq
    %v1861 = vshrl.u32 %v1860, 7
    %v1862 = vsub.s32 %v1859, %v1861
    %v1863 = vrot.slane %v1856, %v1862
    %v1865 = vunpack.c.l.s4 1966171168
    %v1866 = vunpack.c.0.s8 %v1865
    %v1867 = vlaneseq
    %v1868 = vshrl.u32 %v1867, 7
    %v1869 = vsub.s32 %v1866, %v1868
    %v1870 = vrot.slane %v1796, %v1869
    %v1872 = vunpack.c.l.s4 1966171168
    %v1873 = vunpack.c.0.s8 %v1872
    %v1874 = vlaneseq
    %v1875 = vshrl.u32 %v1874, 7
    %v1876 = vsub.s32 %v1873, %v1875
    %v1877 = vrot.slane %v1870, %v1876
    %v1879 = vunpack.c.l.s4 1966171168
    %v1880 = vunpack.c.0.s8 %v1879
    %v1881 = vlaneseq
    %v1882 = vshrl.u32 %v1881, 7
    %v1883 = vsub.s32 %v1880, %v1882
    %v1884 = vrot.slane %v1797, %v1883
    %v1886 = vunpack.c.l.s4 1966171168
    %v1887 = vunpack.c.0.s8 %v1886
    %v1888 = vlaneseq
    %v1889 = vshrl.u32 %v1888, 7
    %v1890 = vsub.s32 %v1887, %v1889
    %v1891 = vrot.slane %v1884, %v1890
    %v1893 = vunpack.c.l.s4 1966171168
    %v1894 = vunpack.c.0.s8 %v1893
    %v1895 = vlaneseq
    %v1896 = vshrl.u32 %v1895, 7
    %v1897 = vsub.s32 %v1894, %v1896
    %v1898 = vrot.slane %v1798, %v1897
    %v1900 = vunpack.c.l.s4 1966171168
    %v1901 = vunpack.c.0.s8 %v1900
    %v1902 = vlaneseq
    %v1903 = vshrl.u32 %v1902, 7
    %v1904 = vsub.s32 %v1901, %v1903
    %v1905 = vrot.slane %v1898, %v1904
    %v1907 = vunpack.c.l.s4 1966171168
    %v1908 = vunpack.c.0.s8 %v1907
    %v1909 = vlaneseq
    %v1910 = vshrl.u32 %v1909, 7
    %v1911 = vsub.s32 %v1908, %v1910
    %v1912 = vrot.slane %v1799, %v1911
    %v1914 = vunpack.c.l.s4 1966171168
    %v1915 = vunpack.c.0.s8 %v1914
    %v1916 = vlaneseq
    %v1917 = vshrl.u32 %v1916, 7
    %v1918 = vsub.s32 %v1915, %v1917
    %v1919 = vrot.slane %v1912, %v1918
    %v1921 = vunpack.c.l.s4 1935823168
    %v1922 = vunpack.c.0.s8 %v1921
    %v1923 = vlaneseq
    %v1924 = vshrl.u32 %v1923, 7
    %v1925 = vsub.s32 %v1922, %v1924
    %v1926 = vrot.slane %v1821, %v1925
    %v1928 = vunpack.c.l.s4 1935823168
    %v1929 = vunpack.c.0.s8 %v1928
    %v1930 = vlaneseq
    %v1931 = vshrl.u32 %v1930, 7
    %v1932 = vsub.s32 %v1929, %v1931
    %v1933 = vrot.slane %v1926, %v1932
    %v1935 = vunpack.c.l.s4 1935823168
    %v1936 = vunpack.c.0.s8 %v1935
    %v1937 = vlaneseq
    %v1938 = vshrl.u32 %v1937, 7
    %v1939 = vsub.s32 %v1936, %v1938
    %v1940 = vrot.slane %v1835, %v1939
    %v1942 = vunpack.c.l.s4 1935823168
    %v1943 = vunpack.c.0.s8 %v1942
    %v1944 = vlaneseq
    %v1945 = vshrl.u32 %v1944, 7
    %v1946 = vsub.s32 %v1943, %v1945
    %v1947 = vrot.slane %v1940, %v1946
    %v1949 = vunpack.c.l.s4 1935823168
    %v1950 = vunpack.c.0.s8 %v1949
    %v1951 = vlaneseq
    %v1952 = vshrl.u32 %v1951, 7
    %v1953 = vsub.s32 %v1950, %v1952
    %v1954 = vrot.slane %v1849, %v1953
    %v1956 = vunpack.c.l.s4 1935823168
    %v1957 = vunpack.c.0.s8 %v1956
    %v1958 = vlaneseq
    %v1959 = vshrl.u32 %v1958, 7
    %v1960 = vsub.s32 %v1957, %v1959
    %v1961 = vrot.slane %v1954, %v1960
    %v1963 = vunpack.c.l.s4 1935823168
    %v1964 = vunpack.c.0.s8 %v1963
    %v1965 = vlaneseq
    %v1966 = vshrl.u32 %v1965, 7
    %v1967 = vsub.s32 %v1964, %v1966
    %v1968 = vrot.slane %v1863, %v1967
    %v1970 = vunpack.c.l.s4 1935823168
    %v1971 = vunpack.c.0.s8 %v1970
    %v1972 = vlaneseq
    %v1973 = vshrl.u32 %v1972, 7
    %v1974 = vsub.s32 %v1971, %v1973
    %v1975 = vrot.slane %v1968, %v1974
    %v1977 = vunpack.c.l.s4 1935823168
    %v1978 = vunpack.c.0.s8 %v1977
    %v1979 = vlaneseq
    %v1980 = vshrl.u32 %v1979, 7
    %v1981 = vsub.s32 %v1978, %v1980
    %v1982 = vrot.slane %v1877, %v1981
    %v1984 = vunpack.c.l.s4 1935823168
    %v1985 = vunpack.c.0.s8 %v1984
    %v1986 = vlaneseq
    %v1987 = vshrl.u32 %v1986, 7
    %v1988 = vsub.s32 %v1985, %v1987
    %v1989 = vrot.slane %v1982, %v1988
    %v1991 = vunpack.c.l.s4 1935823168
    %v1992 = vunpack.c.0.s8 %v1991
    %v1993 = vlaneseq
    %v1994 = vshrl.u32 %v1993, 7
    %v1995 = vsub.s32 %v1992, %v1994
    %v1996 = vrot.slane %v1891, %v1995
    %v1998 = vunpack.c.l.s4 1935823168
    %v1999 = vunpack.c.0.s8 %v1998
    %v2000 = vlaneseq
    %v2001 = vshrl.u32 %v2000, 7
    %v2002 = vsub.s32 %v1999, %v2001
    %v2003 = vrot.slane %v1996, %v2002
    %v2005 = vunpack.c.l.s4 1935823168
    %v2006 = vunpack.c.0.s8 %v2005
    %v2007 = vlaneseq
    %v2008 = vshrl.u32 %v2007, 7
    %v2009 = vsub.s32 %v2006, %v2008
    %v2010 = vrot.slane %v1905, %v2009
    %v2012 = vunpack.c.l.s4 1935823168
    %v2013 = vunpack.c.0.s8 %v2012
    %v2014 = vlaneseq
    %v2015 = vshrl.u32 %v2014, 7
    %v2016 = vsub.s32 %v2013, %v2015
    %v2017 = vrot.slane %v2010, %v2016
    %v2019 = vunpack.c.l.s4 1935823168
    %v2020 = vunpack.c.0.s8 %v2019
    %v2021 = vlaneseq
    %v2022 = vshrl.u32 %v2021, 7
    %v2023 = vsub.s32 %v2020, %v2022
    %v2024 = vrot.slane %v1919, %v2023
    %v2026 = vunpack.c.l.s4 1935823168
    %v2027 = vunpack.c.0.s8 %v2026
    %v2028 = vlaneseq
    %v2029 = vshrl.u32 %v2028, 7
    %v2030 = vsub.s32 %v2027, %v2029
    %v2031 = vrot.slane %v2024, %v2030
    %v2032 = vunpack.c.l.b16 %v1933
    %v2033 = vunpack.c.l.b16 %v1947
    %v2034 = vunpack.c.l.b16 %v1961
    %v2035 = vunpack.c.l.b16 %v1975
    %v2036 = vunpack.c.l.b16 %v1989
    %v2037 = vunpack.c.l.b16 %v2003
    %v2038 = vunpack.c.l.b16 %v2017
    %v2039 = vunpack.c.l.b16 %v2031
    %v2040 = vrot.slane %v2033, 7
    %vm2041 = vcmask 1041409
    %v2042 = vsel %vm2041, %v2040, %v2032
    %v2043 = vrot.slane %v2035, 7
    %v2044 = vsel %vm2041, %v2043, %v2034
    %v2045 = vrot.slane %v2037, 7
    %v2046 = vsel %vm2041, %v2045, %v2036
    %v2047 = vrot.slane %v2039, 7
    %v2048 = vsel %vm2041, %v2047, %v2038
    %v2049 = vpack.c.b16 %v2042, %v2042
    %v2050 = vpack.c.b16 %v2044, %v2044
    %v2051 = vpack.c.b16 %v2046, %v2046
    %v2052 = vpack.c.b16 %v2048, %v2048
    %v2054 = vunpack.c.l.s4 1966171168
    %v2055 = vunpack.c.0.s8 %v2054
    %v2056 = vlaneseq
    %v2057 = vshrl.u32 %v2056, 7
    %v2058 = vsub.s32 %v2055, %v2057
    %v2059 = vrot.slane %v2049, %v2058
    %v2061 = vunpack.c.l.s4 1966171168
    %v2062 = vunpack.c.0.s8 %v2061
    %v2063 = vlaneseq
    %v2064 = vshrl.u32 %v2063, 7
    %v2065 = vsub.s32 %v2062, %v2064
    %v2066 = vrot.slane %v2059, %v2065
    %v2068 = vunpack.c.l.s4 1966171168
    %v2069 = vunpack.c.0.s8 %v2068
    %v2070 = vlaneseq
    %v2071 = vshrl.u32 %v2070, 7
    %v2072 = vsub.s32 %v2069, %v2071
    %v2073 = vrot.slane %v2050, %v2072
    %v2075 = vunpack.c.l.s4 1966171168
    %v2076 = vunpack.c.0.s8 %v2075
    %v2077 = vlaneseq
    %v2078 = vshrl.u32 %v2077, 7
    %v2079 = vsub.s32 %v2076, %v2078
    %v2080 = vrot.slane %v2073, %v2079
    %v2082 = vunpack.c.l.s4 1966171168
    %v2083 = vunpack.c.0.s8 %v2082
    %v2084 = vlaneseq
    %v2085 = vshrl.u32 %v2084, 7
    %v2086 = vsub.s32 %v2083, %v2085
    %v2087 = vrot.slane %v2051, %v2086
    %v2089 = vunpack.c.l.s4 1966171168
    %v2090 = vunpack.c.0.s8 %v2089
    %v2091 = vlaneseq
    %v2092 = vshrl.u32 %v2091, 7
    %v2093 = vsub.s32 %v2090, %v2092
    %v2094 = vrot.slane %v2087, %v2093
    %v2096 = vunpack.c.l.s4 1966171168
    %v2097 = vunpack.c.0.s8 %v2096
    %v2098 = vlaneseq
    %v2099 = vshrl.u32 %v2098, 7
    %v2100 = vsub.s32 %v2097, %v2099
    %v2101 = vrot.slane %v2052, %v2100
    %v2103 = vunpack.c.l.s4 1966171168
    %v2104 = vunpack.c.0.s8 %v2103
    %v2105 = vlaneseq
    %v2106 = vshrl.u32 %v2105, 7
    %v2107 = vsub.s32 %v2104, %v2106
    %v2108 = vrot.slane %v2101, %v2107
    %2113 = vst [vmem:[%s3] sm:$0x1] %v2066
    %2114 = vst [vmem:[%s3 + $0x1] sm:$0x1] %v2080
    %2115 = vst [vmem:[%s3 + $0x2] sm:$0x1] %v2094
    %2116 = vst [vmem:[%s3 + $0x3] sm:$0x1] %v2108
    // Predicated region
    $region22: #{vgg_forward.4} parent=1 // pred_check
      _
    $region23: #{vgg_forward.4} parent=1 // pred_check_branch
      %2118 = sbr.rel (0) target = $region25
    $region24: #{vgg_forward.4} parent=1 // pred_region
      _
    $region25: #{vgg_forward.4} parent=1 // pred_fallthru
      _
    // Predicated region
    $region26: #{vgg_forward.4} parent=1 // pred_check
      _
    $region27: #{vgg_forward.4} parent=1 // pred_check_branch
      %2120 = sbr.rel (0) target = $region29
    $region28: #{vgg_forward.4} parent=1 // pred_region
      _
    $region29: #{vgg_forward.4} parent=1 // pred_fallthru
      _
    %2121 = vsyncpa [#allocation4], 1

// kernel: vgg_forward.3
$region0: #{vgg_forward.3}
  #allocation0 [shape = 'u32[]', space=smem, size = 0x4, offset = 0x4, fixed_abs, tag = 'smem constant byte address 0x4 - core index']
  #allocation1 [shape = 'u32[144,128]{1,0:T(1,128)}', space=vmem, size = 0x12000, scoped, tag = 'internal scratch']
  #allocation2 [shape = 'bf16[2,10,10,128]{3,2,1,0:T(8,128)(2,1)}', space=vmem, size = 0x14000, scoped, tag = 'scratch operand']
  %s0 = inlined_call_operand.vmem [shape: bf16[2,8,8,128], index: 0, kind: input, shape index: {}]
  %s1 = inlined_call_operand.hbm [shape: bf16[3,384,128], index: 1, kind: input, shape index: {}]
  %s2 = inlined_call_operand.vmem [shape: f32[1,128], index: 2, kind: input, shape index: {}]
  %s3 = inlined_call_operand.vmem [shape: bf16[2,4,4,128], index: 3, kind: output, shape index: {}]
  %s4 = sld [smem:[#allocation0]]
  $region30: #{vgg_forward.3} parent=0
    _
  %s6 = ssub.s32 1, %s4
  %s7 = scalar_select 0, %s6, %s4
  $region1: #{vgg_forward.3} parent=0
    #allocation3 [shape = 'u8[294912]{0}', space=vmem, size = 0x48000, scoped, tag = 'input window, operand 1, single buffered']
    #allocation4 [shape = 's32[1]{0}', space=sflag, size = 0x4, scoped, tag = 'scoped memory for vgg_forward.3']
    %8 = vsyncpa [#allocation4], 0
    // Predicated region
    $region2: #{vgg_forward.3} parent=1 // pred_check
      _
    $region3: #{vgg_forward.3} parent=1 // pred_check_branch
      %10 = sbr.rel (0) target = $region5
    $region4: #{vgg_forward.3} parent=1 // pred_region
      _
    $region5: #{vgg_forward.3} parent=1 // pred_fallthru
      _
    // Predicated region
    $region6: #{vgg_forward.3} parent=1 // pred_check
      _
    $region7: #{vgg_forward.3} parent=1 // pred_check_branch
      %12 = sbr.rel (0) target = $region9
    $region8: #{vgg_forward.3} parent=1 // pred_region
      %s14 = ssub.s32 9216, 9216
      %15 = vsyncadd [#allocation4], %s14
      %s16 = sshll.u32 [#allocation3], 4
      %s17 = int_to_ptr.vmem [resolvable:$true] %s16
      %22 = dma.hbm_to_vmem [thread:$0]  %s1, 9216, %s17, [#allocation4], 64, 64, 4
    $region9: #{vgg_forward.3} parent=1 // pred_fallthru
      _
    // Predicated region
    $region10: #{vgg_forward.3} parent=1 // pred_check
      _
    $region11: #{vgg_forward.3} parent=1 // pred_check_branch
      %24 = sbr.rel (0) target = $region13
    $region12: #{vgg_forward.3} parent=1 // pred_region
      _
    $region13: #{vgg_forward.3} parent=1 // pred_fallthru
      _
    // Predicated region
    $region14: #{vgg_forward.3} parent=1 // pred_check
      _
    $region15: #{vgg_forward.3} parent=1 // pred_check_branch
      %26 = sbr.rel (0) target = $region17
    $region16: #{vgg_forward.3} parent=1 // pred_region
      %27 = dma.done [#allocation4], 9216
    $region17: #{vgg_forward.3} parent=1 // pred_fallthru
      _
    %p29 = scmp.eq.s32.totalorder 0, 0
    // Predicated region
    $region18: #{vgg_forward.3} parent=1 // pred_check
      %p30 = pneg %p29
    $region19: #{vgg_forward.3} parent=1 // pred_check_branch
      %32 = sbr.rel (%p30) target = $region21
    $region20: #{vgg_forward.3} parent=1 // pred_region
      %33 = vst [vmem:[#allocation2] sm:$0xf] 0
      %34 = vst [vmem:[#allocation2 + $0x4] sm:$0x1] 0
      %35 = vst [vmem:[#allocation2 + $0x8] sm:$0xf] 0
      %36 = vst [vmem:[#allocation2 + $0xc] sm:$0x1] 0
      %37 = vst [vmem:[#allocation2 + $0x10] sm:$0xf] 0
      %38 = vst [vmem:[#allocation2 + $0x14] sm:$0x1] 0
      %39 = vst [vmem:[#allocation2 + $0x18] sm:$0xf] 0
      %40 = vst [vmem:[#allocation2 + $0x1c] sm:$0x1] 0
      %41 = vst [vmem:[#allocation2 + $0x20] sm:$0xf] 0
      %42 = vst [vmem:[#allocation2 + $0x24] sm:$0x1] 0
      %43 = vst [vmem:[#allocation2 + $0x28] sm:$0xf] 0
      %44 = vst [vmem:[#allocation2 + $0x2c] sm:$0x1] 0
      %45 = vst [vmem:[#allocation2 + $0x30] sm:$0xf] 0
      %46 = vst [vmem:[#allocation2 + $0x34] sm:$0x1] 0
      %47 = vst [vmem:[#allocation2 + $0x38] sm:$0xf] 0
      %48 = vst [vmem:[#allocation2 + $0x3c] sm:$0x1] 0
      %49 = vst [vmem:[#allocation2 + $0x40] sm:$0xf] 0
      %50 = vst [vmem:[#allocation2 + $0x44] sm:$0x1] 0
      %51 = vst [vmem:[#allocation2 + $0x48] sm:$0xf] 0
      %52 = vst [vmem:[#allocation2 + $0x4c] sm:$0x1] 0
      %53 = vst [vmem:[#allocation2 + $0x50] sm:$0xf] 0
      %54 = vst [vmem:[#allocation2 + $0x54] sm:$0x1] 0
      %55 = vst [vmem:[#allocation2 + $0x58] sm:$0xf] 0
      %56 = vst [vmem:[#allocation2 + $0x5c] sm:$0x1] 0
      %57 = vst [vmem:[#allocation2 + $0x60] sm:$0xf] 0
      %58 = vst [vmem:[#allocation2 + $0x64] sm:$0x1] 0
      %59 = vst [vmem:[#allocation2 + $0x68] sm:$0xf] 0
      %60 = vst [vmem:[#allocation2 + $0x6c] sm:$0x1] 0
      %61 = vst [vmem:[#allocation2 + $0x70] sm:$0xf] 0
      %62 = vst [vmem:[#allocation2 + $0x74] sm:$0x1] 0
      %63 = vst [vmem:[#allocation2 + $0x78] sm:$0xf] 0
      %64 = vst [vmem:[#allocation2 + $0x7c] sm:$0x1] 0
      %65 = vst [vmem:[#allocation2 + $0x80] sm:$0xf] 0
      %66 = vst [vmem:[#allocation2 + $0x84] sm:$0x1] 0
      %67 = vst [vmem:[#allocation2 + $0x88] sm:$0xf] 0
      %68 = vst [vmem:[#allocation2 + $0x8c] sm:$0x1] 0
      %69 = vst [vmem:[#allocation2 + $0x90] sm:$0xf] 0
      %70 = vst [vmem:[#allocation2 + $0x94] sm:$0x1] 0
      %71 = vst [vmem:[#allocation2 + $0x98] sm:$0xf] 0
      %72 = vst [vmem:[#allocation2 + $0x9c] sm:$0x1] 0
    $region21: #{vgg_forward.3} parent=1 // pred_fallthru
      _
    %v73 = vld [vmem:[%s0] sm:$0xf]
    %v74 = vld [vmem:[%s0 + $0x4] sm:$0xf]
    %v75 = vld [vmem:[%s0 + $0x8] sm:$0xf]
    %v76 = vld [vmem:[%s0 + $0xc] sm:$0xf]
    %v77 = vld [vmem:[%s0 + $0x10] sm:$0xf]
    %v78 = vld [vmem:[%s0 + $0x14] sm:$0xf]
    %v79 = vld [vmem:[%s0 + $0x18] sm:$0xf]
    %v80 = vld [vmem:[%s0 + $0x1c] sm:$0xf]
    %v81 = vld [vmem:[%s0 + $0x20] sm:$0xf]
    %v82 = vld [vmem:[%s0 + $0x24] sm:$0xf]
    %v83 = vld [vmem:[%s0 + $0x28] sm:$0xf]
    %v84 = vld [vmem:[%s0 + $0x2c] sm:$0xf]
    %v85 = vld [vmem:[%s0 + $0x30] sm:$0xf]
    %v86 = vld [vmem:[%s0 + $0x34] sm:$0xf]
    %v87 = vld [vmem:[%s0 + $0x38] sm:$0xf]
    %v88 = vld [vmem:[%s0 + $0x3c] sm:$0xf]
    %v90 = vshrl.u32 %v73, 16
    %v92 = vrot.slane %v90, 7
    %v93 = vshll.u32 %v73, 16
    %v95 = vor.u32 %v92, %v93
    %v96 = vrot.slane %v92, 4
    %v98 = vshrl.u32 %v74, 16
    %v100 = vrot.slane %v98, 7
    %v101 = vshll.u32 %v74, 16
    %v103 = vor.u32 %v100, %v101
    %v104 = vrot.slane %v100, 4
    %v106 = vshrl.u32 %v75, 16
    %v108 = vrot.slane %v106, 7
    %v109 = vshll.u32 %v75, 16
    %v111 = vor.u32 %v108, %v109
    %v112 = vrot.slane %v108, 4
    %v114 = vshrl.u32 %v76, 16
    %v116 = vrot.slane %v114, 7
    %v117 = vshll.u32 %v76, 16
    %v119 = vor.u32 %v116, %v117
    %v120 = vrot.slane %v116, 4
    %v122 = vshrl.u32 %v77, 16
    %v124 = vrot.slane %v122, 7
    %v125 = vshll.u32 %v77, 16
    %v127 = vor.u32 %v124, %v125
    %v128 = vrot.slane %v124, 4
    %v130 = vshrl.u32 %v78, 16
    %v132 = vrot.slane %v130, 7
    %v133 = vshll.u32 %v78, 16
    %v135 = vor.u32 %v132, %v133
    %v136 = vrot.slane %v132, 4
    %v138 = vshrl.u32 %v79, 16
    %v140 = vrot.slane %v138, 7
    %v141 = vshll.u32 %v79, 16
    %v143 = vor.u32 %v140, %v141
    %v144 = vrot.slane %v140, 4
    %v146 = vshrl.u32 %v80, 16
    %v148 = vrot.slane %v146, 7
    %v149 = vshll.u32 %v80, 16
    %v151 = vor.u32 %v148, %v149
    %v152 = vrot.slane %v148, 4
    %v154 = vshrl.u32 %v81, 16
    %v156 = vrot.slane %v154, 7
    %v157 = vshll.u32 %v81, 16
    %v159 = vor.u32 %v156, %v157
    %v160 = vrot.slane %v156, 4
    %v162 = vshrl.u32 %v82, 16
    %v164 = vrot.slane %v162, 7
    %v165 = vshll.u32 %v82, 16
    %v167 = vor.u32 %v164, %v165
    %v168 = vrot.slane %v164, 4
    %v170 = vshrl.u32 %v83, 16
    %v172 = vrot.slane %v170, 7
    %v173 = vshll.u32 %v83, 16
    %v175 = vor.u32 %v172, %v173
    %v176 = vrot.slane %v172, 4
    %v178 = vshrl.u32 %v84, 16
    %v180 = vrot.slane %v178, 7
    %v181 = vshll.u32 %v84, 16
    %v183 = vor.u32 %v180, %v181
    %v184 = vrot.slane %v180, 4
    %v186 = vshrl.u32 %v85, 16
    %v188 = vrot.slane %v186, 7
    %v189 = vshll.u32 %v85, 16
    %v191 = vor.u32 %v188, %v189
    %v192 = vrot.slane %v188, 4
    %v194 = vshrl.u32 %v86, 16
    %v196 = vrot.slane %v194, 7
    %v197 = vshll.u32 %v86, 16
    %v199 = vor.u32 %v196, %v197
    %v200 = vrot.slane %v196, 4
    %v202 = vshrl.u32 %v87, 16
    %v204 = vrot.slane %v202, 7
    %v205 = vshll.u32 %v87, 16
    %v207 = vor.u32 %v204, %v205
    %v208 = vrot.slane %v204, 4
    %v210 = vshrl.u32 %v88, 16
    %v212 = vrot.slane %v210, 7
    %v213 = vshll.u32 %v88, 16
    %v215 = vor.u32 %v212, %v213
    %v216 = vrot.slane %v212, 4
    %s249 = scalar_lea.vmem [#allocation2], 8
    %vm250 = vcmask 1043456
    %vm251 = vsmask.f32 7938
    %vm252 = vmand %vm250, %vm251
    %v253 = vld [vmem:[%s249] sm:$0xf]
    %v254 = vsel %vm252, %v95, %v253
    %255 = vst [vmem:[%s249] sm:$0xf] %v254
    %vm256 = vcmask 1040384
    %vm257 = vsmask.f32 256
    %vm258 = vmand %vm256, %vm257
    %v259 = vld [vmem:[%s249 + $0x4] sm:$0x1]
    %v260 = vsel %vm258, %v96, %v259
    %261 = vst [vmem:[%s249 + $0x4] sm:$0x1] %v260
    %v262 = vld [vmem:[%s249 + $0x8] sm:$0xf]
    %v263 = vsel %vm252, %v103, %v262
    %264 = vst [vmem:[%s249 + $0x8] sm:$0xf] %v263
    %v265 = vld [vmem:[%s249 + $0xc] sm:$0x1]
    %v266 = vsel %vm258, %v104, %v265
    %267 = vst [vmem:[%s249 + $0xc] sm:$0x1] %v266
    %v268 = vld [vmem:[%s249 + $0x10] sm:$0xf]
    %v269 = vsel %vm252, %v111, %v268
    %270 = vst [vmem:[%s249 + $0x10] sm:$0xf] %v269
    %v271 = vld [vmem:[%s249 + $0x14] sm:$0x1]
    %v272 = vsel %vm258, %v112, %v271
    %273 = vst [vmem:[%s249 + $0x14] sm:$0x1] %v272
    %v274 = vld [vmem:[%s249 + $0x18] sm:$0xf]
    %v275 = vsel %vm252, %v119, %v274
    %276 = vst [vmem:[%s249 + $0x18] sm:$0xf] %v275
    %v277 = vld [vmem:[%s249 + $0x1c] sm:$0x1]
    %v278 = vsel %vm258, %v120, %v277
    %279 = vst [vmem:[%s249 + $0x1c] sm:$0x1] %v278
    %v280 = vld [vmem:[%s249 + $0x20] sm:$0xf]
    %v281 = vsel %vm252, %v127, %v280
    %282 = vst [vmem:[%s249 + $0x20] sm:$0xf] %v281
    %v283 = vld [vmem:[%s249 + $0x24] sm:$0x1]
    %v284 = vsel %vm258, %v128, %v283
    %285 = vst [vmem:[%s249 + $0x24] sm:$0x1] %v284
    %v286 = vld [vmem:[%s249 + $0x28] sm:$0xf]
    %v287 = vsel %vm252, %v135, %v286
    %288 = vst [vmem:[%s249 + $0x28] sm:$0xf] %v287
    %v289 = vld [vmem:[%s249 + $0x2c] sm:$0x1]
    %v290 = vsel %vm258, %v136, %v289
    %291 = vst [vmem:[%s249 + $0x2c] sm:$0x1] %v290
    %v292 = vld [vmem:[%s249 + $0x30] sm:$0xf]
    %v293 = vsel %vm252, %v143, %v292
    %294 = vst [vmem:[%s249 + $0x30] sm:$0xf] %v293
    %v295 = vld [vmem:[%s249 + $0x34] sm:$0x1]
    %v296 = vsel %vm258, %v144, %v295
    %297 = vst [vmem:[%s249 + $0x34] sm:$0x1] %v296
    %v298 = vld [vmem:[%s249 + $0x38] sm:$0xf]
    %v299 = vsel %vm252, %v151, %v298
    %300 = vst [vmem:[%s249 + $0x38] sm:$0xf] %v299
    %v301 = vld [vmem:[%s249 + $0x3c] sm:$0x1]
    %v302 = vsel %vm258, %v152, %v301
    %303 = vst [vmem:[%s249 + $0x3c] sm:$0x1] %v302
    %v304 = vld [vmem:[%s249 + $0x50] sm:$0xf]
    %v305 = vsel %vm252, %v159, %v304
    %306 = vst [vmem:[%s249 + $0x50] sm:$0xf] %v305
    %v307 = vld [vmem:[%s249 + $0x54] sm:$0x1]
    %v308 = vsel %vm258, %v160, %v307
    %309 = vst [vmem:[%s249 + $0x54] sm:$0x1] %v308
    %v310 = vld [vmem:[%s249 + $0x58] sm:$0xf]
    %v311 = vsel %vm252, %v167, %v310
    %312 = vst [vmem:[%s249 + $0x58] sm:$0xf] %v311
    %v313 = vld [vmem:[%s249 + $0x5c] sm:$0x1]
    %v314 = vsel %vm258, %v168, %v313
    %315 = vst [vmem:[%s249 + $0x5c] sm:$0x1] %v314
    %v316 = vld [vmem:[%s249 + $0x60] sm:$0xf]
    %v317 = vsel %vm252, %v175, %v316
    %318 = vst [vmem:[%s249 + $0x60] sm:$0xf] %v317
    %v319 = vld [vmem:[%s249 + $0x64] sm:$0x1]
    %v320 = vsel %vm258, %v176, %v319
    %321 = vst [vmem:[%s249 + $0x64] sm:$0x1] %v320
    %v322 = vld [vmem:[%s249 + $0x68] sm:$0xf]
    %v323 = vsel %vm252, %v183, %v322
    %324 = vst [vmem:[%s249 + $0x68] sm:$0xf] %v323
    %v325 = vld [vmem:[%s249 + $0x6c] sm:$0x1]
    %v326 = vsel %vm258, %v184, %v325
    %327 = vst [vmem:[%s249 + $0x6c] sm:$0x1] %v326
    %v328 = vld [vmem:[%s249 + $0x70] sm:$0xf]
    %v329 = vsel %vm252, %v191, %v328
    %330 = vst [vmem:[%s249 + $0x70] sm:$0xf] %v329
    %v331 = vld [vmem:[%s249 + $0x74] sm:$0x1]
    %v332 = vsel %vm258, %v192, %v331
    %333 = vst [vmem:[%s249 + $0x74] sm:$0x1] %v332
    %v334 = vld [vmem:[%s249 + $0x78] sm:$0xf]
    %v335 = vsel %vm252, %v199, %v334
    %336 = vst [vmem:[%s249 + $0x78] sm:$0xf] %v335
    %v337 = vld [vmem:[%s249 + $0x7c] sm:$0x1]
    %v338 = vsel %vm258, %v200, %v337
    %339 = vst [vmem:[%s249 + $0x7c] sm:$0x1] %v338
    %v340 = vld [vmem:[%s249 + $0x80] sm:$0xf]
    %v341 = vsel %vm252, %v207, %v340
    %342 = vst [vmem:[%s249 + $0x80] sm:$0xf] %v341
    %v343 = vld [vmem:[%s249 + $0x84] sm:$0x1]
    %v344 = vsel %vm258, %v208, %v343
    %345 = vst [vmem:[%s249 + $0x84] sm:$0x1] %v344
    %v346 = vld [vmem:[%s249 + $0x88] sm:$0xf]
    %v347 = vsel %vm252, %v215, %v346
    %348 = vst [vmem:[%s249 + $0x88] sm:$0xf] %v347
    %v349 = vld [vmem:[%s249 + $0x8c] sm:$0x1]
    %v350 = vsel %vm258, %v216, %v349
    %351 = vst [vmem:[%s249 + $0x8c] sm:$0x1] %v350
    %v352 = vld [vmem:[#allocation2] sm:$0xf]
    %v353 = vld [vmem:[#allocation2 + $0x4] sm:$0x1]
    %v354 = vld [vmem:[#allocation2 + $0x8] sm:$0xf]
    %v355 = vld [vmem:[#allocation2 + $0xc] sm:$0x1]
    %v356 = vld [vmem:[#allocation2 + $0x10] sm:$0xf]
    %v357 = vld [vmem:[#allocation2 + $0x14] sm:$0x1]
    %v358 = vld [vmem:[#allocation2 + $0x18] sm:$0xf]
    %v359 = vld [vmem:[#allocation2 + $0x1c] sm:$0x1]
    %v360 = vld [vmem:[#allocation2 + $0x20] sm:$0xf]
    %v361 = vld [vmem:[#allocation2 + $0x24] sm:$0x1]
    %v362 = vld [vmem:[#allocation2 + $0x28] sm:$0xf]
    %v363 = vld [vmem:[#allocation2 + $0x2c] sm:$0x1]
    %v364 = vld [vmem:[#allocation2 + $0x30] sm:$0xf]
    %v365 = vld [vmem:[#allocation2 + $0x34] sm:$0x1]
    %v366 = vld [vmem:[#allocation2 + $0x38] sm:$0xf]
    %v367 = vld [vmem:[#allocation2 + $0x3c] sm:$0x1]
    %v368 = vld [vmem:[#allocation2 + $0x40] sm:$0xf]
    %v369 = vld [vmem:[#allocation2 + $0x44] sm:$0x1]
    %v370 = vld [vmem:[#allocation2 + $0x48] sm:$0xf]
    %v371 = vld [vmem:[#allocation2 + $0x4c] sm:$0x1]
    %v372 = vld [vmem:[#allocation2 + $0x50] sm:$0xf]
    %v373 = vld [vmem:[#allocation2 + $0x54] sm:$0x1]
    %v374 = vld [vmem:[#allocation2 + $0x58] sm:$0xf]
    %v375 = vld [vmem:[#allocation2 + $0x5c] sm:$0x1]
    %v376 = vld [vmem:[#allocation2 + $0x60] sm:$0xf]
    %v377 = vld [vmem:[#allocation2 + $0x64] sm:$0x1]
    %v378 = vld [vmem:[#allocation2 + $0x68] sm:$0xf]
    %v379 = vld [vmem:[#allocation2 + $0x6c] sm:$0x1]
    %v380 = vld [vmem:[#allocation2 + $0x70] sm:$0xf]
    %v381 = vld [vmem:[#allocation2 + $0x74] sm:$0x1]
    %v382 = vld [vmem:[#allocation2 + $0x78] sm:$0xf]
    %v383 = vld [vmem:[#allocation2 + $0x7c] sm:$0x1]
    %v384 = vld [vmem:[#allocation2 + $0x80] sm:$0xf]
    %v385 = vld [vmem:[#allocation2 + $0x84] sm:$0x1]
    %v386 = vld [vmem:[#allocation2 + $0x88] sm:$0xf]
    %v387 = vld [vmem:[#allocation2 + $0x8c] sm:$0x1]
    %v388 = vld [vmem:[#allocation2 + $0x90] sm:$0xf]
    %v389 = vld [vmem:[#allocation2 + $0x94] sm:$0x1]
    %v390 = vld [vmem:[#allocation2 + $0x98] sm:$0xf]
    %v391 = vld [vmem:[#allocation2 + $0x9c] sm:$0x1]
    %v424 = vunpack.c.l.b16 %v352
    %v425 = vunpack.c.l.b16 %v353
    %v426 = vunpack.c.l.b16 %v354
    %v427 = vunpack.c.l.b16 %v355
    %v428 = vunpack.c.l.b16 %v356
    %v429 = vunpack.c.l.b16 %v357
    %v430 = vunpack.c.l.b16 %v358
    %v431 = vunpack.c.l.b16 %v359
    %v432 = vunpack.c.l.b16 %v360
    %v433 = vunpack.c.l.b16 %v361
    %v434 = vunpack.c.l.b16 %v362
    %v435 = vunpack.c.l.b16 %v363
    %v436 = vunpack.c.l.b16 %v364
    %v437 = vunpack.c.l.b16 %v365
    %v438 = vunpack.c.l.b16 %v366
    %v439 = vunpack.c.l.b16 %v367
    %v440 = vunpack.c.l.b16 %v372
    %v441 = vunpack.c.l.b16 %v373
    %v442 = vunpack.c.l.b16 %v374
    %v443 = vunpack.c.l.b16 %v375
    %v444 = vunpack.c.l.b16 %v376
    %v445 = vunpack.c.l.b16 %v377
    %v446 = vunpack.c.l.b16 %v378
    %v447 = vunpack.c.l.b16 %v379
    %v448 = vunpack.c.l.b16 %v380
    %v449 = vunpack.c.l.b16 %v381
    %v450 = vunpack.c.l.b16 %v382
    %v451 = vunpack.c.l.b16 %v383
    %v452 = vunpack.c.l.b16 %v384
    %v453 = vunpack.c.l.b16 %v385
    %v454 = vunpack.c.l.b16 %v386
    %v455 = vunpack.c.l.b16 %v387
    %v456 = vpack.c.b16 %v425, %v424
    %v457 = vpack.c.b16 %v427, %v426
    %v458 = vpack.c.b16 %v429, %v428
    %v459 = vpack.c.b16 %v431, %v430
    %v460 = vpack.c.b16 %v433, %v432
    %v461 = vpack.c.b16 %v435, %v434
    %v462 = vpack.c.b16 %v437, %v436
    %v463 = vpack.c.b16 %v439, %v438
    %v464 = vpack.c.b16 %v441, %v440
    %v465 = vpack.c.b16 %v443, %v442
    %v466 = vpack.c.b16 %v445, %v444
    %v467 = vpack.c.b16 %v447, %v446
    %v468 = vpack.c.b16 %v449, %v448
    %v469 = vpack.c.b16 %v451, %v450
    %v470 = vpack.c.b16 %v453, %v452
    %v471 = vpack.c.b16 %v455, %v454
    %v473 = vshrl.u32 %v456, 16
    %v475 = vshll.u32 %v456, 16
    %v477 = vrot.slane %v475, 1
    %v478 = vor.u32 %v473, %v477
    %v480 = vshrl.u32 %v457, 16
    %v482 = vshll.u32 %v457, 16
    %v484 = vrot.slane %v482, 1
    %v485 = vor.u32 %v480, %v484
    %v487 = vshrl.u32 %v458, 16
    %v489 = vshll.u32 %v458, 16
    %v491 = vrot.slane %v489, 1
    %v492 = vor.u32 %v487, %v491
    %v494 = vshrl.u32 %v459, 16
    %v496 = vshll.u32 %v459, 16
    %v498 = vrot.slane %v496, 1
    %v499 = vor.u32 %v494, %v498
    %v501 = vshrl.u32 %v460, 16
    %v503 = vshll.u32 %v460, 16
    %v505 = vrot.slane %v503, 1
    %v506 = vor.u32 %v501, %v505
    %v508 = vshrl.u32 %v461, 16
    %v510 = vshll.u32 %v461, 16
    %v512 = vrot.slane %v510, 1
    %v513 = vor.u32 %v508, %v512
    %v515 = vshrl.u32 %v462, 16
    %v517 = vshll.u32 %v462, 16
    %v519 = vrot.slane %v517, 1
    %v520 = vor.u32 %v515, %v519
    %v522 = vshrl.u32 %v463, 16
    %v524 = vshll.u32 %v463, 16
    %v526 = vrot.slane %v524, 1
    %v527 = vor.u32 %v522, %v526
    %v529 = vshrl.u32 %v464, 16
    %v531 = vshll.u32 %v464, 16
    %v533 = vrot.slane %v531, 1
    %v534 = vor.u32 %v529, %v533
    %v536 = vshrl.u32 %v465, 16
    %v538 = vshll.u32 %v465, 16
    %v540 = vrot.slane %v538, 1
    %v541 = vor.u32 %v536, %v540
    %v543 = vshrl.u32 %v466, 16
    %v545 = vshll.u32 %v466, 16
    %v547 = vrot.slane %v545, 1
    %v548 = vor.u32 %v543, %v547
    %v550 = vshrl.u32 %v467, 16
    %v552 = vshll.u32 %v467, 16
    %v554 = vrot.slane %v552, 1
    %v555 = vor.u32 %v550, %v554
    %v557 = vshrl.u32 %v468, 16
    %v559 = vshll.u32 %v468, 16
    %v561 = vrot.slane %v559, 1
    %v562 = vor.u32 %v557, %v561
    %v564 = vshrl.u32 %v469, 16
    %v566 = vshll.u32 %v469, 16
    %v568 = vrot.slane %v566, 1
    %v569 = vor.u32 %v564, %v568
    %v571 = vshrl.u32 %v470, 16
    %v573 = vshll.u32 %v470, 16
    %v575 = vrot.slane %v573, 1
    %v576 = vor.u32 %v571, %v575
    %v578 = vshrl.u32 %v471, 16
    %v580 = vshll.u32 %v471, 16
    %v582 = vrot.slane %v580, 1
    %v583 = vor.u32 %v578, %v582
    %v584 = vrot.slane %v456, 1
    %v585 = vrot.slane %v457, 1
    %v586 = vrot.slane %v458, 1
    %v587 = vrot.slane %v459, 1
    %v588 = vrot.slane %v460, 1
    %v589 = vrot.slane %v461, 1
    %v590 = vrot.slane %v462, 1
    %v591 = vrot.slane %v463, 1
    %v592 = vrot.slane %v464, 1
    %v593 = vrot.slane %v465, 1
    %v594 = vrot.slane %v466, 1
    %v595 = vrot.slane %v467, 1
    %v596 = vrot.slane %v468, 1
    %v597 = vrot.slane %v469, 1
    %v598 = vrot.slane %v470, 1
    %v599 = vrot.slane %v471, 1
    %v600 = vunpack.c.l.b16 %v478
    %v601 = vunpack.c.l.b16 %v584
    %v602 = vunpack.c.l.b16 %v485
    %v603 = vunpack.c.l.b16 %v585
    %v604 = vunpack.c.l.b16 %v492
    %v605 = vunpack.c.l.b16 %v586
    %v606 = vunpack.c.l.b16 %v499
    %v607 = vunpack.c.l.b16 %v587
    %v608 = vunpack.c.l.b16 %v506
    %v609 = vunpack.c.l.b16 %v588
    %v610 = vunpack.c.l.b16 %v513
    %v611 = vunpack.c.l.b16 %v589
    %v612 = vunpack.c.l.b16 %v520
    %v613 = vunpack.c.l.b16 %v590
    %v614 = vunpack.c.l.b16 %v527
    %v615 = vunpack.c.l.b16 %v591
    %v616 = vunpack.c.l.b16 %v534
    %v617 = vunpack.c.l.b16 %v592
    %v618 = vunpack.c.l.b16 %v541
    %v619 = vunpack.c.l.b16 %v593
    %v620 = vunpack.c.l.b16 %v548
    %v621 = vunpack.c.l.b16 %v594
    %v622 = vunpack.c.l.b16 %v555
    %v623 = vunpack.c.l.b16 %v595
    %v624 = vunpack.c.l.b16 %v562
    %v625 = vunpack.c.l.b16 %v596
    %v626 = vunpack.c.l.b16 %v569
    %v627 = vunpack.c.l.b16 %v597
    %v628 = vunpack.c.l.b16 %v576
    %v629 = vunpack.c.l.b16 %v598
    %v630 = vunpack.c.l.b16 %v583
    %v631 = vunpack.c.l.b16 %v599
    %v632 = vld [vmem:[#allocation3] sm:$0xf]
    %v633 = vld [vmem:[#allocation3 + $0x4] sm:$0xf]
    %v634 = vld [vmem:[#allocation3 + $0x8] sm:$0xf]
    %v635 = vld [vmem:[#allocation3 + $0xc] sm:$0xf]
    %v636 = vld [vmem:[#allocation3 + $0x10] sm:$0xf]
    %v637 = vld [vmem:[#allocation3 + $0x14] sm:$0xf]
    %v638 = vld [vmem:[#allocation3 + $0x18] sm:$0xf]
    %v639 = vld [vmem:[#allocation3 + $0x1c] sm:$0xf]
    %v640 = vld [vmem:[#allocation3 + $0x20] sm:$0xf]
    %v641 = vld [vmem:[#allocation3 + $0x24] sm:$0xf]
    %v642 = vld [vmem:[#allocation3 + $0x28] sm:$0xf]
    %v643 = vld [vmem:[#allocation3 + $0x2c] sm:$0xf]
    %v644 = vld [vmem:[#allocation3 + $0x30] sm:$0xf]
    %v645 = vld [vmem:[#allocation3 + $0x34] sm:$0xf]
    %v646 = vld [vmem:[#allocation3 + $0x38] sm:$0xf]
    %v647 = vld [vmem:[#allocation3 + $0x3c] sm:$0xf]
    %v648 = vld [vmem:[#allocation3 + $0x40] sm:$0xf]
    %v649 = vld [vmem:[#allocation3 + $0x44] sm:$0xf]
    %v650 = vld [vmem:[#allocation3 + $0x48] sm:$0xf]
    %v651 = vld [vmem:[#allocation3 + $0x4c] sm:$0xf]
    %v652 = vld [vmem:[#allocation3 + $0x50] sm:$0xf]
    %v653 = vld [vmem:[#allocation3 + $0x54] sm:$0xf]
    %v654 = vld [vmem:[#allocation3 + $0x58] sm:$0xf]
    %v655 = vld [vmem:[#allocation3 + $0x5c] sm:$0xf]
    %v656 = vld [vmem:[#allocation3 + $0x60] sm:$0xf]
    %v657 = vld [vmem:[#allocation3 + $0x64] sm:$0xf]
    %v658 = vld [vmem:[#allocation3 + $0x68] sm:$0xf]
    %v659 = vld [vmem:[#allocation3 + $0x6c] sm:$0xf]
    %v660 = vld [vmem:[#allocation3 + $0x70] sm:$0xf]
    %v661 = vld [vmem:[#allocation3 + $0x74] sm:$0xf]
    %v662 = vld [vmem:[#allocation3 + $0x78] sm:$0xf]
    %v663 = vld [vmem:[#allocation3 + $0x7c] sm:$0xf]
    %v664 = vld [vmem:[#allocation3 + $0x80] sm:$0xf]
    %v665 = vld [vmem:[#allocation3 + $0x84] sm:$0xf]
    %v666 = vld [vmem:[#allocation3 + $0x88] sm:$0xf]
    %v667 = vld [vmem:[#allocation3 + $0x8c] sm:$0xf]
    %v668 = vld [vmem:[#allocation3 + $0x90] sm:$0xf]
    %v669 = vld [vmem:[#allocation3 + $0x94] sm:$0xf]
    %v670 = vld [vmem:[#allocation3 + $0x98] sm:$0xf]
    %v671 = vld [vmem:[#allocation3 + $0x9c] sm:$0xf]
    %v672 = vld [vmem:[#allocation3 + $0xa0] sm:$0xf]
    %v673 = vld [vmem:[#allocation3 + $0xa4] sm:$0xf]
    %v674 = vld [vmem:[#allocation3 + $0xa8] sm:$0xf]
    %v675 = vld [vmem:[#allocation3 + $0xac] sm:$0xf]
    %v676 = vld [vmem:[#allocation3 + $0xb0] sm:$0xf]
    %v677 = vld [vmem:[#allocation3 + $0xb4] sm:$0xf]
    %v678 = vld [vmem:[#allocation3 + $0xb8] sm:$0xf]
    %v679 = vld [vmem:[#allocation3 + $0xbc] sm:$0xf]
    %v684 = vunpack.c.l.b16 %v368
    %v685 = vunpack.c.l.b16 %v369
    %v686 = vunpack.c.l.b16 %v388
    %v687 = vunpack.c.l.b16 %v389
    %v688 = vpack.c.b16 %v685, %v684
    %v689 = vpack.c.b16 %v687, %v686
    %v691 = vshrl.u32 %v688, 16
    %v693 = vshll.u32 %v688, 16
    %v695 = vrot.slane %v693, 1
    %v696 = vor.u32 %v691, %v695
    %v698 = vshrl.u32 %v689, 16
    %v700 = vshll.u32 %v689, 16
    %v702 = vrot.slane %v700, 1
    %v703 = vor.u32 %v698, %v702
    %v704 = vrot.slane %v688, 1
    %v705 = vrot.slane %v689, 1
    %v706 = vunpack.c.l.b16 %v696
    %v707 = vunpack.c.l.b16 %v704
    %v708 = vunpack.c.l.b16 %v703
    %v709 = vunpack.c.l.b16 %v705
    %s710 = scalar_lea.vmem [#allocation3], 192
    %v711 = vld [vmem:[%s710] sm:$0xf]
    %v712 = vld [vmem:[%s710 + $0x4] sm:$0xf]
    %v713 = vld [vmem:[%s710 + $0x8] sm:$0xf]
    %v714 = vld [vmem:[%s710 + $0xc] sm:$0xf]
    %v715 = vld [vmem:[%s710 + $0x10] sm:$0xf]
    %v716 = vld [vmem:[%s710 + $0x14] sm:$0xf]
    %v717 = vld [vmem:[%s710 + $0x18] sm:$0xf]
    %v718 = vld [vmem:[%s710 + $0x1c] sm:$0xf]
    %v719 = vld [vmem:[%s710 + $0x20] sm:$0xf]
    %v720 = vld [vmem:[%s710 + $0x24] sm:$0xf]
    %v721 = vld [vmem:[%s710 + $0x28] sm:$0xf]
    %v722 = vld [vmem:[%s710 + $0x2c] sm:$0xf]
    %v723 = vld [vmem:[%s710 + $0x30] sm:$0xf]
    %v724 = vld [vmem:[%s710 + $0x34] sm:$0xf]
    %v725 = vld [vmem:[%s710 + $0x38] sm:$0xf]
    %v726 = vld [vmem:[%s710 + $0x3c] sm:$0xf]
    %v727 = vld [vmem:[%s710 + $0x40] sm:$0xf]
    %v728 = vld [vmem:[%s710 + $0x44] sm:$0xf]
    %v729 = vld [vmem:[%s710 + $0x48] sm:$0xf]
    %v730 = vld [vmem:[%s710 + $0x4c] sm:$0xf]
    %v731 = vld [vmem:[%s710 + $0x50] sm:$0xf]
    %v732 = vld [vmem:[%s710 + $0x54] sm:$0xf]
    %v733 = vld [vmem:[%s710 + $0x58] sm:$0xf]
    %v734 = vld [vmem:[%s710 + $0x5c] sm:$0xf]
    %v735 = vld [vmem:[%s710 + $0x60] sm:$0xf]
    %v736 = vld [vmem:[%s710 + $0x64] sm:$0xf]
    %v737 = vld [vmem:[%s710 + $0x68] sm:$0xf]
    %v738 = vld [vmem:[%s710 + $0x6c] sm:$0xf]
    %v739 = vld [vmem:[%s710 + $0x70] sm:$0xf]
    %v740 = vld [vmem:[%s710 + $0x74] sm:$0xf]
    %v741 = vld [vmem:[%s710 + $0x78] sm:$0xf]
    %v742 = vld [vmem:[%s710 + $0x7c] sm:$0xf]
    %v743 = vld [vmem:[%s710 + $0x80] sm:$0xf]
    %v744 = vld [vmem:[%s710 + $0x84] sm:$0xf]
    %v745 = vld [vmem:[%s710 + $0x88] sm:$0xf]
    %v746 = vld [vmem:[%s710 + $0x8c] sm:$0xf]
    %v747 = vld [vmem:[%s710 + $0x90] sm:$0xf]
    %v748 = vld [vmem:[%s710 + $0x94] sm:$0xf]
    %v749 = vld [vmem:[%s710 + $0x98] sm:$0xf]
    %v750 = vld [vmem:[%s710 + $0x9c] sm:$0xf]
    %v751 = vld [vmem:[%s710 + $0xa0] sm:$0xf]
    %v752 = vld [vmem:[%s710 + $0xa4] sm:$0xf]
    %v753 = vld [vmem:[%s710 + $0xa8] sm:$0xf]
    %v754 = vld [vmem:[%s710 + $0xac] sm:$0xf]
    %v755 = vld [vmem:[%s710 + $0xb0] sm:$0xf]
    %v756 = vld [vmem:[%s710 + $0xb4] sm:$0xf]
    %v757 = vld [vmem:[%s710 + $0xb8] sm:$0xf]
    %v758 = vld [vmem:[%s710 + $0xbc] sm:$0xf]
    %v759 = vpack.c.b16 %v428, %v426
    %v760 = vpack.c.b16 %v604, %v602
    %v761 = vpack.c.b16 %v605, %v603
    %v762 = vpack.c.b16 %v432, %v430
    %v763 = vpack.c.b16 %v608, %v606
    %v764 = vpack.c.b16 %v609, %v607
    %v765 = vpack.c.b16 %v436, %v434
    %v766 = vpack.c.b16 %v612, %v610
    %v767 = vpack.c.b16 %v613, %v611
    %v768 = vpack.c.b16 %v684, %v438
    %v769 = vpack.c.b16 %v706, %v614
    %v770 = vpack.c.b16 %v707, %v615
    %v771 = vpack.c.b16 %v444, %v442
    %v772 = vpack.c.b16 %v620, %v618
    %v773 = vpack.c.b16 %v621, %v619
    %v774 = vpack.c.b16 %v448, %v446
    %v775 = vpack.c.b16 %v624, %v622
    %v776 = vpack.c.b16 %v625, %v623
    %v777 = vpack.c.b16 %v452, %v450
    %v778 = vpack.c.b16 %v628, %v626
    %v779 = vpack.c.b16 %v629, %v627
    %v780 = vpack.c.b16 %v686, %v454
    %v781 = vpack.c.b16 %v708, %v630
    %v782 = vpack.c.b16 %v709, %v631
    %v855 = vunpack.c.l.b16 %v711
    %v856 = vunpack.c.l.b16 %v712
    %v857 = vunpack.c.l.b16 %v713
    %v858 = vunpack.c.l.b16 %v714
    %v859 = vunpack.c.l.b16 %v715
    %v860 = vunpack.c.l.b16 %v716
    %v861 = vunpack.c.l.b16 %v717
    %v862 = vunpack.c.l.b16 %v718
    %v863 = vunpack.c.l.b16 %v719
    %v864 = vunpack.c.l.b16 %v720
    %v865 = vunpack.c.l.b16 %v721
    %v866 = vunpack.c.l.b16 %v722
    %v867 = vunpack.c.l.b16 %v723
    %v868 = vunpack.c.l.b16 %v724
    %v869 = vunpack.c.l.b16 %v725
    %v870 = vunpack.c.l.b16 %v726
    %v871 = vunpack.c.l.b16 %v727
    %v872 = vunpack.c.l.b16 %v728
    %v873 = vunpack.c.l.b16 %v729
    %v874 = vunpack.c.l.b16 %v730
    %v875 = vunpack.c.l.b16 %v731
    %v876 = vunpack.c.l.b16 %v732
    %v877 = vunpack.c.l.b16 %v733
    %v878 = vunpack.c.l.b16 %v734
    %v879 = vunpack.c.l.b16 %v735
    %v880 = vunpack.c.l.b16 %v736
    %v881 = vunpack.c.l.b16 %v737
    %v882 = vunpack.c.l.b16 %v738
    %v883 = vunpack.c.l.b16 %v739
    %v884 = vunpack.c.l.b16 %v740
    %v885 = vunpack.c.l.b16 %v741
    %v886 = vunpack.c.l.b16 %v742
    %v887 = vunpack.c.l.b16 %v743
    %v888 = vunpack.c.l.b16 %v744
    %v889 = vunpack.c.l.b16 %v745
    %v890 = vunpack.c.l.b16 %v746
    %v891 = vunpack.c.l.b16 %v747
    %v892 = vunpack.c.l.b16 %v748
    %v893 = vunpack.c.l.b16 %v749
    %v894 = vunpack.c.l.b16 %v750
    %v895 = vunpack.c.l.b16 %v751
    %v896 = vunpack.c.l.b16 %v752
    %v897 = vunpack.c.l.b16 %v753
    %v898 = vunpack.c.l.b16 %v754
    %v899 = vunpack.c.l.b16 %v755
    %v900 = vunpack.c.l.b16 %v756
    %v901 = vunpack.c.l.b16 %v757
    %v902 = vunpack.c.l.b16 %v758
    %v903 = vpack.c.b16 %v856, %v855
    %v904 = vpack.c.b16 %v858, %v857
    %v905 = vpack.c.b16 %v860, %v859
    %v906 = vpack.c.b16 %v862, %v861
    %v907 = vpack.c.b16 %v864, %v863
    %v908 = vpack.c.b16 %v866, %v865
    %v909 = vpack.c.b16 %v868, %v867
    %v910 = vpack.c.b16 %v870, %v869
    %v911 = vpack.c.b16 %v872, %v871
    %v912 = vpack.c.b16 %v874, %v873
    %v913 = vpack.c.b16 %v876, %v875
    %v914 = vpack.c.b16 %v878, %v877
    %v915 = vpack.c.b16 %v880, %v879
    %v916 = vpack.c.b16 %v882, %v881
    %v917 = vpack.c.b16 %v884, %v883
    %v918 = vpack.c.b16 %v886, %v885
    %v919 = vpack.c.b16 %v888, %v887
    %v920 = vpack.c.b16 %v890, %v889
    %v921 = vpack.c.b16 %v892, %v891
    %v922 = vpack.c.b16 %v894, %v893
    %v923 = vpack.c.b16 %v896, %v895
    %v924 = vpack.c.b16 %v898, %v897
    %v925 = vpack.c.b16 %v900, %v899
    %v926 = vpack.c.b16 %v902, %v901
    %951 = vmatprep.subr.bf16.mxu0 0
    %952 = vmatpush1.bf16.msra.mxu0 %v903
    %953 = vmatprep.subr.bf16.mxu0 0
    %954 = vmatpush1.bf16.msra.mxu0 %v904
    %955 = vmatprep.subr.bf16.mxu0 0
    %956 = vmatpush1.bf16.msra.mxu0 %v905
    %957 = vmatprep.subr.bf16.mxu0 0
    %958 = vmatpush1.bf16.msra.mxu0 %v906
    %959 = vmatprep.subr.bf16.mxu0 0
    %960 = vmatpush1.bf16.msra.mxu0 %v907
    %961 = vmatprep.subr.bf16.mxu0 0
    %962 = vmatpush1.bf16.msra.mxu0 %v908
    %963 = vmatprep.subr.bf16.mxu0 0
    %964 = vmatpush1.bf16.msra.mxu0 %v909
    %965 = vmatprep.subr.bf16.mxu0 0
    %966 = vmatpush1.bf16.msra.mxu0 %v910
    %967 = vmatprep.subr.bf16.mxu0 0
    %968 = vmatpush1.bf16.msra.mxu0 %v911
    %969 = vmatprep.subr.bf16.mxu0 0
    %970 = vmatpush1.bf16.msra.mxu0 %v912
    %971 = vmatprep.subr.bf16.mxu0 0
    %972 = vmatpush1.bf16.msra.mxu0 %v913
    %973 = vmatprep.subr.bf16.mxu0 0
    %974 = vmatpush1.bf16.msra.mxu0 %v914
    %975 = vmatprep.subr.bf16.mxu0 0
    %976 = vmatpush1.bf16.msra.mxu0 %v915
    %977 = vmatprep.subr.bf16.mxu0 0
    %978 = vmatpush1.bf16.msra.mxu0 %v916
    %979 = vmatprep.subr.bf16.mxu0 0
    %980 = vmatpush1.bf16.msra.mxu0 %v917
    %981 = vmatprep.subr.bf16.mxu0 0
    %982 = vmatpush1.bf16.msra.mxu0 %v918
    %983 = vmatprep.mubr.bf16.mxu0 %v760
    %984 = vmatmul.mubr.bf16.gmra.mrb[0].mxu0 %v759
    %v985 = vpop.f32.mrb[0].mxu0
    %v986 = vadd.f32 0.0, %v985
    %v987 = vpop.f32.mrb[0].mxu0
    %v988 = vpop.f32.mrb[0].mxu0
    %v989 = vadd.f32 0.0, %v988
    %v990 = vpop.f32.mrb[0].mxu0
    %991 = vmatprep.mubr.bf16.mxu0 %v763
    %992 = vmatmul.mubr.bf16.gmra.mrb[0].mxu0 %v762
    %v993 = vpop.f32.mrb[0].mxu0
    %v994 = vadd.f32 0.0, %v993
    %v995 = vpop.f32.mrb[0].mxu0
    %v996 = vpop.f32.mrb[0].mxu0
    %v997 = vadd.f32 0.0, %v996
    %v998 = vpop.f32.mrb[0].mxu0
    %999 = vmatprep.mubr.bf16.mxu0 %v766
    %1000 = vmatmul.mubr.bf16.gmra.mrb[0].mxu0 %v765
    %v1001 = vpop.f32.mrb[0].mxu0
    %v1002 = vadd.f32 0.0, %v1001
    %v1003 = vpop.f32.mrb[0].mxu0
    %v1004 = vpop.f32.mrb[0].mxu0
    %v1005 = vadd.f32 0.0, %v1004
    %v1006 = vpop.f32.mrb[0].mxu0
    %1007 = vmatprep.mubr.bf16.mxu0 %v769
    %1008 = vmatmul.mubr.bf16.gmra.mrb[0].mxu0 %v768
    %v1009 = vpop.f32.mrb[0].mxu0
    %v1010 = vadd.f32 0.0, %v1009
    %v1011 = vpop.f32.mrb[0].mxu0
    %v1012 = vpop.f32.mrb[0].mxu0
    %v1013 = vadd.f32 0.0, %v1012
    %v1014 = vpop.f32.mrb[0].mxu0
    %1015 = vmatprep.mubr.bf16.mxu0 %v772
    %1016 = vmatmul.mubr.bf16.gmra.mrb[0].mxu0 %v771
    %v1017 = vpop.f32.mrb[0].mxu0
    %v1018 = vadd.f32 0.0, %v1017
    %v1019 = vpop.f32.mrb[0].mxu0
    %v1020 = vpop.f32.mrb[0].mxu0
    %v1021 = vadd.f32 0.0, %v1020
    %v1022 = vpop.f32.mrb[0].mxu0
    %1023 = vmatprep.mubr.bf16.mxu0 %v775
    %1024 = vmatmul.mubr.bf16.gmra.mrb[0].mxu0 %v774
    %v1025 = vpop.f32.mrb[0].mxu0
    %v1026 = vadd.f32 0.0, %v1025
    %v1027 = vpop.f32.mrb[0].mxu0
    %v1028 = vpop.f32.mrb[0].mxu0
    %v1029 = vadd.f32 0.0, %v1028
    %v1030 = vpop.f32.mrb[0].mxu0
    %1031 = vmatprep.mubr.bf16.mxu0 %v778
    %1032 = vmatmul.mubr.bf16.gmra.mrb[0].mxu0 %v777
    %v1033 = vpop.f32.mrb[0].mxu0
    %v1034 = vadd.f32 0.0, %v1033
    %v1035 = vpop.f32.mrb[0].mxu0
    %v1036 = vpop.f32.mrb[0].mxu0
    %v1037 = vadd.f32 0.0, %v1036
    %v1038 = vpop.f32.mrb[0].mxu0
    %1039 = vmatprep.mubr.bf16.mxu0 %v781
    %1040 = vmatmul.mubr.bf16.gmra.mrb[0].mxu0 %v780
    %v1041 = vpop.f32.mrb[0].mxu0
    %v1042 = vadd.f32 0.0, %v1041
    %v1043 = vpop.f32.mrb[0].mxu0
    %v1044 = vpop.f32.mrb[0].mxu0
    %v1045 = vadd.f32 0.0, %v1044
    %v1046 = vpop.f32.mrb[0].mxu0
    %1047 = vdwg.mxu0
    %1048 = vmatprep.subr.bf16.mxu0 0
    %1049 = vmatpush1.bf16.msra.mxu0 %v919
    %1050 = vmatprep.subr.bf16.mxu0 0
    %1051 = vmatpush1.bf16.msra.mxu0 %v920
    %1052 = vmatprep.subr.bf16.mxu0 0
    %1053 = vmatpush1.bf16.msra.mxu0 %v921
    %1054 = vmatprep.subr.bf16.mxu0 0
    %1055 = vmatpush1.bf16.msra.mxu0 %v922
    %1056 = vmatprep.subr.bf16.mxu0 0
    %1057 = vmatpush1.bf16.msra.mxu0 %v923
    %1058 = vmatprep.subr.bf16.mxu0 0
    %1059 = vmatpush1.bf16.msra.mxu0 %v924
    %1060 = vmatprep.subr.bf16.mxu0 0
    %1061 = vmatpush1.bf16.msra.mxu0 %v925
    %1062 = vmatprep.subr.bf16.mxu0 0
    %1063 = vmatpush1.bf16.msra.mxu0 %v926
    %1064 = vmatprep.subr.bf16.mxu0 0
    %1065 = vmatpush1.bf16.msra.mxu0 0
    %1066 = vmatprep.subr.bf16.mxu0 0
    %1067 = vmatpush1.bf16.msra.mxu0 0
    %1068 = vmatprep.subr.bf16.mxu0 0
    %1069 = vmatpush1.bf16.msra.mxu0 0
    %1070 = vmatprep.subr.bf16.mxu0 0
    %1071 = vmatpush1.bf16.msra.mxu0 0
    %1072 = vmatprep.subr.bf16.mxu0 0
    %1073 = vmatpush1.bf16.msra.mxu0 0
    %1074 = vmatprep.subr.bf16.mxu0 0
    %1075 = vmatpush1.bf16.msra.mxu0 0
    %1076 = vmatprep.subr.bf16.mxu0 0
    %1077 = vmatpush1.bf16.msra.mxu0 0
    %1078 = vmatprep.subr.bf16.mxu0 0
    %1079 = vmatpush1.bf16.msra.mxu0 0
    %1080 = vmatprep.mubr.bf16.mxu0 0
    %1081 = vmatmul.mubr.bf16.gmra.mrb[0].mxu0 %v761
    %v1082 = vpop.f32.mrb[0].mxu0
    %v1083 = vadd.f32 %v986, %v1082
    %v1084 = vpop.f32.mrb[0].mxu0
    %v1085 = vpop.f32.mrb[0].mxu0
    %v1086 = vadd.f32 %v989, %v1085
    %v1087 = vpop.f32.mrb[0].mxu0
    %1088 = vmatprep.mubr.bf16.mxu0 0
    %1089 = vmatmul.mubr.bf16.gmra.mrb[0].mxu0 %v764
    %v1090 = vpop.f32.mrb[0].mxu0
    %v1091 = vadd.f32 %v994, %v1090
    %v1092 = vpop.f32.mrb[0].mxu0
    %v1093 = vpop.f32.mrb[0].mxu0
    %v1094 = vadd.f32 %v997, %v1093
    %v1095 = vpop.f32.mrb[0].mxu0
    %1096 = vmatprep.mubr.bf16.mxu0 0
    %1097 = vmatmul.mubr.bf16.gmra.mrb[0].mxu0 %v767
    %v1098 = vpop.f32.mrb[0].mxu0
    %v1099 = vadd.f32 %v1002, %v1098
    %v1100 = vpop.f32.mrb[0].mxu0
    %v1101 = vpop.f32.mrb[0].mxu0
    %v1102 = vadd.f32 %v1005, %v1101
    %v1103 = vpop.f32.mrb[0].mxu0
    %1104 = vmatprep.mubr.bf16.mxu0 0
    %1105 = vmatmul.mubr.bf16.gmra.mrb[0].mxu0 %v770
    %v1106 = vpop.f32.mrb[0].mxu0
    %v1107 = vadd.f32 %v1010, %v1106
    %v1108 = vpop.f32.mrb[0].mxu0
    %v1109 = vpop.f32.mrb[0].mxu0
    %v1110 = vadd.f32 %v1013, %v1109
    %v1111 = vpop.f32.mrb[0].mxu0
    %1112 = vmatprep.mubr.bf16.mxu0 0
    %1113 = vmatmul.mubr.bf16.gmra.mrb[0].mxu0 %v773
    %v1114 = vpop.f32.mrb[0].mxu0
    %v1115 = vadd.f32 %v1018, %v1114
    %v1116 = vpop.f32.mrb[0].mxu0
    %v1117 = vpop.f32.mrb[0].mxu0
    %v1118 = vadd.f32 %v1021, %v1117
    %v1119 = vpop.f32.mrb[0].mxu0
    %1120 = vmatprep.mubr.bf16.mxu0 0
    %1121 = vmatmul.mubr.bf16.gmra.mrb[0].mxu0 %v776
    %v1122 = vpop.f32.mrb[0].mxu0
    %v1123 = vadd.f32 %v1026, %v1122
    %v1124 = vpop.f32.mrb[0].mxu0
    %v1125 = vpop.f32.mrb[0].mxu0
    %v1126 = vadd.f32 %v1029, %v1125
    %v1127 = vpop.f32.mrb[0].mxu0
    %1128 = vmatprep.mubr.bf16.mxu0 0
    %1129 = vmatmul.mubr.bf16.gmra.mrb[0].mxu0 %v779
    %v1130 = vpop.f32.mrb[0].mxu0
    %v1131 = vadd.f32 %v1034, %v1130
    %v1132 = vpop.f32.mrb[0].mxu0
    %v1133 = vpop.f32.mrb[0].mxu0
    %v1134 = vadd.f32 %v1037, %v1133
    %v1135 = vpop.f32.mrb[0].mxu0
    %1136 = vmatprep.mubr.bf16.mxu0 0
    %1137 = vmatmul.mubr.bf16.gmra.mrb[0].mxu0 %v782
    %v1138 = vpop.f32.mrb[0].mxu0
    %v1139 = vadd.f32 %v1042, %v1138
    %v1140 = vpop.f32.mrb[0].mxu0
    %v1141 = vpop.f32.mrb[0].mxu0
    %v1142 = vadd.f32 %v1045, %v1141
    %v1143 = vpop.f32.mrb[0].mxu0
    %1144 = vdwg.mxu0
    %v1145 = vpack.c.b16 %v426, %v424
    %v1146 = vpack.c.b16 %v602, %v600
    %v1147 = vpack.c.b16 %v603, %v601
    %v1148 = vpack.c.b16 %v430, %v428
    %v1149 = vpack.c.b16 %v606, %v604
    %v1150 = vpack.c.b16 %v607, %v605
    %v1151 = vpack.c.b16 %v434, %v432
    %v1152 = vpack.c.b16 %v610, %v608
    %v1153 = vpack.c.b16 %v611, %v609
    %v1154 = vpack.c.b16 %v438, %v436
    %v1155 = vpack.c.b16 %v614, %v612
    %v1156 = vpack.c.b16 %v615, %v613
    %v1157 = vpack.c.b16 %v442, %v440
    %v1158 = vpack.c.b16 %v618, %v616
    %v1159 = vpack.c.b16 %v619, %v617
    %v1160 = vpack.c.b16 %v446, %v444
    %v1161 = vpack.c.b16 %v622, %v620
    %v1162 = vpack.c.b16 %v623, %v621
    %v1163 = vpack.c.b16 %v450, %v448
    %v1164 = vpack.c.b16 %v626, %v624
    %v1165 = vpack.c.b16 %v627, %v625
    %v1166 = vpack.c.b16 %v454, %v452
    %v1167 = vpack.c.b16 %v630, %v628
    %v1168 = vpack.c.b16 %v631, %v629
    %v1241 = vunpack.c.l.b16 %v632
    %v1242 = vunpack.c.l.b16 %v633
    %v1243 = vunpack.c.l.b16 %v634
    %v1244 = vunpack.c.l.b16 %v635
    %v1245 = vunpack.c.l.b16 %v636
    %v1246 = vunpack.c.l.b16 %v637
    %v1247 = vunpack.c.l.b16 %v638
    %v1248 = vunpack.c.l.b16 %v639
    %v1249 = vunpack.c.l.b16 %v640
    %v1250 = vunpack.c.l.b16 %v641
    %v1251 = vunpack.c.l.b16 %v642
    %v1252 = vunpack.c.l.b16 %v643
    %v1253 = vunpack.c.l.b16 %v644
    %v1254 = vunpack.c.l.b16 %v645
    %v1255 = vunpack.c.l.b16 %v646
    %v1256 = vunpack.c.l.b16 %v647
    %v1257 = vunpack.c.l.b16 %v648
    %v1258 = vunpack.c.l.b16 %v649
    %v1259 = vunpack.c.l.b16 %v650
    %v1260 = vunpack.c.l.b16 %v651
    %v1261 = vunpack.c.l.b16 %v652
    %v1262 = vunpack.c.l.b16 %v653
    %v1263 = vunpack.c.l.b16 %v654
    %v1264 = vunpack.c.l.b16 %v655
    %v1265 = vunpack.c.l.b16 %v656
    %v1266 = vunpack.c.l.b16 %v657
    %v1267 = vunpack.c.l.b16 %v658
    %v1268 = vunpack.c.l.b16 %v659
    %v1269 = vunpack.c.l.b16 %v660
    %v1270 = vunpack.c.l.b16 %v661
    %v1271 = vunpack.c.l.b16 %v662
    %v1272 = vunpack.c.l.b16 %v663
    %v1273 = vunpack.c.l.b16 %v664
    %v1274 = vunpack.c.l.b16 %v665
    %v1275 = vunpack.c.l.b16 %v666
    %v1276 = vunpack.c.l.b16 %v667
    %v1277 = vunpack.c.l.b16 %v668
    %v1278 = vunpack.c.l.b16 %v669
    %v1279 = vunpack.c.l.b16 %v670
    %v1280 = vunpack.c.l.b16 %v671
    %v1281 = vunpack.c.l.b16 %v672
    %v1282 = vunpack.c.l.b16 %v673
    %v1283 = vunpack.c.l.b16 %v674
    %v1284 = vunpack.c.l.b16 %v675
    %v1285 = vunpack.c.l.b16 %v676
    %v1286 = vunpack.c.l.b16 %v677
    %v1287 = vunpack.c.l.b16 %v678
    %v1288 = vunpack.c.l.b16 %v679
    %v1289 = vpack.c.b16 %v1242, %v1241
    %v1290 = vpack.c.b16 %v1244, %v1243
    %v1291 = vpack.c.b16 %v1246, %v1245
    %v1292 = vpack.c.b16 %v1248, %v1247
    %v1293 = vpack.c.b16 %v1250, %v1249
    %v1294 = vpack.c.b16 %v1252, %v1251
    %v1295 = vpack.c.b16 %v1254, %v1253
    %v1296 = vpack.c.b16 %v1256, %v1255
    %v1297 = vpack.c.b16 %v1258, %v1257
    %v1298 = vpack.c.b16 %v1260, %v1259
    %v1299 = vpack.c.b16 %v1262, %v1261
    %v1300 = vpack.c.b16 %v1264, %v1263
    %v1301 = vpack.c.b16 %v1266, %v1265
    %v1302 = vpack.c.b16 %v1268, %v1267
    %v1303 = vpack.c.b16 %v1270, %v1269
    %v1304 = vpack.c.b16 %v1272, %v1271
    %v1305 = vpack.c.b16 %v1274, %v1273
    %v1306 = vpack.c.b16 %v1276, %v1275
    %v1307 = vpack.c.b16 %v1278, %v1277
    %v1308 = vpack.c.b16 %v1280, %v1279
    %v1309 = vpack.c.b16 %v1282, %v1281
    %v1310 = vpack.c.b16 %v1284, %v1283
    %v1311 = vpack.c.b16 %v1286, %v1285
    %v1312 = vpack.c.b16 %v1288, %v1287
    %1337 = vmatprep.subr.bf16.mxu0 0
    %1338 = vmatpush1.bf16.msra.mxu0 %v1289
    %1339 = vmatprep.subr.bf16.mxu0 0
    %1340 = vmatpush1.bf16.msra.mxu0 %v1290
    %1341 = vmatprep.subr.bf16.mxu0 0
    %1342 = vmatpush1.bf16.msra.mxu0 %v1291
    %1343 = vmatprep.subr.bf16.mxu0 0
    %1344 = vmatpush1.bf16.msra.mxu0 %v1292
    %1345 = vmatprep.subr.bf16.mxu0 0
    %1346 = vmatpush1.bf16.msra.mxu0 %v1293
    %1347 = vmatprep.subr.bf16.mxu0 0
    %1348 = vmatpush1.bf16.msra.mxu0 %v1294
    %1349 = vmatprep.subr.bf16.mxu0 0
    %1350 = vmatpush1.bf16.msra.mxu0 %v1295
    %1351 = vmatprep.subr.bf16.mxu0 0
    %1352 = vmatpush1.bf16.msra.mxu0 %v1296
    %1353 = vmatprep.subr.bf16.mxu0 0
    %1354 = vmatpush1.bf16.msra.mxu0 %v1297
    %1355 = vmatprep.subr.bf16.mxu0 0
    %1356 = vmatpush1.bf16.msra.mxu0 %v1298
    %1357 = vmatprep.subr.bf16.mxu0 0
    %1358 = vmatpush1.bf16.msra.mxu0 %v1299
    %1359 = vmatprep.subr.bf16.mxu0 0
    %1360 = vmatpush1.bf16.msra.mxu0 %v1300
    %1361 = vmatprep.subr.bf16.mxu0 0
    %1362 = vmatpush1.bf16.msra.mxu0 %v1301
    %1363 = vmatprep.subr.bf16.mxu0 0
    %1364 = vmatpush1.bf16.msra.mxu0 %v1302
    %1365 = vmatprep.subr.bf16.mxu0 0
    %1366 = vmatpush1.bf16.msra.mxu0 %v1303
    %1367 = vmatprep.subr.bf16.mxu0 0
    %1368 = vmatpush1.bf16.msra.mxu0 %v1304
    %1369 = vmatprep.mubr.bf16.mxu0 %v1146
    %1370 = vmatmul.mubr.bf16.gmra.mrb[0].mxu0 %v1145
    %v1371 = vpop.f32.mrb[0].mxu0
    %v1372 = vadd.f32 %v1083, %v1371
    %v1373 = vpop.f32.mrb[0].mxu0
    %v1374 = vpop.f32.mrb[0].mxu0
    %v1375 = vadd.f32 %v1086, %v1374
    %v1376 = vpop.f32.mrb[0].mxu0
    %1377 = vmatprep.mubr.bf16.mxu0 %v1149
    %1378 = vmatmul.mubr.bf16.gmra.mrb[0].mxu0 %v1148
    %v1379 = vpop.f32.mrb[0].mxu0
    %v1380 = vadd.f32 %v1091, %v1379
    %v1381 = vpop.f32.mrb[0].mxu0
    %v1382 = vpop.f32.mrb[0].mxu0
    %v1383 = vadd.f32 %v1094, %v1382
    %v1384 = vpop.f32.mrb[0].mxu0
    %1385 = vmatprep.mubr.bf16.mxu0 %v1152
    %1386 = vmatmul.mubr.bf16.gmra.mrb[0].mxu0 %v1151
    %v1387 = vpop.f32.mrb[0].mxu0
    %v1388 = vadd.f32 %v1099, %v1387
    %v1389 = vpop.f32.mrb[0].mxu0
    %v1390 = vpop.f32.mrb[0].mxu0
    %v1391 = vadd.f32 %v1102, %v1390
    %v1392 = vpop.f32.mrb[0].mxu0
    %1393 = vmatprep.mubr.bf16.mxu0 %v1155
    %1394 = vmatmul.mubr.bf16.gmra.mrb[0].mxu0 %v1154
    %v1395 = vpop.f32.mrb[0].mxu0
    %v1396 = vadd.f32 %v1107, %v1395
    %v1397 = vpop.f32.mrb[0].mxu0
    %v1398 = vpop.f32.mrb[0].mxu0
    %v1399 = vadd.f32 %v1110, %v1398
    %v1400 = vpop.f32.mrb[0].mxu0
    %1401 = vmatprep.mubr.bf16.mxu0 %v1158
    %1402 = vmatmul.mubr.bf16.gmra.mrb[0].mxu0 %v1157
    %v1403 = vpop.f32.mrb[0].mxu0
    %v1404 = vadd.f32 %v1115, %v1403
    %v1405 = vpop.f32.mrb[0].mxu0
    %v1406 = vpop.f32.mrb[0].mxu0
    %v1407 = vadd.f32 %v1118, %v1406
    %v1408 = vpop.f32.mrb[0].mxu0
    %1409 = vmatprep.mubr.bf16.mxu0 %v1161
    %1410 = vmatmul.mubr.bf16.gmra.mrb[0].mxu0 %v1160
    %v1411 = vpop.f32.mrb[0].mxu0
    %v1412 = vadd.f32 %v1123, %v1411
    %v1413 = vpop.f32.mrb[0].mxu0
    %v1414 = vpop.f32.mrb[0].mxu0
    %v1415 = vadd.f32 %v1126, %v1414
    %v1416 = vpop.f32.mrb[0].mxu0
    %1417 = vmatprep.mubr.bf16.mxu0 %v1164
    %1418 = vmatmul.mubr.bf16.gmra.mrb[0].mxu0 %v1163
    %v1419 = vpop.f32.mrb[0].mxu0
    %v1420 = vadd.f32 %v1131, %v1419
    %v1421 = vpop.f32.mrb[0].mxu0
    %v1422 = vpop.f32.mrb[0].mxu0
    %v1423 = vadd.f32 %v1134, %v1422
    %v1424 = vpop.f32.mrb[0].mxu0
    %1425 = vmatprep.mubr.bf16.mxu0 %v1167
    %1426 = vmatmul.mubr.bf16.gmra.mrb[0].mxu0 %v1166
    %v1427 = vpop.f32.mrb[0].mxu0
    %v1428 = vadd.f32 %v1139, %v1427
    %v1429 = vpop.f32.mrb[0].mxu0
    %v1430 = vpop.f32.mrb[0].mxu0
    %v1431 = vadd.f32 %v1142, %v1430
    %v1432 = vpop.f32.mrb[0].mxu0
    %1433 = vdwg.mxu0
    %1434 = vmatprep.subr.bf16.mxu0 0
    %1435 = vmatpush1.bf16.msra.mxu0 %v1305
    %1436 = vmatprep.subr.bf16.mxu0 0
    %1437 = vmatpush1.bf16.msra.mxu0 %v1306
    %1438 = vmatprep.subr.bf16.mxu0 0
    %1439 = vmatpush1.bf16.msra.mxu0 %v1307
    %1440 = vmatprep.subr.bf16.mxu0 0
    %1441 = vmatpush1.bf16.msra.mxu0 %v1308
    %1442 = vmatprep.subr.bf16.mxu0 0
    %1443 = vmatpush1.bf16.msra.mxu0 %v1309
    %1444 = vmatprep.subr.bf16.mxu0 0
    %1445 = vmatpush1.bf16.msra.mxu0 %v1310
    %1446 = vmatprep.subr.bf16.mxu0 0
    %1447 = vmatpush1.bf16.msra.mxu0 %v1311
    %1448 = vmatprep.subr.bf16.mxu0 0
    %1449 = vmatpush1.bf16.msra.mxu0 %v1312
    %1450 = vmatprep.subr.bf16.mxu0 0
    %1451 = vmatpush1.bf16.msra.mxu0 0
    %1452 = vmatprep.subr.bf16.mxu0 0
    %1453 = vmatpush1.bf16.msra.mxu0 0
    %1454 = vmatprep.subr.bf16.mxu0 0
    %1455 = vmatpush1.bf16.msra.mxu0 0
    %1456 = vmatprep.subr.bf16.mxu0 0
    %1457 = vmatpush1.bf16.msra.mxu0 0
    %1458 = vmatprep.subr.bf16.mxu0 0
    %1459 = vmatpush1.bf16.msra.mxu0 0
    %1460 = vmatprep.subr.bf16.mxu0 0
    %1461 = vmatpush1.bf16.msra.mxu0 0
    %1462 = vmatprep.subr.bf16.mxu0 0
    %1463 = vmatpush1.bf16.msra.mxu0 0
    %1464 = vmatprep.subr.bf16.mxu0 0
    %1465 = vmatpush1.bf16.msra.mxu0 0
    %1466 = vmatprep.mubr.bf16.mxu0 0
    %1467 = vmatmul.mubr.bf16.gmra.mrb[0].mxu0 %v1147
    %v1468 = vpop.f32.mrb[0].mxu0
    %v1469 = vadd.f32 %v1372, %v1468
    %v1470 = vpop.f32.mrb[0].mxu0
    %v1471 = vpop.f32.mrb[0].mxu0
    %v1472 = vadd.f32 %v1375, %v1471
    %v1473 = vpop.f32.mrb[0].mxu0
    %1474 = vmatprep.mubr.bf16.mxu0 0
    %1475 = vmatmul.mubr.bf16.gmra.mrb[0].mxu0 %v1150
    %v1476 = vpop.f32.mrb[0].mxu0
    %v1477 = vadd.f32 %v1380, %v1476
    %v1478 = vpop.f32.mrb[0].mxu0
    %v1479 = vpop.f32.mrb[0].mxu0
    %v1480 = vadd.f32 %v1383, %v1479
    %v1481 = vpop.f32.mrb[0].mxu0
    %1482 = vmatprep.mubr.bf16.mxu0 0
    %1483 = vmatmul.mubr.bf16.gmra.mrb[0].mxu0 %v1153
    %v1484 = vpop.f32.mrb[0].mxu0
    %v1485 = vadd.f32 %v1388, %v1484
    %v1486 = vpop.f32.mrb[0].mxu0
    %v1487 = vpop.f32.mrb[0].mxu0
    %v1488 = vadd.f32 %v1391, %v1487
    %v1489 = vpop.f32.mrb[0].mxu0
    %1490 = vmatprep.mubr.bf16.mxu0 0
    %1491 = vmatmul.mubr.bf16.gmra.mrb[0].mxu0 %v1156
    %v1492 = vpop.f32.mrb[0].mxu0
    %v1493 = vadd.f32 %v1396, %v1492
    %v1494 = vpop.f32.mrb[0].mxu0
    %v1495 = vpop.f32.mrb[0].mxu0
    %v1496 = vadd.f32 %v1399, %v1495
    %v1497 = vpop.f32.mrb[0].mxu0
    %1498 = vmatprep.mubr.bf16.mxu0 0
    %1499 = vmatmul.mubr.bf16.gmra.mrb[0].mxu0 %v1159
    %v1500 = vpop.f32.mrb[0].mxu0
    %v1501 = vadd.f32 %v1404, %v1500
    %v1502 = vpop.f32.mrb[0].mxu0
    %v1503 = vpop.f32.mrb[0].mxu0
    %v1504 = vadd.f32 %v1407, %v1503
    %v1505 = vpop.f32.mrb[0].mxu0
    %1506 = vmatprep.mubr.bf16.mxu0 0
    %1507 = vmatmul.mubr.bf16.gmra.mrb[0].mxu0 %v1162
    %v1508 = vpop.f32.mrb[0].mxu0
    %v1509 = vadd.f32 %v1412, %v1508
    %v1510 = vpop.f32.mrb[0].mxu0
    %v1511 = vpop.f32.mrb[0].mxu0
    %v1512 = vadd.f32 %v1415, %v1511
    %v1513 = vpop.f32.mrb[0].mxu0
    %1514 = vmatprep.mubr.bf16.mxu0 0
    %1515 = vmatmul.mubr.bf16.gmra.mrb[0].mxu0 %v1165
    %v1516 = vpop.f32.mrb[0].mxu0
    %v1517 = vadd.f32 %v1420, %v1516
    %v1518 = vpop.f32.mrb[0].mxu0
    %v1519 = vpop.f32.mrb[0].mxu0
    %v1520 = vadd.f32 %v1423, %v1519
    %v1521 = vpop.f32.mrb[0].mxu0
    %1522 = vmatprep.mubr.bf16.mxu0 0
    %1523 = vmatmul.mubr.bf16.gmra.mrb[0].mxu0 %v1168
    %v1524 = vpop.f32.mrb[0].mxu0
    %v1525 = vadd.f32 %v1428, %v1524
    %v1526 = vpop.f32.mrb[0].mxu0
    %v1527 = vpop.f32.mrb[0].mxu0
    %v1528 = vadd.f32 %v1431, %v1527
    %v1529 = vpop.f32.mrb[0].mxu0
    %1530 = vdwg.mxu0
    %v1535 = vunpack.c.l.b16 %v370
    %v1536 = vunpack.c.l.b16 %v371
    %v1537 = vunpack.c.l.b16 %v390
    %v1538 = vunpack.c.l.b16 %v391
    %v1539 = vpack.c.b16 %v1536, %v1535
    %v1540 = vpack.c.b16 %v1538, %v1537
    %v1542 = vshrl.u32 %v1539, 16
    %v1544 = vshll.u32 %v1539, 16
    %v1546 = vrot.slane %v1544, 1
    %v1547 = vor.u32 %v1542, %v1546
    %v1549 = vshrl.u32 %v1540, 16
    %v1551 = vshll.u32 %v1540, 16
    %v1553 = vrot.slane %v1551, 1
    %v1554 = vor.u32 %v1549, %v1553
    %v1555 = vrot.slane %v1539, 1
    %v1556 = vrot.slane %v1540, 1
    %v1557 = vunpack.c.l.b16 %v1547
    %v1558 = vunpack.c.l.b16 %v1555
    %v1559 = vunpack.c.l.b16 %v1554
    %v1560 = vunpack.c.l.b16 %v1556
    %s1561 = scalar_lea.vmem [#allocation3], 384
    %v1562 = vld [vmem:[%s1561] sm:$0xf]
    %v1563 = vld [vmem:[%s1561 + $0x4] sm:$0xf]
    %v1564 = vld [vmem:[%s1561 + $0x8] sm:$0xf]
    %v1565 = vld [vmem:[%s1561 + $0xc] sm:$0xf]
    %v1566 = vld [vmem:[%s1561 + $0x10] sm:$0xf]
    %v1567 = vld [vmem:[%s1561 + $0x14] sm:$0xf]
    %v1568 = vld [vmem:[%s1561 + $0x18] sm:$0xf]
    %v1569 = vld [vmem:[%s1561 + $0x1c] sm:$0xf]
    %v1570 = vld [vmem:[%s1561 + $0x20] sm:$0xf]
    %v1571 = vld [vmem:[%s1561 + $0x24] sm:$0xf]
    %v1572 = vld [vmem:[%s1561 + $0x28] sm:$0xf]
    %v1573 = vld [vmem:[%s1561 + $0x2c] sm:$0xf]
    %v1574 = vld [vmem:[%s1561 + $0x30] sm:$0xf]
    %v1575 = vld [vmem:[%s1561 + $0x34] sm:$0xf]
    %v1576 = vld [vmem:[%s1561 + $0x38] sm:$0xf]
    %v1577 = vld [vmem:[%s1561 + $0x3c] sm:$0xf]
    %v1578 = vld [vmem:[%s1561 + $0x40] sm:$0xf]
    %v1579 = vld [vmem:[%s1561 + $0x44] sm:$0xf]
    %v1580 = vld [vmem:[%s1561 + $0x48] sm:$0xf]
    %v1581 = vld [vmem:[%s1561 + $0x4c] sm:$0xf]
    %v1582 = vld [vmem:[%s1561 + $0x50] sm:$0xf]
    %v1583 = vld [vmem:[%s1561 + $0x54] sm:$0xf]
    %v1584 = vld [vmem:[%s1561 + $0x58] sm:$0xf]
    %v1585 = vld [vmem:[%s1561 + $0x5c] sm:$0xf]
    %v1586 = vld [vmem:[%s1561 + $0x60] sm:$0xf]
    %v1587 = vld [vmem:[%s1561 + $0x64] sm:$0xf]
    %v1588 = vld [vmem:[%s1561 + $0x68] sm:$0xf]
    %v1589 = vld [vmem:[%s1561 + $0x6c] sm:$0xf]
    %v1590 = vld [vmem:[%s1561 + $0x70] sm:$0xf]
    %v1591 = vld [vmem:[%s1561 + $0x74] sm:$0xf]
    %v1592 = vld [vmem:[%s1561 + $0x78] sm:$0xf]
    %v1593 = vld [vmem:[%s1561 + $0x7c] sm:$0xf]
    %v1594 = vld [vmem:[%s1561 + $0x80] sm:$0xf]
    %v1595 = vld [vmem:[%s1561 + $0x84] sm:$0xf]
    %v1596 = vld [vmem:[%s1561 + $0x88] sm:$0xf]
    %v1597 = vld [vmem:[%s1561 + $0x8c] sm:$0xf]
    %v1598 = vld [vmem:[%s1561 + $0x90] sm:$0xf]
    %v1599 = vld [vmem:[%s1561 + $0x94] sm:$0xf]
    %v1600 = vld [vmem:[%s1561 + $0x98] sm:$0xf]
    %v1601 = vld [vmem:[%s1561 + $0x9c] sm:$0xf]
    %v1602 = vld [vmem:[%s1561 + $0xa0] sm:$0xf]
    %v1603 = vld [vmem:[%s1561 + $0xa4] sm:$0xf]
    %v1604 = vld [vmem:[%s1561 + $0xa8] sm:$0xf]
    %v1605 = vld [vmem:[%s1561 + $0xac] sm:$0xf]
    %v1606 = vld [vmem:[%s1561 + $0xb0] sm:$0xf]
    %v1607 = vld [vmem:[%s1561 + $0xb4] sm:$0xf]
    %v1608 = vld [vmem:[%s1561 + $0xb8] sm:$0xf]
    %v1609 = vld [vmem:[%s1561 + $0xbc] sm:$0xf]
    %v1610 = vpack.c.b16 %v1535, %v684
    %v1611 = vpack.c.b16 %v1557, %v706
    %v1612 = vpack.c.b16 %v1558, %v707
    %v1613 = vpack.c.b16 %v1537, %v686
    %v1614 = vpack.c.b16 %v1559, %v708
    %v1615 = vpack.c.b16 %v1560, %v709
    %v1670 = vunpack.c.l.b16 %v1562
    %v1671 = vunpack.c.l.b16 %v1563
    %v1672 = vunpack.c.l.b16 %v1564
    %v1673 = vunpack.c.l.b16 %v1565
    %v1674 = vunpack.c.l.b16 %v1566
    %v1675 = vunpack.c.l.b16 %v1567
    %v1676 = vunpack.c.l.b16 %v1568
    %v1677 = vunpack.c.l.b16 %v1569
    %v1678 = vunpack.c.l.b16 %v1570
    %v1679 = vunpack.c.l.b16 %v1571
    %v1680 = vunpack.c.l.b16 %v1572
    %v1681 = vunpack.c.l.b16 %v1573
    %v1682 = vunpack.c.l.b16 %v1574
    %v1683 = vunpack.c.l.b16 %v1575
    %v1684 = vunpack.c.l.b16 %v1576
    %v1685 = vunpack.c.l.b16 %v1577
    %v1686 = vunpack.c.l.b16 %v1578
    %v1687 = vunpack.c.l.b16 %v1579
    %v1688 = vunpack.c.l.b16 %v1580
    %v1689 = vunpack.c.l.b16 %v1581
    %v1690 = vunpack.c.l.b16 %v1582
    %v1691 = vunpack.c.l.b16 %v1583
    %v1692 = vunpack.c.l.b16 %v1584
    %v1693 = vunpack.c.l.b16 %v1585
    %v1694 = vunpack.c.l.b16 %v1586
    %v1695 = vunpack.c.l.b16 %v1587
    %v1696 = vunpack.c.l.b16 %v1588
    %v1697 = vunpack.c.l.b16 %v1589
    %v1698 = vunpack.c.l.b16 %v1590
    %v1699 = vunpack.c.l.b16 %v1591
    %v1700 = vunpack.c.l.b16 %v1592
    %v1701 = vunpack.c.l.b16 %v1593
    %v1702 = vunpack.c.l.b16 %v1594
    %v1703 = vunpack.c.l.b16 %v1595
    %v1704 = vunpack.c.l.b16 %v1596
    %v1705 = vunpack.c.l.b16 %v1597
    %v1706 = vunpack.c.l.b16 %v1598
    %v1707 = vunpack.c.l.b16 %v1599
    %v1708 = vunpack.c.l.b16 %v1600
    %v1709 = vunpack.c.l.b16 %v1601
    %v1710 = vunpack.c.l.b16 %v1602
    %v1711 = vunpack.c.l.b16 %v1603
    %v1712 = vunpack.c.l.b16 %v1604
    %v1713 = vunpack.c.l.b16 %v1605
    %v1714 = vunpack.c.l.b16 %v1606
    %v1715 = vunpack.c.l.b16 %v1607
    %v1716 = vunpack.c.l.b16 %v1608
    %v1717 = vunpack.c.l.b16 %v1609
    %v1718 = vpack.c.b16 %v1671, %v1670
    %v1719 = vpack.c.b16 %v1673, %v1672
    %v1720 = vpack.c.b16 %v1675, %v1674
    %v1721 = vpack.c.b16 %v1677, %v1676
    %v1722 = vpack.c.b16 %v1679, %v1678
    %v1723 = vpack.c.b16 %v1681, %v1680
    %v1724 = vpack.c.b16 %v1683, %v1682
    %v1725 = vpack.c.b16 %v1685, %v1684
    %v1726 = vpack.c.b16 %v1687, %v1686
    %v1727 = vpack.c.b16 %v1689, %v1688
    %v1728 = vpack.c.b16 %v1691, %v1690
    %v1729 = vpack.c.b16 %v1693, %v1692
    %v1730 = vpack.c.b16 %v1695, %v1694
    %v1731 = vpack.c.b16 %v1697, %v1696
    %v1732 = vpack.c.b16 %v1699, %v1698
    %v1733 = vpack.c.b16 %v1701, %v1700
    %v1734 = vpack.c.b16 %v1703, %v1702
    %v1735 = vpack.c.b16 %v1705, %v1704
    %v1736 = vpack.c.b16 %v1707, %v1706
    %v1737 = vpack.c.b16 %v1709, %v1708
    %v1738 = vpack.c.b16 %v1711, %v1710
    %v1739 = vpack.c.b16 %v1713, %v1712
    %v1740 = vpack.c.b16 %v1715, %v1714
    %v1741 = vpack.c.b16 %v1717, %v1716
    %1766 = vmatprep.subr.bf16.mxu0 0
    %1767 = vmatpush1.bf16.msra.mxu0 %v1718
    %1768 = vmatprep.subr.bf16.mxu0 0
    %1769 = vmatpush1.bf16.msra.mxu0 %v1719
    %1770 = vmatprep.subr.bf16.mxu0 0
    %1771 = vmatpush1.bf16.msra.mxu0 %v1720
    %1772 = vmatprep.subr.bf16.mxu0 0
    %1773 = vmatpush1.bf16.msra.mxu0 %v1721
    %1774 = vmatprep.subr.bf16.mxu0 0
    %1775 = vmatpush1.bf16.msra.mxu0 %v1722
    %1776 = vmatprep.subr.bf16.mxu0 0
    %1777 = vmatpush1.bf16.msra.mxu0 %v1723
    %1778 = vmatprep.subr.bf16.mxu0 0
    %1779 = vmatpush1.bf16.msra.mxu0 %v1724
    %1780 = vmatprep.subr.bf16.mxu0 0
    %1781 = vmatpush1.bf16.msra.mxu0 %v1725
    %1782 = vmatprep.subr.bf16.mxu0 0
    %1783 = vmatpush1.bf16.msra.mxu0 %v1726
    %1784 = vmatprep.subr.bf16.mxu0 0
    %1785 = vmatpush1.bf16.msra.mxu0 %v1727
    %1786 = vmatprep.subr.bf16.mxu0 0
    %1787 = vmatpush1.bf16.msra.mxu0 %v1728
    %1788 = vmatprep.subr.bf16.mxu0 0
    %1789 = vmatpush1.bf16.msra.mxu0 %v1729
    %1790 = vmatprep.subr.bf16.mxu0 0
    %1791 = vmatpush1.bf16.msra.mxu0 %v1730
    %1792 = vmatprep.subr.bf16.mxu0 0
    %1793 = vmatpush1.bf16.msra.mxu0 %v1731
    %1794 = vmatprep.subr.bf16.mxu0 0
    %1795 = vmatpush1.bf16.msra.mxu0 %v1732
    %1796 = vmatprep.subr.bf16.mxu0 0
    %1797 = vmatpush1.bf16.msra.mxu0 %v1733
    %1798 = vmatprep.mubr.bf16.mxu0 %v1149
    %1799 = vmatmul.mubr.bf16.gmra.mrb[0].mxu0 %v1148
    %v1800 = vpop.f32.mrb[0].mxu0
    %v1801 = vadd.f32 0.0, %v1800
    %v1802 = vpop.f32.mrb[0].mxu0
    %v1803 = vpop.f32.mrb[0].mxu0
    %v1804 = vadd.f32 0.0, %v1803
    %v1805 = vpop.f32.mrb[0].mxu0
    %1806 = vmatprep.mubr.bf16.mxu0 %v1152
    %1807 = vmatmul.mubr.bf16.gmra.mrb[0].mxu0 %v1151
    %v1808 = vpop.f32.mrb[0].mxu0
    %v1809 = vadd.f32 0.0, %v1808
    %v1810 = vpop.f32.mrb[0].mxu0
    %v1811 = vpop.f32.mrb[0].mxu0
    %v1812 = vadd.f32 0.0, %v1811
    %v1813 = vpop.f32.mrb[0].mxu0
    %1814 = vmatprep.mubr.bf16.mxu0 %v1155
    %1815 = vmatmul.mubr.bf16.gmra.mrb[0].mxu0 %v1154
    %v1816 = vpop.f32.mrb[0].mxu0
    %v1817 = vadd.f32 0.0, %v1816
    %v1818 = vpop.f32.mrb[0].mxu0
    %v1819 = vpop.f32.mrb[0].mxu0
    %v1820 = vadd.f32 0.0, %v1819
    %v1821 = vpop.f32.mrb[0].mxu0
    %1822 = vmatprep.mubr.bf16.mxu0 %v1611
    %1823 = vmatmul.mubr.bf16.gmra.mrb[0].mxu0 %v1610
    %v1824 = vpop.f32.mrb[0].mxu0
    %v1825 = vadd.f32 0.0, %v1824
    %v1826 = vpop.f32.mrb[0].mxu0
    %v1827 = vpop.f32.mrb[0].mxu0
    %v1828 = vadd.f32 0.0, %v1827
    %v1829 = vpop.f32.mrb[0].mxu0
    %1830 = vmatprep.mubr.bf16.mxu0 %v1161
    %1831 = vmatmul.mubr.bf16.gmra.mrb[0].mxu0 %v1160
    %v1832 = vpop.f32.mrb[0].mxu0
    %v1833 = vadd.f32 0.0, %v1832
    %v1834 = vpop.f32.mrb[0].mxu0
    %v1835 = vpop.f32.mrb[0].mxu0
    %v1836 = vadd.f32 0.0, %v1835
    %v1837 = vpop.f32.mrb[0].mxu0
    %1838 = vmatprep.mubr.bf16.mxu0 %v1164
    %1839 = vmatmul.mubr.bf16.gmra.mrb[0].mxu0 %v1163
    %v1840 = vpop.f32.mrb[0].mxu0
    %v1841 = vadd.f32 0.0, %v1840
    %v1842 = vpop.f32.mrb[0].mxu0
    %v1843 = vpop.f32.mrb[0].mxu0
    %v1844 = vadd.f32 0.0, %v1843
    %v1845 = vpop.f32.mrb[0].mxu0
    %1846 = vmatprep.mubr.bf16.mxu0 %v1167
    %1847 = vmatmul.mubr.bf16.gmra.mrb[0].mxu0 %v1166
    %v1848 = vpop.f32.mrb[0].mxu0
    %v1849 = vadd.f32 0.0, %v1848
    %v1850 = vpop.f32.mrb[0].mxu0
    %v1851 = vpop.f32.mrb[0].mxu0
    %v1852 = vadd.f32 0.0, %v1851
    %v1853 = vpop.f32.mrb[0].mxu0
    %1854 = vmatprep.mubr.bf16.mxu0 %v1614
    %1855 = vmatmul.mubr.bf16.gmra.mrb[0].mxu0 %v1613
    %v1856 = vpop.f32.mrb[0].mxu0
    %v1857 = vadd.f32 0.0, %v1856
    %v1858 = vpop.f32.mrb[0].mxu0
    %v1859 = vpop.f32.mrb[0].mxu0
    %v1860 = vadd.f32 0.0, %v1859
    %v1861 = vpop.f32.mrb[0].mxu0
    %1862 = vdwg.mxu0
    %1863 = vmatprep.subr.bf16.mxu0 0
    %1864 = vmatpush1.bf16.msra.mxu0 %v1734
    %1865 = vmatprep.subr.bf16.mxu0 0
    %1866 = vmatpush1.bf16.msra.mxu0 %v1735
    %1867 = vmatprep.subr.bf16.mxu0 0
    %1868 = vmatpush1.bf16.msra.mxu0 %v1736
    %1869 = vmatprep.subr.bf16.mxu0 0
    %1870 = vmatpush1.bf16.msra.mxu0 %v1737
    %1871 = vmatprep.subr.bf16.mxu0 0
    %1872 = vmatpush1.bf16.msra.mxu0 %v1738
    %1873 = vmatprep.subr.bf16.mxu0 0
    %1874 = vmatpush1.bf16.msra.mxu0 %v1739
    %1875 = vmatprep.subr.bf16.mxu0 0
    %1876 = vmatpush1.bf16.msra.mxu0 %v1740
    %1877 = vmatprep.subr.bf16.mxu0 0
    %1878 = vmatpush1.bf16.msra.mxu0 %v1741
    %1879 = vmatprep.subr.bf16.mxu0 0
    %1880 = vmatpush1.bf16.msra.mxu0 0
    %1881 = vmatprep.subr.bf16.mxu0 0
    %1882 = vmatpush1.bf16.msra.mxu0 0
    %1883 = vmatprep.subr.bf16.mxu0 0
    %1884 = vmatpush1.bf16.msra.mxu0 0
    %1885 = vmatprep.subr.bf16.mxu0 0
    %1886 = vmatpush1.bf16.msra.mxu0 0
    %1887 = vmatprep.subr.bf16.mxu0 0
    %1888 = vmatpush1.bf16.msra.mxu0 0
    %1889 = vmatprep.subr.bf16.mxu0 0
    %1890 = vmatpush1.bf16.msra.mxu0 0
    %1891 = vmatprep.subr.bf16.mxu0 0
    %1892 = vmatpush1.bf16.msra.mxu0 0
    %1893 = vmatprep.subr.bf16.mxu0 0
    %1894 = vmatpush1.bf16.msra.mxu0 0
    %1895 = vmatprep.mubr.bf16.mxu0 0
    %1896 = vmatmul.mubr.bf16.gmra.mrb[0].mxu0 %v1150
    %v1897 = vpop.f32.mrb[0].mxu0
    %v1898 = vadd.f32 %v1801, %v1897
    %v1899 = vpop.f32.mrb[0].mxu0
    %v1900 = vpop.f32.mrb[0].mxu0
    %v1901 = vadd.f32 %v1804, %v1900
    %v1902 = vpop.f32.mrb[0].mxu0
    %1903 = vmatprep.mubr.bf16.mxu0 0
    %1904 = vmatmul.mubr.bf16.gmra.mrb[0].mxu0 %v1153
    %v1905 = vpop.f32.mrb[0].mxu0
    %v1906 = vadd.f32 %v1809, %v1905
    %v1907 = vpop.f32.mrb[0].mxu0
    %v1908 = vpop.f32.mrb[0].mxu0
    %v1909 = vadd.f32 %v1812, %v1908
    %v1910 = vpop.f32.mrb[0].mxu0
    %1911 = vmatprep.mubr.bf16.mxu0 0
    %1912 = vmatmul.mubr.bf16.gmra.mrb[0].mxu0 %v1156
    %v1913 = vpop.f32.mrb[0].mxu0
    %v1914 = vadd.f32 %v1817, %v1913
    %v1915 = vpop.f32.mrb[0].mxu0
    %v1916 = vpop.f32.mrb[0].mxu0
    %v1917 = vadd.f32 %v1820, %v1916
    %v1918 = vpop.f32.mrb[0].mxu0
    %1919 = vmatprep.mubr.bf16.mxu0 0
    %1920 = vmatmul.mubr.bf16.gmra.mrb[0].mxu0 %v1612
    %v1921 = vpop.f32.mrb[0].mxu0
    %v1922 = vadd.f32 %v1825, %v1921
    %v1923 = vpop.f32.mrb[0].mxu0
    %v1924 = vpop.f32.mrb[0].mxu0
    %v1925 = vadd.f32 %v1828, %v1924
    %v1926 = vpop.f32.mrb[0].mxu0
    %1927 = vmatprep.mubr.bf16.mxu0 0
    %1928 = vmatmul.mubr.bf16.gmra.mrb[0].mxu0 %v1162
    %v1929 = vpop.f32.mrb[0].mxu0
    %v1930 = vadd.f32 %v1833, %v1929
    %v1931 = vpop.f32.mrb[0].mxu0
    %v1932 = vpop.f32.mrb[0].mxu0
    %v1933 = vadd.f32 %v1836, %v1932
    %v1934 = vpop.f32.mrb[0].mxu0
    %1935 = vmatprep.mubr.bf16.mxu0 0
    %1936 = vmatmul.mubr.bf16.gmra.mrb[0].mxu0 %v1165
    %v1937 = vpop.f32.mrb[0].mxu0
    %v1938 = vadd.f32 %v1841, %v1937
    %v1939 = vpop.f32.mrb[0].mxu0
    %v1940 = vpop.f32.mrb[0].mxu0
    %v1941 = vadd.f32 %v1844, %v1940
    %v1942 = vpop.f32.mrb[0].mxu0
    %1943 = vmatprep.mubr.bf16.mxu0 0
    %1944 = vmatmul.mubr.bf16.gmra.mrb[0].mxu0 %v1168
    %v1945 = vpop.f32.mrb[0].mxu0
    %v1946 = vadd.f32 %v1849, %v1945
    %v1947 = vpop.f32.mrb[0].mxu0
    %v1948 = vpop.f32.mrb[0].mxu0
    %v1949 = vadd.f32 %v1852, %v1948
    %v1950 = vpop.f32.mrb[0].mxu0
    %1951 = vmatprep.mubr.bf16.mxu0 0
    %1952 = vmatmul.mubr.bf16.gmra.mrb[0].mxu0 %v1615
    %v1953 = vpop.f32.mrb[0].mxu0
    %v1954 = vadd.f32 %v1857, %v1953
    %v1955 = vpop.f32.mrb[0].mxu0
    %v1956 = vpop.f32.mrb[0].mxu0
    %v1957 = vadd.f32 %v1860, %v1956
    %v1958 = vpop.f32.mrb[0].mxu0
    %1959 = vdwg.mxu0
    %v1960 = vadd.f32 %v1469, %v1898
    %v1961 = vadd.f32 %v1472, %v1901
    %v1962 = vadd.f32 %v1477, %v1906
    %v1963 = vadd.f32 %v1480, %v1909
    %v1964 = vadd.f32 %v1485, %v1914
    %v1965 = vadd.f32 %v1488, %v1917
    %v1966 = vadd.f32 %v1493, %v1922
    %v1967 = vadd.f32 %v1496, %v1925
    %v1968 = vadd.f32 %v1501, %v1930
    %v1969 = vadd.f32 %v1504, %v1933
    %v1970 = vadd.f32 %v1509, %v1938
    %v1971 = vadd.f32 %v1512, %v1941
    %v1972 = vadd.f32 %v1517, %v1946
    %v1973 = vadd.f32 %v1520, %v1949
    %v1974 = vadd.f32 %v1525, %v1954
    %v1975 = vadd.f32 %v1528, %v1957
    %v1976 = vld [vmem:[%s2] sm:$0x1]
    %v1978 = vlaneseq
    %v1979 = vshrl.u32 %v1978, 7
    %v1980 = vsub.s32 0, %v1979
    %v1981 = vrot.slane %v1976, %v1980
    %v1983 = vadd.f32 %v1960, %v1981
    %v1984 = vadd.f32 %v1961, %v1981
    %v1985 = vadd.f32 %v1962, %v1981
    %v1986 = vadd.f32 %v1963, %v1981
    %v1987 = vadd.f32 %v1964, %v1981
    %v1988 = vadd.f32 %v1965, %v1981
    %v1989 = vadd.f32 %v1966, %v1981
    %v1990 = vadd.f32 %v1967, %v1981
    %v1991 = vadd.f32 %v1968, %v1981
    %v1992 = vadd.f32 %v1969, %v1981
    %v1993 = vadd.f32 %v1970, %v1981
    %v1994 = vadd.f32 %v1971, %v1981
    %v1995 = vadd.f32 %v1972, %v1981
    %v1996 = vadd.f32 %v1973, %v1981
    %v1997 = vadd.f32 %v1974, %v1981
    %v1998 = vadd.f32 %v1975, %v1981
    %v1999 = vmax.f32 %v1983, 0.0
    %v2000 = vmax.f32 %v1984, 0.0
    %v2001 = vmax.f32 %v1985, 0.0
    %v2002 = vmax.f32 %v1986, 0.0
    %v2003 = vmax.f32 %v1987, 0.0
    %v2004 = vmax.f32 %v1988, 0.0
    %v2005 = vmax.f32 %v1989, 0.0
    %v2006 = vmax.f32 %v1990, 0.0
    %v2007 = vmax.f32 %v1991, 0.0
    %v2008 = vmax.f32 %v1992, 0.0
    %v2009 = vmax.f32 %v1993, 0.0
    %v2010 = vmax.f32 %v1994, 0.0
    %v2011 = vmax.f32 %v1995, 0.0
    %v2012 = vmax.f32 %v1996, 0.0
    %v2013 = vmax.f32 %v1997, 0.0
    %v2014 = vmax.f32 %v1998, 0.0
    %v2031 = vcombine.high %v1999, %v1999
    %v2033 = vunpack.c.l.s4 1983009808
    %v2034 = vunpack.c.0.s8 %v2033
    %v2035 = vlaneseq
    %v2036 = vshrl.u32 %v2035, 7
    %v2037 = vsub.s32 %v2034, %v2036
    %v2038 = vrot.slane %v1999, %v2037
    %v2040 = vunpack.c.l.s4 1983009808
    %v2041 = vunpack.c.0.s8 %v2040
    %v2042 = vlaneseq
    %v2043 = vshrl.u32 %v2042, 7
    %v2044 = vsub.s32 %v2041, %v2043
    %v2045 = vrot.slane %v2031, %v2044
    %v2046 = vcombine.high %v2038, %v2038
    %v2047 = vcombine.high %v2045, %v2045
    %v2048 = vcombine.high %v2000, %v2000
    %v2050 = vunpack.c.l.s4 1983009808
    %v2051 = vunpack.c.0.s8 %v2050
    %v2052 = vlaneseq
    %v2053 = vshrl.u32 %v2052, 7
    %v2054 = vsub.s32 %v2051, %v2053
    %v2055 = vrot.slane %v2000, %v2054
    %v2057 = vunpack.c.l.s4 1983009808
    %v2058 = vunpack.c.0.s8 %v2057
    %v2059 = vlaneseq
    %v2060 = vshrl.u32 %v2059, 7
    %v2061 = vsub.s32 %v2058, %v2060
    %v2062 = vrot.slane %v2048, %v2061
    %v2063 = vcombine.high %v2055, %v2055
    %v2064 = vcombine.high %v2062, %v2062
    %v2065 = vcombine.high %v2001, %v2001
    %v2067 = vunpack.c.l.s4 1983009808
    %v2068 = vunpack.c.0.s8 %v2067
    %v2069 = vlaneseq
    %v2070 = vshrl.u32 %v2069, 7
    %v2071 = vsub.s32 %v2068, %v2070
    %v2072 = vrot.slane %v2001, %v2071
    %v2074 = vunpack.c.l.s4 1983009808
    %v2075 = vunpack.c.0.s8 %v2074
    %v2076 = vlaneseq
    %v2077 = vshrl.u32 %v2076, 7
    %v2078 = vsub.s32 %v2075, %v2077
    %v2079 = vrot.slane %v2065, %v2078
    %v2080 = vcombine.high %v2072, %v2072
    %v2081 = vcombine.high %v2079, %v2079
    %v2082 = vcombine.high %v2002, %v2002
    %v2084 = vunpack.c.l.s4 1983009808
    %v2085 = vunpack.c.0.s8 %v2084
    %v2086 = vlaneseq
    %v2087 = vshrl.u32 %v2086, 7
    %v2088 = vsub.s32 %v2085, %v2087
    %v2089 = vrot.slane %v2002, %v2088
    %v2091 = vunpack.c.l.s4 1983009808
    %v2092 = vunpack.c.0.s8 %v2091
    %v2093 = vlaneseq
    %v2094 = vshrl.u32 %v2093, 7
    %v2095 = vsub.s32 %v2092, %v2094
    %v2096 = vrot.slane %v2082, %v2095
    %v2097 = vcombine.high %v2089, %v2089
    %v2098 = vcombine.high %v2096, %v2096
    %v2099 = vcombine.high %v2003, %v2003
    %v2101 = vunpack.c.l.s4 1983009808
    %v2102 = vunpack.c.0.s8 %v2101
    %v2103 = vlaneseq
    %v2104 = vshrl.u32 %v2103, 7
    %v2105 = vsub.s32 %v2102, %v2104
    %v2106 = vrot.slane %v2003, %v2105
    %v2108 = vunpack.c.l.s4 1983009808
    %v2109 = vunpack.c.0.s8 %v2108
    %v2110 = vlaneseq
    %v2111 = vshrl.u32 %v2110, 7
    %v2112 = vsub.s32 %v2109, %v2111
    %v2113 = vrot.slane %v2099, %v2112
    %v2114 = vcombine.high %v2106, %v2106
    %v2115 = vcombine.high %v2113, %v2113
    %v2116 = vcombine.high %v2004, %v2004
    %v2118 = vunpack.c.l.s4 1983009808
    %v2119 = vunpack.c.0.s8 %v2118
    %v2120 = vlaneseq
    %v2121 = vshrl.u32 %v2120, 7
    %v2122 = vsub.s32 %v2119, %v2121
    %v2123 = vrot.slane %v2004, %v2122
    %v2125 = vunpack.c.l.s4 1983009808
    %v2126 = vunpack.c.0.s8 %v2125
    %v2127 = vlaneseq
    %v2128 = vshrl.u32 %v2127, 7
    %v2129 = vsub.s32 %v2126, %v2128
    %v2130 = vrot.slane %v2116, %v2129
    %v2131 = vcombine.high %v2123, %v2123
    %v2132 = vcombine.high %v2130, %v2130
    %v2133 = vcombine.high %v2005, %v2005
    %v2135 = vunpack.c.l.s4 1983009808
    %v2136 = vunpack.c.0.s8 %v2135
    %v2137 = vlaneseq
    %v2138 = vshrl.u32 %v2137, 7
    %v2139 = vsub.s32 %v2136, %v2138
    %v2140 = vrot.slane %v2005, %v2139
    %v2142 = vunpack.c.l.s4 1983009808
    %v2143 = vunpack.c.0.s8 %v2142
    %v2144 = vlaneseq
    %v2145 = vshrl.u32 %v2144, 7
    %v2146 = vsub.s32 %v2143, %v2145
    %v2147 = vrot.slane %v2133, %v2146
    %v2148 = vcombine.high %v2140, %v2140
    %v2149 = vcombine.high %v2147, %v2147
    %v2150 = vcombine.high %v2006, %v2006
    %v2152 = vunpack.c.l.s4 1983009808
    %v2153 = vunpack.c.0.s8 %v2152
    %v2154 = vlaneseq
    %v2155 = vshrl.u32 %v2154, 7
    %v2156 = vsub.s32 %v2153, %v2155
    %v2157 = vrot.slane %v2006, %v2156
    %v2159 = vunpack.c.l.s4 1983009808
    %v2160 = vunpack.c.0.s8 %v2159
    %v2161 = vlaneseq
    %v2162 = vshrl.u32 %v2161, 7
    %v2163 = vsub.s32 %v2160, %v2162
    %v2164 = vrot.slane %v2150, %v2163
    %v2165 = vcombine.high %v2157, %v2157
    %v2166 = vcombine.high %v2164, %v2164
    %v2167 = vcombine.high %v2007, %v2007
    %v2169 = vunpack.c.l.s4 1983009808
    %v2170 = vunpack.c.0.s8 %v2169
    %v2171 = vlaneseq
    %v2172 = vshrl.u32 %v2171, 7
    %v2173 = vsub.s32 %v2170, %v2172
    %v2174 = vrot.slane %v2007, %v2173
    %v2176 = vunpack.c.l.s4 1983009808
    %v2177 = vunpack.c.0.s8 %v2176
    %v2178 = vlaneseq
    %v2179 = vshrl.u32 %v2178, 7
    %v2180 = vsub.s32 %v2177, %v2179
    %v2181 = vrot.slane %v2167, %v2180
    %v2182 = vcombine.high %v2174, %v2174
    %v2183 = vcombine.high %v2181, %v2181
    %v2184 = vcombine.high %v2008, %v2008
    %v2186 = vunpack.c.l.s4 1983009808
    %v2187 = vunpack.c.0.s8 %v2186
    %v2188 = vlaneseq
    %v2189 = vshrl.u32 %v2188, 7
    %v2190 = vsub.s32 %v2187, %v2189
    %v2191 = vrot.slane %v2008, %v2190
    %v2193 = vunpack.c.l.s4 1983009808
    %v2194 = vunpack.c.0.s8 %v2193
    %v2195 = vlaneseq
    %v2196 = vshrl.u32 %v2195, 7
    %v2197 = vsub.s32 %v2194, %v2196
    %v2198 = vrot.slane %v2184, %v2197
    %v2199 = vcombine.high %v2191, %v2191
    %v2200 = vcombine.high %v2198, %v2198
    %v2201 = vcombine.high %v2009, %v2009
    %v2203 = vunpack.c.l.s4 1983009808
    %v2204 = vunpack.c.0.s8 %v2203
    %v2205 = vlaneseq
    %v2206 = vshrl.u32 %v2205, 7
    %v2207 = vsub.s32 %v2204, %v2206
    %v2208 = vrot.slane %v2009, %v2207
    %v2210 = vunpack.c.l.s4 1983009808
    %v2211 = vunpack.c.0.s8 %v2210
    %v2212 = vlaneseq
    %v2213 = vshrl.u32 %v2212, 7
    %v2214 = vsub.s32 %v2211, %v2213
    %v2215 = vrot.slane %v2201, %v2214
    %v2216 = vcombine.high %v2208, %v2208
    %v2217 = vcombine.high %v2215, %v2215
    %v2218 = vcombine.high %v2010, %v2010
    %v2220 = vunpack.c.l.s4 1983009808
    %v2221 = vunpack.c.0.s8 %v2220
    %v2222 = vlaneseq
    %v2223 = vshrl.u32 %v2222, 7
    %v2224 = vsub.s32 %v2221, %v2223
    %v2225 = vrot.slane %v2010, %v2224
    %v2227 = vunpack.c.l.s4 1983009808
    %v2228 = vunpack.c.0.s8 %v2227
    %v2229 = vlaneseq
    %v2230 = vshrl.u32 %v2229, 7
    %v2231 = vsub.s32 %v2228, %v2230
    %v2232 = vrot.slane %v2218, %v2231
    %v2233 = vcombine.high %v2225, %v2225
    %v2234 = vcombine.high %v2232, %v2232
    %v2235 = vcombine.high %v2011, %v2011
    %v2237 = vunpack.c.l.s4 1983009808
    %v2238 = vunpack.c.0.s8 %v2237
    %v2239 = vlaneseq
    %v2240 = vshrl.u32 %v2239, 7
    %v2241 = vsub.s32 %v2238, %v2240
    %v2242 = vrot.slane %v2011, %v2241
    %v2244 = vunpack.c.l.s4 1983009808
    %v2245 = vunpack.c.0.s8 %v2244
    %v2246 = vlaneseq
    %v2247 = vshrl.u32 %v2246, 7
    %v2248 = vsub.s32 %v2245, %v2247
    %v2249 = vrot.slane %v2235, %v2248
    %v2250 = vcombine.high %v2242, %v2242
    %v2251 = vcombine.high %v2249, %v2249
    %v2252 = vcombine.high %v2012, %v2012
    %v2254 = vunpack.c.l.s4 1983009808
    %v2255 = vunpack.c.0.s8 %v2254
    %v2256 = vlaneseq
    %v2257 = vshrl.u32 %v2256, 7
    %v2258 = vsub.s32 %v2255, %v2257
    %v2259 = vrot.slane %v2012, %v2258
    %v2261 = vunpack.c.l.s4 1983009808
    %v2262 = vunpack.c.0.s8 %v2261
    %v2263 = vlaneseq
    %v2264 = vshrl.u32 %v2263, 7
    %v2265 = vsub.s32 %v2262, %v2264
    %v2266 = vrot.slane %v2252, %v2265
    %v2267 = vcombine.high %v2259, %v2259
    %v2268 = vcombine.high %v2266, %v2266
    %v2269 = vcombine.high %v2013, %v2013
    %v2271 = vunpack.c.l.s4 1983009808
    %v2272 = vunpack.c.0.s8 %v2271
    %v2273 = vlaneseq
    %v2274 = vshrl.u32 %v2273, 7
    %v2275 = vsub.s32 %v2272, %v2274
    %v2276 = vrot.slane %v2013, %v2275
    %v2278 = vunpack.c.l.s4 1983009808
    %v2279 = vunpack.c.0.s8 %v2278
    %v2280 = vlaneseq
    %v2281 = vshrl.u32 %v2280, 7
    %v2282 = vsub.s32 %v2279, %v2281
    %v2283 = vrot.slane %v2269, %v2282
    %v2284 = vcombine.high %v2276, %v2276
    %v2285 = vcombine.high %v2283, %v2283
    %v2286 = vcombine.high %v2014, %v2014
    %v2288 = vunpack.c.l.s4 1983009808
    %v2289 = vunpack.c.0.s8 %v2288
    %v2290 = vlaneseq
    %v2291 = vshrl.u32 %v2290, 7
    %v2292 = vsub.s32 %v2289, %v2291
    %v2293 = vrot.slane %v2014, %v2292
    %v2295 = vunpack.c.l.s4 1983009808
    %v2296 = vunpack.c.0.s8 %v2295
    %v2297 = vlaneseq
    %v2298 = vshrl.u32 %v2297, 7
    %v2299 = vsub.s32 %v2296, %v2298
    %v2300 = vrot.slane %v2286, %v2299
    %v2301 = vcombine.high %v2293, %v2293
    %v2302 = vcombine.high %v2300, %v2300
    %v2367 = vrot.slane %v2038, 7
    %v2368 = vrot.slane %v2367, 2
    %v2369 = vrot.slane %v2046, 7
    %v2370 = vrot.slane %v2369, 2
    %v2371 = vrot.slane %v2045, 7
    %v2372 = vrot.slane %v2371, 2
    %v2373 = vrot.slane %v2047, 7
    %v2374 = vrot.slane %v2373, 2
    %v2375 = vrot.slane %v2072, 7
    %v2376 = vrot.slane %v2375, 2
    %v2377 = vrot.slane %v2080, 7
    %v2378 = vrot.slane %v2377, 2
    %v2379 = vrot.slane %v2079, 7
    %v2380 = vrot.slane %v2379, 2
    %v2381 = vrot.slane %v2081, 7
    %v2382 = vrot.slane %v2381, 2
    %v2383 = vrot.slane %v2106, 7
    %v2384 = vrot.slane %v2383, 2
    %v2385 = vrot.slane %v2114, 7
    %v2386 = vrot.slane %v2385, 2
    %v2387 = vrot.slane %v2113, 7
    %v2388 = vrot.slane %v2387, 2
    %v2389 = vrot.slane %v2115, 7
    %v2390 = vrot.slane %v2389, 2
    %v2391 = vrot.slane %v2140, 7
    %v2392 = vrot.slane %v2391, 2
    %v2393 = vrot.slane %v2148, 7
    %v2394 = vrot.slane %v2393, 2
    %v2395 = vrot.slane %v2147, 7
    %v2396 = vrot.slane %v2395, 2
    %v2397 = vrot.slane %v2149, 7
    %v2398 = vrot.slane %v2397, 2
    %v2399 = vrot.slane %v2174, 7
    %v2400 = vrot.slane %v2399, 2
    %v2401 = vrot.slane %v2182, 7
    %v2402 = vrot.slane %v2401, 2
    %v2403 = vrot.slane %v2181, 7
    %v2404 = vrot.slane %v2403, 2
    %v2405 = vrot.slane %v2183, 7
    %v2406 = vrot.slane %v2405, 2
    %v2407 = vrot.slane %v2208, 7
    %v2408 = vrot.slane %v2407, 2
    %v2409 = vrot.slane %v2216, 7
    %v2410 = vrot.slane %v2409, 2
    %v2411 = vrot.slane %v2215, 7
    %v2412 = vrot.slane %v2411, 2
    %v2413 = vrot.slane %v2217, 7
    %v2414 = vrot.slane %v2413, 2
    %v2415 = vrot.slane %v2242, 7
    %v2416 = vrot.slane %v2415, 2
    %v2417 = vrot.slane %v2250, 7
    %v2418 = vrot.slane %v2417, 2
    %v2419 = vrot.slane %v2249, 7
    %v2420 = vrot.slane %v2419, 2
    %v2421 = vrot.slane %v2251, 7
    %v2422 = vrot.slane %v2421, 2
    %v2423 = vrot.slane %v2276, 7
    %v2424 = vrot.slane %v2423, 2
    %v2425 = vrot.slane %v2284, 7
    %v2426 = vrot.slane %v2425, 2
    %v2427 = vrot.slane %v2283, 7
    %v2428 = vrot.slane %v2427, 2
    %v2429 = vrot.slane %v2285, 7
    %v2430 = vrot.slane %v2429, 2
    %v2463 = vmax.f32 %v2038, %v2368
    %v2464 = vmax.f32 %v2046, %v2370
    %v2465 = vmax.f32 %v2045, %v2372
    %v2466 = vmax.f32 %v2047, %v2374
    %v2467 = vmax.f32 %v2072, %v2376
    %v2468 = vmax.f32 %v2080, %v2378
    %v2469 = vmax.f32 %v2079, %v2380
    %v2470 = vmax.f32 %v2081, %v2382
    %v2471 = vmax.f32 %v2106, %v2384
    %v2472 = vmax.f32 %v2114, %v2386
    %v2473 = vmax.f32 %v2113, %v2388
    %v2474 = vmax.f32 %v2115, %v2390
    %v2475 = vmax.f32 %v2140, %v2392
    %v2476 = vmax.f32 %v2148, %v2394
    %v2477 = vmax.f32 %v2147, %v2396
    %v2478 = vmax.f32 %v2149, %v2398
    %v2479 = vmax.f32 %v2174, %v2400
    %v2480 = vmax.f32 %v2182, %v2402
    %v2481 = vmax.f32 %v2181, %v2404
    %v2482 = vmax.f32 %v2183, %v2406
    %v2483 = vmax.f32 %v2208, %v2408
    %v2484 = vmax.f32 %v2216, %v2410
    %v2485 = vmax.f32 %v2215, %v2412
    %v2486 = vmax.f32 %v2217, %v2414
    %v2487 = vmax.f32 %v2242, %v2416
    %v2488 = vmax.f32 %v2250, %v2418
    %v2489 = vmax.f32 %v2249, %v2420
    %v2490 = vmax.f32 %v2251, %v2422
    %v2491 = vmax.f32 %v2276, %v2424
    %v2492 = vmax.f32 %v2284, %v2426
    %v2493 = vmax.f32 %v2283, %v2428
    %v2494 = vmax.f32 %v2285, %v2430
    %v2495 = vrot.slane %v2055, 7
    %v2496 = vrot.slane %v2495, 2
    %v2497 = vrot.slane %v2063, 7
    %v2498 = vrot.slane %v2497, 2
    %v2499 = vrot.slane %v2062, 7
    %v2500 = vrot.slane %v2499, 2
    %v2501 = vrot.slane %v2064, 7
    %v2502 = vrot.slane %v2501, 2
    %v2503 = vrot.slane %v2089, 7
    %v2504 = vrot.slane %v2503, 2
    %v2505 = vrot.slane %v2097, 7
    %v2506 = vrot.slane %v2505, 2
    %v2507 = vrot.slane %v2096, 7
    %v2508 = vrot.slane %v2507, 2
    %v2509 = vrot.slane %v2098, 7
    %v2510 = vrot.slane %v2509, 2
    %v2511 = vrot.slane %v2123, 7
    %v2512 = vrot.slane %v2511, 2
    %v2513 = vrot.slane %v2131, 7
    %v2514 = vrot.slane %v2513, 2
    %v2515 = vrot.slane %v2130, 7
    %v2516 = vrot.slane %v2515, 2
    %v2517 = vrot.slane %v2132, 7
    %v2518 = vrot.slane %v2517, 2
    %v2519 = vrot.slane %v2157, 7
    %v2520 = vrot.slane %v2519, 2
    %v2521 = vrot.slane %v2165, 7
    %v2522 = vrot.slane %v2521, 2
    %v2523 = vrot.slane %v2164, 7
    %v2524 = vrot.slane %v2523, 2
    %v2525 = vrot.slane %v2166, 7
    %v2526 = vrot.slane %v2525, 2
    %v2527 = vrot.slane %v2191, 7
    %v2528 = vrot.slane %v2527, 2
    %v2529 = vrot.slane %v2199, 7
    %v2530 = vrot.slane %v2529, 2
    %v2531 = vrot.slane %v2198, 7
    %v2532 = vrot.slane %v2531, 2
    %v2533 = vrot.slane %v2200, 7
    %v2534 = vrot.slane %v2533, 2
    %v2535 = vrot.slane %v2225, 7
    %v2536 = vrot.slane %v2535, 2
    %v2537 = vrot.slane %v2233, 7
    %v2538 = vrot.slane %v2537, 2
    %v2539 = vrot.slane %v2232, 7
    %v2540 = vrot.slane %v2539, 2
    %v2541 = vrot.slane %v2234, 7
    %v2542 = vrot.slane %v2541, 2
    %v2543 = vrot.slane %v2259, 7
    %v2544 = vrot.slane %v2543, 2
    %v2545 = vrot.slane %v2267, 7
    %v2546 = vrot.slane %v2545, 2
    %v2547 = vrot.slane %v2266, 7
    %v2548 = vrot.slane %v2547, 2
    %v2549 = vrot.slane %v2268, 7
    %v2550 = vrot.slane %v2549, 2
    %v2551 = vrot.slane %v2293, 7
    %v2552 = vrot.slane %v2551, 2
    %v2553 = vrot.slane %v2301, 7
    %v2554 = vrot.slane %v2553, 2
    %v2555 = vrot.slane %v2300, 7
    %v2556 = vrot.slane %v2555, 2
    %v2557 = vrot.slane %v2302, 7
    %v2558 = vrot.slane %v2557, 2
    %v2591 = vmax.f32 %v2055, %v2496
    %v2592 = vmax.f32 %v2063, %v2498
    %v2593 = vmax.f32 %v2062, %v2500
    %v2594 = vmax.f32 %v2064, %v2502
    %v2595 = vmax.f32 %v2089, %v2504
    %v2596 = vmax.f32 %v2097, %v2506
    %v2597 = vmax.f32 %v2096, %v2508
    %v2598 = vmax.f32 %v2098, %v2510
    %v2599 = vmax.f32 %v2123, %v2512
    %v2600 = vmax.f32 %v2131, %v2514
    %v2601 = vmax.f32 %v2130, %v2516
    %v2602 = vmax.f32 %v2132, %v2518
    %v2603 = vmax.f32 %v2157, %v2520
    %v2604 = vmax.f32 %v2165, %v2522
    %v2605 = vmax.f32 %v2164, %v2524
    %v2606 = vmax.f32 %v2166, %v2526
    %v2607 = vmax.f32 %v2191, %v2528
    %v2608 = vmax.f32 %v2199, %v2530
    %v2609 = vmax.f32 %v2198, %v2532
    %v2610 = vmax.f32 %v2200, %v2534
    %v2611 = vmax.f32 %v2225, %v2536
    %v2612 = vmax.f32 %v2233, %v2538
    %v2613 = vmax.f32 %v2232, %v2540
    %v2614 = vmax.f32 %v2234, %v2542
    %v2615 = vmax.f32 %v2259, %v2544
    %v2616 = vmax.f32 %v2267, %v2546
    %v2617 = vmax.f32 %v2266, %v2548
    %v2618 = vmax.f32 %v2268, %v2550
    %v2619 = vmax.f32 %v2293, %v2552
    %v2620 = vmax.f32 %v2301, %v2554
    %v2621 = vmax.f32 %v2300, %v2556
    %v2622 = vmax.f32 %v2302, %v2558
    %v2623 = vmax.f32 %v2463, %v2591
    %v2624 = vmax.f32 %v2464, %v2592
    %v2625 = vmax.f32 %v2465, %v2593
    %v2626 = vmax.f32 %v2466, %v2594
    %v2627 = vmax.f32 %v2467, %v2595
    %v2628 = vmax.f32 %v2468, %v2596
    %v2629 = vmax.f32 %v2469, %v2597
    %v2630 = vmax.f32 %v2470, %v2598
    %v2631 = vmax.f32 %v2471, %v2599
    %v2632 = vmax.f32 %v2472, %v2600
    %v2633 = vmax.f32 %v2473, %v2601
    %v2634 = vmax.f32 %v2474, %v2602
    %v2635 = vmax.f32 %v2475, %v2603
    %v2636 = vmax.f32 %v2476, %v2604
    %v2637 = vmax.f32 %v2477, %v2605
    %v2638 = vmax.f32 %v2478, %v2606
    %v2639 = vmax.f32 %v2479, %v2607
    %v2640 = vmax.f32 %v2480, %v2608
    %v2641 = vmax.f32 %v2481, %v2609
    %v2642 = vmax.f32 %v2482, %v2610
    %v2643 = vmax.f32 %v2483, %v2611
    %v2644 = vmax.f32 %v2484, %v2612
    %v2645 = vmax.f32 %v2485, %v2613
    %v2646 = vmax.f32 %v2486, %v2614
    %v2647 = vmax.f32 %v2487, %v2615
    %v2648 = vmax.f32 %v2488, %v2616
    %v2649 = vmax.f32 %v2489, %v2617
    %v2650 = vmax.f32 %v2490, %v2618
    %v2651 = vmax.f32 %v2491, %v2619
    %v2652 = vmax.f32 %v2492, %v2620
    %v2653 = vmax.f32 %v2493, %v2621
    %v2654 = vmax.f32 %v2494, %v2622
    %v2655 = vpack.c.bf16 %v2623, %v2623
    %v2656 = vpack.c.bf16 %v2624, %v2624
    %v2657 = vpack.c.bf16 %v2625, %v2625
    %v2658 = vpack.c.bf16 %v2626, %v2626
    %v2659 = vpack.c.bf16 %v2627, %v2627
    %v2660 = vpack.c.bf16 %v2628, %v2628
    %v2661 = vpack.c.bf16 %v2629, %v2629
    %v2662 = vpack.c.bf16 %v2630, %v2630
    %v2663 = vpack.c.bf16 %v2631, %v2631
    %v2664 = vpack.c.bf16 %v2632, %v2632
    %v2665 = vpack.c.bf16 %v2633, %v2633
    %v2666 = vpack.c.bf16 %v2634, %v2634
    %v2667 = vpack.c.bf16 %v2635, %v2635
    %v2668 = vpack.c.bf16 %v2636, %v2636
    %v2669 = vpack.c.bf16 %v2637, %v2637
    %v2670 = vpack.c.bf16 %v2638, %v2638
    %v2671 = vpack.c.bf16 %v2639, %v2639
    %v2672 = vpack.c.bf16 %v2640, %v2640
    %v2673 = vpack.c.bf16 %v2641, %v2641
    %v2674 = vpack.c.bf16 %v2642, %v2642
    %v2675 = vpack.c.bf16 %v2643, %v2643
    %v2676 = vpack.c.bf16 %v2644, %v2644
    %v2677 = vpack.c.bf16 %v2645, %v2645
    %v2678 = vpack.c.bf16 %v2646, %v2646
    %v2679 = vpack.c.bf16 %v2647, %v2647
    %v2680 = vpack.c.bf16 %v2648, %v2648
    %v2681 = vpack.c.bf16 %v2649, %v2649
    %v2682 = vpack.c.bf16 %v2650, %v2650
    %v2683 = vpack.c.bf16 %v2651, %v2651
    %v2684 = vpack.c.bf16 %v2652, %v2652
    %v2685 = vpack.c.bf16 %v2653, %v2653
    %v2686 = vpack.c.bf16 %v2654, %v2654
    %v2720 = vunpack.c.l.s4 1983009808
    %v2721 = vunpack.c.0.s8 %v2720
    %v2722 = vlaneseq
    %v2723 = vshrl.u32 %v2722, 7
    %v2724 = vsub.s32 %v2721, %v2723
    %v2725 = vrot.slane %v2655, %v2724
    %v2727 = vunpack.c.l.s4 1983009808
    %v2728 = vunpack.c.0.s8 %v2727
    %v2729 = vlaneseq
    %v2730 = vshrl.u32 %v2729, 7
    %v2731 = vsub.s32 %v2728, %v2730
    %v2732 = vrot.slane %v2656, %v2731
    %v2734 = vunpack.c.l.s4 1983009808
    %v2735 = vunpack.c.0.s8 %v2734
    %v2736 = vlaneseq
    %v2737 = vshrl.u32 %v2736, 7
    %v2738 = vsub.s32 %v2735, %v2737
    %v2739 = vrot.slane %v2657, %v2738
    %v2741 = vunpack.c.l.s4 1983009808
    %v2742 = vunpack.c.0.s8 %v2741
    %v2743 = vlaneseq
    %v2744 = vshrl.u32 %v2743, 7
    %v2745 = vsub.s32 %v2742, %v2744
    %v2746 = vrot.slane %v2658, %v2745
    %v2748 = vunpack.c.l.s4 1983009808
    %v2749 = vunpack.c.0.s8 %v2748
    %v2750 = vlaneseq
    %v2751 = vshrl.u32 %v2750, 7
    %v2752 = vsub.s32 %v2749, %v2751
    %v2753 = vrot.slane %v2659, %v2752
    %v2755 = vunpack.c.l.s4 1983009808
    %v2756 = vunpack.c.0.s8 %v2755
    %v2757 = vlaneseq
    %v2758 = vshrl.u32 %v2757, 7
    %v2759 = vsub.s32 %v2756, %v2758
    %v2760 = vrot.slane %v2660, %v2759
    %v2762 = vunpack.c.l.s4 1983009808
    %v2763 = vunpack.c.0.s8 %v2762
    %v2764 = vlaneseq
    %v2765 = vshrl.u32 %v2764, 7
    %v2766 = vsub.s32 %v2763, %v2765
    %v2767 = vrot.slane %v2661, %v2766
    %v2769 = vunpack.c.l.s4 1983009808
    %v2770 = vunpack.c.0.s8 %v2769
    %v2771 = vlaneseq
    %v2772 = vshrl.u32 %v2771, 7
    %v2773 = vsub.s32 %v2770, %v2772
    %v2774 = vrot.slane %v2662, %v2773
    %v2776 = vunpack.c.l.s4 1983009808
    %v2777 = vunpack.c.0.s8 %v2776
    %v2778 = vlaneseq
    %v2779 = vshrl.u32 %v2778, 7
    %v2780 = vsub.s32 %v2777, %v2779
    %v2781 = vrot.slane %v2663, %v2780
    %v2783 = vunpack.c.l.s4 1983009808
    %v2784 = vunpack.c.0.s8 %v2783
    %v2785 = vlaneseq
    %v2786 = vshrl.u32 %v2785, 7
    %v2787 = vsub.s32 %v2784, %v2786
    %v2788 = vrot.slane %v2664, %v2787
    %v2790 = vunpack.c.l.s4 1983009808
    %v2791 = vunpack.c.0.s8 %v2790
    %v2792 = vlaneseq
    %v2793 = vshrl.u32 %v2792, 7
    %v2794 = vsub.s32 %v2791, %v2793
    %v2795 = vrot.slane %v2665, %v2794
    %v2797 = vunpack.c.l.s4 1983009808
    %v2798 = vunpack.c.0.s8 %v2797
    %v2799 = vlaneseq
    %v2800 = vshrl.u32 %v2799, 7
    %v2801 = vsub.s32 %v2798, %v2800
    %v2802 = vrot.slane %v2666, %v2801
    %v2804 = vunpack.c.l.s4 1983009808
    %v2805 = vunpack.c.0.s8 %v2804
    %v2806 = vlaneseq
    %v2807 = vshrl.u32 %v2806, 7
    %v2808 = vsub.s32 %v2805, %v2807
    %v2809 = vrot.slane %v2667, %v2808
    %v2811 = vunpack.c.l.s4 1983009808
    %v2812 = vunpack.c.0.s8 %v2811
    %v2813 = vlaneseq
    %v2814 = vshrl.u32 %v2813, 7
    %v2815 = vsub.s32 %v2812, %v2814
    %v2816 = vrot.slane %v2668, %v2815
    %v2818 = vunpack.c.l.s4 1983009808
    %v2819 = vunpack.c.0.s8 %v2818
    %v2820 = vlaneseq
    %v2821 = vshrl.u32 %v2820, 7
    %v2822 = vsub.s32 %v2819, %v2821
    %v2823 = vrot.slane %v2669, %v2822
    %v2825 = vunpack.c.l.s4 1983009808
    %v2826 = vunpack.c.0.s8 %v2825
    %v2827 = vlaneseq
    %v2828 = vshrl.u32 %v2827, 7
    %v2829 = vsub.s32 %v2826, %v2828
    %v2830 = vrot.slane %v2670, %v2829
    %v2832 = vunpack.c.l.s4 1983009808
    %v2833 = vunpack.c.0.s8 %v2832
    %v2834 = vlaneseq
    %v2835 = vshrl.u32 %v2834, 7
    %v2836 = vsub.s32 %v2833, %v2835
    %v2837 = vrot.slane %v2671, %v2836
    %v2839 = vunpack.c.l.s4 1983009808
    %v2840 = vunpack.c.0.s8 %v2839
    %v2841 = vlaneseq
    %v2842 = vshrl.u32 %v2841, 7
    %v2843 = vsub.s32 %v2840, %v2842
    %v2844 = vrot.slane %v2672, %v2843
    %v2846 = vunpack.c.l.s4 1983009808
    %v2847 = vunpack.c.0.s8 %v2846
    %v2848 = vlaneseq
    %v2849 = vshrl.u32 %v2848, 7
    %v2850 = vsub.s32 %v2847, %v2849
    %v2851 = vrot.slane %v2673, %v2850
    %v2853 = vunpack.c.l.s4 1983009808
    %v2854 = vunpack.c.0.s8 %v2853
    %v2855 = vlaneseq
    %v2856 = vshrl.u32 %v2855, 7
    %v2857 = vsub.s32 %v2854, %v2856
    %v2858 = vrot.slane %v2674, %v2857
    %v2860 = vunpack.c.l.s4 1983009808
    %v2861 = vunpack.c.0.s8 %v2860
    %v2862 = vlaneseq
    %v2863 = vshrl.u32 %v2862, 7
    %v2864 = vsub.s32 %v2861, %v2863
    %v2865 = vrot.slane %v2675, %v2864
    %v2867 = vunpack.c.l.s4 1983009808
    %v2868 = vunpack.c.0.s8 %v2867
    %v2869 = vlaneseq
    %v2870 = vshrl.u32 %v2869, 7
    %v2871 = vsub.s32 %v2868, %v2870
    %v2872 = vrot.slane %v2676, %v2871
    %v2874 = vunpack.c.l.s4 1983009808
    %v2875 = vunpack.c.0.s8 %v2874
    %v2876 = vlaneseq
    %v2877 = vshrl.u32 %v2876, 7
    %v2878 = vsub.s32 %v2875, %v2877
    %v2879 = vrot.slane %v2677, %v2878
    %v2881 = vunpack.c.l.s4 1983009808
    %v2882 = vunpack.c.0.s8 %v2881
    %v2883 = vlaneseq
    %v2884 = vshrl.u32 %v2883, 7
    %v2885 = vsub.s32 %v2882, %v2884
    %v2886 = vrot.slane %v2678, %v2885
    %v2888 = vunpack.c.l.s4 1983009808
    %v2889 = vunpack.c.0.s8 %v2888
    %v2890 = vlaneseq
    %v2891 = vshrl.u32 %v2890, 7
    %v2892 = vsub.s32 %v2889, %v2891
    %v2893 = vrot.slane %v2679, %v2892
    %v2895 = vunpack.c.l.s4 1983009808
    %v2896 = vunpack.c.0.s8 %v2895
    %v2897 = vlaneseq
    %v2898 = vshrl.u32 %v2897, 7
    %v2899 = vsub.s32 %v2896, %v2898
    %v2900 = vrot.slane %v2680, %v2899
    %v2902 = vunpack.c.l.s4 1983009808
    %v2903 = vunpack.c.0.s8 %v2902
    %v2904 = vlaneseq
    %v2905 = vshrl.u32 %v2904, 7
    %v2906 = vsub.s32 %v2903, %v2905
    %v2907 = vrot.slane %v2681, %v2906
    %v2909 = vunpack.c.l.s4 1983009808
    %v2910 = vunpack.c.0.s8 %v2909
    %v2911 = vlaneseq
    %v2912 = vshrl.u32 %v2911, 7
    %v2913 = vsub.s32 %v2910, %v2912
    %v2914 = vrot.slane %v2682, %v2913
    %v2916 = vunpack.c.l.s4 1983009808
    %v2917 = vunpack.c.0.s8 %v2916
    %v2918 = vlaneseq
    %v2919 = vshrl.u32 %v2918, 7
    %v2920 = vsub.s32 %v2917, %v2919
    %v2921 = vrot.slane %v2683, %v2920
    %v2923 = vunpack.c.l.s4 1983009808
    %v2924 = vunpack.c.0.s8 %v2923
    %v2925 = vlaneseq
    %v2926 = vshrl.u32 %v2925, 7
    %v2927 = vsub.s32 %v2924, %v2926
    %v2928 = vrot.slane %v2684, %v2927
    %v2930 = vunpack.c.l.s4 1983009808
    %v2931 = vunpack.c.0.s8 %v2930
    %v2932 = vlaneseq
    %v2933 = vshrl.u32 %v2932, 7
    %v2934 = vsub.s32 %v2931, %v2933
    %v2935 = vrot.slane %v2685, %v2934
    %v2937 = vunpack.c.l.s4 1983009808
    %v2938 = vunpack.c.0.s8 %v2937
    %v2939 = vlaneseq
    %v2940 = vshrl.u32 %v2939, 7
    %v2941 = vsub.s32 %v2938, %v2940
    %v2942 = vrot.slane %v2686, %v2941
    %v2944 = vunpack.c.l.s4 1983009808
    %v2945 = vunpack.c.0.s8 %v2944
    %v2946 = vlaneseq
    %v2947 = vshrl.u32 %v2946, 7
    %v2948 = vsub.s32 %v2945, %v2947
    %v2949 = vrot.slane %v2725, %v2948
    %v2951 = vunpack.c.l.s4 1983009808
    %v2952 = vunpack.c.0.s8 %v2951
    %v2953 = vlaneseq
    %v2954 = vshrl.u32 %v2953, 7
    %v2955 = vsub.s32 %v2952, %v2954
    %v2956 = vrot.slane %v2732, %v2955
    %v2958 = vunpack.c.l.s4 1983009808
    %v2959 = vunpack.c.0.s8 %v2958
    %v2960 = vlaneseq
    %v2961 = vshrl.u32 %v2960, 7
    %v2962 = vsub.s32 %v2959, %v2961
    %v2963 = vrot.slane %v2739, %v2962
    %v2965 = vunpack.c.l.s4 1983009808
    %v2966 = vunpack.c.0.s8 %v2965
    %v2967 = vlaneseq
    %v2968 = vshrl.u32 %v2967, 7
    %v2969 = vsub.s32 %v2966, %v2968
    %v2970 = vrot.slane %v2746, %v2969
    %v2972 = vunpack.c.l.s4 1983009808
    %v2973 = vunpack.c.0.s8 %v2972
    %v2974 = vlaneseq
    %v2975 = vshrl.u32 %v2974, 7
    %v2976 = vsub.s32 %v2973, %v2975
    %v2977 = vrot.slane %v2753, %v2976
    %v2979 = vunpack.c.l.s4 1983009808
    %v2980 = vunpack.c.0.s8 %v2979
    %v2981 = vlaneseq
    %v2982 = vshrl.u32 %v2981, 7
    %v2983 = vsub.s32 %v2980, %v2982
    %v2984 = vrot.slane %v2760, %v2983
    %v2986 = vunpack.c.l.s4 1983009808
    %v2987 = vunpack.c.0.s8 %v2986
    %v2988 = vlaneseq
    %v2989 = vshrl.u32 %v2988, 7
    %v2990 = vsub.s32 %v2987, %v2989
    %v2991 = vrot.slane %v2767, %v2990
    %v2993 = vunpack.c.l.s4 1983009808
    %v2994 = vunpack.c.0.s8 %v2993
    %v2995 = vlaneseq
    %v2996 = vshrl.u32 %v2995, 7
    %v2997 = vsub.s32 %v2994, %v2996
    %v2998 = vrot.slane %v2774, %v2997
    %v3000 = vunpack.c.l.s4 1983009808
    %v3001 = vunpack.c.0.s8 %v3000
    %v3002 = vlaneseq
    %v3003 = vshrl.u32 %v3002, 7
    %v3004 = vsub.s32 %v3001, %v3003
    %v3005 = vrot.slane %v2781, %v3004
    %v3007 = vunpack.c.l.s4 1983009808
    %v3008 = vunpack.c.0.s8 %v3007
    %v3009 = vlaneseq
    %v3010 = vshrl.u32 %v3009, 7
    %v3011 = vsub.s32 %v3008, %v3010
    %v3012 = vrot.slane %v2788, %v3011
    %v3014 = vunpack.c.l.s4 1983009808
    %v3015 = vunpack.c.0.s8 %v3014
    %v3016 = vlaneseq
    %v3017 = vshrl.u32 %v3016, 7
    %v3018 = vsub.s32 %v3015, %v3017
    %v3019 = vrot.slane %v2795, %v3018
    %v3021 = vunpack.c.l.s4 1983009808
    %v3022 = vunpack.c.0.s8 %v3021
    %v3023 = vlaneseq
    %v3024 = vshrl.u32 %v3023, 7
    %v3025 = vsub.s32 %v3022, %v3024
    %v3026 = vrot.slane %v2802, %v3025
    %v3028 = vunpack.c.l.s4 1983009808
    %v3029 = vunpack.c.0.s8 %v3028
    %v3030 = vlaneseq
    %v3031 = vshrl.u32 %v3030, 7
    %v3032 = vsub.s32 %v3029, %v3031
    %v3033 = vrot.slane %v2809, %v3032
    %v3035 = vunpack.c.l.s4 1983009808
    %v3036 = vunpack.c.0.s8 %v3035
    %v3037 = vlaneseq
    %v3038 = vshrl.u32 %v3037, 7
    %v3039 = vsub.s32 %v3036, %v3038
    %v3040 = vrot.slane %v2816, %v3039
    %v3042 = vunpack.c.l.s4 1983009808
    %v3043 = vunpack.c.0.s8 %v3042
    %v3044 = vlaneseq
    %v3045 = vshrl.u32 %v3044, 7
    %v3046 = vsub.s32 %v3043, %v3045
    %v3047 = vrot.slane %v2823, %v3046
    %v3049 = vunpack.c.l.s4 1983009808
    %v3050 = vunpack.c.0.s8 %v3049
    %v3051 = vlaneseq
    %v3052 = vshrl.u32 %v3051, 7
    %v3053 = vsub.s32 %v3050, %v3052
    %v3054 = vrot.slane %v2830, %v3053
    %v3056 = vunpack.c.l.s4 1983009808
    %v3057 = vunpack.c.0.s8 %v3056
    %v3058 = vlaneseq
    %v3059 = vshrl.u32 %v3058, 7
    %v3060 = vsub.s32 %v3057, %v3059
    %v3061 = vrot.slane %v2837, %v3060
    %v3063 = vunpack.c.l.s4 1983009808
    %v3064 = vunpack.c.0.s8 %v3063
    %v3065 = vlaneseq
    %v3066 = vshrl.u32 %v3065, 7
    %v3067 = vsub.s32 %v3064, %v3066
    %v3068 = vrot.slane %v2844, %v3067
    %v3070 = vunpack.c.l.s4 1983009808
    %v3071 = vunpack.c.0.s8 %v3070
    %v3072 = vlaneseq
    %v3073 = vshrl.u32 %v3072, 7
    %v3074 = vsub.s32 %v3071, %v3073
    %v3075 = vrot.slane %v2851, %v3074
    %v3077 = vunpack.c.l.s4 1983009808
    %v3078 = vunpack.c.0.s8 %v3077
    %v3079 = vlaneseq
    %v3080 = vshrl.u32 %v3079, 7
    %v3081 = vsub.s32 %v3078, %v3080
    %v3082 = vrot.slane %v2858, %v3081
    %v3084 = vunpack.c.l.s4 1983009808
    %v3085 = vunpack.c.0.s8 %v3084
    %v3086 = vlaneseq
    %v3087 = vshrl.u32 %v3086, 7
    %v3088 = vsub.s32 %v3085, %v3087
    %v3089 = vrot.slane %v2865, %v3088
    %v3091 = vunpack.c.l.s4 1983009808
    %v3092 = vunpack.c.0.s8 %v3091
    %v3093 = vlaneseq
    %v3094 = vshrl.u32 %v3093, 7
    %v3095 = vsub.s32 %v3092, %v3094
    %v3096 = vrot.slane %v2872, %v3095
    %v3098 = vunpack.c.l.s4 1983009808
    %v3099 = vunpack.c.0.s8 %v3098
    %v3100 = vlaneseq
    %v3101 = vshrl.u32 %v3100, 7
    %v3102 = vsub.s32 %v3099, %v3101
    %v3103 = vrot.slane %v2879, %v3102
    %v3105 = vunpack.c.l.s4 1983009808
    %v3106 = vunpack.c.0.s8 %v3105
    %v3107 = vlaneseq
    %v3108 = vshrl.u32 %v3107, 7
    %v3109 = vsub.s32 %v3106, %v3108
    %v3110 = vrot.slane %v2886, %v3109
    %v3112 = vunpack.c.l.s4 1983009808
    %v3113 = vunpack.c.0.s8 %v3112
    %v3114 = vlaneseq
    %v3115 = vshrl.u32 %v3114, 7
    %v3116 = vsub.s32 %v3113, %v3115
    %v3117 = vrot.slane %v2893, %v3116
    %v3119 = vunpack.c.l.s4 1983009808
    %v3120 = vunpack.c.0.s8 %v3119
    %v3121 = vlaneseq
    %v3122 = vshrl.u32 %v3121, 7
    %v3123 = vsub.s32 %v3120, %v3122
    %v3124 = vrot.slane %v2900, %v3123
    %v3126 = vunpack.c.l.s4 1983009808
    %v3127 = vunpack.c.0.s8 %v3126
    %v3128 = vlaneseq
    %v3129 = vshrl.u32 %v3128, 7
    %v3130 = vsub.s32 %v3127, %v3129
    %v3131 = vrot.slane %v2907, %v3130
    %v3133 = vunpack.c.l.s4 1983009808
    %v3134 = vunpack.c.0.s8 %v3133
    %v3135 = vlaneseq
    %v3136 = vshrl.u32 %v3135, 7
    %v3137 = vsub.s32 %v3134, %v3136
    %v3138 = vrot.slane %v2914, %v3137
    %v3140 = vunpack.c.l.s4 1983009808
    %v3141 = vunpack.c.0.s8 %v3140
    %v3142 = vlaneseq
    %v3143 = vshrl.u32 %v3142, 7
    %v3144 = vsub.s32 %v3141, %v3143
    %v3145 = vrot.slane %v2921, %v3144
    %v3147 = vunpack.c.l.s4 1983009808
    %v3148 = vunpack.c.0.s8 %v3147
    %v3149 = vlaneseq
    %v3150 = vshrl.u32 %v3149, 7
    %v3151 = vsub.s32 %v3148, %v3150
    %v3152 = vrot.slane %v2928, %v3151
    %v3154 = vunpack.c.l.s4 1983009808
    %v3155 = vunpack.c.0.s8 %v3154
    %v3156 = vlaneseq
    %v3157 = vshrl.u32 %v3156, 7
    %v3158 = vsub.s32 %v3155, %v3157
    %v3159 = vrot.slane %v2935, %v3158
    %v3161 = vunpack.c.l.s4 1983009808
    %v3162 = vunpack.c.0.s8 %v3161
    %v3163 = vlaneseq
    %v3164 = vshrl.u32 %v3163, 7
    %v3165 = vsub.s32 %v3162, %v3164
    %v3166 = vrot.slane %v2942, %v3165
    %v3167 = vunpack.c.l.b16 %v2949
    %v3168 = vunpack.c.l.b16 %v2956
    %v3169 = vunpack.c.l.b16 %v2963
    %v3170 = vunpack.c.l.b16 %v2970
    %v3171 = vunpack.c.l.b16 %v2977
    %v3172 = vunpack.c.l.b16 %v2984
    %v3173 = vunpack.c.l.b16 %v2991
    %v3174 = vunpack.c.l.b16 %v2998
    %v3175 = vunpack.c.l.b16 %v3005
    %v3176 = vunpack.c.l.b16 %v3012
    %v3177 = vunpack.c.l.b16 %v3019
    %v3178 = vunpack.c.l.b16 %v3026
    %v3179 = vunpack.c.l.b16 %v3033
    %v3180 = vunpack.c.l.b16 %v3040
    %v3181 = vunpack.c.l.b16 %v3047
    %v3182 = vunpack.c.l.b16 %v3054
    %v3183 = vunpack.c.l.b16 %v3061
    %v3184 = vunpack.c.l.b16 %v3068
    %v3185 = vunpack.c.l.b16 %v3075
    %v3186 = vunpack.c.l.b16 %v3082
    %v3187 = vunpack.c.l.b16 %v3089
    %v3188 = vunpack.c.l.b16 %v3096
    %v3189 = vunpack.c.l.b16 %v3103
    %v3190 = vunpack.c.l.b16 %v3110
    %v3191 = vunpack.c.l.b16 %v3117
    %v3192 = vunpack.c.l.b16 %v3124
    %v3193 = vunpack.c.l.b16 %v3131
    %v3194 = vunpack.c.l.b16 %v3138
    %v3195 = vunpack.c.l.b16 %v3145
    %v3196 = vunpack.c.l.b16 %v3152
    %v3197 = vunpack.c.l.b16 %v3159
    %v3198 = vunpack.c.l.b16 %v3166
    %v3199 = vrot.slane %v3168, 7
    %vm3200 = vcmask 1041409
    %v3201 = vsel %vm3200, %v3199, %v3167
    %v3202 = vrot.slane %v3169, 6
    %vm3203 = vcmask 1042434
    %v3204 = vsel %vm3203, %v3202, %v3201
    %v3205 = vrot.slane %v3170, 5
    %vm3206 = vcmask 1043459
    %v3207 = vsel %vm3206, %v3205, %v3204
    %v3208 = vrot.slane %v3172, 7
    %v3209 = vsel %vm3200, %v3208, %v3171
    %v3210 = vrot.slane %v3173, 6
    %v3211 = vsel %vm3203, %v3210, %v3209
    %v3212 = vrot.slane %v3174, 5
    %v3213 = vsel %vm3206, %v3212, %v3211
    %v3214 = vrot.slane %v3176, 7
    %v3215 = vsel %vm3200, %v3214, %v3175
    %v3216 = vrot.slane %v3177, 6
    %v3217 = vsel %vm3203, %v3216, %v3215
    %v3218 = vrot.slane %v3178, 5
    %v3219 = vsel %vm3206, %v3218, %v3217
    %v3220 = vrot.slane %v3180, 7
    %v3221 = vsel %vm3200, %v3220, %v3179
    %v3222 = vrot.slane %v3181, 6
    %v3223 = vsel %vm3203, %v3222, %v3221
    %v3224 = vrot.slane %v3182, 5
    %v3225 = vsel %vm3206, %v3224, %v3223
    %v3226 = vrot.slane %v3184, 7
    %v3227 = vsel %vm3200, %v3226, %v3183
    %v3228 = vrot.slane %v3185, 6
    %v3229 = vsel %vm3203, %v3228, %v3227
    %v3230 = vrot.slane %v3186, 5
    %v3231 = vsel %vm3206, %v3230, %v3229
    %v3232 = vrot.slane %v3188, 7
    %v3233 = vsel %vm3200, %v3232, %v3187
    %v3234 = vrot.slane %v3189, 6
    %v3235 = vsel %vm3203, %v3234, %v3233
    %v3236 = vrot.slane %v3190, 5
    %v3237 = vsel %vm3206, %v3236, %v3235
    %v3238 = vrot.slane %v3192, 7
    %v3239 = vsel %vm3200, %v3238, %v3191
    %v3240 = vrot.slane %v3193, 6
    %v3241 = vsel %vm3203, %v3240, %v3239
    %v3242 = vrot.slane %v3194, 5
    %v3243 = vsel %vm3206, %v3242, %v3241
    %v3244 = vrot.slane %v3196, 7
    %v3245 = vsel %vm3200, %v3244, %v3195
    %v3246 = vrot.slane %v3197, 6
    %v3247 = vsel %vm3203, %v3246, %v3245
    %v3248 = vrot.slane %v3198, 5
    %v3249 = vsel %vm3206, %v3248, %v3247
    %v3250 = vpack.c.b16 %v3207, %v3207
    %v3251 = vpack.c.b16 %v3213, %v3213
    %v3252 = vpack.c.b16 %v3219, %v3219
    %v3253 = vpack.c.b16 %v3225, %v3225
    %v3254 = vpack.c.b16 %v3231, %v3231
    %v3255 = vpack.c.b16 %v3237, %v3237
    %v3256 = vpack.c.b16 %v3243, %v3243
    %v3257 = vpack.c.b16 %v3249, %v3249
    %v3259 = vunpack.c.l.s4 1983009808
    %v3260 = vunpack.c.0.s8 %v3259
    %v3261 = vlaneseq
    %v3262 = vshrl.u32 %v3261, 7
    %v3263 = vsub.s32 %v3260, %v3262
    %v3264 = vrot.slane %v3250, %v3263
    %v3266 = vunpack.c.l.s4 1983009808
    %v3267 = vunpack.c.0.s8 %v3266
    %v3268 = vlaneseq
    %v3269 = vshrl.u32 %v3268, 7
    %v3270 = vsub.s32 %v3267, %v3269
    %v3271 = vrot.slane %v3251, %v3270
    %v3273 = vunpack.c.l.s4 1983009808
    %v3274 = vunpack.c.0.s8 %v3273
    %v3275 = vlaneseq
    %v3276 = vshrl.u32 %v3275, 7
    %v3277 = vsub.s32 %v3274, %v3276
    %v3278 = vrot.slane %v3252, %v3277
    %v3280 = vunpack.c.l.s4 1983009808
    %v3281 = vunpack.c.0.s8 %v3280
    %v3282 = vlaneseq
    %v3283 = vshrl.u32 %v3282, 7
    %v3284 = vsub.s32 %v3281, %v3283
    %v3285 = vrot.slane %v3253, %v3284
    %v3287 = vunpack.c.l.s4 1983009808
    %v3288 = vunpack.c.0.s8 %v3287
    %v3289 = vlaneseq
    %v3290 = vshrl.u32 %v3289, 7
    %v3291 = vsub.s32 %v3288, %v3290
    %v3292 = vrot.slane %v3254, %v3291
    %v3294 = vunpack.c.l.s4 1983009808
    %v3295 = vunpack.c.0.s8 %v3294
    %v3296 = vlaneseq
    %v3297 = vshrl.u32 %v3296, 7
    %v3298 = vsub.s32 %v3295, %v3297
    %v3299 = vrot.slane %v3255, %v3298
    %v3301 = vunpack.c.l.s4 1983009808
    %v3302 = vunpack.c.0.s8 %v3301
    %v3303 = vlaneseq
    %v3304 = vshrl.u32 %v3303, 7
    %v3305 = vsub.s32 %v3302, %v3304
    %v3306 = vrot.slane %v3256, %v3305
    %v3308 = vunpack.c.l.s4 1983009808
    %v3309 = vunpack.c.0.s8 %v3308
    %v3310 = vlaneseq
    %v3311 = vshrl.u32 %v3310, 7
    %v3312 = vsub.s32 %v3309, %v3311
    %v3313 = vrot.slane %v3257, %v3312
    %3322 = vst [vmem:[%s3] sm:$0x3] %v3264
    %3323 = vst [vmem:[%s3 + $0x2] sm:$0x3] %v3271
    %3324 = vst [vmem:[%s3 + $0x4] sm:$0x3] %v3278
    %3325 = vst [vmem:[%s3 + $0x6] sm:$0x3] %v3285
    %3326 = vst [vmem:[%s3 + $0x8] sm:$0x3] %v3292
    %3327 = vst [vmem:[%s3 + $0xa] sm:$0x3] %v3299
    %3328 = vst [vmem:[%s3 + $0xc] sm:$0x3] %v3306
    %3329 = vst [vmem:[%s3 + $0xe] sm:$0x3] %v3313
    // Predicated region
    $region22: #{vgg_forward.3} parent=1 // pred_check
      _
    $region23: #{vgg_forward.3} parent=1 // pred_check_branch
      %3331 = sbr.rel (0) target = $region25
    $region24: #{vgg_forward.3} parent=1 // pred_region
      _
    $region25: #{vgg_forward.3} parent=1 // pred_fallthru
      _
    // Predicated region
    $region26: #{vgg_forward.3} parent=1 // pred_check
      _
    $region27: #{vgg_forward.3} parent=1 // pred_check_branch
      %3333 = sbr.rel (0) target = $region29
    $region28: #{vgg_forward.3} parent=1 // pred_region
      _
    $region29: #{vgg_forward.3} parent=1 // pred_fallthru
      _
    %3334 = vsyncpa [#allocation4], 1

// kernel: vgg_forward.5
$region0: #{vgg_forward.5}
  #allocation0 [shape = 'u32[]', space=smem, size = 0x4, offset = 0x4, fixed_abs, tag = 'smem constant byte address 0x4 - core index']
  #allocation1 [shape = 'u32[144,128]{1,0:T(1,128)}', space=vmem, size = 0x12000, scoped, tag = 'internal scratch']
  #allocation2 [shape = 'bf16[2,4,4,128]{3,2,1,0:T(4,128)(2,1)}', space=vmem, size = 0x2000, scoped, tag = 'scratch operand']
  %s0 = inlined_call_operand.vmem [shape: bf16[2,2,2,128], index: 0, kind: input, shape index: {}]
  %s1 = inlined_call_operand.vmem [shape: bf16[3,384,512], index: 1, kind: input, shape index: {}]
  %s2 = inlined_call_operand.vmem [shape: f32[1,512], index: 2, kind: input, shape index: {}]
  %s3 = inlined_call_operand.vmem [shape: bf16[512,128], index: 3, kind: input, shape index: {}]
  %s4 = inlined_call_operand.vmem [shape: f32[1,128], index: 4, kind: input, shape index: {}]
  %s5 = inlined_call_operand.hbm [shape: f32[2,128], index: 5, kind: output, shape index: {}]
  %s6 = sld [smem:[#allocation0]]
  $region34: #{vgg_forward.5} parent=0
    _
  %s8 = ssub.s32 1, %s6
  %s9 = scalar_select 0, %s8, %s6
  $region1: #{vgg_forward.5} parent=0
    #allocation3 [shape = 'u8[1024]{0}', space=vmem, size = 0x400, scoped, tag = 'output window, operand 0, single buffered']
    #allocation4 [shape = 's32[1]{0}', space=sflag, size = 0x4, scoped, tag = 'scoped memory for vgg_forward.5']
    %10 = vsyncpa [#allocation4], 0
    // Predicated region
    $region2: #{vgg_forward.5} parent=1 // pred_check
      _
    $region3: #{vgg_forward.5} parent=1 // pred_check_branch
      %12 = sbr.rel (0) target = $region5
    $region4: #{vgg_forward.5} parent=1 // pred_region
      _
    $region5: #{vgg_forward.5} parent=1 // pred_fallthru
      _
    // Predicated region
    $region6: #{vgg_forward.5} parent=1 // pred_check
      _
    $region7: #{vgg_forward.5} parent=1 // pred_check_branch
      %14 = sbr.rel (0) target = $region9
    $region8: #{vgg_forward.5} parent=1 // pred_region
      _
    $region9: #{vgg_forward.5} parent=1 // pred_fallthru
      _
    // Predicated region
    $region10: #{vgg_forward.5} parent=1 // pred_check
      _
    $region11: #{vgg_forward.5} parent=1 // pred_check_branch
      %16 = sbr.rel (0) target = $region13
    $region12: #{vgg_forward.5} parent=1 // pred_region
      _
    $region13: #{vgg_forward.5} parent=1 // pred_fallthru
      _
    // Predicated region
    $region14: #{vgg_forward.5} parent=1 // pred_check
      _
    $region15: #{vgg_forward.5} parent=1 // pred_check_branch
      %18 = sbr.rel (0) target = $region17
    $region16: #{vgg_forward.5} parent=1 // pred_region
      _
    $region17: #{vgg_forward.5} parent=1 // pred_fallthru
      _
    // Predicated region
    $region18: #{vgg_forward.5} parent=1 // pred_check
      _
    $region19: #{vgg_forward.5} parent=1 // pred_check_branch
      %20 = sbr.rel (0) target = $region21
    $region20: #{vgg_forward.5} parent=1 // pred_region
      _
    $region21: #{vgg_forward.5} parent=1 // pred_fallthru
      _
    %p22 = scmp.eq.s32.totalorder 0, 0
    // Predicated region
    $region22: #{vgg_forward.5} parent=1 // pred_check
      %p23 = pneg %p22
    $region23: #{vgg_forward.5} parent=1 // pred_check_branch
      %25 = sbr.rel (%p23) target = $region25
    $region24: #{vgg_forward.5} parent=1 // pred_region
      %26 = vst [vmem:[#allocation2] sm:$0x3] 0
      %27 = vst [vmem:[#allocation2 + $0x2] sm:$0x3] 0
      %28 = vst [vmem:[#allocation2 + $0x4] sm:$0x3] 0
      %29 = vst [vmem:[#allocation2 + $0x6] sm:$0x3] 0
      %30 = vst [vmem:[#allocation2 + $0x8] sm:$0x3] 0
      %31 = vst [vmem:[#allocation2 + $0xa] sm:$0x3] 0
      %32 = vst [vmem:[#allocation2 + $0xc] sm:$0x3] 0
      %33 = vst [vmem:[#allocation2 + $0xe] sm:$0x3] 0
    $region25: #{vgg_forward.5} parent=1 // pred_fallthru
      _
    %v34 = vld [vmem:[%s0] sm:$0x1]
    %v35 = vld [vmem:[%s0 + $0x1] sm:$0x1]
    %v36 = vld [vmem:[%s0 + $0x2] sm:$0x1]
    %v37 = vld [vmem:[%s0 + $0x3] sm:$0x1]
    %v43 = vunpack.c.l.s4 1935823168
    %v44 = vunpack.c.0.s8 %v43
    %v45 = vlaneseq
    %v46 = vshrl.u32 %v45, 7
    %v47 = vsub.s32 %v44, %v46
    %v48 = vrot.slane %v34, %v47
    %v50 = vunpack.c.l.s4 1935823168
    %v51 = vunpack.c.0.s8 %v50
    %v52 = vlaneseq
    %v53 = vshrl.u32 %v52, 7
    %v54 = vsub.s32 %v51, %v53
    %v55 = vrot.slane %v35, %v54
    %v57 = vunpack.c.l.s4 1935823168
    %v58 = vunpack.c.0.s8 %v57
    %v59 = vlaneseq
    %v60 = vshrl.u32 %v59, 7
    %v61 = vsub.s32 %v58, %v60
    %v62 = vrot.slane %v36, %v61
    %v64 = vunpack.c.l.s4 1935823168
    %v65 = vunpack.c.0.s8 %v64
    %v66 = vlaneseq
    %v67 = vshrl.u32 %v66, 7
    %v68 = vsub.s32 %v65, %v67
    %v69 = vrot.slane %v37, %v68
    %v71 = vshrl.u32 %v48, 16
    %v73 = vrot.slane %v71, 7
    %v74 = vshll.u32 %v48, 16
    %v76 = vor.u32 %v73, %v74
    %v78 = vshrl.u32 %v55, 16
    %v80 = vrot.slane %v78, 7
    %v81 = vshll.u32 %v55, 16
    %v83 = vor.u32 %v80, %v81
    %v85 = vshrl.u32 %v62, 16
    %v87 = vrot.slane %v85, 7
    %v88 = vshll.u32 %v62, 16
    %v90 = vor.u32 %v87, %v88
    %v92 = vshrl.u32 %v69, 16
    %v94 = vrot.slane %v92, 7
    %v95 = vshll.u32 %v69, 16
    %v97 = vor.u32 %v94, %v95
    %s102 = scalar_lea.vmem [#allocation2], 2
    %vm103 = vcmask 1041408
    %vm104 = vsmask.f32 1282
    %vm105 = vmand %vm103, %vm104
    %v106 = vld [vmem:[%s102] sm:$0x3]
    %v107 = vsel %vm105, %v76, %v106
    %108 = vst [vmem:[%s102] sm:$0x3] %v107
    %v109 = vld [vmem:[%s102 + $0x2] sm:$0x3]
    %v110 = vsel %vm105, %v83, %v109
    %111 = vst [vmem:[%s102 + $0x2] sm:$0x3] %v110
    %v112 = vld [vmem:[%s102 + $0x8] sm:$0x3]
    %v113 = vsel %vm105, %v90, %v112
    %114 = vst [vmem:[%s102 + $0x8] sm:$0x3] %v113
    %v115 = vld [vmem:[%s102 + $0xa] sm:$0x3]
    %v116 = vsel %vm105, %v97, %v115
    %117 = vst [vmem:[%s102 + $0xa] sm:$0x3] %v116
    %v118 = vld [vmem:[#allocation2] sm:$0x3]
    %v119 = vld [vmem:[#allocation2 + $0x2] sm:$0x3]
    %v120 = vld [vmem:[#allocation2 + $0x4] sm:$0x3]
    %v121 = vld [vmem:[#allocation2 + $0x6] sm:$0x3]
    %v122 = vld [vmem:[#allocation2 + $0x8] sm:$0x3]
    %v123 = vld [vmem:[#allocation2 + $0xa] sm:$0x3]
    %v124 = vld [vmem:[#allocation2 + $0xc] sm:$0x3]
    %v125 = vld [vmem:[#allocation2 + $0xe] sm:$0x3]
    %v131 = vunpack.c.l.s4 1983009808
    %v132 = vunpack.c.0.s8 %v131
    %v133 = vlaneseq
    %v134 = vshrl.u32 %v133, 7
    %v135 = vsub.s32 %v132, %v134
    %v136 = vrot.slane %v118, %v135
    %v138 = vunpack.c.l.s4 1983009808
    %v139 = vunpack.c.0.s8 %v138
    %v140 = vlaneseq
    %v141 = vshrl.u32 %v140, 7
    %v142 = vsub.s32 %v139, %v141
    %v143 = vrot.slane %v119, %v142
    %v145 = vunpack.c.l.s4 1983009808
    %v146 = vunpack.c.0.s8 %v145
    %v147 = vlaneseq
    %v148 = vshrl.u32 %v147, 7
    %v149 = vsub.s32 %v146, %v148
    %v150 = vrot.slane %v122, %v149
    %v152 = vunpack.c.l.s4 1983009808
    %v153 = vunpack.c.0.s8 %v152
    %v154 = vlaneseq
    %v155 = vshrl.u32 %v154, 7
    %v156 = vsub.s32 %v153, %v155
    %v157 = vrot.slane %v123, %v156
    %v159 = vshrl.u32 %v136, 16
    %v161 = vshll.u32 %v136, 16
    %v163 = vrot.slane %v161, 1
    %v164 = vor.u32 %v159, %v163
    %v166 = vshrl.u32 %v143, 16
    %v168 = vshll.u32 %v143, 16
    %v170 = vrot.slane %v168, 1
    %v171 = vor.u32 %v166, %v170
    %v173 = vshrl.u32 %v150, 16
    %v175 = vshll.u32 %v150, 16
    %v177 = vrot.slane %v175, 1
    %v178 = vor.u32 %v173, %v177
    %v180 = vshrl.u32 %v157, 16
    %v182 = vshll.u32 %v157, 16
    %v184 = vrot.slane %v182, 1
    %v185 = vor.u32 %v180, %v184
    %v186 = vrot.slane %v136, 1
    %v187 = vrot.slane %v143, 1
    %v188 = vrot.slane %v150, 1
    %v189 = vrot.slane %v157, 1
    %v190 = vcombine.low %v118, %v164
    %v192 = vunpack.c.l.s4 1966171168
    %v193 = vunpack.c.0.s8 %v192
    %v194 = vlaneseq
    %v195 = vshrl.u32 %v194, 7
    %v196 = vsub.s32 %v193, %v195
    %v197 = vrot.slane %v190, %v196
    %v199 = vunpack.c.l.s4 1966171168
    %v200 = vunpack.c.0.s8 %v199
    %v201 = vlaneseq
    %v202 = vshrl.u32 %v201, 7
    %v203 = vsub.s32 %v200, %v202
    %v204 = vrot.slane %v186, %v203
    %v205 = vcombine.low %v197, %v204
    %v207 = vunpack.c.l.s4 1966171168
    %v208 = vunpack.c.0.s8 %v207
    %v209 = vlaneseq
    %v210 = vshrl.u32 %v209, 7
    %v211 = vsub.s32 %v208, %v210
    %v212 = vrot.slane %v205, %v211
    %v213 = vcombine.low %v119, %v171
    %v215 = vunpack.c.l.s4 1966171168
    %v216 = vunpack.c.0.s8 %v215
    %v217 = vlaneseq
    %v218 = vshrl.u32 %v217, 7
    %v219 = vsub.s32 %v216, %v218
    %v220 = vrot.slane %v213, %v219
    %v222 = vunpack.c.l.s4 1966171168
    %v223 = vunpack.c.0.s8 %v222
    %v224 = vlaneseq
    %v225 = vshrl.u32 %v224, 7
    %v226 = vsub.s32 %v223, %v225
    %v227 = vrot.slane %v187, %v226
    %v228 = vcombine.low %v220, %v227
    %v230 = vunpack.c.l.s4 1966171168
    %v231 = vunpack.c.0.s8 %v230
    %v232 = vlaneseq
    %v233 = vshrl.u32 %v232, 7
    %v234 = vsub.s32 %v231, %v233
    %v235 = vrot.slane %v228, %v234
    %v236 = vcombine.low %v122, %v178
    %v238 = vunpack.c.l.s4 1966171168
    %v239 = vunpack.c.0.s8 %v238
    %v240 = vlaneseq
    %v241 = vshrl.u32 %v240, 7
    %v242 = vsub.s32 %v239, %v241
    %v243 = vrot.slane %v236, %v242
    %v245 = vunpack.c.l.s4 1966171168
    %v246 = vunpack.c.0.s8 %v245
    %v247 = vlaneseq
    %v248 = vshrl.u32 %v247, 7
    %v249 = vsub.s32 %v246, %v248
    %v250 = vrot.slane %v188, %v249
    %v251 = vcombine.low %v243, %v250
    %v253 = vunpack.c.l.s4 1966171168
    %v254 = vunpack.c.0.s8 %v253
    %v255 = vlaneseq
    %v256 = vshrl.u32 %v255, 7
    %v257 = vsub.s32 %v254, %v256
    %v258 = vrot.slane %v251, %v257
    %v259 = vcombine.low %v123, %v185
    %v261 = vunpack.c.l.s4 1966171168
    %v262 = vunpack.c.0.s8 %v261
    %v263 = vlaneseq
    %v264 = vshrl.u32 %v263, 7
    %v265 = vsub.s32 %v262, %v264
    %v266 = vrot.slane %v259, %v265
    %v268 = vunpack.c.l.s4 1966171168
    %v269 = vunpack.c.0.s8 %v268
    %v270 = vlaneseq
    %v271 = vshrl.u32 %v270, 7
    %v272 = vsub.s32 %v269, %v271
    %v273 = vrot.slane %v189, %v272
    %v274 = vcombine.low %v266, %v273
    %v276 = vunpack.c.l.s4 1966171168
    %v277 = vunpack.c.0.s8 %v276
    %v278 = vlaneseq
    %v279 = vshrl.u32 %v278, 7
    %v280 = vsub.s32 %v277, %v279
    %v281 = vrot.slane %v274, %v280
    %v282 = vld [vmem:[%s1] sm:$0xff]
    %v283 = vld [vmem:[%s1 + $0x8] sm:$0xff]
    %v284 = vld [vmem:[%s1 + $0x10] sm:$0xff]
    %v285 = vld [vmem:[%s1 + $0x18] sm:$0xff]
    %v286 = vld [vmem:[%s1 + $0x20] sm:$0xff]
    %v287 = vld [vmem:[%s1 + $0x28] sm:$0xff]
    %v288 = vld [vmem:[%s1 + $0x30] sm:$0xff]
    %v289 = vld [vmem:[%s1 + $0x38] sm:$0xff]
    %v290 = vld [vmem:[%s1 + $0x40] sm:$0xff]
    %v291 = vld [vmem:[%s1 + $0x48] sm:$0xff]
    %v292 = vld [vmem:[%s1 + $0x50] sm:$0xff]
    %v293 = vld [vmem:[%s1 + $0x58] sm:$0xff]
    %v294 = vld [vmem:[%s1 + $0x60] sm:$0xff]
    %v295 = vld [vmem:[%s1 + $0x68] sm:$0xff]
    %v296 = vld [vmem:[%s1 + $0x70] sm:$0xff]
    %v297 = vld [vmem:[%s1 + $0x78] sm:$0xff]
    %v298 = vld [vmem:[%s1 + $0x80] sm:$0xff]
    %v299 = vld [vmem:[%s1 + $0x88] sm:$0xff]
    %v300 = vld [vmem:[%s1 + $0x90] sm:$0xff]
    %v301 = vld [vmem:[%s1 + $0x98] sm:$0xff]
    %v302 = vld [vmem:[%s1 + $0xa0] sm:$0xff]
    %v303 = vld [vmem:[%s1 + $0xa8] sm:$0xff]
    %v304 = vld [vmem:[%s1 + $0xb0] sm:$0xff]
    %v305 = vld [vmem:[%s1 + $0xb8] sm:$0xff]
    %v306 = vld [vmem:[%s1 + $0xc0] sm:$0xff]
    %v307 = vld [vmem:[%s1 + $0xc8] sm:$0xff]
    %v308 = vld [vmem:[%s1 + $0xd0] sm:$0xff]
    %v309 = vld [vmem:[%s1 + $0xd8] sm:$0xff]
    %v310 = vld [vmem:[%s1 + $0xe0] sm:$0xff]
    %v311 = vld [vmem:[%s1 + $0xe8] sm:$0xff]
    %v312 = vld [vmem:[%s1 + $0xf0] sm:$0xff]
    %v313 = vld [vmem:[%s1 + $0xf8] sm:$0xff]
    %v314 = vld [vmem:[%s1 + $0x100] sm:$0xff]
    %v315 = vld [vmem:[%s1 + $0x108] sm:$0xff]
    %v316 = vld [vmem:[%s1 + $0x110] sm:$0xff]
    %v317 = vld [vmem:[%s1 + $0x118] sm:$0xff]
    %v318 = vld [vmem:[%s1 + $0x120] sm:$0xff]
    %v319 = vld [vmem:[%s1 + $0x128] sm:$0xff]
    %v320 = vld [vmem:[%s1 + $0x130] sm:$0xff]
    %v321 = vld [vmem:[%s1 + $0x138] sm:$0xff]
    %v322 = vld [vmem:[%s1 + $0x140] sm:$0xff]
    %v323 = vld [vmem:[%s1 + $0x148] sm:$0xff]
    %v324 = vld [vmem:[%s1 + $0x150] sm:$0xff]
    %v325 = vld [vmem:[%s1 + $0x158] sm:$0xff]
    %v326 = vld [vmem:[%s1 + $0x160] sm:$0xff]
    %v327 = vld [vmem:[%s1 + $0x168] sm:$0xff]
    %v328 = vld [vmem:[%s1 + $0x170] sm:$0xff]
    %v329 = vld [vmem:[%s1 + $0x178] sm:$0xff]
    %v330 = vld [vmem:[%s1 + $0x180] sm:$0xff]
    %v331 = vld [vmem:[%s1 + $0x188] sm:$0xff]
    %v332 = vld [vmem:[%s1 + $0x190] sm:$0xff]
    %v333 = vld [vmem:[%s1 + $0x198] sm:$0xff]
    %v334 = vld [vmem:[%s1 + $0x1a0] sm:$0xff]
    %v335 = vld [vmem:[%s1 + $0x1a8] sm:$0xff]
    %v336 = vld [vmem:[%s1 + $0x1b0] sm:$0xff]
    %v337 = vld [vmem:[%s1 + $0x1b8] sm:$0xff]
    %v338 = vld [vmem:[%s1 + $0x1c0] sm:$0xff]
    %v339 = vld [vmem:[%s1 + $0x1c8] sm:$0xff]
    %v340 = vld [vmem:[%s1 + $0x1d0] sm:$0xff]
    %v341 = vld [vmem:[%s1 + $0x1d8] sm:$0xff]
    %v342 = vld [vmem:[%s1 + $0x1e0] sm:$0xff]
    %v343 = vld [vmem:[%s1 + $0x1e8] sm:$0xff]
    %v344 = vld [vmem:[%s1 + $0x1f0] sm:$0xff]
    %v345 = vld [vmem:[%s1 + $0x1f8] sm:$0xff]
    %v346 = vld [vmem:[%s1 + $0x200] sm:$0xff]
    %v347 = vld [vmem:[%s1 + $0x208] sm:$0xff]
    %v348 = vld [vmem:[%s1 + $0x210] sm:$0xff]
    %v349 = vld [vmem:[%s1 + $0x218] sm:$0xff]
    %v350 = vld [vmem:[%s1 + $0x220] sm:$0xff]
    %v351 = vld [vmem:[%s1 + $0x228] sm:$0xff]
    %v352 = vld [vmem:[%s1 + $0x230] sm:$0xff]
    %v353 = vld [vmem:[%s1 + $0x238] sm:$0xff]
    %v354 = vld [vmem:[%s1 + $0x240] sm:$0xff]
    %v355 = vld [vmem:[%s1 + $0x248] sm:$0xff]
    %v356 = vld [vmem:[%s1 + $0x250] sm:$0xff]
    %v357 = vld [vmem:[%s1 + $0x258] sm:$0xff]
    %v358 = vld [vmem:[%s1 + $0x260] sm:$0xff]
    %v359 = vld [vmem:[%s1 + $0x268] sm:$0xff]
    %v360 = vld [vmem:[%s1 + $0x270] sm:$0xff]
    %v361 = vld [vmem:[%s1 + $0x278] sm:$0xff]
    %v362 = vld [vmem:[%s1 + $0x280] sm:$0xff]
    %v363 = vld [vmem:[%s1 + $0x288] sm:$0xff]
    %v364 = vld [vmem:[%s1 + $0x290] sm:$0xff]
    %v365 = vld [vmem:[%s1 + $0x298] sm:$0xff]
    %v366 = vld [vmem:[%s1 + $0x2a0] sm:$0xff]
    %v367 = vld [vmem:[%s1 + $0x2a8] sm:$0xff]
    %v368 = vld [vmem:[%s1 + $0x2b0] sm:$0xff]
    %v369 = vld [vmem:[%s1 + $0x2b8] sm:$0xff]
    %v370 = vld [vmem:[%s1 + $0x2c0] sm:$0xff]
    %v371 = vld [vmem:[%s1 + $0x2c8] sm:$0xff]
    %v372 = vld [vmem:[%s1 + $0x2d0] sm:$0xff]
    %v373 = vld [vmem:[%s1 + $0x2d8] sm:$0xff]
    %v374 = vld [vmem:[%s1 + $0x2e0] sm:$0xff]
    %v375 = vld [vmem:[%s1 + $0x2e8] sm:$0xff]
    %v376 = vld [vmem:[%s1 + $0x2f0] sm:$0xff]
    %v377 = vld [vmem:[%s1 + $0x2f8] sm:$0xff]
    %v381 = vunpack.c.l.s4 1983009808
    %v382 = vunpack.c.0.s8 %v381
    %v383 = vlaneseq
    %v384 = vshrl.u32 %v383, 7
    %v385 = vsub.s32 %v382, %v384
    %v386 = vrot.slane %v120, %v385
    %v388 = vunpack.c.l.s4 1983009808
    %v389 = vunpack.c.0.s8 %v388
    %v390 = vlaneseq
    %v391 = vshrl.u32 %v390, 7
    %v392 = vsub.s32 %v389, %v391
    %v393 = vrot.slane %v124, %v392
    %v395 = vshrl.u32 %v386, 16
    %v397 = vshll.u32 %v386, 16
    %v399 = vrot.slane %v397, 1
    %v400 = vor.u32 %v395, %v399
    %v402 = vshrl.u32 %v393, 16
    %v404 = vshll.u32 %v393, 16
    %v406 = vrot.slane %v404, 1
    %v407 = vor.u32 %v402, %v406
    %v408 = vrot.slane %v386, 1
    %v409 = vrot.slane %v393, 1
    %v410 = vcombine.low %v120, %v400
    %v412 = vunpack.c.l.s4 1966171168
    %v413 = vunpack.c.0.s8 %v412
    %v414 = vlaneseq
    %v415 = vshrl.u32 %v414, 7
    %v416 = vsub.s32 %v413, %v415
    %v417 = vrot.slane %v410, %v416
    %v419 = vunpack.c.l.s4 1966171168
    %v420 = vunpack.c.0.s8 %v419
    %v421 = vlaneseq
    %v422 = vshrl.u32 %v421, 7
    %v423 = vsub.s32 %v420, %v422
    %v424 = vrot.slane %v408, %v423
    %v425 = vcombine.low %v417, %v424
    %v427 = vunpack.c.l.s4 1966171168
    %v428 = vunpack.c.0.s8 %v427
    %v429 = vlaneseq
    %v430 = vshrl.u32 %v429, 7
    %v431 = vsub.s32 %v428, %v430
    %v432 = vrot.slane %v425, %v431
    %v433 = vcombine.low %v124, %v407
    %v435 = vunpack.c.l.s4 1966171168
    %v436 = vunpack.c.0.s8 %v435
    %v437 = vlaneseq
    %v438 = vshrl.u32 %v437, 7
    %v439 = vsub.s32 %v436, %v438
    %v440 = vrot.slane %v433, %v439
    %v442 = vunpack.c.l.s4 1966171168
    %v443 = vunpack.c.0.s8 %v442
    %v444 = vlaneseq
    %v445 = vshrl.u32 %v444, 7
    %v446 = vsub.s32 %v443, %v445
    %v447 = vrot.slane %v409, %v446
    %v448 = vcombine.low %v440, %v447
    %v450 = vunpack.c.l.s4 1966171168
    %v451 = vunpack.c.0.s8 %v450
    %v452 = vlaneseq
    %v453 = vshrl.u32 %v452, 7
    %v454 = vsub.s32 %v451, %v453
    %v455 = vrot.slane %v448, %v454
    %s456 = scalar_lea.vmem %s1, 768
    %v457 = vld [vmem:[%s456] sm:$0xff]
    %v458 = vld [vmem:[%s456 + $0x8] sm:$0xff]
    %v459 = vld [vmem:[%s456 + $0x10] sm:$0xff]
    %v460 = vld [vmem:[%s456 + $0x18] sm:$0xff]
    %v461 = vld [vmem:[%s456 + $0x20] sm:$0xff]
    %v462 = vld [vmem:[%s456 + $0x28] sm:$0xff]
    %v463 = vld [vmem:[%s456 + $0x30] sm:$0xff]
    %v464 = vld [vmem:[%s456 + $0x38] sm:$0xff]
    %v465 = vld [vmem:[%s456 + $0x40] sm:$0xff]
    %v466 = vld [vmem:[%s456 + $0x48] sm:$0xff]
    %v467 = vld [vmem:[%s456 + $0x50] sm:$0xff]
    %v468 = vld [vmem:[%s456 + $0x58] sm:$0xff]
    %v469 = vld [vmem:[%s456 + $0x60] sm:$0xff]
    %v470 = vld [vmem:[%s456 + $0x68] sm:$0xff]
    %v471 = vld [vmem:[%s456 + $0x70] sm:$0xff]
    %v472 = vld [vmem:[%s456 + $0x78] sm:$0xff]
    %v473 = vld [vmem:[%s456 + $0x80] sm:$0xff]
    %v474 = vld [vmem:[%s456 + $0x88] sm:$0xff]
    %v475 = vld [vmem:[%s456 + $0x90] sm:$0xff]
    %v476 = vld [vmem:[%s456 + $0x98] sm:$0xff]
    %v477 = vld [vmem:[%s456 + $0xa0] sm:$0xff]
    %v478 = vld [vmem:[%s456 + $0xa8] sm:$0xff]
    %v479 = vld [vmem:[%s456 + $0xb0] sm:$0xff]
    %v480 = vld [vmem:[%s456 + $0xb8] sm:$0xff]
    %v481 = vld [vmem:[%s456 + $0xc0] sm:$0xff]
    %v482 = vld [vmem:[%s456 + $0xc8] sm:$0xff]
    %v483 = vld [vmem:[%s456 + $0xd0] sm:$0xff]
    %v484 = vld [vmem:[%s456 + $0xd8] sm:$0xff]
    %v485 = vld [vmem:[%s456 + $0xe0] sm:$0xff]
    %v486 = vld [vmem:[%s456 + $0xe8] sm:$0xff]
    %v487 = vld [vmem:[%s456 + $0xf0] sm:$0xff]
    %v488 = vld [vmem:[%s456 + $0xf8] sm:$0xff]
    %v489 = vld [vmem:[%s456 + $0x100] sm:$0xff]
    %v490 = vld [vmem:[%s456 + $0x108] sm:$0xff]
    %v491 = vld [vmem:[%s456 + $0x110] sm:$0xff]
    %v492 = vld [vmem:[%s456 + $0x118] sm:$0xff]
    %v493 = vld [vmem:[%s456 + $0x120] sm:$0xff]
    %v494 = vld [vmem:[%s456 + $0x128] sm:$0xff]
    %v495 = vld [vmem:[%s456 + $0x130] sm:$0xff]
    %v496 = vld [vmem:[%s456 + $0x138] sm:$0xff]
    %v497 = vld [vmem:[%s456 + $0x140] sm:$0xff]
    %v498 = vld [vmem:[%s456 + $0x148] sm:$0xff]
    %v499 = vld [vmem:[%s456 + $0x150] sm:$0xff]
    %v500 = vld [vmem:[%s456 + $0x158] sm:$0xff]
    %v501 = vld [vmem:[%s456 + $0x160] sm:$0xff]
    %v502 = vld [vmem:[%s456 + $0x168] sm:$0xff]
    %v503 = vld [vmem:[%s456 + $0x170] sm:$0xff]
    %v504 = vld [vmem:[%s456 + $0x178] sm:$0xff]
    %v505 = vld [vmem:[%s456 + $0x180] sm:$0xff]
    %v506 = vld [vmem:[%s456 + $0x188] sm:$0xff]
    %v507 = vld [vmem:[%s456 + $0x190] sm:$0xff]
    %v508 = vld [vmem:[%s456 + $0x198] sm:$0xff]
    %v509 = vld [vmem:[%s456 + $0x1a0] sm:$0xff]
    %v510 = vld [vmem:[%s456 + $0x1a8] sm:$0xff]
    %v511 = vld [vmem:[%s456 + $0x1b0] sm:$0xff]
    %v512 = vld [vmem:[%s456 + $0x1b8] sm:$0xff]
    %v513 = vld [vmem:[%s456 + $0x1c0] sm:$0xff]
    %v514 = vld [vmem:[%s456 + $0x1c8] sm:$0xff]
    %v515 = vld [vmem:[%s456 + $0x1d0] sm:$0xff]
    %v516 = vld [vmem:[%s456 + $0x1d8] sm:$0xff]
    %v517 = vld [vmem:[%s456 + $0x1e0] sm:$0xff]
    %v518 = vld [vmem:[%s456 + $0x1e8] sm:$0xff]
    %v519 = vld [vmem:[%s456 + $0x1f0] sm:$0xff]
    %v520 = vld [vmem:[%s456 + $0x1f8] sm:$0xff]
    %v521 = vld [vmem:[%s456 + $0x200] sm:$0xff]
    %v522 = vld [vmem:[%s456 + $0x208] sm:$0xff]
    %v523 = vld [vmem:[%s456 + $0x210] sm:$0xff]
    %v524 = vld [vmem:[%s456 + $0x218] sm:$0xff]
    %v525 = vld [vmem:[%s456 + $0x220] sm:$0xff]
    %v526 = vld [vmem:[%s456 + $0x228] sm:$0xff]
    %v527 = vld [vmem:[%s456 + $0x230] sm:$0xff]
    %v528 = vld [vmem:[%s456 + $0x238] sm:$0xff]
    %v529 = vld [vmem:[%s456 + $0x240] sm:$0xff]
    %v530 = vld [vmem:[%s456 + $0x248] sm:$0xff]
    %v531 = vld [vmem:[%s456 + $0x250] sm:$0xff]
    %v532 = vld [vmem:[%s456 + $0x258] sm:$0xff]
    %v533 = vld [vmem:[%s456 + $0x260] sm:$0xff]
    %v534 = vld [vmem:[%s456 + $0x268] sm:$0xff]
    %v535 = vld [vmem:[%s456 + $0x270] sm:$0xff]
    %v536 = vld [vmem:[%s456 + $0x278] sm:$0xff]
    %v537 = vld [vmem:[%s456 + $0x280] sm:$0xff]
    %v538 = vld [vmem:[%s456 + $0x288] sm:$0xff]
    %v539 = vld [vmem:[%s456 + $0x290] sm:$0xff]
    %v540 = vld [vmem:[%s456 + $0x298] sm:$0xff]
    %v541 = vld [vmem:[%s456 + $0x2a0] sm:$0xff]
    %v542 = vld [vmem:[%s456 + $0x2a8] sm:$0xff]
    %v543 = vld [vmem:[%s456 + $0x2b0] sm:$0xff]
    %v544 = vld [vmem:[%s456 + $0x2b8] sm:$0xff]
    %v545 = vld [vmem:[%s456 + $0x2c0] sm:$0xff]
    %v546 = vld [vmem:[%s456 + $0x2c8] sm:$0xff]
    %v547 = vld [vmem:[%s456 + $0x2d0] sm:$0xff]
    %v548 = vld [vmem:[%s456 + $0x2d8] sm:$0xff]
    %v549 = vld [vmem:[%s456 + $0x2e0] sm:$0xff]
    %v550 = vld [vmem:[%s456 + $0x2e8] sm:$0xff]
    %v551 = vld [vmem:[%s456 + $0x2f0] sm:$0xff]
    %v552 = vld [vmem:[%s456 + $0x2f8] sm:$0xff]
    %v553 = vcombine.low %v235, %v432
    %v554 = vcombine.low %v281, %v455
    %v556 = vunpack.c.l.s4 1966171168
    %v557 = vunpack.c.0.s8 %v556
    %v558 = vlaneseq
    %v559 = vshrl.u32 %v558, 7
    %v560 = vsub.s32 %v557, %v559
    %v561 = vrot.slane %v553, %v560
    %v563 = vunpack.c.l.s4 1966171168
    %v564 = vunpack.c.0.s8 %v563
    %v565 = vlaneseq
    %v566 = vshrl.u32 %v565, 7
    %v567 = vsub.s32 %v564, %v566
    %v568 = vrot.slane %v554, %v567
    %v569 = vcombine.low %v561, %v568
    %v570 = vcombine.high %v561, %v568
    %v572 = vunpack.c.l.s4 1966171168
    %v573 = vunpack.c.0.s8 %v572
    %v574 = vlaneseq
    %v575 = vshrl.u32 %v574, 7
    %v576 = vsub.s32 %v573, %v575
    %v577 = vrot.slane %v569, %v576
    %v579 = vunpack.c.l.s4 1966171168
    %v580 = vunpack.c.0.s8 %v579
    %v581 = vlaneseq
    %v582 = vshrl.u32 %v581, 7
    %v583 = vsub.s32 %v580, %v582
    %v584 = vrot.slane %v570, %v583
    %v585 = vcombine.high %v577, %v577
    %v685 = vunpack.c.l.b16 %v457
    %v686 = vunpack.c.h.b16 %v457
    %v687 = vunpack.c.l.b16 %v458
    %v688 = vunpack.c.h.b16 %v458
    %v689 = vunpack.c.l.b16 %v459
    %v690 = vunpack.c.h.b16 %v459
    %v691 = vunpack.c.l.b16 %v460
    %v692 = vunpack.c.h.b16 %v460
    %v693 = vunpack.c.l.b16 %v461
    %v694 = vunpack.c.h.b16 %v461
    %v695 = vunpack.c.l.b16 %v462
    %v696 = vunpack.c.h.b16 %v462
    %v697 = vunpack.c.l.b16 %v463
    %v698 = vunpack.c.h.b16 %v463
    %v699 = vunpack.c.l.b16 %v464
    %v700 = vunpack.c.h.b16 %v464
    %v701 = vunpack.c.l.b16 %v465
    %v702 = vunpack.c.h.b16 %v465
    %v703 = vunpack.c.l.b16 %v466
    %v704 = vunpack.c.h.b16 %v466
    %v705 = vunpack.c.l.b16 %v467
    %v706 = vunpack.c.h.b16 %v467
    %v707 = vunpack.c.l.b16 %v468
    %v708 = vunpack.c.h.b16 %v468
    %v709 = vunpack.c.l.b16 %v469
    %v710 = vunpack.c.h.b16 %v469
    %v711 = vunpack.c.l.b16 %v470
    %v712 = vunpack.c.h.b16 %v470
    %v713 = vunpack.c.l.b16 %v471
    %v714 = vunpack.c.h.b16 %v471
    %v715 = vunpack.c.l.b16 %v472
    %v716 = vunpack.c.h.b16 %v472
    %v717 = vunpack.c.l.b16 %v473
    %v718 = vunpack.c.h.b16 %v473
    %v719 = vunpack.c.l.b16 %v474
    %v720 = vunpack.c.h.b16 %v474
    %v721 = vunpack.c.l.b16 %v475
    %v722 = vunpack.c.h.b16 %v475
    %v723 = vunpack.c.l.b16 %v476
    %v724 = vunpack.c.h.b16 %v476
    %v725 = vunpack.c.l.b16 %v477
    %v726 = vunpack.c.h.b16 %v477
    %v727 = vunpack.c.l.b16 %v478
    %v728 = vunpack.c.h.b16 %v478
    %v729 = vunpack.c.l.b16 %v479
    %v730 = vunpack.c.h.b16 %v479
    %v731 = vunpack.c.l.b16 %v480
    %v732 = vunpack.c.h.b16 %v480
    %v733 = vunpack.c.l.b16 %v481
    %v734 = vunpack.c.h.b16 %v481
    %v735 = vunpack.c.l.b16 %v482
    %v736 = vunpack.c.h.b16 %v482
    %v737 = vunpack.c.l.b16 %v483
    %v738 = vunpack.c.h.b16 %v483
    %v739 = vunpack.c.l.b16 %v484
    %v740 = vunpack.c.h.b16 %v484
    %v741 = vunpack.c.l.b16 %v485
    %v742 = vunpack.c.h.b16 %v485
    %v743 = vunpack.c.l.b16 %v486
    %v744 = vunpack.c.h.b16 %v486
    %v745 = vunpack.c.l.b16 %v487
    %v746 = vunpack.c.h.b16 %v487
    %v747 = vunpack.c.l.b16 %v488
    %v748 = vunpack.c.h.b16 %v488
    %v749 = vunpack.c.l.b16 %v489
    %v750 = vunpack.c.h.b16 %v489
    %v751 = vunpack.c.l.b16 %v490
    %v752 = vunpack.c.h.b16 %v490
    %v753 = vunpack.c.l.b16 %v491
    %v754 = vunpack.c.h.b16 %v491
    %v755 = vunpack.c.l.b16 %v492
    %v756 = vunpack.c.h.b16 %v492
    %v757 = vunpack.c.l.b16 %v493
    %v758 = vunpack.c.h.b16 %v493
    %v759 = vunpack.c.l.b16 %v494
    %v760 = vunpack.c.h.b16 %v494
    %v761 = vunpack.c.l.b16 %v495
    %v762 = vunpack.c.h.b16 %v495
    %v763 = vunpack.c.l.b16 %v496
    %v764 = vunpack.c.h.b16 %v496
    %v765 = vunpack.c.l.b16 %v497
    %v766 = vunpack.c.h.b16 %v497
    %v767 = vunpack.c.l.b16 %v498
    %v768 = vunpack.c.h.b16 %v498
    %v769 = vunpack.c.l.b16 %v499
    %v770 = vunpack.c.h.b16 %v499
    %v771 = vunpack.c.l.b16 %v500
    %v772 = vunpack.c.h.b16 %v500
    %v773 = vunpack.c.l.b16 %v501
    %v774 = vunpack.c.h.b16 %v501
    %v775 = vunpack.c.l.b16 %v502
    %v776 = vunpack.c.h.b16 %v502
    %v777 = vunpack.c.l.b16 %v503
    %v778 = vunpack.c.h.b16 %v503
    %v779 = vunpack.c.l.b16 %v504
    %v780 = vunpack.c.h.b16 %v504
    %v781 = vunpack.c.l.b16 %v505
    %v782 = vunpack.c.h.b16 %v505
    %v783 = vunpack.c.l.b16 %v506
    %v784 = vunpack.c.h.b16 %v506
    %v785 = vunpack.c.l.b16 %v507
    %v786 = vunpack.c.h.b16 %v507
    %v787 = vunpack.c.l.b16 %v508
    %v788 = vunpack.c.h.b16 %v508
    %v789 = vunpack.c.l.b16 %v509
    %v790 = vunpack.c.h.b16 %v509
    %v791 = vunpack.c.l.b16 %v510
    %v792 = vunpack.c.h.b16 %v510
    %v793 = vunpack.c.l.b16 %v511
    %v794 = vunpack.c.h.b16 %v511
    %v795 = vunpack.c.l.b16 %v512
    %v796 = vunpack.c.h.b16 %v512
    %v797 = vunpack.c.l.b16 %v513
    %v798 = vunpack.c.h.b16 %v513
    %v799 = vunpack.c.l.b16 %v514
    %v800 = vunpack.c.h.b16 %v514
    %v801 = vunpack.c.l.b16 %v515
    %v802 = vunpack.c.h.b16 %v515
    %v803 = vunpack.c.l.b16 %v516
    %v804 = vunpack.c.h.b16 %v516
    %v805 = vunpack.c.l.b16 %v517
    %v806 = vunpack.c.h.b16 %v517
    %v807 = vunpack.c.l.b16 %v518
    %v808 = vunpack.c.h.b16 %v518
    %v809 = vunpack.c.l.b16 %v519
    %v810 = vunpack.c.h.b16 %v519
    %v811 = vunpack.c.l.b16 %v520
    %v812 = vunpack.c.h.b16 %v520
    %v813 = vunpack.c.l.b16 %v521
    %v814 = vunpack.c.h.b16 %v521
    %v815 = vunpack.c.l.b16 %v522
    %v816 = vunpack.c.h.b16 %v522
    %v817 = vunpack.c.l.b16 %v523
    %v818 = vunpack.c.h.b16 %v523
    %v819 = vunpack.c.l.b16 %v524
    %v820 = vunpack.c.h.b16 %v524
    %v821 = vunpack.c.l.b16 %v525
    %v822 = vunpack.c.h.b16 %v525
    %v823 = vunpack.c.l.b16 %v526
    %v824 = vunpack.c.h.b16 %v526
    %v825 = vunpack.c.l.b16 %v527
    %v826 = vunpack.c.h.b16 %v527
    %v827 = vunpack.c.l.b16 %v528
    %v828 = vunpack.c.h.b16 %v528
    %v829 = vunpack.c.l.b16 %v529
    %v830 = vunpack.c.h.b16 %v529
    %v831 = vunpack.c.l.b16 %v530
    %v832 = vunpack.c.h.b16 %v530
    %v833 = vunpack.c.l.b16 %v531
    %v834 = vunpack.c.h.b16 %v531
    %v835 = vunpack.c.l.b16 %v532
    %v836 = vunpack.c.h.b16 %v532
    %v837 = vunpack.c.l.b16 %v533
    %v838 = vunpack.c.h.b16 %v533
    %v839 = vunpack.c.l.b16 %v534
    %v840 = vunpack.c.h.b16 %v534
    %v841 = vunpack.c.l.b16 %v535
    %v842 = vunpack.c.h.b16 %v535
    %v843 = vunpack.c.l.b16 %v536
    %v844 = vunpack.c.h.b16 %v536
    %v845 = vunpack.c.l.b16 %v537
    %v846 = vunpack.c.h.b16 %v537
    %v847 = vunpack.c.l.b16 %v538
    %v848 = vunpack.c.h.b16 %v538
    %v849 = vunpack.c.l.b16 %v539
    %v850 = vunpack.c.h.b16 %v539
    %v851 = vunpack.c.l.b16 %v540
    %v852 = vunpack.c.h.b16 %v540
    %v853 = vunpack.c.l.b16 %v541
    %v854 = vunpack.c.h.b16 %v541
    %v855 = vunpack.c.l.b16 %v542
    %v856 = vunpack.c.h.b16 %v542
    %v857 = vunpack.c.l.b16 %v543
    %v858 = vunpack.c.h.b16 %v543
    %v859 = vunpack.c.l.b16 %v544
    %v860 = vunpack.c.h.b16 %v544
    %v861 = vunpack.c.l.b16 %v545
    %v862 = vunpack.c.h.b16 %v545
    %v863 = vunpack.c.l.b16 %v546
    %v864 = vunpack.c.h.b16 %v546
    %v865 = vunpack.c.l.b16 %v547
    %v866 = vunpack.c.h.b16 %v547
    %v867 = vunpack.c.l.b16 %v548
    %v868 = vunpack.c.h.b16 %v548
    %v869 = vunpack.c.l.b16 %v549
    %v870 = vunpack.c.h.b16 %v549
    %v871 = vunpack.c.l.b16 %v550
    %v872 = vunpack.c.h.b16 %v550
    %v873 = vunpack.c.l.b16 %v551
    %v874 = vunpack.c.h.b16 %v551
    %v875 = vunpack.c.l.b16 %v552
    %v876 = vunpack.c.h.b16 %v552
    %v877 = vpack.c.b16 %v689, %v685
    %v878 = vpack.c.b16 %v690, %v686
    %v879 = vpack.c.b16 %v691, %v687
    %v880 = vpack.c.b16 %v692, %v688
    %v881 = vpack.c.b16 %v697, %v693
    %v882 = vpack.c.b16 %v698, %v694
    %v883 = vpack.c.b16 %v699, %v695
    %v884 = vpack.c.b16 %v700, %v696
    %v885 = vpack.c.b16 %v705, %v701
    %v886 = vpack.c.b16 %v706, %v702
    %v887 = vpack.c.b16 %v707, %v703
    %v888 = vpack.c.b16 %v708, %v704
    %v889 = vpack.c.b16 %v713, %v709
    %v890 = vpack.c.b16 %v714, %v710
    %v891 = vpack.c.b16 %v715, %v711
    %v892 = vpack.c.b16 %v716, %v712
    %v893 = vpack.c.b16 %v721, %v717
    %v894 = vpack.c.b16 %v722, %v718
    %v895 = vpack.c.b16 %v723, %v719
    %v896 = vpack.c.b16 %v724, %v720
    %v897 = vpack.c.b16 %v729, %v725
    %v898 = vpack.c.b16 %v730, %v726
    %v899 = vpack.c.b16 %v731, %v727
    %v900 = vpack.c.b16 %v732, %v728
    %v901 = vpack.c.b16 %v737, %v733
    %v902 = vpack.c.b16 %v738, %v734
    %v903 = vpack.c.b16 %v739, %v735
    %v904 = vpack.c.b16 %v740, %v736
    %v905 = vpack.c.b16 %v745, %v741
    %v906 = vpack.c.b16 %v746, %v742
    %v907 = vpack.c.b16 %v747, %v743
    %v908 = vpack.c.b16 %v748, %v744
    %v909 = vpack.c.b16 %v753, %v749
    %v910 = vpack.c.b16 %v754, %v750
    %v911 = vpack.c.b16 %v755, %v751
    %v912 = vpack.c.b16 %v756, %v752
    %v913 = vpack.c.b16 %v761, %v757
    %v914 = vpack.c.b16 %v762, %v758
    %v915 = vpack.c.b16 %v763, %v759
    %v916 = vpack.c.b16 %v764, %v760
    %v917 = vpack.c.b16 %v769, %v765
    %v918 = vpack.c.b16 %v770, %v766
    %v919 = vpack.c.b16 %v771, %v767
    %v920 = vpack.c.b16 %v772, %v768
    %v921 = vpack.c.b16 %v777, %v773
    %v922 = vpack.c.b16 %v778, %v774
    %v923 = vpack.c.b16 %v779, %v775
    %v924 = vpack.c.b16 %v780, %v776
    %v925 = vpack.c.b16 %v785, %v781
    %v926 = vpack.c.b16 %v786, %v782
    %v927 = vpack.c.b16 %v787, %v783
    %v928 = vpack.c.b16 %v788, %v784
    %v929 = vpack.c.b16 %v793, %v789
    %v930 = vpack.c.b16 %v794, %v790
    %v931 = vpack.c.b16 %v795, %v791
    %v932 = vpack.c.b16 %v796, %v792
    %v933 = vpack.c.b16 %v801, %v797
    %v934 = vpack.c.b16 %v802, %v798
    %v935 = vpack.c.b16 %v803, %v799
    %v936 = vpack.c.b16 %v804, %v800
    %v937 = vpack.c.b16 %v809, %v805
    %v938 = vpack.c.b16 %v810, %v806
    %v939 = vpack.c.b16 %v811, %v807
    %v940 = vpack.c.b16 %v812, %v808
    %v941 = vpack.c.b16 %v817, %v813
    %v942 = vpack.c.b16 %v818, %v814
    %v943 = vpack.c.b16 %v819, %v815
    %v944 = vpack.c.b16 %v820, %v816
    %v945 = vpack.c.b16 %v825, %v821
    %v946 = vpack.c.b16 %v826, %v822
    %v947 = vpack.c.b16 %v827, %v823
    %v948 = vpack.c.b16 %v828, %v824
    %v949 = vpack.c.b16 %v833, %v829
    %v950 = vpack.c.b16 %v834, %v830
    %v951 = vpack.c.b16 %v835, %v831
    %v952 = vpack.c.b16 %v836, %v832
    %v953 = vpack.c.b16 %v841, %v837
    %v954 = vpack.c.b16 %v842, %v838
    %v955 = vpack.c.b16 %v843, %v839
    %v956 = vpack.c.b16 %v844, %v840
    %v957 = vpack.c.b16 %v849, %v845
    %v958 = vpack.c.b16 %v850, %v846
    %v959 = vpack.c.b16 %v851, %v847
    %v960 = vpack.c.b16 %v852, %v848
    %v961 = vpack.c.b16 %v857, %v853
    %v962 = vpack.c.b16 %v858, %v854
    %v963 = vpack.c.b16 %v859, %v855
    %v964 = vpack.c.b16 %v860, %v856
    %v965 = vpack.c.b16 %v865, %v861
    %v966 = vpack.c.b16 %v866, %v862
    %v967 = vpack.c.b16 %v867, %v863
    %v968 = vpack.c.b16 %v868, %v864
    %v969 = vpack.c.b16 %v873, %v869
    %v970 = vpack.c.b16 %v874, %v870
    %v971 = vpack.c.b16 %v875, %v871
    %v972 = vpack.c.b16 %v876, %v872
    %1069 = vmatprep.subr.bf16.mxu0 %v878
    %1070 = vmatpush1.bf16.msra.mxu0 %v877
    %1071 = vmatprep.subr.bf16.mxu0 %v882
    %1072 = vmatpush1.bf16.msra.mxu0 %v881
    %1073 = vmatprep.subr.bf16.mxu0 %v886
    %1074 = vmatpush1.bf16.msra.mxu0 %v885
    %1075 = vmatprep.subr.bf16.mxu0 %v890
    %1076 = vmatpush1.bf16.msra.mxu0 %v889
    %1077 = vmatprep.subr.bf16.mxu0 %v894
    %1078 = vmatpush1.bf16.msra.mxu0 %v893
    %1079 = vmatprep.subr.bf16.mxu0 %v898
    %1080 = vmatpush1.bf16.msra.mxu0 %v897
    %1081 = vmatprep.subr.bf16.mxu0 %v902
    %1082 = vmatpush1.bf16.msra.mxu0 %v901
    %1083 = vmatprep.subr.bf16.mxu0 %v906
    %1084 = vmatpush1.bf16.msra.mxu0 %v905
    %1085 = vmatprep.subr.bf16.mxu0 %v910
    %1086 = vmatpush1.bf16.msra.mxu0 %v909
    %1087 = vmatprep.subr.bf16.mxu0 %v914
    %1088 = vmatpush1.bf16.msra.mxu0 %v913
    %1089 = vmatprep.subr.bf16.mxu0 %v918
    %1090 = vmatpush1.bf16.msra.mxu0 %v917
    %1091 = vmatprep.subr.bf16.mxu0 %v922
    %1092 = vmatpush1.bf16.msra.mxu0 %v921
    %1093 = vmatprep.subr.bf16.mxu0 %v926
    %1094 = vmatpush1.bf16.msra.mxu0 %v925
    %1095 = vmatprep.subr.bf16.mxu0 %v930
    %1096 = vmatpush1.bf16.msra.mxu0 %v929
    %1097 = vmatprep.subr.bf16.mxu0 %v934
    %1098 = vmatpush1.bf16.msra.mxu0 %v933
    %1099 = vmatprep.subr.bf16.mxu0 %v938
    %1100 = vmatpush1.bf16.msra.mxu0 %v937
    %1101 = vmatprep.mubr.bf16.mxu0 %v584
    %1102 = vmatmul.mubr.bf16.gmra.mrb[0].mxu0 %v577
    %v1103 = vpop.f32.mrb[0].mxu0
    %v1104 = vadd.f32 0.0, %v1103
    %v1105 = vpop.f32.mrb[0].mxu0
    %v1106 = vadd.f32 0.0, %v1105
    %v1107 = vpop.f32.mrb[0].mxu0
    %v1108 = vpop.f32.mrb[0].mxu0
    %1109 = vdwg.mxu0
    %1110 = vmatprep.subr.bf16.mxu0 %v942
    %1111 = vmatpush1.bf16.msra.mxu0 %v941
    %1112 = vmatprep.subr.bf16.mxu0 %v946
    %1113 = vmatpush1.bf16.msra.mxu0 %v945
    %1114 = vmatprep.subr.bf16.mxu0 %v950
    %1115 = vmatpush1.bf16.msra.mxu0 %v949
    %1116 = vmatprep.subr.bf16.mxu0 %v954
    %1117 = vmatpush1.bf16.msra.mxu0 %v953
    %1118 = vmatprep.subr.bf16.mxu0 %v958
    %1119 = vmatpush1.bf16.msra.mxu0 %v957
    %1120 = vmatprep.subr.bf16.mxu0 %v962
    %1121 = vmatpush1.bf16.msra.mxu0 %v961
    %1122 = vmatprep.subr.bf16.mxu0 %v966
    %1123 = vmatpush1.bf16.msra.mxu0 %v965
    %1124 = vmatprep.subr.bf16.mxu0 %v970
    %1125 = vmatpush1.bf16.msra.mxu0 %v969
    %1126 = vmatprep.subr.bf16.mxu0 0
    %1127 = vmatpush1.bf16.msra.mxu0 0
    %1128 = vmatprep.subr.bf16.mxu0 0
    %1129 = vmatpush1.bf16.msra.mxu0 0
    %1130 = vmatprep.subr.bf16.mxu0 0
    %1131 = vmatpush1.bf16.msra.mxu0 0
    %1132 = vmatprep.subr.bf16.mxu0 0
    %1133 = vmatpush1.bf16.msra.mxu0 0
    %1134 = vmatprep.subr.bf16.mxu0 0
    %1135 = vmatpush1.bf16.msra.mxu0 0
    %1136 = vmatprep.subr.bf16.mxu0 0
    %1137 = vmatpush1.bf16.msra.mxu0 0
    %1138 = vmatprep.subr.bf16.mxu0 0
    %1139 = vmatpush1.bf16.msra.mxu0 0
    %1140 = vmatprep.subr.bf16.mxu0 0
    %1141 = vmatpush1.bf16.msra.mxu0 0
    %1142 = vmatprep.mubr.bf16.mxu0 0
    %1143 = vmatmul.mubr.bf16.gmra.mrb[0].mxu0 %v585
    %v1144 = vpop.f32.mrb[0].mxu0
    %v1145 = vadd.f32 %v1104, %v1144
    %v1146 = vpop.f32.mrb[0].mxu0
    %v1147 = vadd.f32 %v1106, %v1146
    %v1148 = vpop.f32.mrb[0].mxu0
    %v1149 = vpop.f32.mrb[0].mxu0
    %1150 = vdwg.mxu0
    %1151 = vmatprep.subr.bf16.mxu0 %v880
    %1152 = vmatpush1.bf16.msra.mxu0 %v879
    %1153 = vmatprep.subr.bf16.mxu0 %v884
    %1154 = vmatpush1.bf16.msra.mxu0 %v883
    %1155 = vmatprep.subr.bf16.mxu0 %v888
    %1156 = vmatpush1.bf16.msra.mxu0 %v887
    %1157 = vmatprep.subr.bf16.mxu0 %v892
    %1158 = vmatpush1.bf16.msra.mxu0 %v891
    %1159 = vmatprep.subr.bf16.mxu0 %v896
    %1160 = vmatpush1.bf16.msra.mxu0 %v895
    %1161 = vmatprep.subr.bf16.mxu0 %v900
    %1162 = vmatpush1.bf16.msra.mxu0 %v899
    %1163 = vmatprep.subr.bf16.mxu0 %v904
    %1164 = vmatpush1.bf16.msra.mxu0 %v903
    %1165 = vmatprep.subr.bf16.mxu0 %v908
    %1166 = vmatpush1.bf16.msra.mxu0 %v907
    %1167 = vmatprep.subr.bf16.mxu0 %v912
    %1168 = vmatpush1.bf16.msra.mxu0 %v911
    %1169 = vmatprep.subr.bf16.mxu0 %v916
    %1170 = vmatpush1.bf16.msra.mxu0 %v915
    %1171 = vmatprep.subr.bf16.mxu0 %v920
    %1172 = vmatpush1.bf16.msra.mxu0 %v919
    %1173 = vmatprep.subr.bf16.mxu0 %v924
    %1174 = vmatpush1.bf16.msra.mxu0 %v923
    %1175 = vmatprep.subr.bf16.mxu0 %v928
    %1176 = vmatpush1.bf16.msra.mxu0 %v927
    %1177 = vmatprep.subr.bf16.mxu0 %v932
    %1178 = vmatpush1.bf16.msra.mxu0 %v931
    %1179 = vmatprep.subr.bf16.mxu0 %v936
    %1180 = vmatpush1.bf16.msra.mxu0 %v935
    %1181 = vmatprep.subr.bf16.mxu0 %v940
    %1182 = vmatpush1.bf16.msra.mxu0 %v939
    %1183 = vmatprep.mubr.bf16.mxu0 %v584
    %1184 = vmatmul.mubr.bf16.gmra.mrb[0].mxu0 %v577
    %v1185 = vpop.f32.mrb[0].mxu0
    %v1186 = vadd.f32 0.0, %v1185
    %v1187 = vpop.f32.mrb[0].mxu0
    %v1188 = vadd.f32 0.0, %v1187
    %v1189 = vpop.f32.mrb[0].mxu0
    %v1190 = vpop.f32.mrb[0].mxu0
    %1191 = vdwg.mxu0
    %1192 = vmatprep.subr.bf16.mxu0 %v944
    %1193 = vmatpush1.bf16.msra.mxu0 %v943
    %1194 = vmatprep.subr.bf16.mxu0 %v948
    %1195 = vmatpush1.bf16.msra.mxu0 %v947
    %1196 = vmatprep.subr.bf16.mxu0 %v952
    %1197 = vmatpush1.bf16.msra.mxu0 %v951
    %1198 = vmatprep.subr.bf16.mxu0 %v956
    %1199 = vmatpush1.bf16.msra.mxu0 %v955
    %1200 = vmatprep.subr.bf16.mxu0 %v960
    %1201 = vmatpush1.bf16.msra.mxu0 %v959
    %1202 = vmatprep.subr.bf16.mxu0 %v964
    %1203 = vmatpush1.bf16.msra.mxu0 %v963
    %1204 = vmatprep.subr.bf16.mxu0 %v968
    %1205 = vmatpush1.bf16.msra.mxu0 %v967
    %1206 = vmatprep.subr.bf16.mxu0 %v972
    %1207 = vmatpush1.bf16.msra.mxu0 %v971
    %1208 = vmatprep.subr.bf16.mxu0 0
    %1209 = vmatpush1.bf16.msra.mxu0 0
    %1210 = vmatprep.subr.bf16.mxu0 0
    %1211 = vmatpush1.bf16.msra.mxu0 0
    %1212 = vmatprep.subr.bf16.mxu0 0
    %1213 = vmatpush1.bf16.msra.mxu0 0
    %1214 = vmatprep.subr.bf16.mxu0 0
    %1215 = vmatpush1.bf16.msra.mxu0 0
    %1216 = vmatprep.subr.bf16.mxu0 0
    %1217 = vmatpush1.bf16.msra.mxu0 0
    %1218 = vmatprep.subr.bf16.mxu0 0
    %1219 = vmatpush1.bf16.msra.mxu0 0
    %1220 = vmatprep.subr.bf16.mxu0 0
    %1221 = vmatpush1.bf16.msra.mxu0 0
    %1222 = vmatprep.subr.bf16.mxu0 0
    %1223 = vmatpush1.bf16.msra.mxu0 0
    %1224 = vmatprep.mubr.bf16.mxu0 0
    %1225 = vmatmul.mubr.bf16.gmra.mrb[0].mxu0 %v585
    %v1226 = vpop.f32.mrb[0].mxu0
    %v1227 = vadd.f32 %v1186, %v1226
    %v1228 = vpop.f32.mrb[0].mxu0
    %v1229 = vadd.f32 %v1188, %v1228
    %v1230 = vpop.f32.mrb[0].mxu0
    %v1231 = vpop.f32.mrb[0].mxu0
    %1232 = vdwg.mxu0
    %v1233 = vcombine.low %v212, %v235
    %v1234 = vcombine.low %v258, %v281
    %v1236 = vunpack.c.l.s4 1966171168
    %v1237 = vunpack.c.0.s8 %v1236
    %v1238 = vlaneseq
    %v1239 = vshrl.u32 %v1238, 7
    %v1240 = vsub.s32 %v1237, %v1239
    %v1241 = vrot.slane %v1233, %v1240
    %v1243 = vunpack.c.l.s4 1966171168
    %v1244 = vunpack.c.0.s8 %v1243
    %v1245 = vlaneseq
    %v1246 = vshrl.u32 %v1245, 7
    %v1247 = vsub.s32 %v1244, %v1246
    %v1248 = vrot.slane %v1234, %v1247
    %v1249 = vcombine.low %v1241, %v1248
    %v1250 = vcombine.high %v1241, %v1248
    %v1252 = vunpack.c.l.s4 1966171168
    %v1253 = vunpack.c.0.s8 %v1252
    %v1254 = vlaneseq
    %v1255 = vshrl.u32 %v1254, 7
    %v1256 = vsub.s32 %v1253, %v1255
    %v1257 = vrot.slane %v1249, %v1256
    %v1259 = vunpack.c.l.s4 1966171168
    %v1260 = vunpack.c.0.s8 %v1259
    %v1261 = vlaneseq
    %v1262 = vshrl.u32 %v1261, 7
    %v1263 = vsub.s32 %v1260, %v1262
    %v1264 = vrot.slane %v1250, %v1263
    %v1265 = vcombine.high %v1257, %v1257
    %v1365 = vunpack.c.l.b16 %v282
    %v1366 = vunpack.c.h.b16 %v282
    %v1367 = vunpack.c.l.b16 %v283
    %v1368 = vunpack.c.h.b16 %v283
    %v1369 = vunpack.c.l.b16 %v284
    %v1370 = vunpack.c.h.b16 %v284
    %v1371 = vunpack.c.l.b16 %v285
    %v1372 = vunpack.c.h.b16 %v285
    %v1373 = vunpack.c.l.b16 %v286
    %v1374 = vunpack.c.h.b16 %v286
    %v1375 = vunpack.c.l.b16 %v287
    %v1376 = vunpack.c.h.b16 %v287
    %v1377 = vunpack.c.l.b16 %v288
    %v1378 = vunpack.c.h.b16 %v288
    %v1379 = vunpack.c.l.b16 %v289
    %v1380 = vunpack.c.h.b16 %v289
    %v1381 = vunpack.c.l.b16 %v290
    %v1382 = vunpack.c.h.b16 %v290
    %v1383 = vunpack.c.l.b16 %v291
    %v1384 = vunpack.c.h.b16 %v291
    %v1385 = vunpack.c.l.b16 %v292
    %v1386 = vunpack.c.h.b16 %v292
    %v1387 = vunpack.c.l.b16 %v293
    %v1388 = vunpack.c.h.b16 %v293
    %v1389 = vunpack.c.l.b16 %v294
    %v1390 = vunpack.c.h.b16 %v294
    %v1391 = vunpack.c.l.b16 %v295
    %v1392 = vunpack.c.h.b16 %v295
    %v1393 = vunpack.c.l.b16 %v296
    %v1394 = vunpack.c.h.b16 %v296
    %v1395 = vunpack.c.l.b16 %v297
    %v1396 = vunpack.c.h.b16 %v297
    %v1397 = vunpack.c.l.b16 %v298
    %v1398 = vunpack.c.h.b16 %v298
    %v1399 = vunpack.c.l.b16 %v299
    %v1400 = vunpack.c.h.b16 %v299
    %v1401 = vunpack.c.l.b16 %v300
    %v1402 = vunpack.c.h.b16 %v300
    %v1403 = vunpack.c.l.b16 %v301
    %v1404 = vunpack.c.h.b16 %v301
    %v1405 = vunpack.c.l.b16 %v302
    %v1406 = vunpack.c.h.b16 %v302
    %v1407 = vunpack.c.l.b16 %v303
    %v1408 = vunpack.c.h.b16 %v303
    %v1409 = vunpack.c.l.b16 %v304
    %v1410 = vunpack.c.h.b16 %v304
    %v1411 = vunpack.c.l.b16 %v305
    %v1412 = vunpack.c.h.b16 %v305
    %v1413 = vunpack.c.l.b16 %v306
    %v1414 = vunpack.c.h.b16 %v306
    %v1415 = vunpack.c.l.b16 %v307
    %v1416 = vunpack.c.h.b16 %v307
    %v1417 = vunpack.c.l.b16 %v308
    %v1418 = vunpack.c.h.b16 %v308
    %v1419 = vunpack.c.l.b16 %v309
    %v1420 = vunpack.c.h.b16 %v309
    %v1421 = vunpack.c.l.b16 %v310
    %v1422 = vunpack.c.h.b16 %v310
    %v1423 = vunpack.c.l.b16 %v311
    %v1424 = vunpack.c.h.b16 %v311
    %v1425 = vunpack.c.l.b16 %v312
    %v1426 = vunpack.c.h.b16 %v312
    %v1427 = vunpack.c.l.b16 %v313
    %v1428 = vunpack.c.h.b16 %v313
    %v1429 = vunpack.c.l.b16 %v314
    %v1430 = vunpack.c.h.b16 %v314
    %v1431 = vunpack.c.l.b16 %v315
    %v1432 = vunpack.c.h.b16 %v315
    %v1433 = vunpack.c.l.b16 %v316
    %v1434 = vunpack.c.h.b16 %v316
    %v1435 = vunpack.c.l.b16 %v317
    %v1436 = vunpack.c.h.b16 %v317
    %v1437 = vunpack.c.l.b16 %v318
    %v1438 = vunpack.c.h.b16 %v318
    %v1439 = vunpack.c.l.b16 %v319
    %v1440 = vunpack.c.h.b16 %v319
    %v1441 = vunpack.c.l.b16 %v320
    %v1442 = vunpack.c.h.b16 %v320
    %v1443 = vunpack.c.l.b16 %v321
    %v1444 = vunpack.c.h.b16 %v321
    %v1445 = vunpack.c.l.b16 %v322
    %v1446 = vunpack.c.h.b16 %v322
    %v1447 = vunpack.c.l.b16 %v323
    %v1448 = vunpack.c.h.b16 %v323
    %v1449 = vunpack.c.l.b16 %v324
    %v1450 = vunpack.c.h.b16 %v324
    %v1451 = vunpack.c.l.b16 %v325
    %v1452 = vunpack.c.h.b16 %v325
    %v1453 = vunpack.c.l.b16 %v326
    %v1454 = vunpack.c.h.b16 %v326
    %v1455 = vunpack.c.l.b16 %v327
    %v1456 = vunpack.c.h.b16 %v327
    %v1457 = vunpack.c.l.b16 %v328
    %v1458 = vunpack.c.h.b16 %v328
    %v1459 = vunpack.c.l.b16 %v329
    %v1460 = vunpack.c.h.b16 %v329
    %v1461 = vunpack.c.l.b16 %v330
    %v1462 = vunpack.c.h.b16 %v330
    %v1463 = vunpack.c.l.b16 %v331
    %v1464 = vunpack.c.h.b16 %v331
    %v1465 = vunpack.c.l.b16 %v332
    %v1466 = vunpack.c.h.b16 %v332
    %v1467 = vunpack.c.l.b16 %v333
    %v1468 = vunpack.c.h.b16 %v333
    %v1469 = vunpack.c.l.b16 %v334
    %v1470 = vunpack.c.h.b16 %v334
    %v1471 = vunpack.c.l.b16 %v335
    %v1472 = vunpack.c.h.b16 %v335
    %v1473 = vunpack.c.l.b16 %v336
    %v1474 = vunpack.c.h.b16 %v336
    %v1475 = vunpack.c.l.b16 %v337
    %v1476 = vunpack.c.h.b16 %v337
    %v1477 = vunpack.c.l.b16 %v338
    %v1478 = vunpack.c.h.b16 %v338
    %v1479 = vunpack.c.l.b16 %v339
    %v1480 = vunpack.c.h.b16 %v339
    %v1481 = vunpack.c.l.b16 %v340
    %v1482 = vunpack.c.h.b16 %v340
    %v1483 = vunpack.c.l.b16 %v341
    %v1484 = vunpack.c.h.b16 %v341
    %v1485 = vunpack.c.l.b16 %v342
    %v1486 = vunpack.c.h.b16 %v342
    %v1487 = vunpack.c.l.b16 %v343
    %v1488 = vunpack.c.h.b16 %v343
    %v1489 = vunpack.c.l.b16 %v344
    %v1490 = vunpack.c.h.b16 %v344
    %v1491 = vunpack.c.l.b16 %v345
    %v1492 = vunpack.c.h.b16 %v345
    %v1493 = vunpack.c.l.b16 %v346
    %v1494 = vunpack.c.h.b16 %v346
    %v1495 = vunpack.c.l.b16 %v347
    %v1496 = vunpack.c.h.b16 %v347
    %v1497 = vunpack.c.l.b16 %v348
    %v1498 = vunpack.c.h.b16 %v348
    %v1499 = vunpack.c.l.b16 %v349
    %v1500 = vunpack.c.h.b16 %v349
    %v1501 = vunpack.c.l.b16 %v350
    %v1502 = vunpack.c.h.b16 %v350
    %v1503 = vunpack.c.l.b16 %v351
    %v1504 = vunpack.c.h.b16 %v351
    %v1505 = vunpack.c.l.b16 %v352
    %v1506 = vunpack.c.h.b16 %v352
    %v1507 = vunpack.c.l.b16 %v353
    %v1508 = vunpack.c.h.b16 %v353
    %v1509 = vunpack.c.l.b16 %v354
    %v1510 = vunpack.c.h.b16 %v354
    %v1511 = vunpack.c.l.b16 %v355
    %v1512 = vunpack.c.h.b16 %v355
    %v1513 = vunpack.c.l.b16 %v356
    %v1514 = vunpack.c.h.b16 %v356
    %v1515 = vunpack.c.l.b16 %v357
    %v1516 = vunpack.c.h.b16 %v357
    %v1517 = vunpack.c.l.b16 %v358
    %v1518 = vunpack.c.h.b16 %v358
    %v1519 = vunpack.c.l.b16 %v359
    %v1520 = vunpack.c.h.b16 %v359
    %v1521 = vunpack.c.l.b16 %v360
    %v1522 = vunpack.c.h.b16 %v360
    %v1523 = vunpack.c.l.b16 %v361
    %v1524 = vunpack.c.h.b16 %v361
    %v1525 = vunpack.c.l.b16 %v362
    %v1526 = vunpack.c.h.b16 %v362
    %v1527 = vunpack.c.l.b16 %v363
    %v1528 = vunpack.c.h.b16 %v363
    %v1529 = vunpack.c.l.b16 %v364
    %v1530 = vunpack.c.h.b16 %v364
    %v1531 = vunpack.c.l.b16 %v365
    %v1532 = vunpack.c.h.b16 %v365
    %v1533 = vunpack.c.l.b16 %v366
    %v1534 = vunpack.c.h.b16 %v366
    %v1535 = vunpack.c.l.b16 %v367
    %v1536 = vunpack.c.h.b16 %v367
    %v1537 = vunpack.c.l.b16 %v368
    %v1538 = vunpack.c.h.b16 %v368
    %v1539 = vunpack.c.l.b16 %v369
    %v1540 = vunpack.c.h.b16 %v369
    %v1541 = vunpack.c.l.b16 %v370
    %v1542 = vunpack.c.h.b16 %v370
    %v1543 = vunpack.c.l.b16 %v371
    %v1544 = vunpack.c.h.b16 %v371
    %v1545 = vunpack.c.l.b16 %v372
    %v1546 = vunpack.c.h.b16 %v372
    %v1547 = vunpack.c.l.b16 %v373
    %v1548 = vunpack.c.h.b16 %v373
    %v1549 = vunpack.c.l.b16 %v374
    %v1550 = vunpack.c.h.b16 %v374
    %v1551 = vunpack.c.l.b16 %v375
    %v1552 = vunpack.c.h.b16 %v375
    %v1553 = vunpack.c.l.b16 %v376
    %v1554 = vunpack.c.h.b16 %v376
    %v1555 = vunpack.c.l.b16 %v377
    %v1556 = vunpack.c.h.b16 %v377
    %v1557 = vpack.c.b16 %v1369, %v1365
    %v1558 = vpack.c.b16 %v1370, %v1366
    %v1559 = vpack.c.b16 %v1371, %v1367
    %v1560 = vpack.c.b16 %v1372, %v1368
    %v1561 = vpack.c.b16 %v1377, %v1373
    %v1562 = vpack.c.b16 %v1378, %v1374
    %v1563 = vpack.c.b16 %v1379, %v1375
    %v1564 = vpack.c.b16 %v1380, %v1376
    %v1565 = vpack.c.b16 %v1385, %v1381
    %v1566 = vpack.c.b16 %v1386, %v1382
    %v1567 = vpack.c.b16 %v1387, %v1383
    %v1568 = vpack.c.b16 %v1388, %v1384
    %v1569 = vpack.c.b16 %v1393, %v1389
    %v1570 = vpack.c.b16 %v1394, %v1390
    %v1571 = vpack.c.b16 %v1395, %v1391
    %v1572 = vpack.c.b16 %v1396, %v1392
    %v1573 = vpack.c.b16 %v1401, %v1397
    %v1574 = vpack.c.b16 %v1402, %v1398
    %v1575 = vpack.c.b16 %v1403, %v1399
    %v1576 = vpack.c.b16 %v1404, %v1400
    %v1577 = vpack.c.b16 %v1409, %v1405
    %v1578 = vpack.c.b16 %v1410, %v1406
    %v1579 = vpack.c.b16 %v1411, %v1407
    %v1580 = vpack.c.b16 %v1412, %v1408
    %v1581 = vpack.c.b16 %v1417, %v1413
    %v1582 = vpack.c.b16 %v1418, %v1414
    %v1583 = vpack.c.b16 %v1419, %v1415
    %v1584 = vpack.c.b16 %v1420, %v1416
    %v1585 = vpack.c.b16 %v1425, %v1421
    %v1586 = vpack.c.b16 %v1426, %v1422
    %v1587 = vpack.c.b16 %v1427, %v1423
    %v1588 = vpack.c.b16 %v1428, %v1424
    %v1589 = vpack.c.b16 %v1433, %v1429
    %v1590 = vpack.c.b16 %v1434, %v1430
    %v1591 = vpack.c.b16 %v1435, %v1431
    %v1592 = vpack.c.b16 %v1436, %v1432
    %v1593 = vpack.c.b16 %v1441, %v1437
    %v1594 = vpack.c.b16 %v1442, %v1438
    %v1595 = vpack.c.b16 %v1443, %v1439
    %v1596 = vpack.c.b16 %v1444, %v1440
    %v1597 = vpack.c.b16 %v1449, %v1445
    %v1598 = vpack.c.b16 %v1450, %v1446
    %v1599 = vpack.c.b16 %v1451, %v1447
    %v1600 = vpack.c.b16 %v1452, %v1448
    %v1601 = vpack.c.b16 %v1457, %v1453
    %v1602 = vpack.c.b16 %v1458, %v1454
    %v1603 = vpack.c.b16 %v1459, %v1455
    %v1604 = vpack.c.b16 %v1460, %v1456
    %v1605 = vpack.c.b16 %v1465, %v1461
    %v1606 = vpack.c.b16 %v1466, %v1462
    %v1607 = vpack.c.b16 %v1467, %v1463
    %v1608 = vpack.c.b16 %v1468, %v1464
    %v1609 = vpack.c.b16 %v1473, %v1469
    %v1610 = vpack.c.b16 %v1474, %v1470
    %v1611 = vpack.c.b16 %v1475, %v1471
    %v1612 = vpack.c.b16 %v1476, %v1472
    %v1613 = vpack.c.b16 %v1481, %v1477
    %v1614 = vpack.c.b16 %v1482, %v1478
    %v1615 = vpack.c.b16 %v1483, %v1479
    %v1616 = vpack.c.b16 %v1484, %v1480
    %v1617 = vpack.c.b16 %v1489, %v1485
    %v1618 = vpack.c.b16 %v1490, %v1486
    %v1619 = vpack.c.b16 %v1491, %v1487
    %v1620 = vpack.c.b16 %v1492, %v1488
    %v1621 = vpack.c.b16 %v1497, %v1493
    %v1622 = vpack.c.b16 %v1498, %v1494
    %v1623 = vpack.c.b16 %v1499, %v1495
    %v1624 = vpack.c.b16 %v1500, %v1496
    %v1625 = vpack.c.b16 %v1505, %v1501
    %v1626 = vpack.c.b16 %v1506, %v1502
    %v1627 = vpack.c.b16 %v1507, %v1503
    %v1628 = vpack.c.b16 %v1508, %v1504
    %v1629 = vpack.c.b16 %v1513, %v1509
    %v1630 = vpack.c.b16 %v1514, %v1510
    %v1631 = vpack.c.b16 %v1515, %v1511
    %v1632 = vpack.c.b16 %v1516, %v1512
    %v1633 = vpack.c.b16 %v1521, %v1517
    %v1634 = vpack.c.b16 %v1522, %v1518
    %v1635 = vpack.c.b16 %v1523, %v1519
    %v1636 = vpack.c.b16 %v1524, %v1520
    %v1637 = vpack.c.b16 %v1529, %v1525
    %v1638 = vpack.c.b16 %v1530, %v1526
    %v1639 = vpack.c.b16 %v1531, %v1527
    %v1640 = vpack.c.b16 %v1532, %v1528
    %v1641 = vpack.c.b16 %v1537, %v1533
    %v1642 = vpack.c.b16 %v1538, %v1534
    %v1643 = vpack.c.b16 %v1539, %v1535
    %v1644 = vpack.c.b16 %v1540, %v1536
    %v1645 = vpack.c.b16 %v1545, %v1541
    %v1646 = vpack.c.b16 %v1546, %v1542
    %v1647 = vpack.c.b16 %v1547, %v1543
    %v1648 = vpack.c.b16 %v1548, %v1544
    %v1649 = vpack.c.b16 %v1553, %v1549
    %v1650 = vpack.c.b16 %v1554, %v1550
    %v1651 = vpack.c.b16 %v1555, %v1551
    %v1652 = vpack.c.b16 %v1556, %v1552
    %1749 = vmatprep.subr.bf16.mxu0 %v1558
    %1750 = vmatpush1.bf16.msra.mxu0 %v1557
    %1751 = vmatprep.subr.bf16.mxu0 %v1562
    %1752 = vmatpush1.bf16.msra.mxu0 %v1561
    %1753 = vmatprep.subr.bf16.mxu0 %v1566
    %1754 = vmatpush1.bf16.msra.mxu0 %v1565
    %1755 = vmatprep.subr.bf16.mxu0 %v1570
    %1756 = vmatpush1.bf16.msra.mxu0 %v1569
    %1757 = vmatprep.subr.bf16.mxu0 %v1574
    %1758 = vmatpush1.bf16.msra.mxu0 %v1573
    %1759 = vmatprep.subr.bf16.mxu0 %v1578
    %1760 = vmatpush1.bf16.msra.mxu0 %v1577
    %1761 = vmatprep.subr.bf16.mxu0 %v1582
    %1762 = vmatpush1.bf16.msra.mxu0 %v1581
    %1763 = vmatprep.subr.bf16.mxu0 %v1586
    %1764 = vmatpush1.bf16.msra.mxu0 %v1585
    %1765 = vmatprep.subr.bf16.mxu0 %v1590
    %1766 = vmatpush1.bf16.msra.mxu0 %v1589
    %1767 = vmatprep.subr.bf16.mxu0 %v1594
    %1768 = vmatpush1.bf16.msra.mxu0 %v1593
    %1769 = vmatprep.subr.bf16.mxu0 %v1598
    %1770 = vmatpush1.bf16.msra.mxu0 %v1597
    %1771 = vmatprep.subr.bf16.mxu0 %v1602
    %1772 = vmatpush1.bf16.msra.mxu0 %v1601
    %1773 = vmatprep.subr.bf16.mxu0 %v1606
    %1774 = vmatpush1.bf16.msra.mxu0 %v1605
    %1775 = vmatprep.subr.bf16.mxu0 %v1610
    %1776 = vmatpush1.bf16.msra.mxu0 %v1609
    %1777 = vmatprep.subr.bf16.mxu0 %v1614
    %1778 = vmatpush1.bf16.msra.mxu0 %v1613
    %1779 = vmatprep.subr.bf16.mxu0 %v1618
    %1780 = vmatpush1.bf16.msra.mxu0 %v1617
    %1781 = vmatprep.mubr.bf16.mxu0 %v1264
    %1782 = vmatmul.mubr.bf16.gmra.mrb[0].mxu0 %v1257
    %v1783 = vpop.f32.mrb[0].mxu0
    %v1784 = vadd.f32 %v1145, %v1783
    %v1785 = vpop.f32.mrb[0].mxu0
    %v1786 = vadd.f32 %v1147, %v1785
    %v1787 = vpop.f32.mrb[0].mxu0
    %v1788 = vpop.f32.mrb[0].mxu0
    %1789 = vdwg.mxu0
    %1790 = vmatprep.subr.bf16.mxu0 %v1622
    %1791 = vmatpush1.bf16.msra.mxu0 %v1621
    %1792 = vmatprep.subr.bf16.mxu0 %v1626
    %1793 = vmatpush1.bf16.msra.mxu0 %v1625
    %1794 = vmatprep.subr.bf16.mxu0 %v1630
    %1795 = vmatpush1.bf16.msra.mxu0 %v1629
    %1796 = vmatprep.subr.bf16.mxu0 %v1634
    %1797 = vmatpush1.bf16.msra.mxu0 %v1633
    %1798 = vmatprep.subr.bf16.mxu0 %v1638
    %1799 = vmatpush1.bf16.msra.mxu0 %v1637
    %1800 = vmatprep.subr.bf16.mxu0 %v1642
    %1801 = vmatpush1.bf16.msra.mxu0 %v1641
    %1802 = vmatprep.subr.bf16.mxu0 %v1646
    %1803 = vmatpush1.bf16.msra.mxu0 %v1645
    %1804 = vmatprep.subr.bf16.mxu0 %v1650
    %1805 = vmatpush1.bf16.msra.mxu0 %v1649
    %1806 = vmatprep.subr.bf16.mxu0 0
    %1807 = vmatpush1.bf16.msra.mxu0 0
    %1808 = vmatprep.subr.bf16.mxu0 0
    %1809 = vmatpush1.bf16.msra.mxu0 0
    %1810 = vmatprep.subr.bf16.mxu0 0
    %1811 = vmatpush1.bf16.msra.mxu0 0
    %1812 = vmatprep.subr.bf16.mxu0 0
    %1813 = vmatpush1.bf16.msra.mxu0 0
    %1814 = vmatprep.subr.bf16.mxu0 0
    %1815 = vmatpush1.bf16.msra.mxu0 0
    %1816 = vmatprep.subr.bf16.mxu0 0
    %1817 = vmatpush1.bf16.msra.mxu0 0
    %1818 = vmatprep.subr.bf16.mxu0 0
    %1819 = vmatpush1.bf16.msra.mxu0 0
    %1820 = vmatprep.subr.bf16.mxu0 0
    %1821 = vmatpush1.bf16.msra.mxu0 0
    %1822 = vmatprep.mubr.bf16.mxu0 0
    %1823 = vmatmul.mubr.bf16.gmra.mrb[0].mxu0 %v1265
    %v1824 = vpop.f32.mrb[0].mxu0
    %v1825 = vadd.f32 %v1784, %v1824
    %v1826 = vpop.f32.mrb[0].mxu0
    %v1827 = vadd.f32 %v1786, %v1826
    %v1828 = vpop.f32.mrb[0].mxu0
    %v1829 = vpop.f32.mrb[0].mxu0
    %1830 = vdwg.mxu0
    %1831 = vmatprep.subr.bf16.mxu0 %v1560
    %1832 = vmatpush1.bf16.msra.mxu0 %v1559
    %1833 = vmatprep.subr.bf16.mxu0 %v1564
    %1834 = vmatpush1.bf16.msra.mxu0 %v1563
    %1835 = vmatprep.subr.bf16.mxu0 %v1568
    %1836 = vmatpush1.bf16.msra.mxu0 %v1567
    %1837 = vmatprep.subr.bf16.mxu0 %v1572
    %1838 = vmatpush1.bf16.msra.mxu0 %v1571
    %1839 = vmatprep.subr.bf16.mxu0 %v1576
    %1840 = vmatpush1.bf16.msra.mxu0 %v1575
    %1841 = vmatprep.subr.bf16.mxu0 %v1580
    %1842 = vmatpush1.bf16.msra.mxu0 %v1579
    %1843 = vmatprep.subr.bf16.mxu0 %v1584
    %1844 = vmatpush1.bf16.msra.mxu0 %v1583
    %1845 = vmatprep.subr.bf16.mxu0 %v1588
    %1846 = vmatpush1.bf16.msra.mxu0 %v1587
    %1847 = vmatprep.subr.bf16.mxu0 %v1592
    %1848 = vmatpush1.bf16.msra.mxu0 %v1591
    %1849 = vmatprep.subr.bf16.mxu0 %v1596
    %1850 = vmatpush1.bf16.msra.mxu0 %v1595
    %1851 = vmatprep.subr.bf16.mxu0 %v1600
    %1852 = vmatpush1.bf16.msra.mxu0 %v1599
    %1853 = vmatprep.subr.bf16.mxu0 %v1604
    %1854 = vmatpush1.bf16.msra.mxu0 %v1603
    %1855 = vmatprep.subr.bf16.mxu0 %v1608
    %1856 = vmatpush1.bf16.msra.mxu0 %v1607
    %1857 = vmatprep.subr.bf16.mxu0 %v1612
    %1858 = vmatpush1.bf16.msra.mxu0 %v1611
    %1859 = vmatprep.subr.bf16.mxu0 %v1616
    %1860 = vmatpush1.bf16.msra.mxu0 %v1615
    %1861 = vmatprep.subr.bf16.mxu0 %v1620
    %1862 = vmatpush1.bf16.msra.mxu0 %v1619
    %1863 = vmatprep.mubr.bf16.mxu0 %v1264
    %1864 = vmatmul.mubr.bf16.gmra.mrb[0].mxu0 %v1257
    %v1865 = vpop.f32.mrb[0].mxu0
    %v1866 = vadd.f32 %v1227, %v1865
    %v1867 = vpop.f32.mrb[0].mxu0
    %v1868 = vadd.f32 %v1229, %v1867
    %v1869 = vpop.f32.mrb[0].mxu0
    %v1870 = vpop.f32.mrb[0].mxu0
    %1871 = vdwg.mxu0
    %1872 = vmatprep.subr.bf16.mxu0 %v1624
    %1873 = vmatpush1.bf16.msra.mxu0 %v1623
    %1874 = vmatprep.subr.bf16.mxu0 %v1628
    %1875 = vmatpush1.bf16.msra.mxu0 %v1627
    %1876 = vmatprep.subr.bf16.mxu0 %v1632
    %1877 = vmatpush1.bf16.msra.mxu0 %v1631
    %1878 = vmatprep.subr.bf16.mxu0 %v1636
    %1879 = vmatpush1.bf16.msra.mxu0 %v1635
    %1880 = vmatprep.subr.bf16.mxu0 %v1640
    %1881 = vmatpush1.bf16.msra.mxu0 %v1639
    %1882 = vmatprep.subr.bf16.mxu0 %v1644
    %1883 = vmatpush1.bf16.msra.mxu0 %v1643
    %1884 = vmatprep.subr.bf16.mxu0 %v1648
    %1885 = vmatpush1.bf16.msra.mxu0 %v1647
    %1886 = vmatprep.subr.bf16.mxu0 %v1652
    %1887 = vmatpush1.bf16.msra.mxu0 %v1651
    %1888 = vmatprep.subr.bf16.mxu0 0
    %1889 = vmatpush1.bf16.msra.mxu0 0
    %1890 = vmatprep.subr.bf16.mxu0 0
    %1891 = vmatpush1.bf16.msra.mxu0 0
    %1892 = vmatprep.subr.bf16.mxu0 0
    %1893 = vmatpush1.bf16.msra.mxu0 0
    %1894 = vmatprep.subr.bf16.mxu0 0
    %1895 = vmatpush1.bf16.msra.mxu0 0
    %1896 = vmatprep.subr.bf16.mxu0 0
    %1897 = vmatpush1.bf16.msra.mxu0 0
    %1898 = vmatprep.subr.bf16.mxu0 0
    %1899 = vmatpush1.bf16.msra.mxu0 0
    %1900 = vmatprep.subr.bf16.mxu0 0
    %1901 = vmatpush1.bf16.msra.mxu0 0
    %1902 = vmatprep.subr.bf16.mxu0 0
    %1903 = vmatpush1.bf16.msra.mxu0 0
    %1904 = vmatprep.mubr.bf16.mxu0 0
    %1905 = vmatmul.mubr.bf16.gmra.mrb[0].mxu0 %v1265
    %v1906 = vpop.f32.mrb[0].mxu0
    %v1907 = vadd.f32 %v1866, %v1906
    %v1908 = vpop.f32.mrb[0].mxu0
    %v1909 = vadd.f32 %v1868, %v1908
    %v1910 = vpop.f32.mrb[0].mxu0
    %v1911 = vpop.f32.mrb[0].mxu0
    %1912 = vdwg.mxu0
    %v1916 = vunpack.c.l.s4 1983009808
    %v1917 = vunpack.c.0.s8 %v1916
    %v1918 = vlaneseq
    %v1919 = vshrl.u32 %v1918, 7
    %v1920 = vsub.s32 %v1917, %v1919
    %v1921 = vrot.slane %v121, %v1920
    %v1923 = vunpack.c.l.s4 1983009808
    %v1924 = vunpack.c.0.s8 %v1923
    %v1925 = vlaneseq
    %v1926 = vshrl.u32 %v1925, 7
    %v1927 = vsub.s32 %v1924, %v1926
    %v1928 = vrot.slane %v125, %v1927
    %v1930 = vshrl.u32 %v1921, 16
    %v1932 = vshll.u32 %v1921, 16
    %v1934 = vrot.slane %v1932, 1
    %v1935 = vor.u32 %v1930, %v1934
    %v1937 = vshrl.u32 %v1928, 16
    %v1939 = vshll.u32 %v1928, 16
    %v1941 = vrot.slane %v1939, 1
    %v1942 = vor.u32 %v1937, %v1941
    %v1943 = vrot.slane %v1921, 1
    %v1944 = vrot.slane %v1928, 1
    %v1945 = vcombine.low %v121, %v1935
    %v1947 = vunpack.c.l.s4 1966171168
    %v1948 = vunpack.c.0.s8 %v1947
    %v1949 = vlaneseq
    %v1950 = vshrl.u32 %v1949, 7
    %v1951 = vsub.s32 %v1948, %v1950
    %v1952 = vrot.slane %v1945, %v1951
    %v1954 = vunpack.c.l.s4 1966171168
    %v1955 = vunpack.c.0.s8 %v1954
    %v1956 = vlaneseq
    %v1957 = vshrl.u32 %v1956, 7
    %v1958 = vsub.s32 %v1955, %v1957
    %v1959 = vrot.slane %v1943, %v1958
    %v1960 = vcombine.low %v1952, %v1959
    %v1962 = vunpack.c.l.s4 1966171168
    %v1963 = vunpack.c.0.s8 %v1962
    %v1964 = vlaneseq
    %v1965 = vshrl.u32 %v1964, 7
    %v1966 = vsub.s32 %v1963, %v1965
    %v1967 = vrot.slane %v1960, %v1966
    %v1968 = vcombine.low %v125, %v1942
    %v1970 = vunpack.c.l.s4 1966171168
    %v1971 = vunpack.c.0.s8 %v1970
    %v1972 = vlaneseq
    %v1973 = vshrl.u32 %v1972, 7
    %v1974 = vsub.s32 %v1971, %v1973
    %v1975 = vrot.slane %v1968, %v1974
    %v1977 = vunpack.c.l.s4 1966171168
    %v1978 = vunpack.c.0.s8 %v1977
    %v1979 = vlaneseq
    %v1980 = vshrl.u32 %v1979, 7
    %v1981 = vsub.s32 %v1978, %v1980
    %v1982 = vrot.slane %v1944, %v1981
    %v1983 = vcombine.low %v1975, %v1982
    %v1985 = vunpack.c.l.s4 1966171168
    %v1986 = vunpack.c.0.s8 %v1985
    %v1987 = vlaneseq
    %v1988 = vshrl.u32 %v1987, 7
    %v1989 = vsub.s32 %v1986, %v1988
    %v1990 = vrot.slane %v1983, %v1989
    %s1991 = scalar_lea.vmem %s1, 1536
    %v1992 = vld [vmem:[%s1991] sm:$0xff]
    %v1993 = vld [vmem:[%s1991 + $0x8] sm:$0xff]
    %v1994 = vld [vmem:[%s1991 + $0x10] sm:$0xff]
    %v1995 = vld [vmem:[%s1991 + $0x18] sm:$0xff]
    %v1996 = vld [vmem:[%s1991 + $0x20] sm:$0xff]
    %v1997 = vld [vmem:[%s1991 + $0x28] sm:$0xff]
    %v1998 = vld [vmem:[%s1991 + $0x30] sm:$0xff]
    %v1999 = vld [vmem:[%s1991 + $0x38] sm:$0xff]
    %v2000 = vld [vmem:[%s1991 + $0x40] sm:$0xff]
    %v2001 = vld [vmem:[%s1991 + $0x48] sm:$0xff]
    %v2002 = vld [vmem:[%s1991 + $0x50] sm:$0xff]
    %v2003 = vld [vmem:[%s1991 + $0x58] sm:$0xff]
    %v2004 = vld [vmem:[%s1991 + $0x60] sm:$0xff]
    %v2005 = vld [vmem:[%s1991 + $0x68] sm:$0xff]
    %v2006 = vld [vmem:[%s1991 + $0x70] sm:$0xff]
    %v2007 = vld [vmem:[%s1991 + $0x78] sm:$0xff]
    %v2008 = vld [vmem:[%s1991 + $0x80] sm:$0xff]
    %v2009 = vld [vmem:[%s1991 + $0x88] sm:$0xff]
    %v2010 = vld [vmem:[%s1991 + $0x90] sm:$0xff]
    %v2011 = vld [vmem:[%s1991 + $0x98] sm:$0xff]
    %v2012 = vld [vmem:[%s1991 + $0xa0] sm:$0xff]
    %v2013 = vld [vmem:[%s1991 + $0xa8] sm:$0xff]
    %v2014 = vld [vmem:[%s1991 + $0xb0] sm:$0xff]
    %v2015 = vld [vmem:[%s1991 + $0xb8] sm:$0xff]
    %v2016 = vld [vmem:[%s1991 + $0xc0] sm:$0xff]
    %v2017 = vld [vmem:[%s1991 + $0xc8] sm:$0xff]
    %v2018 = vld [vmem:[%s1991 + $0xd0] sm:$0xff]
    %v2019 = vld [vmem:[%s1991 + $0xd8] sm:$0xff]
    %v2020 = vld [vmem:[%s1991 + $0xe0] sm:$0xff]
    %v2021 = vld [vmem:[%s1991 + $0xe8] sm:$0xff]
    %v2022 = vld [vmem:[%s1991 + $0xf0] sm:$0xff]
    %v2023 = vld [vmem:[%s1991 + $0xf8] sm:$0xff]
    %v2024 = vld [vmem:[%s1991 + $0x100] sm:$0xff]
    %v2025 = vld [vmem:[%s1991 + $0x108] sm:$0xff]
    %v2026 = vld [vmem:[%s1991 + $0x110] sm:$0xff]
    %v2027 = vld [vmem:[%s1991 + $0x118] sm:$0xff]
    %v2028 = vld [vmem:[%s1991 + $0x120] sm:$0xff]
    %v2029 = vld [vmem:[%s1991 + $0x128] sm:$0xff]
    %v2030 = vld [vmem:[%s1991 + $0x130] sm:$0xff]
    %v2031 = vld [vmem:[%s1991 + $0x138] sm:$0xff]
    %v2032 = vld [vmem:[%s1991 + $0x140] sm:$0xff]
    %v2033 = vld [vmem:[%s1991 + $0x148] sm:$0xff]
    %v2034 = vld [vmem:[%s1991 + $0x150] sm:$0xff]
    %v2035 = vld [vmem:[%s1991 + $0x158] sm:$0xff]
    %v2036 = vld [vmem:[%s1991 + $0x160] sm:$0xff]
    %v2037 = vld [vmem:[%s1991 + $0x168] sm:$0xff]
    %v2038 = vld [vmem:[%s1991 + $0x170] sm:$0xff]
    %v2039 = vld [vmem:[%s1991 + $0x178] sm:$0xff]
    %v2040 = vld [vmem:[%s1991 + $0x180] sm:$0xff]
    %v2041 = vld [vmem:[%s1991 + $0x188] sm:$0xff]
    %v2042 = vld [vmem:[%s1991 + $0x190] sm:$0xff]
    %v2043 = vld [vmem:[%s1991 + $0x198] sm:$0xff]
    %v2044 = vld [vmem:[%s1991 + $0x1a0] sm:$0xff]
    %v2045 = vld [vmem:[%s1991 + $0x1a8] sm:$0xff]
    %v2046 = vld [vmem:[%s1991 + $0x1b0] sm:$0xff]
    %v2047 = vld [vmem:[%s1991 + $0x1b8] sm:$0xff]
    %v2048 = vld [vmem:[%s1991 + $0x1c0] sm:$0xff]
    %v2049 = vld [vmem:[%s1991 + $0x1c8] sm:$0xff]
    %v2050 = vld [vmem:[%s1991 + $0x1d0] sm:$0xff]
    %v2051 = vld [vmem:[%s1991 + $0x1d8] sm:$0xff]
    %v2052 = vld [vmem:[%s1991 + $0x1e0] sm:$0xff]
    %v2053 = vld [vmem:[%s1991 + $0x1e8] sm:$0xff]
    %v2054 = vld [vmem:[%s1991 + $0x1f0] sm:$0xff]
    %v2055 = vld [vmem:[%s1991 + $0x1f8] sm:$0xff]
    %v2056 = vld [vmem:[%s1991 + $0x200] sm:$0xff]
    %v2057 = vld [vmem:[%s1991 + $0x208] sm:$0xff]
    %v2058 = vld [vmem:[%s1991 + $0x210] sm:$0xff]
    %v2059 = vld [vmem:[%s1991 + $0x218] sm:$0xff]
    %v2060 = vld [vmem:[%s1991 + $0x220] sm:$0xff]
    %v2061 = vld [vmem:[%s1991 + $0x228] sm:$0xff]
    %v2062 = vld [vmem:[%s1991 + $0x230] sm:$0xff]
    %v2063 = vld [vmem:[%s1991 + $0x238] sm:$0xff]
    %v2064 = vld [vmem:[%s1991 + $0x240] sm:$0xff]
    %v2065 = vld [vmem:[%s1991 + $0x248] sm:$0xff]
    %v2066 = vld [vmem:[%s1991 + $0x250] sm:$0xff]
    %v2067 = vld [vmem:[%s1991 + $0x258] sm:$0xff]
    %v2068 = vld [vmem:[%s1991 + $0x260] sm:$0xff]
    %v2069 = vld [vmem:[%s1991 + $0x268] sm:$0xff]
    %v2070 = vld [vmem:[%s1991 + $0x270] sm:$0xff]
    %v2071 = vld [vmem:[%s1991 + $0x278] sm:$0xff]
    %v2072 = vld [vmem:[%s1991 + $0x280] sm:$0xff]
    %v2073 = vld [vmem:[%s1991 + $0x288] sm:$0xff]
    %v2074 = vld [vmem:[%s1991 + $0x290] sm:$0xff]
    %v2075 = vld [vmem:[%s1991 + $0x298] sm:$0xff]
    %v2076 = vld [vmem:[%s1991 + $0x2a0] sm:$0xff]
    %v2077 = vld [vmem:[%s1991 + $0x2a8] sm:$0xff]
    %v2078 = vld [vmem:[%s1991 + $0x2b0] sm:$0xff]
    %v2079 = vld [vmem:[%s1991 + $0x2b8] sm:$0xff]
    %v2080 = vld [vmem:[%s1991 + $0x2c0] sm:$0xff]
    %v2081 = vld [vmem:[%s1991 + $0x2c8] sm:$0xff]
    %v2082 = vld [vmem:[%s1991 + $0x2d0] sm:$0xff]
    %v2083 = vld [vmem:[%s1991 + $0x2d8] sm:$0xff]
    %v2084 = vld [vmem:[%s1991 + $0x2e0] sm:$0xff]
    %v2085 = vld [vmem:[%s1991 + $0x2e8] sm:$0xff]
    %v2086 = vld [vmem:[%s1991 + $0x2f0] sm:$0xff]
    %v2087 = vld [vmem:[%s1991 + $0x2f8] sm:$0xff]
    %v2088 = vcombine.low %v432, %v1967
    %v2089 = vcombine.low %v455, %v1990
    %v2091 = vunpack.c.l.s4 1966171168
    %v2092 = vunpack.c.0.s8 %v2091
    %v2093 = vlaneseq
    %v2094 = vshrl.u32 %v2093, 7
    %v2095 = vsub.s32 %v2092, %v2094
    %v2096 = vrot.slane %v2088, %v2095
    %v2098 = vunpack.c.l.s4 1966171168
    %v2099 = vunpack.c.0.s8 %v2098
    %v2100 = vlaneseq
    %v2101 = vshrl.u32 %v2100, 7
    %v2102 = vsub.s32 %v2099, %v2101
    %v2103 = vrot.slane %v2089, %v2102
    %v2104 = vcombine.low %v2096, %v2103
    %v2105 = vcombine.high %v2096, %v2103
    %v2107 = vunpack.c.l.s4 1966171168
    %v2108 = vunpack.c.0.s8 %v2107
    %v2109 = vlaneseq
    %v2110 = vshrl.u32 %v2109, 7
    %v2111 = vsub.s32 %v2108, %v2110
    %v2112 = vrot.slane %v2104, %v2111
    %v2114 = vunpack.c.l.s4 1966171168
    %v2115 = vunpack.c.0.s8 %v2114
    %v2116 = vlaneseq
    %v2117 = vshrl.u32 %v2116, 7
    %v2118 = vsub.s32 %v2115, %v2117
    %v2119 = vrot.slane %v2105, %v2118
    %v2120 = vcombine.high %v2112, %v2112
    %v2220 = vunpack.c.l.b16 %v1992
    %v2221 = vunpack.c.h.b16 %v1992
    %v2222 = vunpack.c.l.b16 %v1993
    %v2223 = vunpack.c.h.b16 %v1993
    %v2224 = vunpack.c.l.b16 %v1994
    %v2225 = vunpack.c.h.b16 %v1994
    %v2226 = vunpack.c.l.b16 %v1995
    %v2227 = vunpack.c.h.b16 %v1995
    %v2228 = vunpack.c.l.b16 %v1996
    %v2229 = vunpack.c.h.b16 %v1996
    %v2230 = vunpack.c.l.b16 %v1997
    %v2231 = vunpack.c.h.b16 %v1997
    %v2232 = vunpack.c.l.b16 %v1998
    %v2233 = vunpack.c.h.b16 %v1998
    %v2234 = vunpack.c.l.b16 %v1999
    %v2235 = vunpack.c.h.b16 %v1999
    %v2236 = vunpack.c.l.b16 %v2000
    %v2237 = vunpack.c.h.b16 %v2000
    %v2238 = vunpack.c.l.b16 %v2001
    %v2239 = vunpack.c.h.b16 %v2001
    %v2240 = vunpack.c.l.b16 %v2002
    %v2241 = vunpack.c.h.b16 %v2002
    %v2242 = vunpack.c.l.b16 %v2003
    %v2243 = vunpack.c.h.b16 %v2003
    %v2244 = vunpack.c.l.b16 %v2004
    %v2245 = vunpack.c.h.b16 %v2004
    %v2246 = vunpack.c.l.b16 %v2005
    %v2247 = vunpack.c.h.b16 %v2005
    %v2248 = vunpack.c.l.b16 %v2006
    %v2249 = vunpack.c.h.b16 %v2006
    %v2250 = vunpack.c.l.b16 %v2007
    %v2251 = vunpack.c.h.b16 %v2007
    %v2252 = vunpack.c.l.b16 %v2008
    %v2253 = vunpack.c.h.b16 %v2008
    %v2254 = vunpack.c.l.b16 %v2009
    %v2255 = vunpack.c.h.b16 %v2009
    %v2256 = vunpack.c.l.b16 %v2010
    %v2257 = vunpack.c.h.b16 %v2010
    %v2258 = vunpack.c.l.b16 %v2011
    %v2259 = vunpack.c.h.b16 %v2011
    %v2260 = vunpack.c.l.b16 %v2012
    %v2261 = vunpack.c.h.b16 %v2012
    %v2262 = vunpack.c.l.b16 %v2013
    %v2263 = vunpack.c.h.b16 %v2013
    %v2264 = vunpack.c.l.b16 %v2014
    %v2265 = vunpack.c.h.b16 %v2014
    %v2266 = vunpack.c.l.b16 %v2015
    %v2267 = vunpack.c.h.b16 %v2015
    %v2268 = vunpack.c.l.b16 %v2016
    %v2269 = vunpack.c.h.b16 %v2016
    %v2270 = vunpack.c.l.b16 %v2017
    %v2271 = vunpack.c.h.b16 %v2017
    %v2272 = vunpack.c.l.b16 %v2018
    %v2273 = vunpack.c.h.b16 %v2018
    %v2274 = vunpack.c.l.b16 %v2019
    %v2275 = vunpack.c.h.b16 %v2019
    %v2276 = vunpack.c.l.b16 %v2020
    %v2277 = vunpack.c.h.b16 %v2020
    %v2278 = vunpack.c.l.b16 %v2021
    %v2279 = vunpack.c.h.b16 %v2021
    %v2280 = vunpack.c.l.b16 %v2022
    %v2281 = vunpack.c.h.b16 %v2022
    %v2282 = vunpack.c.l.b16 %v2023
    %v2283 = vunpack.c.h.b16 %v2023
    %v2284 = vunpack.c.l.b16 %v2024
    %v2285 = vunpack.c.h.b16 %v2024
    %v2286 = vunpack.c.l.b16 %v2025
    %v2287 = vunpack.c.h.b16 %v2025
    %v2288 = vunpack.c.l.b16 %v2026
    %v2289 = vunpack.c.h.b16 %v2026
    %v2290 = vunpack.c.l.b16 %v2027
    %v2291 = vunpack.c.h.b16 %v2027
    %v2292 = vunpack.c.l.b16 %v2028
    %v2293 = vunpack.c.h.b16 %v2028
    %v2294 = vunpack.c.l.b16 %v2029
    %v2295 = vunpack.c.h.b16 %v2029
    %v2296 = vunpack.c.l.b16 %v2030
    %v2297 = vunpack.c.h.b16 %v2030
    %v2298 = vunpack.c.l.b16 %v2031
    %v2299 = vunpack.c.h.b16 %v2031
    %v2300 = vunpack.c.l.b16 %v2032
    %v2301 = vunpack.c.h.b16 %v2032
    %v2302 = vunpack.c.l.b16 %v2033
    %v2303 = vunpack.c.h.b16 %v2033
    %v2304 = vunpack.c.l.b16 %v2034
    %v2305 = vunpack.c.h.b16 %v2034
    %v2306 = vunpack.c.l.b16 %v2035
    %v2307 = vunpack.c.h.b16 %v2035
    %v2308 = vunpack.c.l.b16 %v2036
    %v2309 = vunpack.c.h.b16 %v2036
    %v2310 = vunpack.c.l.b16 %v2037
    %v2311 = vunpack.c.h.b16 %v2037
    %v2312 = vunpack.c.l.b16 %v2038
    %v2313 = vunpack.c.h.b16 %v2038
    %v2314 = vunpack.c.l.b16 %v2039
    %v2315 = vunpack.c.h.b16 %v2039
    %v2316 = vunpack.c.l.b16 %v2040
    %v2317 = vunpack.c.h.b16 %v2040
    %v2318 = vunpack.c.l.b16 %v2041
    %v2319 = vunpack.c.h.b16 %v2041
    %v2320 = vunpack.c.l.b16 %v2042
    %v2321 = vunpack.c.h.b16 %v2042
    %v2322 = vunpack.c.l.b16 %v2043
    %v2323 = vunpack.c.h.b16 %v2043
    %v2324 = vunpack.c.l.b16 %v2044
    %v2325 = vunpack.c.h.b16 %v2044
    %v2326 = vunpack.c.l.b16 %v2045
    %v2327 = vunpack.c.h.b16 %v2045
    %v2328 = vunpack.c.l.b16 %v2046
    %v2329 = vunpack.c.h.b16 %v2046
    %v2330 = vunpack.c.l.b16 %v2047
    %v2331 = vunpack.c.h.b16 %v2047
    %v2332 = vunpack.c.l.b16 %v2048
    %v2333 = vunpack.c.h.b16 %v2048
    %v2334 = vunpack.c.l.b16 %v2049
    %v2335 = vunpack.c.h.b16 %v2049
    %v2336 = vunpack.c.l.b16 %v2050
    %v2337 = vunpack.c.h.b16 %v2050
    %v2338 = vunpack.c.l.b16 %v2051
    %v2339 = vunpack.c.h.b16 %v2051
    %v2340 = vunpack.c.l.b16 %v2052
    %v2341 = vunpack.c.h.b16 %v2052
    %v2342 = vunpack.c.l.b16 %v2053
    %v2343 = vunpack.c.h.b16 %v2053
    %v2344 = vunpack.c.l.b16 %v2054
    %v2345 = vunpack.c.h.b16 %v2054
    %v2346 = vunpack.c.l.b16 %v2055
    %v2347 = vunpack.c.h.b16 %v2055
    %v2348 = vunpack.c.l.b16 %v2056
    %v2349 = vunpack.c.h.b16 %v2056
    %v2350 = vunpack.c.l.b16 %v2057
    %v2351 = vunpack.c.h.b16 %v2057
    %v2352 = vunpack.c.l.b16 %v2058
    %v2353 = vunpack.c.h.b16 %v2058
    %v2354 = vunpack.c.l.b16 %v2059
    %v2355 = vunpack.c.h.b16 %v2059
    %v2356 = vunpack.c.l.b16 %v2060
    %v2357 = vunpack.c.h.b16 %v2060
    %v2358 = vunpack.c.l.b16 %v2061
    %v2359 = vunpack.c.h.b16 %v2061
    %v2360 = vunpack.c.l.b16 %v2062
    %v2361 = vunpack.c.h.b16 %v2062
    %v2362 = vunpack.c.l.b16 %v2063
    %v2363 = vunpack.c.h.b16 %v2063
    %v2364 = vunpack.c.l.b16 %v2064
    %v2365 = vunpack.c.h.b16 %v2064
    %v2366 = vunpack.c.l.b16 %v2065
    %v2367 = vunpack.c.h.b16 %v2065
    %v2368 = vunpack.c.l.b16 %v2066
    %v2369 = vunpack.c.h.b16 %v2066
    %v2370 = vunpack.c.l.b16 %v2067
    %v2371 = vunpack.c.h.b16 %v2067
    %v2372 = vunpack.c.l.b16 %v2068
    %v2373 = vunpack.c.h.b16 %v2068
    %v2374 = vunpack.c.l.b16 %v2069
    %v2375 = vunpack.c.h.b16 %v2069
    %v2376 = vunpack.c.l.b16 %v2070
    %v2377 = vunpack.c.h.b16 %v2070
    %v2378 = vunpack.c.l.b16 %v2071
    %v2379 = vunpack.c.h.b16 %v2071
    %v2380 = vunpack.c.l.b16 %v2072
    %v2381 = vunpack.c.h.b16 %v2072
    %v2382 = vunpack.c.l.b16 %v2073
    %v2383 = vunpack.c.h.b16 %v2073
    %v2384 = vunpack.c.l.b16 %v2074
    %v2385 = vunpack.c.h.b16 %v2074
    %v2386 = vunpack.c.l.b16 %v2075
    %v2387 = vunpack.c.h.b16 %v2075
    %v2388 = vunpack.c.l.b16 %v2076
    %v2389 = vunpack.c.h.b16 %v2076
    %v2390 = vunpack.c.l.b16 %v2077
    %v2391 = vunpack.c.h.b16 %v2077
    %v2392 = vunpack.c.l.b16 %v2078
    %v2393 = vunpack.c.h.b16 %v2078
    %v2394 = vunpack.c.l.b16 %v2079
    %v2395 = vunpack.c.h.b16 %v2079
    %v2396 = vunpack.c.l.b16 %v2080
    %v2397 = vunpack.c.h.b16 %v2080
    %v2398 = vunpack.c.l.b16 %v2081
    %v2399 = vunpack.c.h.b16 %v2081
    %v2400 = vunpack.c.l.b16 %v2082
    %v2401 = vunpack.c.h.b16 %v2082
    %v2402 = vunpack.c.l.b16 %v2083
    %v2403 = vunpack.c.h.b16 %v2083
    %v2404 = vunpack.c.l.b16 %v2084
    %v2405 = vunpack.c.h.b16 %v2084
    %v2406 = vunpack.c.l.b16 %v2085
    %v2407 = vunpack.c.h.b16 %v2085
    %v2408 = vunpack.c.l.b16 %v2086
    %v2409 = vunpack.c.h.b16 %v2086
    %v2410 = vunpack.c.l.b16 %v2087
    %v2411 = vunpack.c.h.b16 %v2087
    %v2412 = vpack.c.b16 %v2224, %v2220
    %v2413 = vpack.c.b16 %v2225, %v2221
    %v2414 = vpack.c.b16 %v2226, %v2222
    %v2415 = vpack.c.b16 %v2227, %v2223
    %v2416 = vpack.c.b16 %v2232, %v2228
    %v2417 = vpack.c.b16 %v2233, %v2229
    %v2418 = vpack.c.b16 %v2234, %v2230
    %v2419 = vpack.c.b16 %v2235, %v2231
    %v2420 = vpack.c.b16 %v2240, %v2236
    %v2421 = vpack.c.b16 %v2241, %v2237
    %v2422 = vpack.c.b16 %v2242, %v2238
    %v2423 = vpack.c.b16 %v2243, %v2239
    %v2424 = vpack.c.b16 %v2248, %v2244
    %v2425 = vpack.c.b16 %v2249, %v2245
    %v2426 = vpack.c.b16 %v2250, %v2246
    %v2427 = vpack.c.b16 %v2251, %v2247
    %v2428 = vpack.c.b16 %v2256, %v2252
    %v2429 = vpack.c.b16 %v2257, %v2253
    %v2430 = vpack.c.b16 %v2258, %v2254
    %v2431 = vpack.c.b16 %v2259, %v2255
    %v2432 = vpack.c.b16 %v2264, %v2260
    %v2433 = vpack.c.b16 %v2265, %v2261
    %v2434 = vpack.c.b16 %v2266, %v2262
    %v2435 = vpack.c.b16 %v2267, %v2263
    %v2436 = vpack.c.b16 %v2272, %v2268
    %v2437 = vpack.c.b16 %v2273, %v2269
    %v2438 = vpack.c.b16 %v2274, %v2270
    %v2439 = vpack.c.b16 %v2275, %v2271
    %v2440 = vpack.c.b16 %v2280, %v2276
    %v2441 = vpack.c.b16 %v2281, %v2277
    %v2442 = vpack.c.b16 %v2282, %v2278
    %v2443 = vpack.c.b16 %v2283, %v2279
    %v2444 = vpack.c.b16 %v2288, %v2284
    %v2445 = vpack.c.b16 %v2289, %v2285
    %v2446 = vpack.c.b16 %v2290, %v2286
    %v2447 = vpack.c.b16 %v2291, %v2287
    %v2448 = vpack.c.b16 %v2296, %v2292
    %v2449 = vpack.c.b16 %v2297, %v2293
    %v2450 = vpack.c.b16 %v2298, %v2294
    %v2451 = vpack.c.b16 %v2299, %v2295
    %v2452 = vpack.c.b16 %v2304, %v2300
    %v2453 = vpack.c.b16 %v2305, %v2301
    %v2454 = vpack.c.b16 %v2306, %v2302
    %v2455 = vpack.c.b16 %v2307, %v2303
    %v2456 = vpack.c.b16 %v2312, %v2308
    %v2457 = vpack.c.b16 %v2313, %v2309
    %v2458 = vpack.c.b16 %v2314, %v2310
    %v2459 = vpack.c.b16 %v2315, %v2311
    %v2460 = vpack.c.b16 %v2320, %v2316
    %v2461 = vpack.c.b16 %v2321, %v2317
    %v2462 = vpack.c.b16 %v2322, %v2318
    %v2463 = vpack.c.b16 %v2323, %v2319
    %v2464 = vpack.c.b16 %v2328, %v2324
    %v2465 = vpack.c.b16 %v2329, %v2325
    %v2466 = vpack.c.b16 %v2330, %v2326
    %v2467 = vpack.c.b16 %v2331, %v2327
    %v2468 = vpack.c.b16 %v2336, %v2332
    %v2469 = vpack.c.b16 %v2337, %v2333
    %v2470 = vpack.c.b16 %v2338, %v2334
    %v2471 = vpack.c.b16 %v2339, %v2335
    %v2472 = vpack.c.b16 %v2344, %v2340
    %v2473 = vpack.c.b16 %v2345, %v2341
    %v2474 = vpack.c.b16 %v2346, %v2342
    %v2475 = vpack.c.b16 %v2347, %v2343
    %v2476 = vpack.c.b16 %v2352, %v2348
    %v2477 = vpack.c.b16 %v2353, %v2349
    %v2478 = vpack.c.b16 %v2354, %v2350
    %v2479 = vpack.c.b16 %v2355, %v2351
    %v2480 = vpack.c.b16 %v2360, %v2356
    %v2481 = vpack.c.b16 %v2361, %v2357
    %v2482 = vpack.c.b16 %v2362, %v2358
    %v2483 = vpack.c.b16 %v2363, %v2359
    %v2484 = vpack.c.b16 %v2368, %v2364
    %v2485 = vpack.c.b16 %v2369, %v2365
    %v2486 = vpack.c.b16 %v2370, %v2366
    %v2487 = vpack.c.b16 %v2371, %v2367
    %v2488 = vpack.c.b16 %v2376, %v2372
    %v2489 = vpack.c.b16 %v2377, %v2373
    %v2490 = vpack.c.b16 %v2378, %v2374
    %v2491 = vpack.c.b16 %v2379, %v2375
    %v2492 = vpack.c.b16 %v2384, %v2380
    %v2493 = vpack.c.b16 %v2385, %v2381
    %v2494 = vpack.c.b16 %v2386, %v2382
    %v2495 = vpack.c.b16 %v2387, %v2383
    %v2496 = vpack.c.b16 %v2392, %v2388
    %v2497 = vpack.c.b16 %v2393, %v2389
    %v2498 = vpack.c.b16 %v2394, %v2390
    %v2499 = vpack.c.b16 %v2395, %v2391
    %v2500 = vpack.c.b16 %v2400, %v2396
    %v2501 = vpack.c.b16 %v2401, %v2397
    %v2502 = vpack.c.b16 %v2402, %v2398
    %v2503 = vpack.c.b16 %v2403, %v2399
    %v2504 = vpack.c.b16 %v2408, %v2404
    %v2505 = vpack.c.b16 %v2409, %v2405
    %v2506 = vpack.c.b16 %v2410, %v2406
    %v2507 = vpack.c.b16 %v2411, %v2407
    %2604 = vmatprep.subr.bf16.mxu0 %v2413
    %2605 = vmatpush1.bf16.msra.mxu0 %v2412
    %2606 = vmatprep.subr.bf16.mxu0 %v2417
    %2607 = vmatpush1.bf16.msra.mxu0 %v2416
    %2608 = vmatprep.subr.bf16.mxu0 %v2421
    %2609 = vmatpush1.bf16.msra.mxu0 %v2420
    %2610 = vmatprep.subr.bf16.mxu0 %v2425
    %2611 = vmatpush1.bf16.msra.mxu0 %v2424
    %2612 = vmatprep.subr.bf16.mxu0 %v2429
    %2613 = vmatpush1.bf16.msra.mxu0 %v2428
    %2614 = vmatprep.subr.bf16.mxu0 %v2433
    %2615 = vmatpush1.bf16.msra.mxu0 %v2432
    %2616 = vmatprep.subr.bf16.mxu0 %v2437
    %2617 = vmatpush1.bf16.msra.mxu0 %v2436
    %2618 = vmatprep.subr.bf16.mxu0 %v2441
    %2619 = vmatpush1.bf16.msra.mxu0 %v2440
    %2620 = vmatprep.subr.bf16.mxu0 %v2445
    %2621 = vmatpush1.bf16.msra.mxu0 %v2444
    %2622 = vmatprep.subr.bf16.mxu0 %v2449
    %2623 = vmatpush1.bf16.msra.mxu0 %v2448
    %2624 = vmatprep.subr.bf16.mxu0 %v2453
    %2625 = vmatpush1.bf16.msra.mxu0 %v2452
    %2626 = vmatprep.subr.bf16.mxu0 %v2457
    %2627 = vmatpush1.bf16.msra.mxu0 %v2456
    %2628 = vmatprep.subr.bf16.mxu0 %v2461
    %2629 = vmatpush1.bf16.msra.mxu0 %v2460
    %2630 = vmatprep.subr.bf16.mxu0 %v2465
    %2631 = vmatpush1.bf16.msra.mxu0 %v2464
    %2632 = vmatprep.subr.bf16.mxu0 %v2469
    %2633 = vmatpush1.bf16.msra.mxu0 %v2468
    %2634 = vmatprep.subr.bf16.mxu0 %v2473
    %2635 = vmatpush1.bf16.msra.mxu0 %v2472
    %2636 = vmatprep.mubr.bf16.mxu0 %v2119
    %2637 = vmatmul.mubr.bf16.gmra.mrb[0].mxu0 %v2112
    %v2638 = vpop.f32.mrb[0].mxu0
    %v2639 = vadd.f32 0.0, %v2638
    %v2640 = vpop.f32.mrb[0].mxu0
    %v2641 = vadd.f32 0.0, %v2640
    %v2642 = vpop.f32.mrb[0].mxu0
    %v2643 = vpop.f32.mrb[0].mxu0
    %2644 = vdwg.mxu0
    %2645 = vmatprep.subr.bf16.mxu0 %v2477
    %2646 = vmatpush1.bf16.msra.mxu0 %v2476
    %2647 = vmatprep.subr.bf16.mxu0 %v2481
    %2648 = vmatpush1.bf16.msra.mxu0 %v2480
    %2649 = vmatprep.subr.bf16.mxu0 %v2485
    %2650 = vmatpush1.bf16.msra.mxu0 %v2484
    %2651 = vmatprep.subr.bf16.mxu0 %v2489
    %2652 = vmatpush1.bf16.msra.mxu0 %v2488
    %2653 = vmatprep.subr.bf16.mxu0 %v2493
    %2654 = vmatpush1.bf16.msra.mxu0 %v2492
    %2655 = vmatprep.subr.bf16.mxu0 %v2497
    %2656 = vmatpush1.bf16.msra.mxu0 %v2496
    %2657 = vmatprep.subr.bf16.mxu0 %v2501
    %2658 = vmatpush1.bf16.msra.mxu0 %v2500
    %2659 = vmatprep.subr.bf16.mxu0 %v2505
    %2660 = vmatpush1.bf16.msra.mxu0 %v2504
    %2661 = vmatprep.subr.bf16.mxu0 0
    %2662 = vmatpush1.bf16.msra.mxu0 0
    %2663 = vmatprep.subr.bf16.mxu0 0
    %2664 = vmatpush1.bf16.msra.mxu0 0
    %2665 = vmatprep.subr.bf16.mxu0 0
    %2666 = vmatpush1.bf16.msra.mxu0 0
    %2667 = vmatprep.subr.bf16.mxu0 0
    %2668 = vmatpush1.bf16.msra.mxu0 0
    %2669 = vmatprep.subr.bf16.mxu0 0
    %2670 = vmatpush1.bf16.msra.mxu0 0
    %2671 = vmatprep.subr.bf16.mxu0 0
    %2672 = vmatpush1.bf16.msra.mxu0 0
    %2673 = vmatprep.subr.bf16.mxu0 0
    %2674 = vmatpush1.bf16.msra.mxu0 0
    %2675 = vmatprep.subr.bf16.mxu0 0
    %2676 = vmatpush1.bf16.msra.mxu0 0
    %2677 = vmatprep.mubr.bf16.mxu0 0
    %2678 = vmatmul.mubr.bf16.gmra.mrb[0].mxu0 %v2120
    %v2679 = vpop.f32.mrb[0].mxu0
    %v2680 = vadd.f32 %v2639, %v2679
    %v2681 = vpop.f32.mrb[0].mxu0
    %v2682 = vadd.f32 %v2641, %v2681
    %v2683 = vpop.f32.mrb[0].mxu0
    %v2684 = vpop.f32.mrb[0].mxu0
    %2685 = vdwg.mxu0
    %2686 = vmatprep.subr.bf16.mxu0 %v2415
    %2687 = vmatpush1.bf16.msra.mxu0 %v2414
    %2688 = vmatprep.subr.bf16.mxu0 %v2419
    %2689 = vmatpush1.bf16.msra.mxu0 %v2418
    %2690 = vmatprep.subr.bf16.mxu0 %v2423
    %2691 = vmatpush1.bf16.msra.mxu0 %v2422
    %2692 = vmatprep.subr.bf16.mxu0 %v2427
    %2693 = vmatpush1.bf16.msra.mxu0 %v2426
    %2694 = vmatprep.subr.bf16.mxu0 %v2431
    %2695 = vmatpush1.bf16.msra.mxu0 %v2430
    %2696 = vmatprep.subr.bf16.mxu0 %v2435
    %2697 = vmatpush1.bf16.msra.mxu0 %v2434
    %2698 = vmatprep.subr.bf16.mxu0 %v2439
    %2699 = vmatpush1.bf16.msra.mxu0 %v2438
    %2700 = vmatprep.subr.bf16.mxu0 %v2443
    %2701 = vmatpush1.bf16.msra.mxu0 %v2442
    %2702 = vmatprep.subr.bf16.mxu0 %v2447
    %2703 = vmatpush1.bf16.msra.mxu0 %v2446
    %2704 = vmatprep.subr.bf16.mxu0 %v2451
    %2705 = vmatpush1.bf16.msra.mxu0 %v2450
    %2706 = vmatprep.subr.bf16.mxu0 %v2455
    %2707 = vmatpush1.bf16.msra.mxu0 %v2454
    %2708 = vmatprep.subr.bf16.mxu0 %v2459
    %2709 = vmatpush1.bf16.msra.mxu0 %v2458
    %2710 = vmatprep.subr.bf16.mxu0 %v2463
    %2711 = vmatpush1.bf16.msra.mxu0 %v2462
    %2712 = vmatprep.subr.bf16.mxu0 %v2467
    %2713 = vmatpush1.bf16.msra.mxu0 %v2466
    %2714 = vmatprep.subr.bf16.mxu0 %v2471
    %2715 = vmatpush1.bf16.msra.mxu0 %v2470
    %2716 = vmatprep.subr.bf16.mxu0 %v2475
    %2717 = vmatpush1.bf16.msra.mxu0 %v2474
    %2718 = vmatprep.mubr.bf16.mxu0 %v2119
    %2719 = vmatmul.mubr.bf16.gmra.mrb[0].mxu0 %v2112
    %v2720 = vpop.f32.mrb[0].mxu0
    %v2721 = vadd.f32 0.0, %v2720
    %v2722 = vpop.f32.mrb[0].mxu0
    %v2723 = vadd.f32 0.0, %v2722
    %v2724 = vpop.f32.mrb[0].mxu0
    %v2725 = vpop.f32.mrb[0].mxu0
    %2726 = vdwg.mxu0
    %2727 = vmatprep.subr.bf16.mxu0 %v2479
    %2728 = vmatpush1.bf16.msra.mxu0 %v2478
    %2729 = vmatprep.subr.bf16.mxu0 %v2483
    %2730 = vmatpush1.bf16.msra.mxu0 %v2482
    %2731 = vmatprep.subr.bf16.mxu0 %v2487
    %2732 = vmatpush1.bf16.msra.mxu0 %v2486
    %2733 = vmatprep.subr.bf16.mxu0 %v2491
    %2734 = vmatpush1.bf16.msra.mxu0 %v2490
    %2735 = vmatprep.subr.bf16.mxu0 %v2495
    %2736 = vmatpush1.bf16.msra.mxu0 %v2494
    %2737 = vmatprep.subr.bf16.mxu0 %v2499
    %2738 = vmatpush1.bf16.msra.mxu0 %v2498
    %2739 = vmatprep.subr.bf16.mxu0 %v2503
    %2740 = vmatpush1.bf16.msra.mxu0 %v2502
    %2741 = vmatprep.subr.bf16.mxu0 %v2507
    %2742 = vmatpush1.bf16.msra.mxu0 %v2506
    %2743 = vmatprep.subr.bf16.mxu0 0
    %2744 = vmatpush1.bf16.msra.mxu0 0
    %2745 = vmatprep.subr.bf16.mxu0 0
    %2746 = vmatpush1.bf16.msra.mxu0 0
    %2747 = vmatprep.subr.bf16.mxu0 0
    %2748 = vmatpush1.bf16.msra.mxu0 0
    %2749 = vmatprep.subr.bf16.mxu0 0
    %2750 = vmatpush1.bf16.msra.mxu0 0
    %2751 = vmatprep.subr.bf16.mxu0 0
    %2752 = vmatpush1.bf16.msra.mxu0 0
    %2753 = vmatprep.subr.bf16.mxu0 0
    %2754 = vmatpush1.bf16.msra.mxu0 0
    %2755 = vmatprep.subr.bf16.mxu0 0
    %2756 = vmatpush1.bf16.msra.mxu0 0
    %2757 = vmatprep.subr.bf16.mxu0 0
    %2758 = vmatpush1.bf16.msra.mxu0 0
    %2759 = vmatprep.mubr.bf16.mxu0 0
    %2760 = vmatmul.mubr.bf16.gmra.mrb[0].mxu0 %v2120
    %v2761 = vpop.f32.mrb[0].mxu0
    %v2762 = vadd.f32 %v2721, %v2761
    %v2763 = vpop.f32.mrb[0].mxu0
    %v2764 = vadd.f32 %v2723, %v2763
    %v2765 = vpop.f32.mrb[0].mxu0
    %v2766 = vpop.f32.mrb[0].mxu0
    %2767 = vdwg.mxu0
    %v2768 = vadd.f32 %v1825, %v2680
    %v2769 = vadd.f32 %v1827, %v2682
    %v2770 = vadd.f32 %v1907, %v2762
    %v2771 = vadd.f32 %v1909, %v2764
    %v2772 = vld [vmem:[%s2] sm:$0xf]
    %v2774 = vlaneseq
    %v2775 = vshrl.u32 %v2774, 7
    %v2776 = vsub.s32 0, %v2775
    %v2777 = vrot.slane %v2772, %v2776
    %v2778 = vlaneseq
    %v2779 = vshrl.u32 %v2778, 7
    %v2780 = vsub.s32 1, %v2779
    %v2781 = vrot.slane %v2772, %v2780
    %v2782 = vlaneseq
    %v2783 = vshrl.u32 %v2782, 7
    %v2784 = vsub.s32 2, %v2783
    %v2785 = vrot.slane %v2772, %v2784
    %v2786 = vlaneseq
    %v2787 = vshrl.u32 %v2786, 7
    %v2788 = vsub.s32 3, %v2787
    %v2789 = vrot.slane %v2772, %v2788
    %v2794 = vadd.f32 %v2768, %v2777
    %v2795 = vadd.f32 %v2769, %v2781
    %v2796 = vadd.f32 %v2770, %v2785
    %v2797 = vadd.f32 %v2771, %v2789
    %v2798 = vmax.f32 %v2794, 0.0
    %v2799 = vmax.f32 %v2795, 0.0
    %v2800 = vmax.f32 %v2796, 0.0
    %v2801 = vmax.f32 %v2797, 0.0
    %v2806 = vcombine.low %v2798, %v2799
    %v2807 = vcombine.high %v2798, %v2799
    %v2808 = vcombine.low %v2800, %v2801
    %v2809 = vcombine.high %v2800, %v2801
    %v2811 = vunpack.c.l.s4 1983009808
    %v2812 = vunpack.c.0.s8 %v2811
    %v2813 = vlaneseq
    %v2814 = vshrl.u32 %v2813, 7
    %v2815 = vsub.s32 %v2812, %v2814
    %v2816 = vrot.slane %v2806, %v2815
    %v2818 = vunpack.c.l.s4 1983009808
    %v2819 = vunpack.c.0.s8 %v2818
    %v2820 = vlaneseq
    %v2821 = vshrl.u32 %v2820, 7
    %v2822 = vsub.s32 %v2819, %v2821
    %v2823 = vrot.slane %v2807, %v2822
    %v2825 = vunpack.c.l.s4 1983009808
    %v2826 = vunpack.c.0.s8 %v2825
    %v2827 = vlaneseq
    %v2828 = vshrl.u32 %v2827, 7
    %v2829 = vsub.s32 %v2826, %v2828
    %v2830 = vrot.slane %v2808, %v2829
    %v2832 = vunpack.c.l.s4 1983009808
    %v2833 = vunpack.c.0.s8 %v2832
    %v2834 = vlaneseq
    %v2835 = vshrl.u32 %v2834, 7
    %v2836 = vsub.s32 %v2833, %v2835
    %v2837 = vrot.slane %v2809, %v2836
    %v2838 = vcombine.low %v2816, %v2830
    %v2839 = vcombine.high %v2816, %v2830
    %v2840 = vcombine.low %v2823, %v2837
    %v2841 = vcombine.high %v2823, %v2837
    %v2846 = vrot.slane %v2838, 7
    %v2847 = vrot.slane %v2846, 2
    %v2848 = vrot.slane %v2840, 7
    %v2849 = vrot.slane %v2848, 2
    %v2852 = vmax.f32 %v2838, %v2847
    %v2853 = vmax.f32 %v2840, %v2849
    %v2854 = vrot.slane %v2839, 7
    %v2855 = vrot.slane %v2854, 2
    %v2856 = vrot.slane %v2841, 7
    %v2857 = vrot.slane %v2856, 2
    %v2860 = vmax.f32 %v2839, %v2855
    %v2861 = vmax.f32 %v2841, %v2857
    %v2862 = vmax.f32 %v2852, %v2860
    %v2863 = vmax.f32 %v2853, %v2861
    %v2866 = vlaneseq
    %v2867 = vshrl.u32 %v2866, 7
    %v2868 = vsub.s32 0, %v2867
    %v2869 = vrot.slane %v2862, %v2868
    %v2870 = vlaneseq
    %v2871 = vshrl.u32 %v2870, 7
    %v2872 = vsub.s32 2, %v2871
    %v2873 = vrot.slane %v2862, %v2872
    %v2874 = vlaneseq
    %v2875 = vshrl.u32 %v2874, 7
    %v2876 = vsub.s32 4, %v2875
    %v2877 = vrot.slane %v2862, %v2876
    %v2878 = vlaneseq
    %v2879 = vshrl.u32 %v2878, 7
    %v2880 = vsub.s32 6, %v2879
    %v2881 = vrot.slane %v2862, %v2880
    %v2882 = vlaneseq
    %v2883 = vshrl.u32 %v2882, 7
    %v2884 = vsub.s32 0, %v2883
    %v2885 = vrot.slane %v2863, %v2884
    %v2886 = vlaneseq
    %v2887 = vshrl.u32 %v2886, 7
    %v2888 = vsub.s32 2, %v2887
    %v2889 = vrot.slane %v2863, %v2888
    %v2890 = vlaneseq
    %v2891 = vshrl.u32 %v2890, 7
    %v2892 = vsub.s32 4, %v2891
    %v2893 = vrot.slane %v2863, %v2892
    %v2894 = vlaneseq
    %v2895 = vshrl.u32 %v2894, 7
    %v2896 = vsub.s32 6, %v2895
    %v2897 = vrot.slane %v2863, %v2896
    %v2906 = vpack.c.bf16 %v2869, %v2869
    %v2907 = vpack.c.bf16 %v2873, %v2873
    %v2908 = vpack.c.bf16 %v2877, %v2877
    %v2909 = vpack.c.bf16 %v2881, %v2881
    %v2910 = vpack.c.bf16 %v2885, %v2885
    %v2911 = vpack.c.bf16 %v2889, %v2889
    %v2912 = vpack.c.bf16 %v2893, %v2893
    %v2913 = vpack.c.bf16 %v2897, %v2897
    %v2914 = vld [vmem:[%s3] sm:$0xf]
    %v2915 = vld [vmem:[%s3 + $0x4] sm:$0xf]
    %v2916 = vld [vmem:[%s3 + $0x8] sm:$0xf]
    %v2917 = vld [vmem:[%s3 + $0xc] sm:$0xf]
    %v2918 = vld [vmem:[%s3 + $0x10] sm:$0xf]
    %v2919 = vld [vmem:[%s3 + $0x14] sm:$0xf]
    %v2920 = vld [vmem:[%s3 + $0x18] sm:$0xf]
    %v2921 = vld [vmem:[%s3 + $0x1c] sm:$0xf]
    %v2922 = vld [vmem:[%s3 + $0x20] sm:$0xf]
    %v2923 = vld [vmem:[%s3 + $0x24] sm:$0xf]
    %v2924 = vld [vmem:[%s3 + $0x28] sm:$0xf]
    %v2925 = vld [vmem:[%s3 + $0x2c] sm:$0xf]
    %v2926 = vld [vmem:[%s3 + $0x30] sm:$0xf]
    %v2927 = vld [vmem:[%s3 + $0x34] sm:$0xf]
    %v2928 = vld [vmem:[%s3 + $0x38] sm:$0xf]
    %v2929 = vld [vmem:[%s3 + $0x3c] sm:$0xf]
    %v2930 = vld [vmem:[%s3 + $0x40] sm:$0xf]
    %v2931 = vld [vmem:[%s3 + $0x44] sm:$0xf]
    %v2932 = vld [vmem:[%s3 + $0x48] sm:$0xf]
    %v2933 = vld [vmem:[%s3 + $0x4c] sm:$0xf]
    %v2934 = vld [vmem:[%s3 + $0x50] sm:$0xf]
    %v2935 = vld [vmem:[%s3 + $0x54] sm:$0xf]
    %v2936 = vld [vmem:[%s3 + $0x58] sm:$0xf]
    %v2937 = vld [vmem:[%s3 + $0x5c] sm:$0xf]
    %v2938 = vld [vmem:[%s3 + $0x60] sm:$0xf]
    %v2939 = vld [vmem:[%s3 + $0x64] sm:$0xf]
    %v2940 = vld [vmem:[%s3 + $0x68] sm:$0xf]
    %v2941 = vld [vmem:[%s3 + $0x6c] sm:$0xf]
    %v2942 = vld [vmem:[%s3 + $0x70] sm:$0xf]
    %v2943 = vld [vmem:[%s3 + $0x74] sm:$0xf]
    %v2944 = vld [vmem:[%s3 + $0x78] sm:$0xf]
    %v2945 = vld [vmem:[%s3 + $0x7c] sm:$0xf]
    %v2946 = vld [vmem:[%s3 + $0x80] sm:$0xf]
    %v2947 = vld [vmem:[%s3 + $0x84] sm:$0xf]
    %v2948 = vld [vmem:[%s3 + $0x88] sm:$0xf]
    %v2949 = vld [vmem:[%s3 + $0x8c] sm:$0xf]
    %v2950 = vld [vmem:[%s3 + $0x90] sm:$0xf]
    %v2951 = vld [vmem:[%s3 + $0x94] sm:$0xf]
    %v2952 = vld [vmem:[%s3 + $0x98] sm:$0xf]
    %v2953 = vld [vmem:[%s3 + $0x9c] sm:$0xf]
    %v2954 = vld [vmem:[%s3 + $0xa0] sm:$0xf]
    %v2955 = vld [vmem:[%s3 + $0xa4] sm:$0xf]
    %v2956 = vld [vmem:[%s3 + $0xa8] sm:$0xf]
    %v2957 = vld [vmem:[%s3 + $0xac] sm:$0xf]
    %v2958 = vld [vmem:[%s3 + $0xb0] sm:$0xf]
    %v2959 = vld [vmem:[%s3 + $0xb4] sm:$0xf]
    %v2960 = vld [vmem:[%s3 + $0xb8] sm:$0xf]
    %v2961 = vld [vmem:[%s3 + $0xbc] sm:$0xf]
    %v2962 = vld [vmem:[%s3 + $0xc0] sm:$0xf]
    %v2963 = vld [vmem:[%s3 + $0xc4] sm:$0xf]
    %v2964 = vld [vmem:[%s3 + $0xc8] sm:$0xf]
    %v2965 = vld [vmem:[%s3 + $0xcc] sm:$0xf]
    %v2966 = vld [vmem:[%s3 + $0xd0] sm:$0xf]
    %v2967 = vld [vmem:[%s3 + $0xd4] sm:$0xf]
    %v2968 = vld [vmem:[%s3 + $0xd8] sm:$0xf]
    %v2969 = vld [vmem:[%s3 + $0xdc] sm:$0xf]
    %v2970 = vld [vmem:[%s3 + $0xe0] sm:$0xf]
    %v2971 = vld [vmem:[%s3 + $0xe4] sm:$0xf]
    %v2972 = vld [vmem:[%s3 + $0xe8] sm:$0xf]
    %v2973 = vld [vmem:[%s3 + $0xec] sm:$0xf]
    %v2974 = vld [vmem:[%s3 + $0xf0] sm:$0xf]
    %v2975 = vld [vmem:[%s3 + $0xf4] sm:$0xf]
    %v2976 = vld [vmem:[%s3 + $0xf8] sm:$0xf]
    %v2977 = vld [vmem:[%s3 + $0xfc] sm:$0xf]
    %v2978 = vld [vmem:[%s4] sm:$0x1]
    %v2980 = vlaneseq
    %v2981 = vshrl.u32 %v2980, 7
    %v2982 = vsub.s32 0, %v2981
    %v2983 = vrot.slane %v2978, %v2982
    %v2993 = vunpack.c.l.b16 %v2906
    %v2994 = vunpack.c.l.b16 %v2907
    %v2995 = vunpack.c.l.b16 %v2908
    %v2996 = vunpack.c.l.b16 %v2909
    %v2997 = vunpack.c.l.b16 %v2910
    %v2998 = vunpack.c.l.b16 %v2911
    %v2999 = vunpack.c.l.b16 %v2912
    %v3000 = vunpack.c.l.b16 %v2913
    %v3001 = vrot.slane %v2997, 7
    %vm3002 = vcmask 1041409
    %v3003 = vsel %vm3002, %v3001, %v2993
    %v3004 = vrot.slane %v2998, 7
    %v3005 = vsel %vm3002, %v3004, %v2994
    %v3006 = vrot.slane %v2999, 7
    %v3007 = vsel %vm3002, %v3006, %v2995
    %v3008 = vrot.slane %v3000, 7
    %v3009 = vsel %vm3002, %v3008, %v2996
    %v3010 = vpack.c.b16 %v3003, %v3003
    %v3011 = vpack.c.b16 %v3005, %v3005
    %v3012 = vpack.c.b16 %v3007, %v3007
    %v3013 = vpack.c.b16 %v3009, %v3009
    %v3082 = vunpack.c.l.b16 %v2914
    %v3083 = vunpack.c.l.b16 %v2915
    %v3084 = vunpack.c.l.b16 %v2916
    %v3085 = vunpack.c.l.b16 %v2917
    %v3086 = vunpack.c.l.b16 %v2918
    %v3087 = vunpack.c.l.b16 %v2919
    %v3088 = vunpack.c.l.b16 %v2920
    %v3089 = vunpack.c.l.b16 %v2921
    %v3090 = vunpack.c.l.b16 %v2922
    %v3091 = vunpack.c.l.b16 %v2923
    %v3092 = vunpack.c.l.b16 %v2924
    %v3093 = vunpack.c.l.b16 %v2925
    %v3094 = vunpack.c.l.b16 %v2926
    %v3095 = vunpack.c.l.b16 %v2927
    %v3096 = vunpack.c.l.b16 %v2928
    %v3097 = vunpack.c.l.b16 %v2929
    %v3098 = vunpack.c.l.b16 %v2930
    %v3099 = vunpack.c.l.b16 %v2931
    %v3100 = vunpack.c.l.b16 %v2932
    %v3101 = vunpack.c.l.b16 %v2933
    %v3102 = vunpack.c.l.b16 %v2934
    %v3103 = vunpack.c.l.b16 %v2935
    %v3104 = vunpack.c.l.b16 %v2936
    %v3105 = vunpack.c.l.b16 %v2937
    %v3106 = vunpack.c.l.b16 %v2938
    %v3107 = vunpack.c.l.b16 %v2939
    %v3108 = vunpack.c.l.b16 %v2940
    %v3109 = vunpack.c.l.b16 %v2941
    %v3110 = vunpack.c.l.b16 %v2942
    %v3111 = vunpack.c.l.b16 %v2943
    %v3112 = vunpack.c.l.b16 %v2944
    %v3113 = vunpack.c.l.b16 %v2945
    %v3114 = vunpack.c.l.b16 %v2946
    %v3115 = vunpack.c.l.b16 %v2947
    %v3116 = vunpack.c.l.b16 %v2948
    %v3117 = vunpack.c.l.b16 %v2949
    %v3118 = vunpack.c.l.b16 %v2950
    %v3119 = vunpack.c.l.b16 %v2951
    %v3120 = vunpack.c.l.b16 %v2952
    %v3121 = vunpack.c.l.b16 %v2953
    %v3122 = vunpack.c.l.b16 %v2954
    %v3123 = vunpack.c.l.b16 %v2955
    %v3124 = vunpack.c.l.b16 %v2956
    %v3125 = vunpack.c.l.b16 %v2957
    %v3126 = vunpack.c.l.b16 %v2958
    %v3127 = vunpack.c.l.b16 %v2959
    %v3128 = vunpack.c.l.b16 %v2960
    %v3129 = vunpack.c.l.b16 %v2961
    %v3130 = vunpack.c.l.b16 %v2962
    %v3131 = vunpack.c.l.b16 %v2963
    %v3132 = vunpack.c.l.b16 %v2964
    %v3133 = vunpack.c.l.b16 %v2965
    %v3134 = vunpack.c.l.b16 %v2966
    %v3135 = vunpack.c.l.b16 %v2967
    %v3136 = vunpack.c.l.b16 %v2968
    %v3137 = vunpack.c.l.b16 %v2969
    %v3138 = vunpack.c.l.b16 %v2970
    %v3139 = vunpack.c.l.b16 %v2971
    %v3140 = vunpack.c.l.b16 %v2972
    %v3141 = vunpack.c.l.b16 %v2973
    %v3142 = vunpack.c.l.b16 %v2974
    %v3143 = vunpack.c.l.b16 %v2975
    %v3144 = vunpack.c.l.b16 %v2976
    %v3145 = vunpack.c.l.b16 %v2977
    %v3146 = vpack.c.b16 %v3083, %v3082
    %v3147 = vpack.c.b16 %v3085, %v3084
    %v3148 = vpack.c.b16 %v3087, %v3086
    %v3149 = vpack.c.b16 %v3089, %v3088
    %v3150 = vpack.c.b16 %v3091, %v3090
    %v3151 = vpack.c.b16 %v3093, %v3092
    %v3152 = vpack.c.b16 %v3095, %v3094
    %v3153 = vpack.c.b16 %v3097, %v3096
    %v3154 = vpack.c.b16 %v3099, %v3098
    %v3155 = vpack.c.b16 %v3101, %v3100
    %v3156 = vpack.c.b16 %v3103, %v3102
    %v3157 = vpack.c.b16 %v3105, %v3104
    %v3158 = vpack.c.b16 %v3107, %v3106
    %v3159 = vpack.c.b16 %v3109, %v3108
    %v3160 = vpack.c.b16 %v3111, %v3110
    %v3161 = vpack.c.b16 %v3113, %v3112
    %v3162 = vpack.c.b16 %v3115, %v3114
    %v3163 = vpack.c.b16 %v3117, %v3116
    %v3164 = vpack.c.b16 %v3119, %v3118
    %v3165 = vpack.c.b16 %v3121, %v3120
    %v3166 = vpack.c.b16 %v3123, %v3122
    %v3167 = vpack.c.b16 %v3125, %v3124
    %v3168 = vpack.c.b16 %v3127, %v3126
    %v3169 = vpack.c.b16 %v3129, %v3128
    %v3170 = vpack.c.b16 %v3131, %v3130
    %v3171 = vpack.c.b16 %v3133, %v3132
    %v3172 = vpack.c.b16 %v3135, %v3134
    %v3173 = vpack.c.b16 %v3137, %v3136
    %v3174 = vpack.c.b16 %v3139, %v3138
    %v3175 = vpack.c.b16 %v3141, %v3140
    %v3176 = vpack.c.b16 %v3143, %v3142
    %v3177 = vpack.c.b16 %v3145, %v3144
    %3210 = vmatprep.subr.bf16.mxu0 0
    %3211 = vmatpush1.bf16.msra.mxu0 %v3146
    %3212 = vmatprep.subr.bf16.mxu0 0
    %3213 = vmatpush1.bf16.msra.mxu0 %v3147
    %3214 = vmatprep.subr.bf16.mxu0 0
    %3215 = vmatpush1.bf16.msra.mxu0 %v3148
    %3216 = vmatprep.subr.bf16.mxu0 0
    %3217 = vmatpush1.bf16.msra.mxu0 %v3149
    %3218 = vmatprep.subr.bf16.mxu0 0
    %3219 = vmatpush1.bf16.msra.mxu0 %v3150
    %3220 = vmatprep.subr.bf16.mxu0 0
    %3221 = vmatpush1.bf16.msra.mxu0 %v3151
    %3222 = vmatprep.subr.bf16.mxu0 0
    %3223 = vmatpush1.bf16.msra.mxu0 %v3152
    %3224 = vmatprep.subr.bf16.mxu0 0
    %3225 = vmatpush1.bf16.msra.mxu0 %v3153
    %3226 = vmatprep.subr.bf16.mxu0 0
    %3227 = vmatpush1.bf16.msra.mxu0 %v3154
    %3228 = vmatprep.subr.bf16.mxu0 0
    %3229 = vmatpush1.bf16.msra.mxu0 %v3155
    %3230 = vmatprep.subr.bf16.mxu0 0
    %3231 = vmatpush1.bf16.msra.mxu0 %v3156
    %3232 = vmatprep.subr.bf16.mxu0 0
    %3233 = vmatpush1.bf16.msra.mxu0 %v3157
    %3234 = vmatprep.subr.bf16.mxu0 0
    %3235 = vmatpush1.bf16.msra.mxu0 %v3158
    %3236 = vmatprep.subr.bf16.mxu0 0
    %3237 = vmatpush1.bf16.msra.mxu0 %v3159
    %3238 = vmatprep.subr.bf16.mxu0 0
    %3239 = vmatpush1.bf16.msra.mxu0 %v3160
    %3240 = vmatprep.subr.bf16.mxu0 0
    %3241 = vmatpush1.bf16.msra.mxu0 %v3161
    %3242 = vmatprep.mubr.bf16.mxu0 %v3011
    %3243 = vmatmul.mubr.bf16.gmra.mrb[0].mxu0 %v3010
    %v3244 = vpop.f32.mrb[0].mxu0
    %v3245 = vadd.f32 %v2983, %v3244
    %v3246 = vpop.f32.mrb[0].mxu0
    %v3247 = vpop.f32.mrb[0].mxu0
    %v3248 = vpop.f32.mrb[0].mxu0
    %3249 = vdwg.mxu0
    %3250 = vmatprep.subr.bf16.mxu0 0
    %3251 = vmatpush1.bf16.msra.mxu0 %v3162
    %3252 = vmatprep.subr.bf16.mxu0 0
    %3253 = vmatpush1.bf16.msra.mxu0 %v3163
    %3254 = vmatprep.subr.bf16.mxu0 0
    %3255 = vmatpush1.bf16.msra.mxu0 %v3164
    %3256 = vmatprep.subr.bf16.mxu0 0
    %3257 = vmatpush1.bf16.msra.mxu0 %v3165
    %3258 = vmatprep.subr.bf16.mxu0 0
    %3259 = vmatpush1.bf16.msra.mxu0 %v3166
    %3260 = vmatprep.subr.bf16.mxu0 0
    %3261 = vmatpush1.bf16.msra.mxu0 %v3167
    %3262 = vmatprep.subr.bf16.mxu0 0
    %3263 = vmatpush1.bf16.msra.mxu0 %v3168
    %3264 = vmatprep.subr.bf16.mxu0 0
    %3265 = vmatpush1.bf16.msra.mxu0 %v3169
    %3266 = vmatprep.subr.bf16.mxu0 0
    %3267 = vmatpush1.bf16.msra.mxu0 %v3170
    %3268 = vmatprep.subr.bf16.mxu0 0
    %3269 = vmatpush1.bf16.msra.mxu0 %v3171
    %3270 = vmatprep.subr.bf16.mxu0 0
    %3271 = vmatpush1.bf16.msra.mxu0 %v3172
    %3272 = vmatprep.subr.bf16.mxu0 0
    %3273 = vmatpush1.bf16.msra.mxu0 %v3173
    %3274 = vmatprep.subr.bf16.mxu0 0
    %3275 = vmatpush1.bf16.msra.mxu0 %v3174
    %3276 = vmatprep.subr.bf16.mxu0 0
    %3277 = vmatpush1.bf16.msra.mxu0 %v3175
    %3278 = vmatprep.subr.bf16.mxu0 0
    %3279 = vmatpush1.bf16.msra.mxu0 %v3176
    %3280 = vmatprep.subr.bf16.mxu0 0
    %3281 = vmatpush1.bf16.msra.mxu0 %v3177
    %3282 = vmatprep.mubr.bf16.mxu0 %v3013
    %3283 = vmatmul.mubr.bf16.gmra.mrb[0].mxu0 %v3012
    %v3284 = vpop.f32.mrb[0].mxu0
    %v3285 = vadd.f32 %v3245, %v3284
    %v3286 = vpop.f32.mrb[0].mxu0
    %v3287 = vpop.f32.mrb[0].mxu0
    %v3288 = vpop.f32.mrb[0].mxu0
    %3289 = vdwg.mxu0
    %3290 = vst [vmem:[#allocation3] sm:$0x3] %v3285
    // Predicated region
    $region26: #{vgg_forward.5} parent=1 // pred_check
      _
    $region27: #{vgg_forward.5} parent=1 // pred_check_branch
      %3292 = sbr.rel (0) target = $region29
    $region28: #{vgg_forward.5} parent=1 // pred_region
      %s3294 = ssub.s32 32, 32
      %3295 = vsyncadd [#allocation4], %s3294
      %s3297 = sshll.u32 [#allocation3], 4
      %s3298 = int_to_ptr.vmem [resolvable:$true] %s3297
      %3300 = dma.vmem_to_hbm [thread:$0]  %s3298, 32, %s5, [#allocation4]
    $region29: #{vgg_forward.5} parent=1 // pred_fallthru
      _
    // Predicated region
    $region30: #{vgg_forward.5} parent=1 // pred_check
      _
    $region31: #{vgg_forward.5} parent=1 // pred_check_branch
      %3302 = sbr.rel (0) target = $region33
    $region32: #{vgg_forward.5} parent=1 // pred_region
      %3303 = dma.done [#allocation4], 32
    $region33: #{vgg_forward.5} parent=1 // pred_fallthru
      _
    %3304 = vsyncpa [#allocation4], 1

</llo_original>
